<compile_context>
chip_gen: v6e
topology: v6e:2x2x1
jax: 0.10.0
libtpu: 0.0.40
codegen_flags: <defaults>
</compile_context>

<pallas_src>
import functools

import jax
import jax.numpy as jnp
from jax import lax
from jax.experimental import pallas as pl
from jax.experimental.pallas import tpu as pltpu

BN_EPS = 1e-5
LANES = 128     # channel padding target (TPU lane width)
TILE_H = 8      # row tile (multiple of 8 sublanes)


# --------------------------------------------------------------------------
# helpers
# --------------------------------------------------------------------------
def _pad_lanes(a, target=LANES):
    pads = [(0, 0)] * a.ndim
    pads[-1] = (0, target - a.shape[-1])
    return jnp.pad(a, pads)


def _parallel(n):
    return pltpu.CompilerParams(dimension_semantics=("parallel",) * n)


# --------------------------------------------------------------------------
# kernels
# --------------------------------------------------------------------------
def _norm_kernel(x_ref, xo_ref, mean_ref, std_ref):
    """Per-sample standardization over H*W (torch .std -> unbiased)."""
    _, H, W = x_ref.shape
    x = x_ref[...].astype(jnp.float32)                # (1, H, W)
    n = H * W
    mu = jnp.sum(x) / n
    var = jnp.sum((x - mu) ** 2) / (n - 1)            # unbiased, like torch.std
    sd = jnp.sqrt(var)
    xo_ref[...] = ((x - mu) / sd).astype(xo_ref.dtype)
    mean_ref[...] = jnp.reshape(mu, (1, 1, 1))
    std_ref[...] = jnp.reshape(sd, (1, 1, 1))


def _conv3x3_moments_kernel(xp_ref, w_ref, b_ref, y_ref, mom_ref):
    """3x3 conv (padded input) + bias for one (batch, row-tile) block.

    Also emits per-tile per-channel sum / sum-of-squares so BatchNorm can be
    finished as an exact cross-tile reduction outside the kernel.
      xp_ref : (1, H+2, W+2, C) bf16   (whole padded image of this batch item)
      w_ref  : (9, C, C)        bf16   (tap = 3*dy + dx)
      b_ref  : (1, C)           f32
      y_ref  : (1, TH, W, C)    f32    pre-BN conv output tile
      mom_ref: (1, 1, 8, C)     f32    row 0 = sum, row 1 = sum of squares
    """
    _, th, W, Cout = y_ref.shape
    Cin = xp_ref.shape[-1]
    r = pl.program_id(1)
    row0 = pl.multiple_of(r * th, th)

    acc = jnp.zeros((th * W, Cout), jnp.float32)
    for dy in range(3):
        rows = xp_ref[0, pl.ds(row0 + dy, th), :, :]          # (th, W+2, Cin)
        for dx in range(3):
            patch = rows[:, dx:dx + W, :].reshape(th * W, Cin)
            acc = acc + jnp.dot(patch, w_ref[dy * 3 + dx],
                                preferred_element_type=jnp.float32)
    acc = acc + b_ref[...].astype(jnp.float32)                # (1, C) broadcast

    y_ref[...] = acc.reshape(1, th, W, Cout)

    mom = jnp.concatenate(
        [jnp.sum(acc, axis=0, keepdims=True),
         jnp.sum(acc * acc, axis=0, keepdims=True),
         jnp.zeros((6, Cout), jnp.float32)], axis=0)          # (8, C)
    mom_ref[...] = mom.reshape(1, 1, 8, Cout)


def _bn_relu_kernel(y_ref, scale_ref, shift_ref, o_ref):
    """Elementwise y * scale + shift, ReLU, cast to bf16 (lane-dense)."""
    c = y_ref.shape[-1]
    sc = scale_ref[...].reshape(1, 1, 1, c)
    sh = shift_ref[...].reshape(1, 1, 1, c)
    o_ref[...] = jnp.maximum(y_ref[...] * sc + sh, 0.0).astype(o_ref.dtype)


def _maxpool2_kernel(x_ref, o_ref):
    """2x2 max pool, stride 2 (channels stay on lanes)."""
    _, H, W, C = x_ref.shape
    x = x_ref[0].astype(jnp.float32)                          # (H, W, C)
    a = jnp.max(x.reshape(H // 2, 2, W, C), axis=1)           # pool rows
    z = a.reshape(H // 2, W // 2, 2 * C)                      # pair cols on lanes
    o = jnp.maximum(z[:, :, :C], z[:, :, C:])                 # pool cols
    o_ref[...] = o.reshape(1, H // 2, W // 2, C).astype(o_ref.dtype)


def _convt2x2_kernel(x_ref, w_ref, b_ref, o_ref):
    """ConvTranspose2d(kernel=2, stride=2): four matmuls + interleave."""
    _, h, w, Cin = x_ref.shape
    Cout = o_ref.shape[-1]
    xf = x_ref[0].reshape(h * w, Cin)
    b = b_ref[...].astype(jnp.float32)
    rows = []
    for di in range(2):
        taps = []
        for dj in range(2):
            y = jnp.dot(xf, w_ref[di * 2 + dj],
                        preferred_element_type=jnp.float32) + b
            taps.append(y.reshape(h, w, Cout))
        # (h, w, 2C) -> (h, 2w, C): interleaves dj along the width axis
        rows.append(jnp.concatenate(taps, axis=-1).reshape(h, 2 * w, Cout))
    # interleave di along the height axis (outer dims only -> cheap)
    out = jnp.stack(rows, axis=1).reshape(2 * h, 2 * w, Cout)
    o_ref[...] = out.reshape(1, 2 * h, 2 * w, Cout).astype(o_ref.dtype)


def _concat_channels_kernel(a_ref, b_ref, o_ref, *, ca, cb):
    """torch.cat([a, b], dim=channel) in lane-padded layout."""
    C = o_ref.shape[-1]
    a = a_ref[...].astype(jnp.float32)
    b = b_ref[...].astype(jnp.float32)
    pad = jnp.zeros(a.shape[:-1] + (C - ca - cb,), jnp.float32)
    o_ref[...] = jnp.concatenate([a[..., :ca], b[..., :cb], pad],
                                 axis=-1).astype(o_ref.dtype)


def _conv1x1_unnorm_kernel(x_ref, w_ref, b_ref, mean_ref, std_ref, o_ref):
    """1x1 conv + per-sample unnorm (out * std + mean)."""
    _, H, W, Cin = x_ref.shape
    Cout = o_ref.shape[-1]
    xf = x_ref[0].reshape(H * W, Cin)
    y = jnp.dot(xf, w_ref[...], preferred_element_type=jnp.float32)
    y = y + b_ref[...].astype(jnp.float32)
    y = y * std_ref[0, 0, 0] + mean_ref[0, 0, 0]
    o_ref[...] = y.reshape(1, H, W, Cout)


# --------------------------------------------------------------------------
# pallas_call wrappers
# --------------------------------------------------------------------------
def conv3x3_bn_relu(x, wq, bq, gq, betaq):
    """Conv3x3 + BatchNorm(batch stats) + ReLU on a (N, row-tile) grid.

    x: (N, H, W, LANES) bf16 activation.  Returns bf16 of the same shape.
    """
    N, H, W, C = x.shape
    th = TILE_H if H % TILE_H == 0 else H
    assert H % th == 0
    R = H // th

    # TODO(synk): replace with in-kernel halo handling at production sizes.
    xp = jnp.pad(x, ((0, 0), (1, 1), (1, 1), (0, 0)))

    y, mom = pl.pallas_call(
        _conv3x3_moments_kernel,
        out_shape=(jax.ShapeDtypeStruct((N, H, W, C), jnp.float32),
                   jax.ShapeDtypeStruct((N, R, 8, C), jnp.float32)),
        grid=(N, R),
        in_specs=[
            pl.BlockSpec((1, H + 2, W + 2, C), lambda n, r: (n, 0, 0, 0)),
            pl.BlockSpec((9, C, C), lambda n, r: (0, 0, 0)),
            pl.BlockSpec((1, C), lambda n, r: (0, 0)),
        ],
        out_specs=(pl.BlockSpec((1, th, W, C), lambda n, r: (n, r, 0, 0)),
                   pl.BlockSpec((1, 1, 8, C), lambda n, r: (n, r, 0, 0))),
        compiler_params=_parallel(2),
    )(xp, wq, bq)

    # exact batch statistics from the per-tile moments (tiny (C,) reduction)
    cnt = float(N * H * W)
    s = jnp.sum(mom[:, :, 0, :], axis=(0, 1))
    ss = jnp.sum(mom[:, :, 1, :], axis=(0, 1))
    mean = s / cnt
    var = jnp.maximum(ss / cnt - mean * mean, 0.0)
    inv = lax.rsqrt(var + BN_EPS)
    scale = (gq[0] * inv).reshape(1, C)
    shift = (betaq[0] - gq[0] * mean * inv).reshape(1, C)

    return pl.pallas_call(
        _bn_relu_kernel,
        out_shape=jax.ShapeDtypeStruct((N, H, W, C), jnp.bfloat16),
        grid=(N, R),
        in_specs=[
            pl.BlockSpec((1, th, W, C), lambda n, r: (n, r, 0, 0)),
            pl.BlockSpec((1, C), lambda n, r: (0, 0)),
            pl.BlockSpec((1, C), lambda n, r: (0, 0)),
        ],
        out_specs=pl.BlockSpec((1, th, W, C), lambda n, r: (n, r, 0, 0)),
        compiler_params=_parallel(2),
    )(y, scale, shift)


def maxpool2(x):
    N, H, W, C = x.shape
    return pl.pallas_call(
        _maxpool2_kernel,
        out_shape=jax.ShapeDtypeStruct((N, H // 2, W // 2, C), x.dtype),
        grid=(N,),
        in_specs=[pl.BlockSpec((1, H, W, C), lambda n: (n, 0, 0, 0))],
        out_specs=pl.BlockSpec((1, H // 2, W // 2, C), lambda n: (n, 0, 0, 0)),
        compiler_params=_parallel(1),
    )(x)


def convt2x2(x, wq, bq):
    N, h, w, C = x.shape
    return pl.pallas_call(
        _convt2x2_kernel,
        out_shape=jax.ShapeDtypeStruct((N, 2 * h, 2 * w, C), jnp.bfloat16),
        grid=(N,),
        in_specs=[
            pl.BlockSpec((1, h, w, C), lambda n: (n, 0, 0, 0)),
            pl.BlockSpec((4, C, C), lambda n: (0, 0, 0)),
            pl.BlockSpec((1, C), lambda n: (0, 0)),
        ],
        out_specs=pl.BlockSpec((1, 2 * h, 2 * w, C), lambda n: (n, 0, 0, 0)),
        compiler_params=_parallel(1),
    )(x, wq, bq)


def concat_channels(a, b, ca, cb):
    N, H, W, C = a.shape
    kern = functools.partial(_concat_channels_kernel, ca=ca, cb=cb)
    return pl.pallas_call(
        kern,
        out_shape=jax.ShapeDtypeStruct((N, H, W, C), jnp.bfloat16),
        grid=(N,),
        in_specs=[pl.BlockSpec((1, H, W, C), lambda n: (n, 0, 0, 0)),
                  pl.BlockSpec((1, H, W, C), lambda n: (n, 0, 0, 0))],
        out_specs=pl.BlockSpec((1, H, W, C), lambda n: (n, 0, 0, 0)),
        compiler_params=_parallel(1),
    )(a, b)


def conv1x1_unnorm(x, wq, bq, mean, std):
    N, H, W, C = x.shape
    return pl.pallas_call(
        _conv1x1_unnorm_kernel,
        out_shape=jax.ShapeDtypeStruct((N, H, W, C), jnp.float32),
        grid=(N,),
        in_specs=[
            pl.BlockSpec((1, H, W, C), lambda n: (n, 0, 0, 0)),
            pl.BlockSpec((C, C), lambda n: (0, 0)),
            pl.BlockSpec((1, C), lambda n: (0, 0)),
            pl.BlockSpec((1, 1, 1), lambda n: (n, 0, 0)),
            pl.BlockSpec((1, 1, 1), lambda n: (n, 0, 0)),
        ],
        out_specs=pl.BlockSpec((1, H, W, C), lambda n: (n, 0, 0, 0)),
        compiler_params=_parallel(1),
    )(x, wq, bq, mean, std)


# --------------------------------------------------------------------------
# full UNet forward
# --------------------------------------------------------------------------
def unet_forward(x, kp):
    """x: (B, H, W) f32.  Returns (B, H, W) f32 (out_chans = 1, squeezed)."""
    B, H, W = x.shape

    xn, mean, std = pl.pallas_call(
        _norm_kernel,
        out_shape=(jax.ShapeDtypeStruct((B, H, W), jnp.bfloat16),
                   jax.ShapeDtypeStruct((B, 1, 1), jnp.float32),
                   jax.ShapeDtypeStruct((B, 1, 1), jnp.float32)),
        grid=(B,),
        in_specs=[pl.BlockSpec((1, H, W), lambda b: (b, 0, 0))],
        out_specs=(pl.BlockSpec((1, H, W), lambda b: (b, 0, 0)),
                   pl.BlockSpec((1, 1, 1), lambda b: (b, 0, 0)),
                   pl.BlockSpec((1, 1, 1), lambda b: (b, 0, 0))),
        compiler_params=_parallel(1),
    )(x.astype(jnp.float32))

    # unsqueeze(1): embed as a 1-channel NHWC activation, lane-padded to 128
    x0 = _pad_lanes(xn[..., None])

    # first_block: ConvBlock(1 -> 2)
    d1 = conv3x3_bn_relu(x0, *kp["fb1"])
    d1 = conv3x3_bn_relu(d1, *kp["fb2"])

    # down1: ConvBlock(2 -> 3 -> 4) + MaxPool2d(2)
    m = conv3x3_bn_relu(d1, *kp["d1a"])
    m = conv3x3_bn_relu(m, *kp["d1b"])
    m0 = maxpool2(m)

    # up1: ConvTranspose2d(4 -> 2, k=2, s=2), cat([d1, up]), ConvBlock(4 -> 2)
    up = convt2x2(m0, kp["up_w"], kp["up_b"])
    cat = concat_channels(d1, up, ca=2, cb=2)
    u = conv3x3_bn_relu(cat, *kp["u1a"])
    u = conv3x3_bn_relu(u, *kp["u1b"])

    # last_block: Conv2d(2 -> 1, kernel=1), fused with unnorm; squeeze(1)
    y = conv1x1_unnorm(u, kp["last_w"], kp["last_b"], mean, std)
    return y[..., 0]


# --------------------------------------------------------------------------
# parameters
# --------------------------------------------------------------------------
def init_unet_params(key, in_chans=1, out_chans=1):
    ks = jax.random.split(key, 8)

    def conv(k, cin, cout, kh):
        k1, k2 = jax.random.split(k)
        w = jax.random.normal(k1, (kh, kh, cin, cout), jnp.float32) / jnp.sqrt(
            float(cin * kh * kh))
        b = 0.1 * jax.random.normal(k2, (cout,), jnp.float32)
        return w, b

    p = {}
    p["fb1_w"], p["fb1_b"] = conv(ks[0], in_chans, 2, 3)
    p["fb2_w"], p["fb2_b"] = conv(ks[1], 2, 2, 3)
    p["d1a_w"], p["d1a_b"] = conv(ks[2], 2, 3, 3)
    p["d1b_w"], p["d1b_b"] = conv(ks[3], 3, 4, 3)
    p["up_w"], p["up_b"] = conv(ks[4], 4, 2, 2)          # (kh, kw, cin, cout)
    p["u1a_w"], p["u1a_b"] = conv(ks[5], 4, 2, 3)
    p["u1b_w"], p["u1b_b"] = conv(ks[6], 2, 2, 3)
    k1, k2 = jax.random.split(ks[7])
    p["last_w"] = jax.random.normal(k1, (2, out_chans), jnp.float32) / jnp.sqrt(2.0)
    p["last_b"] = 0.1 * jax.random.normal(k2, (out_chans,), jnp.float32)
    # BatchNorm2d affine params (torch defaults: gamma=1, beta=0)
    for name, c in [("fb1", 2), ("fb2", 2), ("d1a", 3), ("d1b", 4),
                    ("u1a", 2), ("u1b", 2)]:
        p[name + "_g"] = jnp.ones((c,), jnp.float32)
        p[name + "_be"] = jnp.zeros((c,), jnp.float32)
    return p


def _pack_conv3x3(w, b, g, be):
    _, _, cin, cout = w.shape
    wq = jnp.zeros((3, 3, LANES, LANES), jnp.float32).at[:, :, :cin, :cout].set(w)
    wq = wq.reshape(9, LANES, LANES).astype(jnp.bfloat16)
    bq = jnp.zeros((1, LANES), jnp.float32).at[0, :cout].set(b)
    gq = jnp.zeros((1, LANES), jnp.float32).at[0, :cout].set(g)
    beq = jnp.zeros((1, LANES), jnp.float32).at[0, :cout].set(be)
    return wq, bq, gq, beq


def pack_params(p):
    kp = {}
    for name in ["fb1", "fb2", "d1a", "d1b", "u1a", "u1b"]:
        kp[name] = _pack_conv3x3(p[name + "_w"], p[name + "_b"],
                                 p[name + "_g"], p[name + "_be"])
    cin, cout = 4, 2
    wq = jnp.zeros((2, 2, LANES, LANES), jnp.float32)
    wq = wq.at[:, :, :cin, :cout].set(p["up_w"])
    kp["up_w"] = wq.reshape(4, LANES, LANES).astype(jnp.bfloat16)
    kp["up_b"] = jnp.zeros((1, LANES), jnp.float32).at[0, :cout].set(p["up_b"])
    cin, cout = p["last_w"].shape
    kp["last_w"] = (jnp.zeros((LANES, LANES), jnp.float32)
                    .at[:cin, :cout].set(p["last_w"]).astype(jnp.bfloat16))
    kp["last_b"] = jnp.zeros((1, LANES), jnp.float32).at[0, :cout].set(p["last_b"])
    return kp


# --------------------------------------------------------------------------
# pure-JAX reference (mirrors the bf16-in / f32-accumulate dtype policy)
# --------------------------------------------------------------------------
def _ref_conv_bn_relu(x, w, b, g, be):
    y = lax.conv_general_dilated(
        x.astype(jnp.bfloat16), w.astype(jnp.bfloat16), (1, 1),
        ((1, 1), (1, 1)), dimension_numbers=("NHWC", "HWIO", "NHWC"),
        preferred_element_type=jnp.float32)
    y = y + b.reshape(1, 1, 1, -1)
    cnt = float(y.shape[0] * y.shape[1] * y.shape[2])
    mean = jnp.sum(y, axis=(0, 1, 2)) / cnt
    var = jnp.maximum(jnp.sum(y * y, axis=(0, 1, 2)) / cnt - mean * mean, 0.0)
    inv = lax.rsqrt(var + BN_EPS)
    y = (y - mean.reshape(1, 1, 1, -1)) * (g * inv).reshape(1, 1, 1, -1)
    y = y + be.reshape(1, 1, 1, -1)
    return jnp.maximum(y, 0.0).astype(jnp.bfloat16)


def _ref_maxpool2(x):
    N, H, W, C = x.shape
    return jnp.max(x.reshape(N, H // 2, 2, W // 2, 2, C), axis=(2, 4))


def _ref_convt2x2(x, w, b):
    y = jnp.einsum("nhwc,ijcd->nhiwjd", x.astype(jnp.bfloat16),
                   w.astype(jnp.bfloat16), preferred_element_type=jnp.float32)
    N, h, _, w_, _, cout = y.shape
    return y.reshape(N, 2 * h, 2 * w_, cout) + b.reshape(1, 1, 1, -1)


def unet_reference(x, p):
    B, H, W = x.shape
    x = x.astype(jnp.float32)
    mu = jnp.mean(x.reshape(B, -1), axis=1).reshape(B, 1, 1)
    sd = jnp.std(x.reshape(B, -1), axis=1, ddof=1).reshape(B, 1, 1)
    xn = ((x - mu) / sd).astype(jnp.bfloat16)[..., None]
    d1 = _ref_conv_bn_relu(xn, p["fb1_w"], p["fb1_b"], p["fb1_g"], p["fb1_be"])
    d1 = _ref_conv_bn_relu(d1, p["fb2_w"], p["fb2_b"], p["fb2_g"], p["fb2_be"])
    m = _ref_conv_bn_relu(d1, p["d1a_w"], p["d1a_b"], p["d1a_g"], p["d1a_be"])
    m = _ref_conv_bn_relu(m, p["d1b_w"], p["d1b_b"], p["d1b_g"], p["d1b_be"])
    m0 = _ref_maxpool2(m)
    up = _ref_convt2x2(m0, p["up_w"], p["up_b"]).astype(jnp.bfloat16)
    cat = jnp.concatenate([d1, up], axis=-1)
    u = _ref_conv_bn_relu(cat, p["u1a_w"], p["u1a_b"], p["u1a_g"], p["u1a_be"])
    u = _ref_conv_bn_relu(u, p["u1b_w"], p["u1b_b"], p["u1b_g"], p["u1b_be"])
    y = jnp.einsum("nhwc,cd->nhwd", u.astype(jnp.bfloat16),
                   p["last_w"].astype(jnp.bfloat16),
                   preferred_element_type=jnp.float32)
    y = y + p["last_b"].reshape(1, 1, 1, -1)
    return y[..., 0] * sd + mu


# --------------------------------------------------------------------------
if __name__ == "__main__":
    key = jax.random.PRNGKey(0)
    kx, kp = jax.random.split(key)

    B, H, W = 2, 16, 16
    x = jax.random.normal(kx, (B, H, W), jnp.float32)  # Unet.forward input (b, h, w)

    raw = init_unet_params(kp, in_chans=1, out_chans=1)
    packed = pack_params(raw)

    fwd = jax.jit(unet_forward)
    out = jax.block_until_ready(fwd(x, packed))
    assert out.shape == (B, H, W), out.shape
    assert bool(jnp.all(jnp.isfinite(out)))

    ref = jax.block_until_ready(unet_reference(x, raw))
    err = float(jnp.max(jnp.abs(out - ref)))
    assert jnp.allclose(out, ref, rtol=2e-2, atol=2e-2), err

    print("KERNEL_OK")
</pallas_src>

<mosaic_0001>
module attributes {stable_mosaic.version = 11 : i64} {
  func.func @_conv3x3_moments_kernel(%arg0: i32, %arg1: i32, %arg2: memref<1x18x18x128xbf16, #tpu.memory_space<vmem>>, %arg3: memref<9x128x128xbf16, #tpu.memory_space<vmem>>, %arg4: memref<1x128xf32, #tpu.memory_space<vmem>>, %arg5: memref<1x8x16x128xf32, #tpu.memory_space<vmem>>, %arg6: memref<1x1x8x128xf32, #tpu.memory_space<vmem>>) attributes {dimension_semantics = [#tpu.dimension_semantics<parallel>, #tpu.dimension_semantics<parallel>], iteration_bounds = array<i64: 2, 2>, scalar_prefetch = 0 : i64, scratch_operands = 0 : i64, tpu.core_type = #tpu.core_type<tc>, window_params = [{transform_indices = @transform_0, window_bounds = array<i64: 1, 18, 18, 128>}, {pipeline_mode = #tpu.pipeline_mode<synchronous>, transform_indices = @transform_1, window_bounds = array<i64: 9, 128, 128>}, {pipeline_mode = #tpu.pipeline_mode<synchronous>, transform_indices = @transform_2, window_bounds = array<i64: 1, 128>}, {transform_indices = @transform_3, window_bounds = array<i64: 1, 8, 16, 128>}, {transform_indices = @transform_4, window_bounds = array<i64: 1, 1, 8, 128>}]} {
    %c8_i32 = arith.constant 8 : i32
    %0 = arith.muli %arg1, %c8_i32 : i32
    %1 = tpu.assume_multiple %0, 8 : i32
    %cst = arith.constant 0.000000e+00 : f32
    %2 = vector.broadcast %cst : f32 to vector<128x128xf32>
    %c0_i32 = arith.constant 0 : i32
    %3 = arith.addi %1, %c0_i32 : i32
    %c0 = arith.constant 0 : index
    %4 = arith.index_cast %3 : i32 to index
    %c0_0 = arith.constant 0 : index
    %c0_1 = arith.constant 0 : index
    %5 = vector.load %arg2[%c0, %4, %c0_0, %c0_1] : memref<1x18x18x128xbf16, #tpu.memory_space<vmem>>, vector<1x8x18x128xbf16>
    %6 = vector.shape_cast %5 : vector<1x8x18x128xbf16> to vector<8x18x128xbf16>
    %7 = vector.extract_strided_slice %6 {offsets = [0, 0, 0], sizes = [8, 16, 128], strides = [1, 1, 1]} : vector<8x18x128xbf16> to vector<8x16x128xbf16>
    %8 = vector.shape_cast %7 : vector<8x16x128xbf16> to vector<128x128xbf16>
    %c0_2 = arith.constant 0 : index
    %c0_3 = arith.constant 0 : index
    %c0_4 = arith.constant 0 : index
    %9 = vector.load %arg3[%c0_2, %c0_3, %c0_4] : memref<9x128x128xbf16, #tpu.memory_space<vmem>>, vector<1x128x128xbf16>
    %10 = vector.shape_cast %9 : vector<1x128x128xbf16> to vector<128x128xbf16>
    %cst_5 = arith.constant dense<0.000000e+00> : vector<128x128xf32>
    %11 = tpu.matmul %8, %10, %cst_5 {dimension_numbers = #tpu.dot_dimension_numbers<[1], [0], [0], [1], [0, 0, 1, 1], [], []>} : vector<128x128xbf16>, vector<128x128xbf16>, vector<128x128xf32> -> vector<128x128xf32>
    %12 = arith.addf %2, %11 : vector<128x128xf32>
    %13 = vector.extract_strided_slice %6 {offsets = [0, 1, 0], sizes = [8, 16, 128], strides = [1, 1, 1]} : vector<8x18x128xbf16> to vector<8x16x128xbf16>
    %14 = vector.shape_cast %13 : vector<8x16x128xbf16> to vector<128x128xbf16>
    %c1 = arith.constant 1 : index
    %c0_6 = arith.constant 0 : index
    %c0_7 = arith.constant 0 : index
    %15 = vector.load %arg3[%c1, %c0_6, %c0_7] : memref<9x128x128xbf16, #tpu.memory_space<vmem>>, vector<1x128x128xbf16>
    %16 = vector.shape_cast %15 : vector<1x128x128xbf16> to vector<128x128xbf16>
    %cst_8 = arith.constant dense<0.000000e+00> : vector<128x128xf32>
    %17 = tpu.matmul %14, %16, %cst_8 {dimension_numbers = #tpu.dot_dimension_numbers<[1], [0], [0], [1], [0, 0, 1, 1], [], []>} : vector<128x128xbf16>, vector<128x128xbf16>, vector<128x128xf32> -> vector<128x128xf32>
    %18 = arith.addf %12, %17 : vector<128x128xf32>
    %19 = vector.extract_strided_slice %6 {offsets = [0, 2, 0], sizes = [8, 16, 128], strides = [1, 1, 1]} : vector<8x18x128xbf16> to vector<8x16x128xbf16>
    %20 = vector.shape_cast %19 : vector<8x16x128xbf16> to vector<128x128xbf16>
    %c2 = arith.constant 2 : index
    %c0_9 = arith.constant 0 : index
    %c0_10 = arith.constant 0 : index
    %21 = vector.load %arg3[%c2, %c0_9, %c0_10] : memref<9x128x128xbf16, #tpu.memory_space<vmem>>, vector<1x128x128xbf16>
    %22 = vector.shape_cast %21 : vector<1x128x128xbf16> to vector<128x128xbf16>
    %cst_11 = arith.constant dense<0.000000e+00> : vector<128x128xf32>
    %23 = tpu.matmul %20, %22, %cst_11 {dimension_numbers = #tpu.dot_dimension_numbers<[1], [0], [0], [1], [0, 0, 1, 1], [], []>} : vector<128x128xbf16>, vector<128x128xbf16>, vector<128x128xf32> -> vector<128x128xf32>
    %24 = arith.addf %18, %23 : vector<128x128xf32>
    %c1_i32 = arith.constant 1 : i32
    %25 = arith.addi %1, %c1_i32 : i32
    %c0_12 = arith.constant 0 : index
    %26 = arith.index_cast %25 : i32 to index
    %c0_13 = arith.constant 0 : index
    %c0_14 = arith.constant 0 : index
    %27 = vector.load %arg2[%c0_12, %26, %c0_13, %c0_14] : memref<1x18x18x128xbf16, #tpu.memory_space<vmem>>, vector<1x8x18x128xbf16>
    %28 = vector.shape_cast %27 : vector<1x8x18x128xbf16> to vector<8x18x128xbf16>
    %29 = vector.extract_strided_slice %28 {offsets = [0, 0, 0], sizes = [8, 16, 128], strides = [1, 1, 1]} : vector<8x18x128xbf16> to vector<8x16x128xbf16>
    %30 = vector.shape_cast %29 : vector<8x16x128xbf16> to vector<128x128xbf16>
    %c3 = arith.constant 3 : index
    %c0_15 = arith.constant 0 : index
    %c0_16 = arith.constant 0 : index
    %31 = vector.load %arg3[%c3, %c0_15, %c0_16] : memref<9x128x128xbf16, #tpu.memory_space<vmem>>, vector<1x128x128xbf16>
    %32 = vector.shape_cast %31 : vector<1x128x128xbf16> to vector<128x128xbf16>
    %cst_17 = arith.constant dense<0.000000e+00> : vector<128x128xf32>
    %33 = tpu.matmul %30, %32, %cst_17 {dimension_numbers = #tpu.dot_dimension_numbers<[1], [0], [0], [1], [0, 0, 1, 1], [], []>} : vector<128x128xbf16>, vector<128x128xbf16>, vector<128x128xf32> -> vector<128x128xf32>
    %34 = arith.addf %24, %33 : vector<128x128xf32>
    %35 = vector.extract_strided_slice %28 {offsets = [0, 1, 0], sizes = [8, 16, 128], strides = [1, 1, 1]} : vector<8x18x128xbf16> to vector<8x16x128xbf16>
    %36 = vector.shape_cast %35 : vector<8x16x128xbf16> to vector<128x128xbf16>
    %c4 = arith.constant 4 : index
    %c0_18 = arith.constant 0 : index
    %c0_19 = arith.constant 0 : index
    %37 = vector.load %arg3[%c4, %c0_18, %c0_19] : memref<9x128x128xbf16, #tpu.memory_space<vmem>>, vector<1x128x128xbf16>
    %38 = vector.shape_cast %37 : vector<1x128x128xbf16> to vector<128x128xbf16>
    %cst_20 = arith.constant dense<0.000000e+00> : vector<128x128xf32>
    %39 = tpu.matmul %36, %38, %cst_20 {dimension_numbers = #tpu.dot_dimension_numbers<[1], [0], [0], [1], [0, 0, 1, 1], [], []>} : vector<128x128xbf16>, vector<128x128xbf16>, vector<128x128xf32> -> vector<128x128xf32>
    %40 = arith.addf %34, %39 : vector<128x128xf32>
    %41 = vector.extract_strided_slice %28 {offsets = [0, 2, 0], sizes = [8, 16, 128], strides = [1, 1, 1]} : vector<8x18x128xbf16> to vector<8x16x128xbf16>
    %42 = vector.shape_cast %41 : vector<8x16x128xbf16> to vector<128x128xbf16>
    %c5 = arith.constant 5 : index
    %c0_21 = arith.constant 0 : index
    %c0_22 = arith.constant 0 : index
    %43 = vector.load %arg3[%c5, %c0_21, %c0_22] : memref<9x128x128xbf16, #tpu.memory_space<vmem>>, vector<1x128x128xbf16>
    %44 = vector.shape_cast %43 : vector<1x128x128xbf16> to vector<128x128xbf16>
    %cst_23 = arith.constant dense<0.000000e+00> : vector<128x128xf32>
    %45 = tpu.matmul %42, %44, %cst_23 {dimension_numbers = #tpu.dot_dimension_numbers<[1], [0], [0], [1], [0, 0, 1, 1], [], []>} : vector<128x128xbf16>, vector<128x128xbf16>, vector<128x128xf32> -> vector<128x128xf32>
    %46 = arith.addf %40, %45 : vector<128x128xf32>
    %c2_i32 = arith.constant 2 : i32
    %47 = arith.addi %1, %c2_i32 : i32
    %c0_24 = arith.constant 0 : index
    %48 = arith.index_cast %47 : i32 to index
    %c0_25 = arith.constant 0 : index
    %c0_26 = arith.constant 0 : index
    %49 = vector.load %arg2[%c0_24, %48, %c0_25, %c0_26] : memref<1x18x18x128xbf16, #tpu.memory_space<vmem>>, vector<1x8x18x128xbf16>
    %50 = vector.shape_cast %49 : vector<1x8x18x128xbf16> to vector<8x18x128xbf16>
    %51 = vector.extract_strided_slice %50 {offsets = [0, 0, 0], sizes = [8, 16, 128], strides = [1, 1, 1]} : vector<8x18x128xbf16> to vector<8x16x128xbf16>
    %52 = vector.shape_cast %51 : vector<8x16x128xbf16> to vector<128x128xbf16>
    %c6 = arith.constant 6 : index
    %c0_27 = arith.constant 0 : index
    %c0_28 = arith.constant 0 : index
    %53 = vector.load %arg3[%c6, %c0_27, %c0_28] : memref<9x128x128xbf16, #tpu.memory_space<vmem>>, vector<1x128x128xbf16>
    %54 = vector.shape_cast %53 : vector<1x128x128xbf16> to vector<128x128xbf16>
    %cst_29 = arith.constant dense<0.000000e+00> : vector<128x128xf32>
    %55 = tpu.matmul %52, %54, %cst_29 {dimension_numbers = #tpu.dot_dimension_numbers<[1], [0], [0], [1], [0, 0, 1, 1], [], []>} : vector<128x128xbf16>, vector<128x128xbf16>, vector<128x128xf32> -> vector<128x128xf32>
    %56 = arith.addf %46, %55 : vector<128x128xf32>
    %57 = vector.extract_strided_slice %50 {offsets = [0, 1, 0], sizes = [8, 16, 128], strides = [1, 1, 1]} : vector<8x18x128xbf16> to vector<8x16x128xbf16>
    %58 = vector.shape_cast %57 : vector<8x16x128xbf16> to vector<128x128xbf16>
    %c7 = arith.constant 7 : index
    %c0_30 = arith.constant 0 : index
    %c0_31 = arith.constant 0 : index
    %59 = vector.load %arg3[%c7, %c0_30, %c0_31] : memref<9x128x128xbf16, #tpu.memory_space<vmem>>, vector<1x128x128xbf16>
    %60 = vector.shape_cast %59 : vector<1x128x128xbf16> to vector<128x128xbf16>
    %cst_32 = arith.constant dense<0.000000e+00> : vector<128x128xf32>
    %61 = tpu.matmul %58, %60, %cst_32 {dimension_numbers = #tpu.dot_dimension_numbers<[1], [0], [0], [1], [0, 0, 1, 1], [], []>} : vector<128x128xbf16>, vector<128x128xbf16>, vector<128x128xf32> -> vector<128x128xf32>
    %62 = arith.addf %56, %61 : vector<128x128xf32>
    %63 = vector.extract_strided_slice %50 {offsets = [0, 2, 0], sizes = [8, 16, 128], strides = [1, 1, 1]} : vector<8x18x128xbf16> to vector<8x16x128xbf16>
    %64 = vector.shape_cast %63 : vector<8x16x128xbf16> to vector<128x128xbf16>
    %c8 = arith.constant 8 : index
    %c0_33 = arith.constant 0 : index
    %c0_34 = arith.constant 0 : index
    %65 = vector.load %arg3[%c8, %c0_33, %c0_34] : memref<9x128x128xbf16, #tpu.memory_space<vmem>>, vector<1x128x128xbf16>
    %66 = vector.shape_cast %65 : vector<1x128x128xbf16> to vector<128x128xbf16>
    %cst_35 = arith.constant dense<0.000000e+00> : vector<128x128xf32>
    %67 = tpu.matmul %64, %66, %cst_35 {dimension_numbers = #tpu.dot_dimension_numbers<[1], [0], [0], [1], [0, 0, 1, 1], [], []>} : vector<128x128xbf16>, vector<128x128xbf16>, vector<128x128xf32> -> vector<128x128xf32>
    %68 = arith.addf %62, %67 : vector<128x128xf32>
    %c0_36 = arith.constant 0 : index
    %c0_37 = arith.constant 0 : index
    %69 = vector.load %arg4[%c0_36, %c0_37] : memref<1x128xf32, #tpu.memory_space<vmem>>, vector<1x128xf32>
    %70 = vector.broadcast %69 : vector<1x128xf32> to vector<128x128xf32>
    %71 = arith.addf %68, %70 : vector<128x128xf32>
    %72 = vector.shape_cast %71 : vector<128x128xf32> to vector<1x8x16x128xf32>
    %c0_38 = arith.constant 0 : index
    %c0_39 = arith.constant 0 : index
    %c0_40 = arith.constant 0 : index
    %c0_41 = arith.constant 0 : index
    %73 = vector.load %arg5[%c0_38, %c0_39, %c0_40, %c0_41] : memref<1x8x16x128xf32, #tpu.memory_space<vmem>>, vector<1x8x16x128xf32>
    tpu.vector_store %arg5[%c0_38, %c0_39, %c0_40, %c0_41], %72 {strides = array<i32>} : memref<1x8x16x128xf32, #tpu.memory_space<vmem>>, vector<1x8x16x128xf32>,
    %cst_42 = arith.constant dense<0.000000e+00> : vector<128xf32>
    %74 = vector.multi_reduction <add>, %71, %cst_42 [0] : vector<128x128xf32> to vector<128xf32>
    %75 = vector.shape_cast %74 : vector<128xf32> to vector<1x128xf32>
    %76 = arith.mulf %71, %71 : vector<128x128xf32>
    %cst_43 = arith.constant dense<0.000000e+00> : vector<128xf32>
    %77 = vector.multi_reduction <add>, %76, %cst_43 [0] : vector<128x128xf32> to vector<128xf32>
    %78 = vector.shape_cast %77 : vector<128xf32> to vector<1x128xf32>
    %cst_44 = arith.constant 0.000000e+00 : f32
    %79 = vector.broadcast %cst_44 : f32 to vector<6x128xf32>
    %80 = tpu.concatenate %75, %78, %79 in 0 : vector<1x128xf32>, vector<1x128xf32>, vector<6x128xf32> -> vector<8x128xf32>
    %81 = vector.shape_cast %80 : vector<8x128xf32> to vector<1x1x8x128xf32>
    %c0_45 = arith.constant 0 : index
    %c0_46 = arith.constant 0 : index
    %c0_47 = arith.constant 0 : index
    %c0_48 = arith.constant 0 : index
    %82 = vector.load %arg6[%c0_45, %c0_46, %c0_47, %c0_48] : memref<1x1x8x128xf32, #tpu.memory_space<vmem>>, vector<1x1x8x128xf32>
    tpu.vector_store %arg6[%c0_45, %c0_46, %c0_47, %c0_48], %81 {strides = array<i32>} : memref<1x1x8x128xf32, #tpu.memory_space<vmem>>, vector<1x1x8x128xf32>,
    return
  }
  func.func @transform_0(%arg0: i32, %arg1: i32) -> (i32, i32, i32, i32) {
    %c0_i32 = arith.constant 0 : i32
    %c0_i32_0 = arith.constant 0 : i32
    %c0_i32_1 = arith.constant 0 : i32
    %c0_i32_2 = arith.constant 0 : i32
    return %arg0, %c0_i32, %c0_i32_0, %c0_i32_1 : i32, i32, i32, i32
  }
  func.func @transform_1(%arg0: i32, %arg1: i32) -> (i32, i32, i32) {
    %c0_i32 = arith.constant 0 : i32
    %c0_i32_0 = arith.constant 0 : i32
    %c0_i32_1 = arith.constant 0 : i32
    %c0_i32_2 = arith.constant 0 : i32
    return %c0_i32, %c0_i32_0, %c0_i32_1 : i32, i32, i32
  }
  func.func @transform_2(%arg0: i32, %arg1: i32) -> (i32, i32) {
    %c0_i32 = arith.constant 0 : i32
    %c0_i32_0 = arith.constant 0 : i32
    %c0_i32_1 = arith.constant 0 : i32
    return %c0_i32, %c0_i32_0 : i32, i32
  }
  func.func @transform_3(%arg0: i32, %arg1: i32) -> (i32, i32, i32, i32) {
    %c0_i32 = arith.constant 0 : i32
    %c0_i32_0 = arith.constant 0 : i32
    %c0_i32_1 = arith.constant 0 : i32
    return %arg0, %arg1, %c0_i32, %c0_i32_0 : i32, i32, i32, i32
  }
  func.func @transform_4(%arg0: i32, %arg1: i32) -> (i32, i32, i32, i32) {
    %c0_i32 = arith.constant 0 : i32
    %c0_i32_0 = arith.constant 0 : i32
    %c0_i32_1 = arith.constant 0 : i32
    return %arg0, %arg1, %c0_i32, %c0_i32_0 : i32, i32, i32, i32
  }
}

module attributes {stable_mosaic.version = 11 : i64} {
  func.func @_norm_kernel(%arg0: i32, %arg1: memref<1x16x16xf32, #tpu.memory_space<vmem>>, %arg2: memref<1x16x16xbf16, #tpu.memory_space<vmem>>, %arg3: memref<1x1x1xf32, #tpu.memory_space<vmem>>, %arg4: memref<1x1x1xf32, #tpu.memory_space<vmem>>) attributes {dimension_semantics = [#tpu.dimension_semantics<parallel>], iteration_bounds = array<i64: 2>, scalar_prefetch = 0 : i64, scratch_operands = 0 : i64, tpu.core_type = #tpu.core_type<tc>, window_params = [{transform_indices = @transform_0, window_bounds = array<i64: 1, 16, 16>}, {transform_indices = @transform_1, window_bounds = array<i64: 1, 16, 16>}, {transform_indices = @transform_2, window_bounds = array<i64: 1, 1, 1>}, {transform_indices = @transform_3, window_bounds = array<i64: 1, 1, 1>}]} {
    %c0 = arith.constant 0 : index
    %c0_0 = arith.constant 0 : index
    %c0_1 = arith.constant 0 : index
    %0 = vector.load %arg1[%c0, %c0_0, %c0_1] : memref<1x16x16xf32, #tpu.memory_space<vmem>>, vector<1x16x16xf32>
    %1 = vector.shape_cast %0 : vector<1x16x16xf32> to vector<1x1x16x16xf32>
    %cst = arith.constant dense<0.000000e+00> : vector<1xf32>
    %2 = vector.multi_reduction <add>, %1, %cst [1, 2, 3] : vector<1x1x16x16xf32> to vector<1xf32>
    %3 = vector.shape_cast %2 : vector<1xf32> to vector<1x1x1x1xf32>
    %4 = vector.extract %3[0, 0, 0, 0] : f32 from vector<1x1x1x1xf32>
    %cst_2 = arith.constant 2.560000e+02 : f32
    %5 = arith.divf %4, %cst_2 : f32
    %6 = vector.broadcast %5 : f32 to vector<1x16x16xf32>
    %7 = arith.subf %0, %6 : vector<1x16x16xf32>
    %8 = arith.mulf %7, %7 : vector<1x16x16xf32>
    %9 = vector.shape_cast %8 : vector<1x16x16xf32> to vector<1x1x16x16xf32>
    %cst_3 = arith.constant dense<0.000000e+00> : vector<1xf32>
    %10 = vector.multi_reduction <add>, %9, %cst_3 [1, 2, 3] : vector<1x1x16x16xf32> to vector<1xf32>
    %11 = vector.shape_cast %10 : vector<1xf32> to vector<1x1x1x1xf32>
    %12 = vector.extract %11[0, 0, 0, 0] : f32 from vector<1x1x1x1xf32>
    %cst_4 = arith.constant 2.550000e+02 : f32
    %13 = arith.divf %12, %cst_4 : f32
    %14 = math.sqrt %13 : f32
    %15 = vector.broadcast %5 : f32 to vector<1x16x16xf32>
    %16 = arith.subf %0, %15 : vector<1x16x16xf32>
    %17 = vector.broadcast %14 : f32 to vector<1x16x16xf32>
    %18 = arith.divf %16, %17 : vector<1x16x16xf32>
    %19 = arith.truncf %18 : vector<1x16x16xf32> to vector<1x16x16xbf16>
    %c0_5 = arith.constant 0 : index
    %c0_6 = arith.constant 0 : index
    %c0_7 = arith.constant 0 : index
    %20 = vector.load %arg2[%c0_5, %c0_6, %c0_7] : memref<1x16x16xbf16, #tpu.memory_space<vmem>>, vector<1x16x16xbf16>
    tpu.vector_store %arg2[%c0_5, %c0_6, %c0_7], %19 {strides = array<i32>} : memref<1x16x16xbf16, #tpu.memory_space<vmem>>, vector<1x16x16xbf16>,
    %21 = vector.broadcast %5 : f32 to vector<1x1x1xf32>
    %c0_8 = arith.constant 0 : index
    %c0_9 = arith.constant 0 : index
    %c0_10 = arith.constant 0 : index
    %22 = vector.load %arg3[%c0_8, %c0_9, %c0_10] : memref<1x1x1xf32, #tpu.memory_space<vmem>>, vector<1x1x1xf32>
    tpu.vector_store %arg3[%c0_8, %c0_9, %c0_10], %21 {strides = array<i32>} : memref<1x1x1xf32, #tpu.memory_space<vmem>>, vector<1x1x1xf32>,
    %23 = vector.broadcast %14 : f32 to vector<1x1x1xf32>
    %c0_11 = arith.constant 0 : index
    %c0_12 = arith.constant 0 : index
    %c0_13 = arith.constant 0 : index
    %24 = vector.load %arg4[%c0_11, %c0_12, %c0_13] : memref<1x1x1xf32, #tpu.memory_space<vmem>>, vector<1x1x1xf32>
    tpu.vector_store %arg4[%c0_11, %c0_12, %c0_13], %23 {strides = array<i32>} : memref<1x1x1xf32, #tpu.memory_space<vmem>>, vector<1x1x1xf32>,
    return
  }
  func.func @transform_0(%arg0: i32) -> (i32, i32, i32) {
    %c0_i32 = arith.constant 0 : i32
    %c0_i32_0 = arith.constant 0 : i32
    %c0_i32_1 = arith.constant 0 : i32
    return %arg0, %c0_i32, %c0_i32_0 : i32, i32, i32
  }
  func.func @transform_1(%arg0: i32) -> (i32, i32, i32) {
    %c0_i32 = arith.constant 0 : i32
    %c0_i32_0 = arith.constant 0 : i32
    %c0_i32_1 = arith.constant 0 : i32
    return %arg0, %c0_i32, %c0_i32_0 : i32, i32, i32
  }
  func.func @transform_2(%arg0: i32) -> (i32, i32, i32) {
    %c0_i32 = arith.constant 0 : i32
    %c0_i32_0 = arith.constant 0 : i32
    %c0_i32_1 = arith.constant 0 : i32
    return %arg0, %c0_i32, %c0_i32_0 : i32, i32, i32
  }
  func.func @transform_3(%arg0: i32) -> (i32, i32, i32) {
    %c0_i32 = arith.constant 0 : i32
    %c0_i32_0 = arith.constant 0 : i32
    %c0_i32_1 = arith.constant 0 : i32
    return %arg0, %c0_i32, %c0_i32_0 : i32, i32, i32
  }
}

module attributes {stable_mosaic.version = 11 : i64} {
  func.func @_bn_relu_kernel(%arg0: i32, %arg1: i32, %arg2: memref<1x8x16x128xf32, #tpu.memory_space<vmem>>, %arg3: memref<1x128xf32, #tpu.memory_space<vmem>>, %arg4: memref<1x128xf32, #tpu.memory_space<vmem>>, %arg5: memref<1x8x16x128xbf16, #tpu.memory_space<vmem>>) attributes {dimension_semantics = [#tpu.dimension_semantics<parallel>, #tpu.dimension_semantics<parallel>], iteration_bounds = array<i64: 2, 2>, scalar_prefetch = 0 : i64, scratch_operands = 0 : i64, tpu.core_type = #tpu.core_type<tc>, window_params = [{transform_indices = @transform_0, window_bounds = array<i64: 1, 8, 16, 128>}, {pipeline_mode = #tpu.pipeline_mode<synchronous>, transform_indices = @transform_1, window_bounds = array<i64: 1, 128>}, {pipeline_mode = #tpu.pipeline_mode<synchronous>, transform_indices = @transform_2, window_bounds = array<i64: 1, 128>}, {transform_indices = @transform_3, window_bounds = array<i64: 1, 8, 16, 128>}]} {
    %c0 = arith.constant 0 : index
    %c0_0 = arith.constant 0 : index
    %0 = vector.load %arg3[%c0, %c0_0] : memref<1x128xf32, #tpu.memory_space<vmem>>, vector<1x128xf32>
    %1 = vector.shape_cast %0 : vector<1x128xf32> to vector<1x1x1x128xf32>
    %c0_1 = arith.constant 0 : index
    %c0_2 = arith.constant 0 : index
    %2 = vector.load %arg4[%c0_1, %c0_2] : memref<1x128xf32, #tpu.memory_space<vmem>>, vector<1x128xf32>
    %3 = vector.shape_cast %2 : vector<1x128xf32> to vector<1x1x1x128xf32>
    %c0_3 = arith.constant 0 : index
    %c0_4 = arith.constant 0 : index
    %c0_5 = arith.constant 0 : index
    %c0_6 = arith.constant 0 : index
    %4 = vector.load %arg2[%c0_3, %c0_4, %c0_5, %c0_6] : memref<1x8x16x128xf32, #tpu.memory_space<vmem>>, vector<1x8x16x128xf32>
    %5 = vector.broadcast %1 : vector<1x1x1x128xf32> to vector<1x8x16x128xf32>
    %6 = arith.mulf %4, %5 : vector<1x8x16x128xf32>
    %7 = vector.broadcast %3 : vector<1x1x1x128xf32> to vector<1x8x16x128xf32>
    %8 = arith.addf %6, %7 : vector<1x8x16x128xf32>
    %cst = arith.constant 0.000000e+00 : f32
    %9 = vector.broadcast %cst : f32 to vector<1x8x16x128xf32>
    %10 = arith.maximumf %8, %9 : vector<1x8x16x128xf32>
    %11 = arith.truncf %10 : vector<1x8x16x128xf32> to vector<1x8x16x128xbf16>
    %c0_7 = arith.constant 0 : index
    %c0_8 = arith.constant 0 : index
    %c0_9 = arith.constant 0 : index
    %c0_10 = arith.constant 0 : index
    %12 = vector.load %arg5[%c0_7, %c0_8, %c0_9, %c0_10] : memref<1x8x16x128xbf16, #tpu.memory_space<vmem>>, vector<1x8x16x128xbf16>
    tpu.vector_store %arg5[%c0_7, %c0_8, %c0_9, %c0_10], %11 {strides = array<i32>} : memref<1x8x16x128xbf16, #tpu.memory_space<vmem>>, vector<1x8x16x128xbf16>,
    return
  }
  func.func @transform_0(%arg0: i32, %arg1: i32) -> (i32, i32, i32, i32) {
    %c0_i32 = arith.constant 0 : i32
    %c0_i32_0 = arith.constant 0 : i32
    %c0_i32_1 = arith.constant 0 : i32
    return %arg0, %arg1, %c0_i32, %c0_i32_0 : i32, i32, i32, i32
  }
  func.func @transform_1(%arg0: i32, %arg1: i32) -> (i32, i32) {
    %c0_i32 = arith.constant 0 : i32
    %c0_i32_0 = arith.constant 0 : i32
    %c0_i32_1 = arith.constant 0 : i32
    return %c0_i32, %c0_i32_0 : i32, i32
  }
  func.func @transform_2(%arg0: i32, %arg1: i32) -> (i32, i32) {
    %c0_i32 = arith.constant 0 : i32
    %c0_i32_0 = arith.constant 0 : i32
    %c0_i32_1 = arith.constant 0 : i32
    return %c0_i32, %c0_i32_0 : i32, i32
  }
  func.func @transform_3(%arg0: i32, %arg1: i32) -> (i32, i32, i32, i32) {
    %c0_i32 = arith.constant 0 : i32
    %c0_i32_0 = arith.constant 0 : i32
    %c0_i32_1 = arith.constant 0 : i32
    return %arg0, %arg1, %c0_i32, %c0_i32_0 : i32, i32, i32, i32
  }
}

module attributes {stable_mosaic.version = 11 : i64} {
  func.func @_convt2x2_kernel(%arg0: i32, %arg1: memref<1x8x8x128xbf16, #tpu.memory_space<vmem>>, %arg2: memref<4x128x128xbf16, #tpu.memory_space<vmem>>, %arg3: memref<1x128xf32, #tpu.memory_space<vmem>>, %arg4: memref<1x16x16x128xbf16, #tpu.memory_space<vmem>>) attributes {dimension_semantics = [#tpu.dimension_semantics<parallel>], iteration_bounds = array<i64: 2>, scalar_prefetch = 0 : i64, scratch_operands = 0 : i64, tpu.core_type = #tpu.core_type<tc>, window_params = [{transform_indices = @transform_0, window_bounds = array<i64: 1, 8, 8, 128>}, {pipeline_mode = #tpu.pipeline_mode<synchronous>, transform_indices = @transform_1, window_bounds = array<i64: 4, 128, 128>}, {pipeline_mode = #tpu.pipeline_mode<synchronous>, transform_indices = @transform_2, window_bounds = array<i64: 1, 128>}, {transform_indices = @transform_3, window_bounds = array<i64: 1, 16, 16, 128>}]} {
    %c0 = arith.constant 0 : index
    %c0_0 = arith.constant 0 : index
    %c0_1 = arith.constant 0 : index
    %c0_2 = arith.constant 0 : index
    %0 = vector.load %arg1[%c0, %c0_0, %c0_1, %c0_2] : memref<1x8x8x128xbf16, #tpu.memory_space<vmem>>, vector<1x8x8x128xbf16>
    %1 = vector.shape_cast %0 : vector<1x8x8x128xbf16> to vector<8x8x128xbf16>
    %2 = vector.shape_cast %1 : vector<8x8x128xbf16> to vector<64x128xbf16>
    %c0_3 = arith.constant 0 : index
    %c0_4 = arith.constant 0 : index
    %3 = vector.load %arg3[%c0_3, %c0_4] : memref<1x128xf32, #tpu.memory_space<vmem>>, vector<1x128xf32>
    %c0_5 = arith.constant 0 : index
    %c0_6 = arith.constant 0 : index
    %c0_7 = arith.constant 0 : index
    %4 = vector.load %arg2[%c0_5, %c0_6, %c0_7] : memref<4x128x128xbf16, #tpu.memory_space<vmem>>, vector<1x128x128xbf16>
    %5 = vector.shape_cast %4 : vector<1x128x128xbf16> to vector<128x128xbf16>
    %cst = arith.constant dense<0.000000e+00> : vector<64x128xf32>
    %6 = tpu.matmul %2, %5, %cst {dimension_numbers = #tpu.dot_dimension_numbers<[1], [0], [0], [1], [0, 0, 1, 1], [], []>} : vector<64x128xbf16>, vector<128x128xbf16>, vector<64x128xf32> -> vector<64x128xf32>
    %7 = vector.broadcast %3 : vector<1x128xf32> to vector<64x128xf32>
    %8 = arith.addf %6, %7 : vector<64x128xf32>
    %9 = vector.shape_cast %8 : vector<64x128xf32> to vector<8x8x128xf32>
    %c1 = arith.constant 1 : index
    %c0_8 = arith.constant 0 : index
    %c0_9 = arith.constant 0 : index
    %10 = vector.load %arg2[%c1, %c0_8, %c0_9] : memref<4x128x128xbf16, #tpu.memory_space<vmem>>, vector<1x128x128xbf16>
    %11 = vector.shape_cast %10 : vector<1x128x128xbf16> to vector<128x128xbf16>
    %cst_10 = arith.constant dense<0.000000e+00> : vector<64x128xf32>
    %12 = tpu.matmul %2, %11, %cst_10 {dimension_numbers = #tpu.dot_dimension_numbers<[1], [0], [0], [1], [0, 0, 1, 1], [], []>} : vector<64x128xbf16>, vector<128x128xbf16>, vector<64x128xf32> -> vector<64x128xf32>
    %13 = vector.broadcast %3 : vector<1x128xf32> to vector<64x128xf32>
    %14 = arith.addf %12, %13 : vector<64x128xf32>
    %15 = vector.shape_cast %14 : vector<64x128xf32> to vector<8x8x128xf32>
    %16 = tpu.concatenate %9, %15 in 2 : vector<8x8x128xf32>, vector<8x8x128xf32> -> vector<8x8x256xf32>
    %17 = vector.shape_cast %16 : vector<8x8x256xf32> to vector<8x16x128xf32>
    %c2 = arith.constant 2 : index
    %c0_11 = arith.constant 0 : index
    %c0_12 = arith.constant 0 : index
    %18 = vector.load %arg2[%c2, %c0_11, %c0_12] : memref<4x128x128xbf16, #tpu.memory_space<vmem>>, vector<1x128x128xbf16>
    %19 = vector.shape_cast %18 : vector<1x128x128xbf16> to vector<128x128xbf16>
    %cst_13 = arith.constant dense<0.000000e+00> : vector<64x128xf32>
    %20 = tpu.matmul %2, %19, %cst_13 {dimension_numbers = #tpu.dot_dimension_numbers<[1], [0], [0], [1], [0, 0, 1, 1], [], []>} : vector<64x128xbf16>, vector<128x128xbf16>, vector<64x128xf32> -> vector<64x128xf32>
    %21 = vector.broadcast %3 : vector<1x128xf32> to vector<64x128xf32>
    %22 = arith.addf %20, %21 : vector<64x128xf32>
    %23 = vector.shape_cast %22 : vector<64x128xf32> to vector<8x8x128xf32>
    %c3 = arith.constant 3 : index
    %c0_14 = arith.constant 0 : index
    %c0_15 = arith.constant 0 : index
    %24 = vector.load %arg2[%c3, %c0_14, %c0_15] : memref<4x128x128xbf16, #tpu.memory_space<vmem>>, vector<1x128x128xbf16>
    %25 = vector.shape_cast %24 : vector<1x128x128xbf16> to vector<128x128xbf16>
    %cst_16 = arith.constant dense<0.000000e+00> : vector<64x128xf32>
    %26 = tpu.matmul %2, %25, %cst_16 {dimension_numbers = #tpu.dot_dimension_numbers<[1], [0], [0], [1], [0, 0, 1, 1], [], []>} : vector<64x128xbf16>, vector<128x128xbf16>, vector<64x128xf32> -> vector<64x128xf32>
    %27 = vector.broadcast %3 : vector<1x128xf32> to vector<64x128xf32>
    %28 = arith.addf %26, %27 : vector<64x128xf32>
    %29 = vector.shape_cast %28 : vector<64x128xf32> to vector<8x8x128xf32>
    %30 = tpu.concatenate %23, %29 in 2 : vector<8x8x128xf32>, vector<8x8x128xf32> -> vector<8x8x256xf32>
    %31 = vector.shape_cast %30 : vector<8x8x256xf32> to vector<8x16x128xf32>
    %32 = vector.shape_cast %17 : vector<8x16x128xf32> to vector<8x1x16x128xf32>
    %33 = vector.shape_cast %31 : vector<8x16x128xf32> to vector<8x1x16x128xf32>
    %34 = tpu.concatenate %32, %33 in 1 : vector<8x1x16x128xf32>, vector<8x1x16x128xf32> -> vector<8x2x16x128xf32>
    %35 = vector.shape_cast %34 : vector<8x2x16x128xf32> to vector<16x16x128xf32>
    %36 = vector.shape_cast %35 : vector<16x16x128xf32> to vector<1x16x16x128xf32>
    %37 = arith.truncf %36 : vector<1x16x16x128xf32> to vector<1x16x16x128xbf16>
    %c0_17 = arith.constant 0 : index
    %c0_18 = arith.constant 0 : index
    %c0_19 = arith.constant 0 : index
    %c0_20 = arith.constant 0 : index
    %38 = vector.load %arg4[%c0_17, %c0_18, %c0_19, %c0_20] : memref<1x16x16x128xbf16, #tpu.memory_space<vmem>>, vector<1x16x16x128xbf16>
    tpu.vector_store %arg4[%c0_17, %c0_18, %c0_19, %c0_20], %37 {strides = array<i32>} : memref<1x16x16x128xbf16, #tpu.memory_space<vmem>>, vector<1x16x16x128xbf16>,
    return
  }
  func.func @transform_0(%arg0: i32) -> (i32, i32, i32, i32) {
    %c0_i32 = arith.constant 0 : i32
    %c0_i32_0 = arith.constant 0 : i32
    %c0_i32_1 = arith.constant 0 : i32
    %c0_i32_2 = arith.constant 0 : i32
    return %arg0, %c0_i32, %c0_i32_0, %c0_i32_1 : i32, i32, i32, i32
  }
  func.func @transform_1(%arg0: i32) -> (i32, i32, i32) {
    %c0_i32 = arith.constant 0 : i32
    %c0_i32_0 = arith.constant 0 : i32
    %c0_i32_1 = arith.constant 0 : i32
    %c0_i32_2 = arith.constant 0 : i32
    return %c0_i32, %c0_i32_0, %c0_i32_1 : i32, i32, i32
  }
  func.func @transform_2(%arg0: i32) -> (i32, i32) {
    %c0_i32 = arith.constant 0 : i32
    %c0_i32_0 = arith.constant 0 : i32
    %c0_i32_1 = arith.constant 0 : i32
    return %c0_i32, %c0_i32_0 : i32, i32
  }
  func.func @transform_3(%arg0: i32) -> (i32, i32, i32, i32) {
    %c0_i32 = arith.constant 0 : i32
    %c0_i32_0 = arith.constant 0 : i32
    %c0_i32_1 = arith.constant 0 : i32
    %c0_i32_2 = arith.constant 0 : i32
    return %arg0, %c0_i32, %c0_i32_0, %c0_i32_1 : i32, i32, i32, i32
  }
}

module attributes {stable_mosaic.version = 11 : i64} {
  func.func @_maxpool2_kernel(%arg0: i32, %arg1: memref<1x16x16x128xbf16, #tpu.memory_space<vmem>>, %arg2: memref<1x8x8x128xbf16, #tpu.memory_space<vmem>>) attributes {dimension_semantics = [#tpu.dimension_semantics<parallel>], iteration_bounds = array<i64: 2>, scalar_prefetch = 0 : i64, scratch_operands = 0 : i64, tpu.core_type = #tpu.core_type<tc>, window_params = [{transform_indices = @transform_0, window_bounds = array<i64: 1, 16, 16, 128>}, {transform_indices = @transform_1, window_bounds = array<i64: 1, 8, 8, 128>}]} {
    %c0 = arith.constant 0 : index
    %c0_0 = arith.constant 0 : index
    %c0_1 = arith.constant 0 : index
    %c0_2 = arith.constant 0 : index
    %0 = vector.load %arg1[%c0, %c0_0, %c0_1, %c0_2] : memref<1x16x16x128xbf16, #tpu.memory_space<vmem>>, vector<1x16x16x128xbf16>
    %1 = vector.shape_cast %0 : vector<1x16x16x128xbf16> to vector<16x16x128xbf16>
    %2 = arith.extf %1 : vector<16x16x128xbf16> to vector<16x16x128xf32>
    %3 = vector.shape_cast %2 : vector<16x16x128xf32> to vector<8x2x16x128xf32>
    %cst = arith.constant dense<0xFF800000> : vector<8x16x128xf32>
    %4 = vector.multi_reduction <maximumf>, %3, %cst [1] : vector<8x2x16x128xf32> to vector<8x16x128xf32>
    %5 = vector.shape_cast %4 : vector<8x16x128xf32> to vector<8x8x256xf32>
    %6 = vector.extract_strided_slice %5 {offsets = [0, 0, 0], sizes = [8, 8, 128], strides = [1, 1, 1]} : vector<8x8x256xf32> to vector<8x8x128xf32>
    %7 = vector.extract_strided_slice %5 {offsets = [0, 0, 128], sizes = [8, 8, 128], strides = [1, 1, 1]} : vector<8x8x256xf32> to vector<8x8x128xf32>
    %8 = arith.maximumf %6, %7 : vector<8x8x128xf32>
    %9 = vector.shape_cast %8 : vector<8x8x128xf32> to vector<1x8x8x128xf32>
    %10 = arith.truncf %9 : vector<1x8x8x128xf32> to vector<1x8x8x128xbf16>
    %c0_3 = arith.constant 0 : index
    %c0_4 = arith.constant 0 : index
    %c0_5 = arith.constant 0 : index
    %c0_6 = arith.constant 0 : index
    %11 = vector.load %arg2[%c0_3, %c0_4, %c0_5, %c0_6] : memref<1x8x8x128xbf16, #tpu.memory_space<vmem>>, vector<1x8x8x128xbf16>
    tpu.vector_store %arg2[%c0_3, %c0_4, %c0_5, %c0_6], %10 {strides = array<i32>} : memref<1x8x8x128xbf16, #tpu.memory_space<vmem>>, vector<1x8x8x128xbf16>,
    return
  }
  func.func @transform_0(%arg0: i32) -> (i32, i32, i32, i32) {
    %c0_i32 = arith.constant 0 : i32
    %c0_i32_0 = arith.constant 0 : i32
    %c0_i32_1 = arith.constant 0 : i32
    %c0_i32_2 = arith.constant 0 : i32
    return %arg0, %c0_i32, %c0_i32_0, %c0_i32_1 : i32, i32, i32, i32
  }
  func.func @transform_1(%arg0: i32) -> (i32, i32, i32, i32) {
    %c0_i32 = arith.constant 0 : i32
    %c0_i32_0 = arith.constant 0 : i32
    %c0_i32_1 = arith.constant 0 : i32
    %c0_i32_2 = arith.constant 0 : i32
    return %arg0, %c0_i32, %c0_i32_0, %c0_i32_1 : i32, i32, i32, i32
  }
}

module attributes {stable_mosaic.version = 11 : i64} {
  func.func @_concat_channels_kernel(%arg0: i32, %arg1: memref<1x16x16x128xbf16, #tpu.memory_space<vmem>>, %arg2: memref<1x16x16x128xbf16, #tpu.memory_space<vmem>>, %arg3: memref<1x16x16x128xbf16, #tpu.memory_space<vmem>>) attributes {dimension_semantics = [#tpu.dimension_semantics<parallel>], iteration_bounds = array<i64: 2>, scalar_prefetch = 0 : i64, scratch_operands = 0 : i64, tpu.core_type = #tpu.core_type<tc>, window_params = [{transform_indices = @transform_0, window_bounds = array<i64: 1, 16, 16, 128>}, {transform_indices = @transform_1, window_bounds = array<i64: 1, 16, 16, 128>}, {transform_indices = @transform_2, window_bounds = array<i64: 1, 16, 16, 128>}]} {
    %c0 = arith.constant 0 : index
    %c0_0 = arith.constant 0 : index
    %c0_1 = arith.constant 0 : index
    %c0_2 = arith.constant 0 : index
    %0 = vector.load %arg1[%c0, %c0_0, %c0_1, %c0_2] : memref<1x16x16x128xbf16, #tpu.memory_space<vmem>>, vector<1x16x16x128xbf16>
    %1 = arith.extf %0 : vector<1x16x16x128xbf16> to vector<1x16x16x128xf32>
    %c0_3 = arith.constant 0 : index
    %c0_4 = arith.constant 0 : index
    %c0_5 = arith.constant 0 : index
    %c0_6 = arith.constant 0 : index
    %2 = vector.load %arg2[%c0_3, %c0_4, %c0_5, %c0_6] : memref<1x16x16x128xbf16, #tpu.memory_space<vmem>>, vector<1x16x16x128xbf16>
    %3 = arith.extf %2 : vector<1x16x16x128xbf16> to vector<1x16x16x128xf32>
    %cst = arith.constant 0.000000e+00 : f32
    %4 = vector.broadcast %cst : f32 to vector<1x16x16x124xf32>
    %5 = vector.extract_strided_slice %1 {offsets = [0, 0, 0, 0], sizes = [1, 16, 16, 2], strides = [1, 1, 1, 1]} : vector<1x16x16x128xf32> to vector<1x16x16x2xf32>
    %6 = vector.extract_strided_slice %3 {offsets = [0, 0, 0, 0], sizes = [1, 16, 16, 2], strides = [1, 1, 1, 1]} : vector<1x16x16x128xf32> to vector<1x16x16x2xf32>
    %7 = tpu.concatenate %5, %6, %4 in 3 : vector<1x16x16x2xf32>, vector<1x16x16x2xf32>, vector<1x16x16x124xf32> -> vector<1x16x16x128xf32>
    %8 = arith.truncf %7 : vector<1x16x16x128xf32> to vector<1x16x16x128xbf16>
    %c0_7 = arith.constant 0 : index
    %c0_8 = arith.constant 0 : index
    %c0_9 = arith.constant 0 : index
    %c0_10 = arith.constant 0 : index
    %9 = vector.load %arg3[%c0_7, %c0_8, %c0_9, %c0_10] : memref<1x16x16x128xbf16, #tpu.memory_space<vmem>>, vector<1x16x16x128xbf16>
    tpu.vector_store %arg3[%c0_7, %c0_8, %c0_9, %c0_10], %8 {strides = array<i32>} : memref<1x16x16x128xbf16, #tpu.memory_space<vmem>>, vector<1x16x16x128xbf16>,
    return
  }
  func.func @transform_0(%arg0: i32) -> (i32, i32, i32, i32) {
    %c0_i32 = arith.constant 0 : i32
    %c0_i32_0 = arith.constant 0 : i32
    %c0_i32_1 = arith.constant 0 : i32
    %c0_i32_2 = arith.constant 0 : i32
    return %arg0, %c0_i32, %c0_i32_0, %c0_i32_1 : i32, i32, i32, i32
  }
  func.func @transform_1(%arg0: i32) -> (i32, i32, i32, i32) {
    %c0_i32 = arith.constant 0 : i32
    %c0_i32_0 = arith.constant 0 : i32
    %c0_i32_1 = arith.constant 0 : i32
    %c0_i32_2 = arith.constant 0 : i32
    return %arg0, %c0_i32, %c0_i32_0, %c0_i32_1 : i32, i32, i32, i32
  }
  func.func @transform_2(%arg0: i32) -> (i32, i32, i32, i32) {
    %c0_i32 = arith.constant 0 : i32
    %c0_i32_0 = arith.constant 0 : i32
    %c0_i32_1 = arith.constant 0 : i32
    %c0_i32_2 = arith.constant 0 : i32
    return %arg0, %c0_i32, %c0_i32_0, %c0_i32_1 : i32, i32, i32, i32
  }
}

module attributes {stable_mosaic.version = 11 : i64} {
  func.func @_conv1x1_unnorm_kernel(%arg0: i32, %arg1: memref<1x16x16x128xbf16, #tpu.memory_space<vmem>>, %arg2: memref<128x128xbf16, #tpu.memory_space<vmem>>, %arg3: memref<1x128xf32, #tpu.memory_space<vmem>>, %arg4: memref<1x1x1xf32, #tpu.memory_space<vmem>>, %arg5: memref<1x1x1xf32, #tpu.memory_space<vmem>>, %arg6: memref<1x16x16x128xf32, #tpu.memory_space<vmem>>) attributes {dimension_semantics = [#tpu.dimension_semantics<parallel>], iteration_bounds = array<i64: 2>, scalar_prefetch = 0 : i64, scratch_operands = 0 : i64, tpu.core_type = #tpu.core_type<tc>, window_params = [{transform_indices = @transform_0, window_bounds = array<i64: 1, 16, 16, 128>}, {pipeline_mode = #tpu.pipeline_mode<synchronous>, transform_indices = @transform_1, window_bounds = array<i64: 128, 128>}, {pipeline_mode = #tpu.pipeline_mode<synchronous>, transform_indices = @transform_2, window_bounds = array<i64: 1, 128>}, {transform_indices = @transform_3, window_bounds = array<i64: 1, 1, 1>}, {transform_indices = @transform_4, window_bounds = array<i64: 1, 1, 1>}, {transform_indices = @transform_5, window_bounds = array<i64: 1, 16, 16, 128>}]} {
    %c0 = arith.constant 0 : index
    %c0_0 = arith.constant 0 : index
    %c0_1 = arith.constant 0 : index
    %c0_2 = arith.constant 0 : index
    %0 = vector.load %arg1[%c0, %c0_0, %c0_1, %c0_2] : memref<1x16x16x128xbf16, #tpu.memory_space<vmem>>, vector<1x16x16x128xbf16>
    %1 = vector.shape_cast %0 : vector<1x16x16x128xbf16> to vector<16x16x128xbf16>
    %2 = vector.shape_cast %1 : vector<16x16x128xbf16> to vector<256x128xbf16>
    %c0_3 = arith.constant 0 : index
    %c0_4 = arith.constant 0 : index
    %3 = vector.load %arg2[%c0_3, %c0_4] : memref<128x128xbf16, #tpu.memory_space<vmem>>, vector<128x128xbf16>
    %cst = arith.constant dense<0.000000e+00> : vector<256x128xf32>
    %4 = tpu.matmul %2, %3, %cst {dimension_numbers = #tpu.dot_dimension_numbers<[1], [0], [0], [1], [0, 0, 1, 1], [], []>} : vector<256x128xbf16>, vector<128x128xbf16>, vector<256x128xf32> -> vector<256x128xf32>
    %c0_5 = arith.constant 0 : index
    %c0_6 = arith.constant 0 : index
    %5 = vector.load %arg3[%c0_5, %c0_6] : memref<1x128xf32, #tpu.memory_space<vmem>>, vector<1x128xf32>
    %6 = vector.broadcast %5 : vector<1x128xf32> to vector<256x128xf32>
    %7 = arith.addf %4, %6 : vector<256x128xf32>
    %c0_7 = arith.constant 0 : index
    %c0_8 = arith.constant 0 : index
    %c0_9 = arith.constant 0 : index
    %8 = vector.load %arg5[%c0_7, %c0_8, %c0_9] : memref<1x1x1xf32, #tpu.memory_space<vmem>>, vector<1x1x1xf32>
    %9 = vector.extract %8[0, 0, 0] : f32 from vector<1x1x1xf32>
    %10 = vector.broadcast %9 : f32 to vector<256x128xf32>
    %11 = arith.mulf %7, %10 : vector<256x128xf32>
    %c0_10 = arith.constant 0 : index
    %c0_11 = arith.constant 0 : index
    %c0_12 = arith.constant 0 : index
    %12 = vector.load %arg4[%c0_10, %c0_11, %c0_12] : memref<1x1x1xf32, #tpu.memory_space<vmem>>, vector<1x1x1xf32>
    %13 = vector.extract %12[0, 0, 0] : f32 from vector<1x1x1xf32>
    %14 = vector.broadcast %13 : f32 to vector<256x128xf32>
    %15 = arith.addf %11, %14 : vector<256x128xf32>
    %16 = vector.shape_cast %15 : vector<256x128xf32> to vector<1x16x16x128xf32>
    %c0_13 = arith.constant 0 : index
    %c0_14 = arith.constant 0 : index
    %c0_15 = arith.constant 0 : index
    %c0_16 = arith.constant 0 : index
    %17 = vector.load %arg6[%c0_13, %c0_14, %c0_15, %c0_16] : memref<1x16x16x128xf32, #tpu.memory_space<vmem>>, vector<1x16x16x128xf32>
    tpu.vector_store %arg6[%c0_13, %c0_14, %c0_15, %c0_16], %16 {strides = array<i32>} : memref<1x16x16x128xf32, #tpu.memory_space<vmem>>, vector<1x16x16x128xf32>,
    return
  }
  func.func @transform_0(%arg0: i32) -> (i32, i32, i32, i32) {
    %c0_i32 = arith.constant 0 : i32
    %c0_i32_0 = arith.constant 0 : i32
    %c0_i32_1 = arith.constant 0 : i32
    %c0_i32_2 = arith.constant 0 : i32
    return %arg0, %c0_i32, %c0_i32_0, %c0_i32_1 : i32, i32, i32, i32
  }
  func.func @transform_1(%arg0: i32) -> (i32, i32) {
    %c0_i32 = arith.constant 0 : i32
    %c0_i32_0 = arith.constant 0 : i32
    %c0_i32_1 = arith.constant 0 : i32
    return %c0_i32, %c0_i32_0 : i32, i32
  }
  func.func @transform_2(%arg0: i32) -> (i32, i32) {
    %c0_i32 = arith.constant 0 : i32
    %c0_i32_0 = arith.constant 0 : i32
    %c0_i32_1 = arith.constant 0 : i32
    return %c0_i32, %c0_i32_0 : i32, i32
  }
  func.func @transform_3(%arg0: i32) -> (i32, i32, i32) {
    %c0_i32 = arith.constant 0 : i32
    %c0_i32_0 = arith.constant 0 : i32
    %c0_i32_1 = arith.constant 0 : i32
    return %arg0, %c0_i32, %c0_i32_0 : i32, i32, i32
  }
  func.func @transform_4(%arg0: i32) -> (i32, i32, i32) {
    %c0_i32 = arith.constant 0 : i32
    %c0_i32_0 = arith.constant 0 : i32
    %c0_i32_1 = arith.constant 0 : i32
    return %arg0, %c0_i32, %c0_i32_0 : i32, i32, i32
  }
  func.func @transform_5(%arg0: i32) -> (i32, i32, i32, i32) {
    %c0_i32 = arith.constant 0 : i32
    %c0_i32_0 = arith.constant 0 : i32
    %c0_i32_1 = arith.constant 0 : i32
    %c0_i32_2 = arith.constant 0 : i32
    return %arg0, %c0_i32, %c0_i32_0, %c0_i32_1 : i32, i32, i32, i32
  }
}

</mosaic_0001>

<llo_original>
// kernel: unet_forward.17
$region0: #{unet_forward.17}
  #allocation0 [shape = 'u32[]', space=smem, size = 0x4, offset = 0x4, fixed_abs, tag = 'smem constant byte address 0x4 - core index']
  #allocation1 [shape = 'u32[144,128]{1,0:T(1,128)}', space=vmem, size = 0x12000, scoped, tag = 'internal scratch']
  %s0 = inlined_call_operand.hbm [shape: f32[2,16,16], index: 0, kind: input, shape index: {}]
  %s1 = inlined_call_operand.vmem [shape: bf16[2,16,16], index: 1, kind: output, shape index: {0}]
  %s2 = inlined_call_operand.vmem [shape: f32[2,1,1], index: 2, kind: output, shape index: {1}]
  %s3 = inlined_call_operand.vmem [shape: f32[2,1,1], index: 3, kind: output, shape index: {2}]
  %4 = xla_tuple %s1, %s2, %s3
  %s5 = sld [smem:[#allocation0]]
  $region57: #{unet_forward.17} parent=0
    _
  %s7 = ssub.s32 1, %s5
  %s8 = scalar_select 0, %s7, %s5
  $region1: #{unet_forward.17} parent=0
    #allocation2 [shape = 'u8[16384]{0}', space=vmem, size = 0x4000, scoped, tag = 'input window, operand 0']
    #allocation3 [shape = 's32[2]{0}', space=sflag, size = 0x8, scoped, tag = 'scoped memory for unet_forward.17']
    %9 = vsyncpa [#allocation3], 0
    %s10 = scalar_lea.sflag [#allocation3], 1
    %11 = vsyncpa %s10, 0
    loop: start=0, step=1, limit=4
    $region2: #{unet_forward.17} parent=1 // loop_pre_header
      _
    $region3: #{unet_forward.17} parent=1 // loop_header
      %s13 = sphi 0, %s17
      %p14 = scmp.ge.s32.totalorder %s13, 4
      %s23 = sphi 0, %s25
      %s26 = sphi 0, %s23
      %s27 = sphi 0, %s26
      %s43 = sphi 0, %s27
      %s49 = sphi 0, %s51
      %s52 = sphi 0, %s49
      %s53 = sphi 0, %s52
      %s69 = sphi 0, %s53
      %s75 = sphi 0, %s77
      %s78 = sphi 0, %s75
      %s79 = sphi 0, %s78
      %s95 = sphi 0, %s79
      %s101 = sphi 0, %s103
      %s104 = sphi 0, %s101
      %s105 = sphi 0, %s104
      %s121 = sphi 0, %s105
    $region4: #{unet_forward.17} parent=1 // loop_header_branch
      %16 = sbr.rel (%p14) target = $region8
    $region5: #{unet_forward.17} parent=1 // loop_body
      %s18 = ssub.s32 %s13, 1
      %s19 = ssub.s32 %s13, 2
      %s20 = sadd.s32 %s13, 1
      %s21 = ssub.s32 %s13, %s20
      %p22 = scmp.eq.s32.totalorder %s21, 0
      %s24 = sadd.s32 %s23, 1
      %s25 = scalar_select %p22, %s23, %s24
      %p28 = pneg %p22
      %p29 = scmp.eq.s32.totalorder %s13, 1
      %p30 = por %p28, %p29
      %p31 = scmp.ne.s32.totalorder %s23, %s26
      %p32 = scmp.eq.s32.totalorder %s13, 0
      %p33 = por %p31, %p32
      %p34 = scmp.ne.s32.totalorder %s23, %s26
      %p35 = scmp.eq.s32.totalorder %s18, 1
      %p36 = por %p34, %p35
      %p37 = scmp.ne.s32.totalorder %s26, %s27
      %p38 = scmp.eq.s32.totalorder %s18, 0
      %p39 = por %p37, %p38
      %p40 = scmp.ne.s32.totalorder %s26, %s27
      %p41 = scmp.eq.s32.totalorder %s19, 1
      %p42 = por %p40, %p41
      %p44 = scmp.ne.s32.totalorder %s27, %s43
      %p45 = scmp.eq.s32.totalorder %s19, 0
      %p46 = por %p44, %p45
      %s47 = ssub.s32 %s13, %s20
      %p48 = scmp.eq.s32.totalorder %s47, 0
      %s50 = sadd.s32 %s49, 1
      %s51 = scalar_select %p48, %s49, %s50
      %p54 = pneg %p48
      %p55 = scmp.eq.s32.totalorder %s13, 1
      %p56 = por %p54, %p55
      %p57 = scmp.ne.s32.totalorder %s49, %s52
      %p58 = scmp.eq.s32.totalorder %s13, 0
      %p59 = por %p57, %p58
      %p60 = scmp.ne.s32.totalorder %s49, %s52
      %p61 = scmp.eq.s32.totalorder %s18, 1
      %p62 = por %p60, %p61
      %p63 = scmp.ne.s32.totalorder %s52, %s53
      %p64 = scmp.eq.s32.totalorder %s18, 0
      %p65 = por %p63, %p64
      %p66 = scmp.ne.s32.totalorder %s52, %s53
      %p67 = scmp.eq.s32.totalorder %s19, 1
      %p68 = por %p66, %p67
      %p70 = scmp.ne.s32.totalorder %s53, %s69
      %p71 = scmp.eq.s32.totalorder %s19, 0
      %p72 = por %p70, %p71
      %s73 = ssub.s32 %s13, %s20
      %p74 = scmp.eq.s32.totalorder %s73, 0
      %s76 = sadd.s32 %s75, 1
      %s77 = scalar_select %p74, %s75, %s76
      %p80 = pneg %p74
      %p81 = scmp.eq.s32.totalorder %s13, 1
      %p82 = por %p80, %p81
      %p83 = scmp.ne.s32.totalorder %s75, %s78
      %p84 = scmp.eq.s32.totalorder %s13, 0
      %p85 = por %p83, %p84
      %p86 = scmp.ne.s32.totalorder %s75, %s78
      %p87 = scmp.eq.s32.totalorder %s18, 1
      %p88 = por %p86, %p87
      %p89 = scmp.ne.s32.totalorder %s78, %s79
      %p90 = scmp.eq.s32.totalorder %s18, 0
      %p91 = por %p89, %p90
      %p92 = scmp.ne.s32.totalorder %s78, %s79
      %p93 = scmp.eq.s32.totalorder %s19, 1
      %p94 = por %p92, %p93
      %p96 = scmp.ne.s32.totalorder %s79, %s95
      %p97 = scmp.eq.s32.totalorder %s19, 0
      %p98 = por %p96, %p97
      %s99 = ssub.s32 %s13, %s20
      %p100 = scmp.eq.s32.totalorder %s99, 0
      %s102 = sadd.s32 %s101, 1
      %s103 = scalar_select %p100, %s101, %s102
      %p106 = pneg %p100
      %p107 = scmp.eq.s32.totalorder %s13, 1
      %p108 = por %p106, %p107
      %p109 = scmp.ne.s32.totalorder %s101, %s104
      %p110 = scmp.eq.s32.totalorder %s13, 0
      %p111 = por %p109, %p110
      %p112 = scmp.ne.s32.totalorder %s101, %s104
      %p113 = scmp.eq.s32.totalorder %s18, 1
      %p114 = por %p112, %p113
      %p115 = scmp.ne.s32.totalorder %s104, %s105
      %p116 = scmp.eq.s32.totalorder %s18, 0
      %p117 = por %p115, %p116
      %p118 = scmp.ne.s32.totalorder %s104, %s105
      %p119 = scmp.eq.s32.totalorder %s19, 1
      %p120 = por %p118, %p119
      %p122 = scmp.ne.s32.totalorder %s105, %s121
      %p123 = scmp.eq.s32.totalorder %s19, 0
      %p124 = por %p122, %p123
      %p125 = scmp.le.s32.totalorder 1, %s13
      %p126 = scmp.lt.s32.totalorder %s13, 3
      %p127 = pnand %p125, %p126
      %p128 = pneg %p127
      // Predicated region
      $region9: #{unet_forward.17} parent=5 // pred_check
        _
      $region10: #{unet_forward.17} parent=5 // pred_check_branch
        %130 = sbr.rel (%p127) target = $region12
      $region11: #{unet_forward.17} parent=5 // pred_region
        %s131 = ssub.s32 %s13, 1
      $region12: #{unet_forward.17} parent=5 // pred_fallthru
        _
      %p132 = scmp.lt.s32.totalorder %s13, 2
      // Predicated region
      $region13: #{unet_forward.17} parent=5 // pred_check
        %p133 = pneg %p132
      $region14: #{unet_forward.17} parent=5 // pred_check_branch
        %135 = sbr.rel (%p133) target = $region16
      $region15: #{unet_forward.17} parent=5 // pred_region
        // Predicated region
        $region17: #{unet_forward.17} parent=15 // pred_check
          %p136 = pneg %p33
        $region18: #{unet_forward.17} parent=15 // pred_check_branch
          %138 = sbr.rel (%p136) target = $region20
        $region19: #{unet_forward.17} parent=15 // pred_region
          %s139 = sand.u32 %s23, 1
          %s140 = scalar_lea.sflag [#allocation3], %s139
          %s141 = sand.u32 %s23, 1
          %s142 = smul.addr %s141, 16
          %s143 = scalar_lea.vmem [#allocation2], %s142
          %s145 = ssub.s32 256, 256
          %146 = vsyncadd %s140, %s145
          %s147 = smul.addr %s13, 2
          %s148 = smul.addr %s147, 128
          %s149 = scalar_lea.hbm %s0, %s148
          %s150 = sshll.u32 %s143, 4
          %s151 = int_to_ptr.vmem [resolvable:$true] %s150
          %156 = dma.hbm_to_vmem [thread:$0]  %s149, 256, %s151, %s140, 128, 128, 8
        $region20: #{unet_forward.17} parent=15 // pred_fallthru
          _
      $region16: #{unet_forward.17} parent=5 // pred_fallthru
        _
      %p157 = scmp.le.s32.totalorder 1, %s13
      %p158 = scmp.lt.s32.totalorder %s13, 3
      %p159 = pnand %p157, %p158
      %p160 = pneg %p159
      // Predicated region
      $region21: #{unet_forward.17} parent=5 // pred_check
        _
      $region22: #{unet_forward.17} parent=5 // pred_check_branch
        %162 = sbr.rel (%p159) target = $region24
      $region23: #{unet_forward.17} parent=5 // pred_region
        %s163 = ssub.s32 %s13, 1
        %s164 = sand.u32 %s26, 1
        %s165 = scalar_lea.sflag [#allocation3], %s164
        %s166 = sand.u32 %s26, 1
        %s167 = smul.addr %s166, 16
        %s168 = scalar_lea.vmem [#allocation2], %s167
        // Predicated region
        $region25: #{unet_forward.17} parent=23 // pred_check
          %p169 = pneg %p39
        $region26: #{unet_forward.17} parent=23 // pred_check_branch
          %171 = sbr.rel (%p169) target = $region28
        $region27: #{unet_forward.17} parent=23 // pred_region
          %172 = dma.done %s165, 256
        $region28: #{unet_forward.17} parent=23 // pred_fallthru
          _
        %s173 = sand.u32 %s26, 1
        %s174 = scalar_lea.sflag [#allocation3], %s173
        %s175 = sand.u32 %s26, 1
        %s176 = smul.addr %s175, 16
        %s177 = scalar_lea.vmem [#allocation2], %s176
        %p178 = pneg %p39
        %p179 = pneg %p36
        %p180 = pneg %p65
        %p181 = pneg %p62
        %p182 = scmp.lt.s32.totalorder %s18, 1
        %s183 = scalar_select %p182, %s18, 1
        %s184 = smul.addr %s183, 2
        %s185 = smul.addr %s184, 4
        %s186 = scalar_lea.vmem %s1, %s185
        %p187 = pneg %p91
        %p188 = pneg %p88
        %p189 = scmp.lt.s32.totalorder %s18, 1
        %s190 = scalar_select %p189, %s18, 1
        %s191 = scalar_lea.vmem %s2, %s190
        %p192 = pneg %p117
        %p193 = pneg %p114
        %p194 = scmp.lt.s32.totalorder %s18, 1
        %s195 = scalar_select %p194, %s18, 1
        %s196 = scalar_lea.vmem %s3, %s195
        %p197 = scmp.lt.s32.totalorder %s18, 1
        %s198 = scalar_select %p197, %s18, 1
        %s199 = smul.addr %s198, 2
        %s200 = smul.addr %s199, 4
        %s201 = scalar_lea.vmem %s1, %s200
        %p202 = scmp.lt.s32.totalorder %s18, 1
        %s203 = scalar_select %p202, %s18, 1
        %s204 = scalar_lea.vmem %s2, %s203
        %p205 = scmp.lt.s32.totalorder %s18, 1
        %s206 = scalar_select %p205, %s18, 1
        %s207 = scalar_lea.vmem %s3, %s206
        %v208 = vld [vmem:[%s168] sm:$0xff]
        %v209 = vld [vmem:[%s168 + $0x8] sm:$0xff]
        %vm210 = vcmask 130048
        %v211 = vsel %vm210, %v208, 0.0
        %v212 = vsel %vm210, %v209, 0.0
        %v213 = vadd.f32 %v211, %v212
        %214 = vadd.xlane.f32.xlu0 %v213
        %v215 = vpop.xlane.xlu0 %214
        %v216 = vrot.slane %v215, 4
        %v217 = vadd.f32 %v215, %v216
        %v218 = vrot.slane %v217, 2
        %v219 = vadd.f32 %v217, %v218
        %v220 = vrot.slane %v219, 1
        %v221 = vadd.f32 %v219, %v220
        %s222 = vtos %v221
        %v223 = vrcp.pop 256.0
        %s224 = vtos %v223
        %s225 = smul.f32 %s222, %s224
        %v226 = vstv %s225
        %v227 = vsub.f32 %v208, %v226
        %v228 = vsub.f32 %v209, %v226
        %v229 = vmul.f32 %v227, %v227
        %v230 = vmul.f32 %v228, %v228
        %v231 = vsel %vm210, %v229, 0.0
        %v232 = vsel %vm210, %v230, 0.0
        %v233 = vadd.f32 %v231, %v232
        %234 = vadd.xlane.f32.xlu0 %v233
        %v235 = vpop.xlane.xlu0 %234
        %v236 = vrot.slane %v235, 4
        %v237 = vadd.f32 %v235, %v236
        %v238 = vrot.slane %v237, 2
        %v239 = vadd.f32 %v237, %v238
        %v240 = vrot.slane %v239, 1
        %v241 = vadd.f32 %v239, %v240
        %s242 = vtos %v241
        %v243 = vrcp.pop 255.0
        %s244 = vtos %v243
        %s245 = smul.f32 %s242, %s244
        %v246 = vstv %s245
        %v247 = vrsqrt.pop %v246
        %v248 = vmul.f32 %v246, %v247
        %vm249 = vcmp.eq.f32.partialorder %v246, inf
        %v250 = vsel %vm249, %v246, %v248
        %vm251 = vcmp.eq.f32.partialorder %v246, 0.0
        %v252 = vand.u32 %v246, 2147483648
        %v253 = vsel %vm251, %v252, %v250
        %s254 = vtos %v253
        %v255 = vstv %s254
        %v256 = vrcp.pop %v255
        %v257 = vmul.f32 %v227, %v256
        %v258 = vmul.f32 %v228, %v256
        %v259 = vpack.c.bf16 %v258, %v257
        %v261 = vunpack.c.l.b16 %v259
        %v262 = vunpack.c.h.b16 %v259
        %v263 = vpack.c.b16 %v261, %v261
        %v264 = vpack.c.b16 %v262, %v262
        %vm267 = vcmask 125952
        %268 = vst.msk [vmem:[%s201] sm:$0xf] %vm267, %v263
        %269 = vst.msk [vmem:[%s201 + $0x4] sm:$0xf] %vm267, %v264
        %vm270 = vcmask 0
        %271 = vst.msk [vmem:[%s204] sm:$0x1] %vm270, %v226
        %272 = vst.msk [vmem:[%s207] sm:$0x1] %vm270, %v255
        %p273 = scmp.lt.s32.totalorder %s18, 1
        %s274 = scalar_select %p273, %s18, 1
        %s275 = smul.addr %s274, 2
        %s276 = smul.addr %s275, 4
        %s277 = scalar_lea.vmem %s1, %s276
        %p278 = scmp.lt.s32.totalorder %s18, 1
        %s279 = scalar_select %p278, %s18, 1
        %s280 = scalar_lea.vmem %s2, %s279
        %p281 = scmp.lt.s32.totalorder %s18, 1
        %s282 = scalar_select %p281, %s18, 1
        %s283 = scalar_lea.vmem %s3, %s282
        // Predicated region
        $region29: #{unet_forward.17} parent=23 // pred_check
          %p284 = pneg %p62
        $region30: #{unet_forward.17} parent=23 // pred_check_branch
          %286 = sbr.rel (%p284) target = $region32
        $region31: #{unet_forward.17} parent=23 // pred_region
          _
        $region32: #{unet_forward.17} parent=23 // pred_fallthru
          _
        // Predicated region
        $region33: #{unet_forward.17} parent=23 // pred_check
          %p287 = pneg %p88
        $region34: #{unet_forward.17} parent=23 // pred_check_branch
          %289 = sbr.rel (%p287) target = $region36
        $region35: #{unet_forward.17} parent=23 // pred_region
          _
        $region36: #{unet_forward.17} parent=23 // pred_fallthru
          _
        // Predicated region
        $region37: #{unet_forward.17} parent=23 // pred_check
          %p290 = pneg %p114
        $region38: #{unet_forward.17} parent=23 // pred_check_branch
          %292 = sbr.rel (%p290) target = $region40
        $region39: #{unet_forward.17} parent=23 // pred_region
          _
        $region40: #{unet_forward.17} parent=23 // pred_fallthru
          _
      $region24: #{unet_forward.17} parent=5 // pred_fallthru
        _
      %p293 = scmp.le.s32.totalorder 2, %s13
      // Predicated region
      $region41: #{unet_forward.17} parent=5 // pred_check
        %p294 = pneg %p293
      $region42: #{unet_forward.17} parent=5 // pred_check_branch
        %296 = sbr.rel (%p294) target = $region44
      $region43: #{unet_forward.17} parent=5 // pred_region
        %s297 = ssub.s32 %s13, 2
        // Predicated region
        $region45: #{unet_forward.17} parent=43 // pred_check
          %p298 = pneg %p68
        $region46: #{unet_forward.17} parent=43 // pred_check_branch
          %300 = sbr.rel (%p298) target = $region48
        $region47: #{unet_forward.17} parent=43 // pred_region
          %p301 = scmp.lt.s32.totalorder %s19, 1
          %s302 = scalar_select %p301, %s19, 1
          %s303 = smul.addr %s302, 2
          %s304 = smul.addr %s303, 4
          %s305 = scalar_lea.vmem %s1, %s304
        $region48: #{unet_forward.17} parent=43 // pred_fallthru
          _
        // Predicated region
        $region49: #{unet_forward.17} parent=43 // pred_check
          %p306 = pneg %p94
        $region50: #{unet_forward.17} parent=43 // pred_check_branch
          %308 = sbr.rel (%p306) target = $region52
        $region51: #{unet_forward.17} parent=43 // pred_region
          %p309 = scmp.lt.s32.totalorder %s19, 1
          %s310 = scalar_select %p309, %s19, 1
          %s311 = scalar_lea.vmem %s2, %s310
        $region52: #{unet_forward.17} parent=43 // pred_fallthru
          _
        // Predicated region
        $region53: #{unet_forward.17} parent=43 // pred_check
          %p312 = pneg %p120
        $region54: #{unet_forward.17} parent=43 // pred_check_branch
          %314 = sbr.rel (%p312) target = $region56
        $region55: #{unet_forward.17} parent=43 // pred_region
          %p315 = scmp.lt.s32.totalorder %s19, 1
          %s316 = scalar_select %p315, %s19, 1
          %s317 = scalar_lea.vmem %s3, %s316
        $region56: #{unet_forward.17} parent=43 // pred_fallthru
          _
      $region44: #{unet_forward.17} parent=5 // pred_fallthru
        _
    $region6: #{unet_forward.17} parent=1 // loop_footer
      %s17 = sadd.s32 1, %s13
    $region7: #{unet_forward.17} parent=1 // loop_footer_branch
      %12 = sbr.rel target = $region3
    $region8: #{unet_forward.17} parent=1 // loop_exit
      _
    %318 = vsyncpa [#allocation3], 1
    %s319 = scalar_lea.sflag [#allocation3], 1
    %320 = vsyncpa %s319, 1

// kernel: unet_forward.19
$region0: #{unet_forward.19}
  #allocation0 [shape = 'u32[]', space=smem, size = 0x4, offset = 0x4, fixed_abs, tag = 'smem constant byte address 0x4 - core index']
  #allocation1 [shape = 'u32[144,128]{1,0:T(1,128)}', space=vmem, size = 0x12000, scoped, tag = 'internal scratch']
  %s0 = inlined_call_operand.vmem [shape: f32[2,16,16,128], index: 0, kind: input, shape index: {}]
  %s1 = inlined_call_operand.vmem [shape: f32[1,128], index: 1, kind: input, shape index: {}]
  %s2 = inlined_call_operand.vmem [shape: f32[1,128], index: 2, kind: input, shape index: {}]
  %s3 = inlined_call_operand.vmem [shape: bf16[2,16,16,128], index: 3, kind: output, shape index: {}]
  %s4 = sld [smem:[#allocation0]]
  $region45: #{unet_forward.19} parent=0
    _
  %s6 = ssub.s32 1, %s4
  %s7 = scalar_select 0, %s6, %s4
  loop: start=0, step=1, limit=6
  $region2: #{unet_forward.19} parent=0 // loop_pre_header
    _
  $region3: #{unet_forward.19} parent=0 // loop_header
    %s9 = sphi 0, %s13
    %p10 = scmp.ge.s32.totalorder %s9, 6
    %s16 = sphi 0, %s28
    %s17 = sphi 0, %s24
    %s18 = sphi 0, %s16
    %s19 = sphi 0, %s17
    %s20 = sphi 0, %s18
    %s21 = sphi 0, %s19
    %s33 = sphi 0, %s35
    %s36 = sphi 0, %s33
    %s37 = sphi 0, %s36
    %s53 = sphi 0, %s37
    %s57 = sphi 0, %s57
    %s59 = sphi 0, %s57
    %s60 = sphi 0, %s59
    %s74 = sphi 0, %s60
    %s78 = sphi 0, %s78
    %s80 = sphi 0, %s78
    %s81 = sphi 0, %s80
    %s95 = sphi 0, %s81
    %s103 = sphi 0, %s105
    %s106 = sphi 0, %s103
    %s107 = sphi 0, %s106
    %s123 = sphi 0, %s107
  $region4: #{unet_forward.19} parent=0 // loop_header_branch
    %12 = sbr.rel (%p10) target = $region8
  $region5: #{unet_forward.19} parent=0 // loop_body
    %s14 = ssub.s32 %s9, 1
    %s15 = ssub.s32 %s9, 2
    %s22 = sadd.s32 1, %s17
    %p23 = scmp.ge.s32.totalorder %s22, 2
    %s24 = scalar_select %p23, 0, %s22
    %s25 = sadd.s32 1, %s16
    %s26 = scalar_select %p23, %s25, %s16
    %p27 = scmp.ge.s32.totalorder %s26, 2
    %s28 = scalar_select %p27, 0, %s26
    %s29 = ssub.s32 %s16, %s28
    %s30 = ssub.s32 %s17, %s24
    %s31 = sor.u32 %s29, %s30
    %p32 = scmp.eq.s32.totalorder %s31, 0
    %s34 = sadd.s32 %s33, 1
    %s35 = scalar_select %p32, %s33, %s34
    %p38 = pneg %p32
    %p39 = scmp.eq.s32.totalorder %s9, 3
    %p40 = por %p38, %p39
    %p41 = scmp.ne.s32.totalorder %s33, %s36
    %p42 = scmp.eq.s32.totalorder %s9, 0
    %p43 = por %p41, %p42
    %p44 = scmp.ne.s32.totalorder %s33, %s36
    %p45 = scmp.eq.s32.totalorder %s14, 3
    %p46 = por %p44, %p45
    %p47 = scmp.ne.s32.totalorder %s36, %s37
    %p48 = scmp.eq.s32.totalorder %s14, 0
    %p49 = por %p47, %p48
    %p50 = scmp.ne.s32.totalorder %s36, %s37
    %p51 = scmp.eq.s32.totalorder %s15, 3
    %p52 = por %p50, %p51
    %p54 = scmp.ne.s32.totalorder %s37, %s53
    %p55 = scmp.eq.s32.totalorder %s15, 0
    %p56 = por %p54, %p55
    %s58 = sadd.s32 %s57, 1
    %p61 = scmp.eq.s32.totalorder %s9, 3
    %p62 = scmp.ne.s32.totalorder %s57, %s59
    %p63 = scmp.eq.s32.totalorder %s9, 0
    %p64 = por %p62, %p63
    %p65 = scmp.ne.s32.totalorder %s57, %s59
    %p66 = scmp.eq.s32.totalorder %s14, 3
    %p67 = por %p65, %p66
    %p68 = scmp.ne.s32.totalorder %s59, %s60
    %p69 = scmp.eq.s32.totalorder %s14, 0
    %p70 = por %p68, %p69
    %p71 = scmp.ne.s32.totalorder %s59, %s60
    %p72 = scmp.eq.s32.totalorder %s15, 3
    %p73 = por %p71, %p72
    %p75 = scmp.ne.s32.totalorder %s60, %s74
    %p76 = scmp.eq.s32.totalorder %s15, 0
    %p77 = por %p75, %p76
    %s79 = sadd.s32 %s78, 1
    %p82 = scmp.eq.s32.totalorder %s9, 3
    %p83 = scmp.ne.s32.totalorder %s78, %s80
    %p84 = scmp.eq.s32.totalorder %s9, 0
    %p85 = por %p83, %p84
    %p86 = scmp.ne.s32.totalorder %s78, %s80
    %p87 = scmp.eq.s32.totalorder %s14, 3
    %p88 = por %p86, %p87
    %p89 = scmp.ne.s32.totalorder %s80, %s81
    %p90 = scmp.eq.s32.totalorder %s14, 0
    %p91 = por %p89, %p90
    %p92 = scmp.ne.s32.totalorder %s80, %s81
    %p93 = scmp.eq.s32.totalorder %s15, 3
    %p94 = por %p92, %p93
    %p96 = scmp.ne.s32.totalorder %s81, %s95
    %p97 = scmp.eq.s32.totalorder %s15, 0
    %p98 = por %p96, %p97
    %s99 = ssub.s32 %s16, %s28
    %s100 = ssub.s32 %s17, %s24
    %s101 = sor.u32 %s99, %s100
    %p102 = scmp.eq.s32.totalorder %s101, 0
    %s104 = sadd.s32 %s103, 1
    %s105 = scalar_select %p102, %s103, %s104
    %p108 = pneg %p102
    %p109 = scmp.eq.s32.totalorder %s9, 3
    %p110 = por %p108, %p109
    %p111 = scmp.ne.s32.totalorder %s103, %s106
    %p112 = scmp.eq.s32.totalorder %s9, 0
    %p113 = por %p111, %p112
    %p114 = scmp.ne.s32.totalorder %s103, %s106
    %p115 = scmp.eq.s32.totalorder %s14, 3
    %p116 = por %p114, %p115
    %p117 = scmp.ne.s32.totalorder %s106, %s107
    %p118 = scmp.eq.s32.totalorder %s14, 0
    %p119 = por %p117, %p118
    %p120 = scmp.ne.s32.totalorder %s106, %s107
    %p121 = scmp.eq.s32.totalorder %s15, 3
    %p122 = por %p120, %p121
    %p124 = scmp.ne.s32.totalorder %s107, %s123
    %p125 = scmp.eq.s32.totalorder %s15, 0
    %p126 = por %p124, %p125
    %p127 = scmp.le.s32.totalorder 1, %s9
    %p128 = scmp.lt.s32.totalorder %s9, 5
    %p129 = pnand %p127, %p128
    %p130 = pneg %p129
    // Predicated region
    $region9: #{unet_forward.19} parent=5 // pred_check
      _
    $region10: #{unet_forward.19} parent=5 // pred_check_branch
      %132 = sbr.rel (%p129) target = $region12
    $region11: #{unet_forward.19} parent=5 // pred_region
      %s133 = ssub.s32 %s9, 1
      // Predicated region
      $region13: #{unet_forward.19} parent=11 // pred_check
        %p134 = pneg %p70
      $region14: #{unet_forward.19} parent=11 // pred_check_branch
        %136 = sbr.rel (%p134) target = $region16
      $region15: #{unet_forward.19} parent=11 // pred_region
        _
      $region16: #{unet_forward.19} parent=11 // pred_fallthru
        _
      // Predicated region
      $region17: #{unet_forward.19} parent=11 // pred_check
        %p137 = pneg %p91
      $region18: #{unet_forward.19} parent=11 // pred_check_branch
        %139 = sbr.rel (%p137) target = $region20
      $region19: #{unet_forward.19} parent=11 // pred_region
        _
      $region20: #{unet_forward.19} parent=11 // pred_fallthru
        _
    $region12: #{unet_forward.19} parent=5 // pred_fallthru
      _
    %p140 = scmp.lt.s32.totalorder %s9, 4
    // Predicated region
    $region21: #{unet_forward.19} parent=5 // pred_check
      %p141 = pneg %p140
    $region22: #{unet_forward.19} parent=5 // pred_check_branch
      %143 = sbr.rel (%p141) target = $region24
    $region23: #{unet_forward.19} parent=5 // pred_region
      // Predicated region
      $region25: #{unet_forward.19} parent=23 // pred_check
        %p144 = pneg %p43
      $region26: #{unet_forward.19} parent=23 // pred_check_branch
        %146 = sbr.rel (%p144) target = $region28
      $region27: #{unet_forward.19} parent=23 // pred_region
        %s147 = smul.u32 8, %s17
        %p148 = scmp.lt.s32.totalorder %s16, 1
        %s149 = scalar_select %p148, %s16, 1
        %p150 = scmp.lt.s32.totalorder %s147, 15
        %s151 = scalar_select %p150, %s147, 15
        %s152 = smul.addr %s151, 2
        %s153 = smul.addr %s149, 32
        %s154 = sadd.s32 %s152, %s153
        %s155 = smul.addr %s154, 8
        %s156 = scalar_lea.vmem %s0, %s155
        %s157 = smul.u32 8, %s17
      $region28: #{unet_forward.19} parent=23 // pred_fallthru
        _
    $region24: #{unet_forward.19} parent=5 // pred_fallthru
      _
    %p158 = scmp.le.s32.totalorder 1, %s9
    %p159 = scmp.lt.s32.totalorder %s9, 5
    %p160 = pnand %p158, %p159
    %p161 = pneg %p160
    // Predicated region
    $region29: #{unet_forward.19} parent=5 // pred_check
      _
    $region30: #{unet_forward.19} parent=5 // pred_check_branch
      %163 = sbr.rel (%p160) target = $region32
    $region31: #{unet_forward.19} parent=5 // pred_region
      %s164 = ssub.s32 %s9, 1
      %s165 = smul.u32 8, %s19
      %p166 = scmp.lt.s32.totalorder %s18, 1
      %s167 = scalar_select %p166, %s18, 1
      %p168 = scmp.lt.s32.totalorder %s165, 15
      %s169 = scalar_select %p168, %s165, 15
      %s170 = smul.addr %s169, 2
      %s171 = smul.addr %s167, 32
      %s172 = sadd.s32 %s170, %s171
      %s173 = smul.addr %s172, 8
      %s174 = scalar_lea.vmem %s0, %s173
      %p175 = pneg %p49
      %p176 = pneg %p46
      %p177 = pneg %p70
      %p178 = pneg %p67
      %p179 = pneg %p91
      %p180 = pneg %p88
      %p181 = pneg %p119
      %p182 = pneg %p116
      %s183 = smul.u32 8, %s19
      %p184 = scmp.lt.s32.totalorder %s18, 1
      %s185 = scalar_select %p184, %s18, 1
      %p186 = scmp.lt.s32.totalorder %s183, 15
      %s187 = scalar_select %p186, %s183, 15
      %s188 = smul.addr %s187, 2
      %s189 = smul.addr %s185, 32
      %s190 = sadd.s32 %s188, %s189
      %s191 = smul.addr %s190, 4
      %s192 = scalar_lea.vmem %s3, %s191
      %s193 = smul.u32 8, %s19
      %p194 = scmp.lt.s32.totalorder %s18, 1
      %s195 = scalar_select %p194, %s18, 1
      %p196 = scmp.lt.s32.totalorder %s193, 15
      %s197 = scalar_select %p196, %s193, 15
      %s198 = smul.addr %s197, 2
      %s199 = smul.addr %s195, 32
      %s200 = sadd.s32 %s198, %s199
      %s201 = smul.addr %s200, 8
      %s202 = scalar_lea.vmem %s0, %s201
      %s203 = smul.u32 8, %s19
      %s204 = smul.u32 8, %s19
      %p205 = scmp.lt.s32.totalorder %s18, 1
      %s206 = scalar_select %p205, %s18, 1
      %p207 = scmp.lt.s32.totalorder %s204, 15
      %s208 = scalar_select %p207, %s204, 15
      %s209 = smul.addr %s208, 2
      %s210 = smul.addr %s206, 32
      %s211 = sadd.s32 %s209, %s210
      %s212 = smul.addr %s211, 4
      %s213 = scalar_lea.vmem %s3, %s212
      %s214 = smul.u32 8, %s19
      %v215 = vld [vmem:[%s1] sm:$0x1]
      %v216 = vld [vmem:[%s2] sm:$0x1]
      %v217 = vld [vmem:[%s202] sm:$0xff]
      %v218 = vld [vmem:[%s202 + $0x8] sm:$0xff]
      %v219 = vld [vmem:[%s202 + $0x10] sm:$0xff]
      %v220 = vld [vmem:[%s202 + $0x18] sm:$0xff]
      %v221 = vld [vmem:[%s202 + $0x20] sm:$0xff]
      %v222 = vld [vmem:[%s202 + $0x28] sm:$0xff]
      %v223 = vld [vmem:[%s202 + $0x30] sm:$0xff]
      %v224 = vld [vmem:[%s202 + $0x38] sm:$0xff]
      %v225 = vld [vmem:[%s202 + $0x40] sm:$0xff]
      %v226 = vld [vmem:[%s202 + $0x48] sm:$0xff]
      %v227 = vld [vmem:[%s202 + $0x50] sm:$0xff]
      %v228 = vld [vmem:[%s202 + $0x58] sm:$0xff]
      %v229 = vld [vmem:[%s202 + $0x60] sm:$0xff]
      %v230 = vld [vmem:[%s202 + $0x68] sm:$0xff]
      %v231 = vld [vmem:[%s202 + $0x70] sm:$0xff]
      %v232 = vld [vmem:[%s202 + $0x78] sm:$0xff]
      %v234 = vlaneseq
      %v235 = vshrl.u32 %v234, 7
      %v236 = vsub.s32 0, %v235
      %v237 = vrot.slane %v215, %v236
      %v239 = vmul.f32 %v217, %v237
      %v240 = vmul.f32 %v218, %v237
      %v241 = vmul.f32 %v219, %v237
      %v242 = vmul.f32 %v220, %v237
      %v243 = vmul.f32 %v221, %v237
      %v244 = vmul.f32 %v222, %v237
      %v245 = vmul.f32 %v223, %v237
      %v246 = vmul.f32 %v224, %v237
      %v247 = vmul.f32 %v225, %v237
      %v248 = vmul.f32 %v226, %v237
      %v249 = vmul.f32 %v227, %v237
      %v250 = vmul.f32 %v228, %v237
      %v251 = vmul.f32 %v229, %v237
      %v252 = vmul.f32 %v230, %v237
      %v253 = vmul.f32 %v231, %v237
      %v254 = vmul.f32 %v232, %v237
      %v256 = vlaneseq
      %v257 = vshrl.u32 %v256, 7
      %v258 = vsub.s32 0, %v257
      %v259 = vrot.slane %v216, %v258
      %v261 = vadd.f32 %v239, %v259
      %v262 = vadd.f32 %v240, %v259
      %v263 = vadd.f32 %v241, %v259
      %v264 = vadd.f32 %v242, %v259
      %v265 = vadd.f32 %v243, %v259
      %v266 = vadd.f32 %v244, %v259
      %v267 = vadd.f32 %v245, %v259
      %v268 = vadd.f32 %v246, %v259
      %v269 = vadd.f32 %v247, %v259
      %v270 = vadd.f32 %v248, %v259
      %v271 = vadd.f32 %v249, %v259
      %v272 = vadd.f32 %v250, %v259
      %v273 = vadd.f32 %v251, %v259
      %v274 = vadd.f32 %v252, %v259
      %v275 = vadd.f32 %v253, %v259
      %v276 = vadd.f32 %v254, %v259
      %v277 = vmax.f32 %v261, 0.0
      %v278 = vmax.f32 %v262, 0.0
      %v279 = vmax.f32 %v263, 0.0
      %v280 = vmax.f32 %v264, 0.0
      %v281 = vmax.f32 %v265, 0.0
      %v282 = vmax.f32 %v266, 0.0
      %v283 = vmax.f32 %v267, 0.0
      %v284 = vmax.f32 %v268, 0.0
      %v285 = vmax.f32 %v269, 0.0
      %v286 = vmax.f32 %v270, 0.0
      %v287 = vmax.f32 %v271, 0.0
      %v288 = vmax.f32 %v272, 0.0
      %v289 = vmax.f32 %v273, 0.0
      %v290 = vmax.f32 %v274, 0.0
      %v291 = vmax.f32 %v275, 0.0
      %v292 = vmax.f32 %v276, 0.0
      %v293 = vpack.c.bf16 %v278, %v277
      %v294 = vpack.c.bf16 %v280, %v279
      %v295 = vpack.c.bf16 %v282, %v281
      %v296 = vpack.c.bf16 %v284, %v283
      %v297 = vpack.c.bf16 %v286, %v285
      %v298 = vpack.c.bf16 %v288, %v287
      %v299 = vpack.c.bf16 %v290, %v289
      %v300 = vpack.c.bf16 %v292, %v291
      %v309 = vunpack.c.l.b16 %v293
      %v310 = vunpack.c.h.b16 %v293
      %v311 = vunpack.c.l.b16 %v294
      %v312 = vunpack.c.h.b16 %v294
      %v313 = vunpack.c.l.b16 %v295
      %v314 = vunpack.c.h.b16 %v295
      %v315 = vunpack.c.l.b16 %v296
      %v316 = vunpack.c.h.b16 %v296
      %v317 = vunpack.c.l.b16 %v297
      %v318 = vunpack.c.h.b16 %v297
      %v319 = vunpack.c.l.b16 %v298
      %v320 = vunpack.c.h.b16 %v298
      %v321 = vunpack.c.l.b16 %v299
      %v322 = vunpack.c.h.b16 %v299
      %v323 = vunpack.c.l.b16 %v300
      %v324 = vunpack.c.h.b16 %v300
      %v325 = vpack.c.b16 %v309, %v309
      %v326 = vpack.c.b16 %v310, %v310
      %v327 = vpack.c.b16 %v311, %v311
      %v328 = vpack.c.b16 %v312, %v312
      %v329 = vpack.c.b16 %v313, %v313
      %v330 = vpack.c.b16 %v314, %v314
      %v331 = vpack.c.b16 %v315, %v315
      %v332 = vpack.c.b16 %v316, %v316
      %v333 = vpack.c.b16 %v317, %v317
      %v334 = vpack.c.b16 %v318, %v318
      %v335 = vpack.c.b16 %v319, %v319
      %v336 = vpack.c.b16 %v320, %v320
      %v337 = vpack.c.b16 %v321, %v321
      %v338 = vpack.c.b16 %v322, %v322
      %v339 = vpack.c.b16 %v323, %v323
      %v340 = vpack.c.b16 %v324, %v324
      %357 = vst [vmem:[%s213] sm:$0xf] %v325
      %358 = vst [vmem:[%s213 + $0x4] sm:$0xf] %v326
      %359 = vst [vmem:[%s213 + $0x8] sm:$0xf] %v327
      %360 = vst [vmem:[%s213 + $0xc] sm:$0xf] %v328
      %361 = vst [vmem:[%s213 + $0x10] sm:$0xf] %v329
      %362 = vst [vmem:[%s213 + $0x14] sm:$0xf] %v330
      %363 = vst [vmem:[%s213 + $0x18] sm:$0xf] %v331
      %364 = vst [vmem:[%s213 + $0x1c] sm:$0xf] %v332
      %365 = vst [vmem:[%s213 + $0x20] sm:$0xf] %v333
      %366 = vst [vmem:[%s213 + $0x24] sm:$0xf] %v334
      %367 = vst [vmem:[%s213 + $0x28] sm:$0xf] %v335
      %368 = vst [vmem:[%s213 + $0x2c] sm:$0xf] %v336
      %369 = vst [vmem:[%s213 + $0x30] sm:$0xf] %v337
      %370 = vst [vmem:[%s213 + $0x34] sm:$0xf] %v338
      %371 = vst [vmem:[%s213 + $0x38] sm:$0xf] %v339
      %372 = vst [vmem:[%s213 + $0x3c] sm:$0xf] %v340
      %s373 = smul.u32 8, %s19
      %p374 = scmp.lt.s32.totalorder %s18, 1
      %s375 = scalar_select %p374, %s18, 1
      %p376 = scmp.lt.s32.totalorder %s373, 15
      %s377 = scalar_select %p376, %s373, 15
      %s378 = smul.addr %s377, 2
      %s379 = smul.addr %s375, 32
      %s380 = sadd.s32 %s378, %s379
      %s381 = smul.addr %s380, 4
      %s382 = scalar_lea.vmem %s3, %s381
      // Predicated region
      $region33: #{unet_forward.19} parent=31 // pred_check
        %p383 = pneg %p116
      $region34: #{unet_forward.19} parent=31 // pred_check_branch
        %385 = sbr.rel (%p383) target = $region36
      $region35: #{unet_forward.19} parent=31 // pred_region
        %s386 = smul.u32 8, %s19
      $region36: #{unet_forward.19} parent=31 // pred_fallthru
        _
    $region32: #{unet_forward.19} parent=5 // pred_fallthru
      _
    %p387 = scmp.le.s32.totalorder 2, %s9
    // Predicated region
    $region37: #{unet_forward.19} parent=5 // pred_check
      %p388 = pneg %p387
    $region38: #{unet_forward.19} parent=5 // pred_check_branch
      %390 = sbr.rel (%p388) target = $region40
    $region39: #{unet_forward.19} parent=5 // pred_region
      %s391 = ssub.s32 %s9, 2
      // Predicated region
      $region41: #{unet_forward.19} parent=39 // pred_check
        %p392 = pneg %p122
      $region42: #{unet_forward.19} parent=39 // pred_check_branch
        %394 = sbr.rel (%p392) target = $region44
      $region43: #{unet_forward.19} parent=39 // pred_region
        %s395 = smul.u32 8, %s21
        %p396 = scmp.lt.s32.totalorder %s20, 1
        %s397 = scalar_select %p396, %s20, 1
        %p398 = scmp.lt.s32.totalorder %s395, 15
        %s399 = scalar_select %p398, %s395, 15
        %s400 = smul.addr %s399, 2
        %s401 = smul.addr %s397, 32
        %s402 = sadd.s32 %s400, %s401
        %s403 = smul.addr %s402, 4
        %s404 = scalar_lea.vmem %s3, %s403
      $region44: #{unet_forward.19} parent=39 // pred_fallthru
        _
    $region40: #{unet_forward.19} parent=5 // pred_fallthru
      _
  $region6: #{unet_forward.19} parent=0 // loop_footer
    %s13 = sadd.s32 1, %s9
  $region7: #{unet_forward.19} parent=0 // loop_footer_branch
    %8 = sbr.rel target = $region3
  $region8: #{unet_forward.19} parent=0 // loop_exit
    _

// kernel: unet_forward.26
$region0: #{unet_forward.26}
  #allocation0 [shape = 'u32[]', space=smem, size = 0x4, offset = 0x4, fixed_abs, tag = 'smem constant byte address 0x4 - core index']
  #allocation1 [shape = 'u32[144,128]{1,0:T(1,128)}', space=vmem, size = 0x12000, scoped, tag = 'internal scratch']
  %s0 = inlined_call_operand.vmem [shape: bf16[2,16,16,128], index: 0, kind: input, shape index: {}]
  %s1 = inlined_call_operand.vmem [shape: bf16[2,8,8,128], index: 1, kind: output, shape index: {}]
  %s2 = sld [smem:[#allocation0]]
  $region37: #{unet_forward.26} parent=0
    _
  %s4 = ssub.s32 1, %s2
  %s5 = scalar_select 0, %s4, %s2
  loop: start=0, step=1, limit=4
  $region2: #{unet_forward.26} parent=0 // loop_pre_header
    _
  $region3: #{unet_forward.26} parent=0 // loop_header
    %s7 = sphi 0, %s11
    %p8 = scmp.ge.s32.totalorder %s7, 4
    %s17 = sphi 0, %s19
    %s20 = sphi 0, %s17
    %s21 = sphi 0, %s20
    %s37 = sphi 0, %s21
    %s43 = sphi 0, %s45
    %s46 = sphi 0, %s43
    %s47 = sphi 0, %s46
    %s63 = sphi 0, %s47
  $region4: #{unet_forward.26} parent=0 // loop_header_branch
    %10 = sbr.rel (%p8) target = $region8
  $region5: #{unet_forward.26} parent=0 // loop_body
    %s12 = ssub.s32 %s7, 1
    %s13 = ssub.s32 %s7, 2
    %s14 = sadd.s32 %s7, 1
    %s15 = ssub.s32 %s7, %s14
    %p16 = scmp.eq.s32.totalorder %s15, 0
    %s18 = sadd.s32 %s17, 1
    %s19 = scalar_select %p16, %s17, %s18
    %p22 = pneg %p16
    %p23 = scmp.eq.s32.totalorder %s7, 1
    %p24 = por %p22, %p23
    %p25 = scmp.ne.s32.totalorder %s17, %s20
    %p26 = scmp.eq.s32.totalorder %s7, 0
    %p27 = por %p25, %p26
    %p28 = scmp.ne.s32.totalorder %s17, %s20
    %p29 = scmp.eq.s32.totalorder %s12, 1
    %p30 = por %p28, %p29
    %p31 = scmp.ne.s32.totalorder %s20, %s21
    %p32 = scmp.eq.s32.totalorder %s12, 0
    %p33 = por %p31, %p32
    %p34 = scmp.ne.s32.totalorder %s20, %s21
    %p35 = scmp.eq.s32.totalorder %s13, 1
    %p36 = por %p34, %p35
    %p38 = scmp.ne.s32.totalorder %s21, %s37
    %p39 = scmp.eq.s32.totalorder %s13, 0
    %p40 = por %p38, %p39
    %s41 = ssub.s32 %s7, %s14
    %p42 = scmp.eq.s32.totalorder %s41, 0
    %s44 = sadd.s32 %s43, 1
    %s45 = scalar_select %p42, %s43, %s44
    %p48 = pneg %p42
    %p49 = scmp.eq.s32.totalorder %s7, 1
    %p50 = por %p48, %p49
    %p51 = scmp.ne.s32.totalorder %s43, %s46
    %p52 = scmp.eq.s32.totalorder %s7, 0
    %p53 = por %p51, %p52
    %p54 = scmp.ne.s32.totalorder %s43, %s46
    %p55 = scmp.eq.s32.totalorder %s12, 1
    %p56 = por %p54, %p55
    %p57 = scmp.ne.s32.totalorder %s46, %s47
    %p58 = scmp.eq.s32.totalorder %s12, 0
    %p59 = por %p57, %p58
    %p60 = scmp.ne.s32.totalorder %s46, %s47
    %p61 = scmp.eq.s32.totalorder %s13, 1
    %p62 = por %p60, %p61
    %p64 = scmp.ne.s32.totalorder %s47, %s63
    %p65 = scmp.eq.s32.totalorder %s13, 0
    %p66 = por %p64, %p65
    %p67 = scmp.le.s32.totalorder 1, %s7
    %p68 = scmp.lt.s32.totalorder %s7, 3
    %p69 = pnand %p67, %p68
    %p70 = pneg %p69
    // Predicated region
    $region9: #{unet_forward.26} parent=5 // pred_check
      _
    $region10: #{unet_forward.26} parent=5 // pred_check_branch
      %72 = sbr.rel (%p69) target = $region12
    $region11: #{unet_forward.26} parent=5 // pred_region
      %s73 = ssub.s32 %s7, 1
    $region12: #{unet_forward.26} parent=5 // pred_fallthru
      _
    %p74 = scmp.lt.s32.totalorder %s7, 2
    // Predicated region
    $region13: #{unet_forward.26} parent=5 // pred_check
      %p75 = pneg %p74
    $region14: #{unet_forward.26} parent=5 // pred_check_branch
      %77 = sbr.rel (%p75) target = $region16
    $region15: #{unet_forward.26} parent=5 // pred_region
      // Predicated region
      $region17: #{unet_forward.26} parent=15 // pred_check
        %p78 = pneg %p27
      $region18: #{unet_forward.26} parent=15 // pred_check_branch
        %80 = sbr.rel (%p78) target = $region20
      $region19: #{unet_forward.26} parent=15 // pred_region
        %p81 = scmp.lt.s32.totalorder %s7, 1
        %s82 = scalar_select %p81, %s7, 1
        %s83 = smul.addr %s82, 32
        %s84 = smul.addr %s83, 4
        %s85 = scalar_lea.vmem %s0, %s84
      $region20: #{unet_forward.26} parent=15 // pred_fallthru
        _
    $region16: #{unet_forward.26} parent=5 // pred_fallthru
      _
    %p86 = scmp.le.s32.totalorder 1, %s7
    %p87 = scmp.lt.s32.totalorder %s7, 3
    %p88 = pnand %p86, %p87
    %p89 = pneg %p88
    // Predicated region
    $region21: #{unet_forward.26} parent=5 // pred_check
      _
    $region22: #{unet_forward.26} parent=5 // pred_check_branch
      %91 = sbr.rel (%p88) target = $region24
    $region23: #{unet_forward.26} parent=5 // pred_region
      %s92 = ssub.s32 %s7, 1
      %p93 = scmp.lt.s32.totalorder %s12, 1
      %s94 = scalar_select %p93, %s12, 1
      %s95 = smul.addr %s94, 32
      %s96 = smul.addr %s95, 4
      %s97 = scalar_lea.vmem %s0, %s96
      %p98 = pneg %p33
      %p99 = pneg %p30
      %p100 = pneg %p59
      %p101 = pneg %p56
      %p102 = scmp.lt.s32.totalorder %s12, 1
      %s103 = scalar_select %p102, %s12, 1
      %s104 = smul.addr %s103, 8
      %s105 = smul.addr %s104, 4
      %s106 = scalar_lea.vmem %s1, %s105
      %p107 = scmp.lt.s32.totalorder %s12, 1
      %s108 = scalar_select %p107, %s12, 1
      %s109 = smul.addr %s108, 32
      %s110 = smul.addr %s109, 4
      %s111 = scalar_lea.vmem %s0, %s110
      %p112 = scmp.lt.s32.totalorder %s12, 1
      %s113 = scalar_select %p112, %s12, 1
      %s114 = smul.addr %s113, 8
      %s115 = smul.addr %s114, 4
      %s116 = scalar_lea.vmem %s1, %s115
      %v117 = vld [vmem:[%s111] sm:$0xf]
      %v118 = vld [vmem:[%s111 + $0x4] sm:$0xf]
      %v119 = vld [vmem:[%s111 + $0x8] sm:$0xf]
      %v120 = vld [vmem:[%s111 + $0xc] sm:$0xf]
      %v121 = vld [vmem:[%s111 + $0x10] sm:$0xf]
      %v122 = vld [vmem:[%s111 + $0x14] sm:$0xf]
      %v123 = vld [vmem:[%s111 + $0x18] sm:$0xf]
      %v124 = vld [vmem:[%s111 + $0x1c] sm:$0xf]
      %v125 = vld [vmem:[%s111 + $0x20] sm:$0xf]
      %v126 = vld [vmem:[%s111 + $0x24] sm:$0xf]
      %v127 = vld [vmem:[%s111 + $0x28] sm:$0xf]
      %v128 = vld [vmem:[%s111 + $0x2c] sm:$0xf]
      %v129 = vld [vmem:[%s111 + $0x30] sm:$0xf]
      %v130 = vld [vmem:[%s111 + $0x34] sm:$0xf]
      %v131 = vld [vmem:[%s111 + $0x38] sm:$0xf]
      %v132 = vld [vmem:[%s111 + $0x3c] sm:$0xf]
      %v133 = vld [vmem:[%s111 + $0x40] sm:$0xf]
      %v134 = vld [vmem:[%s111 + $0x44] sm:$0xf]
      %v135 = vld [vmem:[%s111 + $0x48] sm:$0xf]
      %v136 = vld [vmem:[%s111 + $0x4c] sm:$0xf]
      %v137 = vld [vmem:[%s111 + $0x50] sm:$0xf]
      %v138 = vld [vmem:[%s111 + $0x54] sm:$0xf]
      %v139 = vld [vmem:[%s111 + $0x58] sm:$0xf]
      %v140 = vld [vmem:[%s111 + $0x5c] sm:$0xf]
      %v141 = vld [vmem:[%s111 + $0x60] sm:$0xf]
      %v142 = vld [vmem:[%s111 + $0x64] sm:$0xf]
      %v143 = vld [vmem:[%s111 + $0x68] sm:$0xf]
      %v144 = vld [vmem:[%s111 + $0x6c] sm:$0xf]
      %v145 = vld [vmem:[%s111 + $0x70] sm:$0xf]
      %v146 = vld [vmem:[%s111 + $0x74] sm:$0xf]
      %v147 = vld [vmem:[%s111 + $0x78] sm:$0xf]
      %v148 = vld [vmem:[%s111 + $0x7c] sm:$0xf]
      %v149 = vunpack.c.l.bf16 %v117
      %v150 = vunpack.c.l.bf16 %v118
      %v151 = vunpack.c.l.bf16 %v119
      %v152 = vunpack.c.l.bf16 %v120
      %v153 = vunpack.c.l.bf16 %v121
      %v154 = vunpack.c.l.bf16 %v122
      %v155 = vunpack.c.l.bf16 %v123
      %v156 = vunpack.c.l.bf16 %v124
      %v157 = vunpack.c.l.bf16 %v125
      %v158 = vunpack.c.l.bf16 %v126
      %v159 = vunpack.c.l.bf16 %v127
      %v160 = vunpack.c.l.bf16 %v128
      %v161 = vunpack.c.l.bf16 %v129
      %v162 = vunpack.c.l.bf16 %v130
      %v163 = vunpack.c.l.bf16 %v131
      %v164 = vunpack.c.l.bf16 %v132
      %v165 = vunpack.c.l.bf16 %v133
      %v166 = vunpack.c.l.bf16 %v134
      %v167 = vunpack.c.l.bf16 %v135
      %v168 = vunpack.c.l.bf16 %v136
      %v169 = vunpack.c.l.bf16 %v137
      %v170 = vunpack.c.l.bf16 %v138
      %v171 = vunpack.c.l.bf16 %v139
      %v172 = vunpack.c.l.bf16 %v140
      %v173 = vunpack.c.l.bf16 %v141
      %v174 = vunpack.c.l.bf16 %v142
      %v175 = vunpack.c.l.bf16 %v143
      %v176 = vunpack.c.l.bf16 %v144
      %v177 = vunpack.c.l.bf16 %v145
      %v178 = vunpack.c.l.bf16 %v146
      %v179 = vunpack.c.l.bf16 %v147
      %v180 = vunpack.c.l.bf16 %v148
      %v181 = vmax.f32 %v149, %v151
      %v182 = vmax.f32 %v150, %v152
      %v183 = vmax.f32 %v153, %v155
      %v184 = vmax.f32 %v154, %v156
      %v185 = vmax.f32 %v157, %v159
      %v186 = vmax.f32 %v158, %v160
      %v187 = vmax.f32 %v161, %v163
      %v188 = vmax.f32 %v162, %v164
      %v189 = vmax.f32 %v165, %v167
      %v190 = vmax.f32 %v166, %v168
      %v191 = vmax.f32 %v169, %v171
      %v192 = vmax.f32 %v170, %v172
      %v193 = vmax.f32 %v173, %v175
      %v194 = vmax.f32 %v174, %v176
      %v195 = vmax.f32 %v177, %v179
      %v196 = vmax.f32 %v178, %v180
      %v198 = vunpack.c.l.s4 1966171168
      %v199 = vunpack.c.0.s8 %v198
      %v200 = vlaneseq
      %v201 = vshrl.u32 %v200, 7
      %v202 = vsub.s32 %v199, %v201
      %v203 = vrot.slane %v181, %v202
      %v205 = vunpack.c.l.s4 1966171168
      %v206 = vunpack.c.0.s8 %v205
      %v207 = vlaneseq
      %v208 = vshrl.u32 %v207, 7
      %v209 = vsub.s32 %v206, %v208
      %v210 = vrot.slane %v182, %v209
      %v212 = vunpack.c.l.s4 1966171168
      %v213 = vunpack.c.0.s8 %v212
      %v214 = vlaneseq
      %v215 = vshrl.u32 %v214, 7
      %v216 = vsub.s32 %v213, %v215
      %v217 = vrot.slane %v183, %v216
      %v219 = vunpack.c.l.s4 1966171168
      %v220 = vunpack.c.0.s8 %v219
      %v221 = vlaneseq
      %v222 = vshrl.u32 %v221, 7
      %v223 = vsub.s32 %v220, %v222
      %v224 = vrot.slane %v184, %v223
      %v226 = vunpack.c.l.s4 1966171168
      %v227 = vunpack.c.0.s8 %v226
      %v228 = vlaneseq
      %v229 = vshrl.u32 %v228, 7
      %v230 = vsub.s32 %v227, %v229
      %v231 = vrot.slane %v185, %v230
      %v233 = vunpack.c.l.s4 1966171168
      %v234 = vunpack.c.0.s8 %v233
      %v235 = vlaneseq
      %v236 = vshrl.u32 %v235, 7
      %v237 = vsub.s32 %v234, %v236
      %v238 = vrot.slane %v186, %v237
      %v240 = vunpack.c.l.s4 1966171168
      %v241 = vunpack.c.0.s8 %v240
      %v242 = vlaneseq
      %v243 = vshrl.u32 %v242, 7
      %v244 = vsub.s32 %v241, %v243
      %v245 = vrot.slane %v187, %v244
      %v247 = vunpack.c.l.s4 1966171168
      %v248 = vunpack.c.0.s8 %v247
      %v249 = vlaneseq
      %v250 = vshrl.u32 %v249, 7
      %v251 = vsub.s32 %v248, %v250
      %v252 = vrot.slane %v188, %v251
      %v254 = vunpack.c.l.s4 1966171168
      %v255 = vunpack.c.0.s8 %v254
      %v256 = vlaneseq
      %v257 = vshrl.u32 %v256, 7
      %v258 = vsub.s32 %v255, %v257
      %v259 = vrot.slane %v189, %v258
      %v261 = vunpack.c.l.s4 1966171168
      %v262 = vunpack.c.0.s8 %v261
      %v263 = vlaneseq
      %v264 = vshrl.u32 %v263, 7
      %v265 = vsub.s32 %v262, %v264
      %v266 = vrot.slane %v190, %v265
      %v268 = vunpack.c.l.s4 1966171168
      %v269 = vunpack.c.0.s8 %v268
      %v270 = vlaneseq
      %v271 = vshrl.u32 %v270, 7
      %v272 = vsub.s32 %v269, %v271
      %v273 = vrot.slane %v191, %v272
      %v275 = vunpack.c.l.s4 1966171168
      %v276 = vunpack.c.0.s8 %v275
      %v277 = vlaneseq
      %v278 = vshrl.u32 %v277, 7
      %v279 = vsub.s32 %v276, %v278
      %v280 = vrot.slane %v192, %v279
      %v282 = vunpack.c.l.s4 1966171168
      %v283 = vunpack.c.0.s8 %v282
      %v284 = vlaneseq
      %v285 = vshrl.u32 %v284, 7
      %v286 = vsub.s32 %v283, %v285
      %v287 = vrot.slane %v193, %v286
      %v289 = vunpack.c.l.s4 1966171168
      %v290 = vunpack.c.0.s8 %v289
      %v291 = vlaneseq
      %v292 = vshrl.u32 %v291, 7
      %v293 = vsub.s32 %v290, %v292
      %v294 = vrot.slane %v194, %v293
      %v296 = vunpack.c.l.s4 1966171168
      %v297 = vunpack.c.0.s8 %v296
      %v298 = vlaneseq
      %v299 = vshrl.u32 %v298, 7
      %v300 = vsub.s32 %v297, %v299
      %v301 = vrot.slane %v195, %v300
      %v303 = vunpack.c.l.s4 1966171168
      %v304 = vunpack.c.0.s8 %v303
      %v305 = vlaneseq
      %v306 = vshrl.u32 %v305, 7
      %v307 = vsub.s32 %v304, %v306
      %v308 = vrot.slane %v196, %v307
      %v325 = vrot.slane %v203, 4
      %v326 = vrot.slane %v210, 4
      %v327 = vrot.slane %v217, 4
      %v328 = vrot.slane %v224, 4
      %v329 = vrot.slane %v231, 4
      %v330 = vrot.slane %v238, 4
      %v331 = vrot.slane %v245, 4
      %v332 = vrot.slane %v252, 4
      %v333 = vrot.slane %v259, 4
      %v334 = vrot.slane %v266, 4
      %v335 = vrot.slane %v273, 4
      %v336 = vrot.slane %v280, 4
      %v337 = vrot.slane %v287, 4
      %v338 = vrot.slane %v294, 4
      %v339 = vrot.slane %v301, 4
      %v340 = vrot.slane %v308, 4
      %v357 = vmax.f32 %v203, %v325
      %v358 = vmax.f32 %v210, %v326
      %v359 = vmax.f32 %v217, %v327
      %v360 = vmax.f32 %v224, %v328
      %v361 = vmax.f32 %v231, %v329
      %v362 = vmax.f32 %v238, %v330
      %v363 = vmax.f32 %v245, %v331
      %v364 = vmax.f32 %v252, %v332
      %v365 = vmax.f32 %v259, %v333
      %v366 = vmax.f32 %v266, %v334
      %v367 = vmax.f32 %v273, %v335
      %v368 = vmax.f32 %v280, %v336
      %v369 = vmax.f32 %v287, %v337
      %v370 = vmax.f32 %v294, %v338
      %v371 = vmax.f32 %v301, %v339
      %v372 = vmax.f32 %v308, %v340
      %v389 = vcombine.low %v357, %v358
      %v390 = vcombine.low %v359, %v360
      %v391 = vcombine.low %v361, %v362
      %v392 = vcombine.low %v363, %v364
      %v393 = vcombine.low %v365, %v366
      %v394 = vcombine.low %v367, %v368
      %v395 = vcombine.low %v369, %v370
      %v396 = vcombine.low %v371, %v372
      %v405 = vpack.c.bf16 %v389, %v389
      %v406 = vpack.c.bf16 %v390, %v390
      %v407 = vpack.c.bf16 %v391, %v391
      %v408 = vpack.c.bf16 %v392, %v392
      %v409 = vpack.c.bf16 %v393, %v393
      %v410 = vpack.c.bf16 %v394, %v394
      %v411 = vpack.c.bf16 %v395, %v395
      %v412 = vpack.c.bf16 %v396, %v396
      %413 = vst [vmem:[%s116] sm:$0xf] %v405
      %414 = vst [vmem:[%s116 + $0x4] sm:$0xf] %v406
      %415 = vst [vmem:[%s116 + $0x8] sm:$0xf] %v407
      %416 = vst [vmem:[%s116 + $0xc] sm:$0xf] %v408
      %417 = vst [vmem:[%s116 + $0x10] sm:$0xf] %v409
      %418 = vst [vmem:[%s116 + $0x14] sm:$0xf] %v410
      %419 = vst [vmem:[%s116 + $0x18] sm:$0xf] %v411
      %420 = vst [vmem:[%s116 + $0x1c] sm:$0xf] %v412
      %p421 = scmp.lt.s32.totalorder %s12, 1
      %s422 = scalar_select %p421, %s12, 1
      %s423 = smul.addr %s422, 8
      %s424 = smul.addr %s423, 4
      %s425 = scalar_lea.vmem %s1, %s424
      // Predicated region
      $region25: #{unet_forward.26} parent=23 // pred_check
        %p426 = pneg %p56
      $region26: #{unet_forward.26} parent=23 // pred_check_branch
        %428 = sbr.rel (%p426) target = $region28
      $region27: #{unet_forward.26} parent=23 // pred_region
        _
      $region28: #{unet_forward.26} parent=23 // pred_fallthru
        _
    $region24: #{unet_forward.26} parent=5 // pred_fallthru
      _
    %p429 = scmp.le.s32.totalorder 2, %s7
    // Predicated region
    $region29: #{unet_forward.26} parent=5 // pred_check
      %p430 = pneg %p429
    $region30: #{unet_forward.26} parent=5 // pred_check_branch
      %432 = sbr.rel (%p430) target = $region32
    $region31: #{unet_forward.26} parent=5 // pred_region
      %s433 = ssub.s32 %s7, 2
      // Predicated region
      $region33: #{unet_forward.26} parent=31 // pred_check
        %p434 = pneg %p62
      $region34: #{unet_forward.26} parent=31 // pred_check_branch
        %436 = sbr.rel (%p434) target = $region36
      $region35: #{unet_forward.26} parent=31 // pred_region
        %p437 = scmp.lt.s32.totalorder %s13, 1
        %s438 = scalar_select %p437, %s13, 1
        %s439 = smul.addr %s438, 8
        %s440 = smul.addr %s439, 4
        %s441 = scalar_lea.vmem %s1, %s440
      $region36: #{unet_forward.26} parent=31 // pred_fallthru
        _
    $region32: #{unet_forward.26} parent=5 // pred_fallthru
      _
  $region6: #{unet_forward.26} parent=0 // loop_footer
    %s11 = sadd.s32 1, %s7
  $region7: #{unet_forward.26} parent=0 // loop_footer_branch
    %6 = sbr.rel target = $region3
  $region8: #{unet_forward.26} parent=0 // loop_exit
    _

// kernel: unet_forward.27
$region0: #{unet_forward.27}
  #allocation0 [shape = 'u32[]', space=smem, size = 0x4, offset = 0x4, fixed_abs, tag = 'smem constant byte address 0x4 - core index']
  #allocation1 [shape = 'u32[144,128]{1,0:T(1,128)}', space=vmem, size = 0x12000, scoped, tag = 'internal scratch']
  %s0 = inlined_call_operand.vmem [shape: bf16[2,8,8,128], index: 0, kind: input, shape index: {}]
  %s1 = inlined_call_operand.vmem [shape: bf16[4,128,128], index: 1, kind: input, shape index: {}]
  %s2 = inlined_call_operand.vmem [shape: f32[1,128], index: 2, kind: input, shape index: {}]
  %s3 = inlined_call_operand.vmem [shape: bf16[2,16,16,128], index: 3, kind: output, shape index: {}]
  %s4 = sld [smem:[#allocation0]]
  $region45: #{unet_forward.27} parent=0
    _
  %s6 = ssub.s32 1, %s4
  %s7 = scalar_select 0, %s6, %s4
  loop: start=0, step=1, limit=4
  $region2: #{unet_forward.27} parent=0 // loop_pre_header
    _
  $region3: #{unet_forward.27} parent=0 // loop_header
    %s9 = sphi 0, %s13
    %p10 = scmp.ge.s32.totalorder %s9, 4
    %s19 = sphi 0, %s21
    %s22 = sphi 0, %s19
    %s23 = sphi 0, %s22
    %s39 = sphi 0, %s23
    %s43 = sphi 0, %s43
    %s45 = sphi 0, %s43
    %s46 = sphi 0, %s45
    %s60 = sphi 0, %s46
    %s64 = sphi 0, %s64
    %s66 = sphi 0, %s64
    %s67 = sphi 0, %s66
    %s81 = sphi 0, %s67
    %s87 = sphi 0, %s89
    %s90 = sphi 0, %s87
    %s91 = sphi 0, %s90
    %s107 = sphi 0, %s91
  $region4: #{unet_forward.27} parent=0 // loop_header_branch
    %12 = sbr.rel (%p10) target = $region8
  $region5: #{unet_forward.27} parent=0 // loop_body
    %s14 = ssub.s32 %s9, 1
    %s15 = ssub.s32 %s9, 2
    %s16 = sadd.s32 %s9, 1
    %s17 = ssub.s32 %s9, %s16
    %p18 = scmp.eq.s32.totalorder %s17, 0
    %s20 = sadd.s32 %s19, 1
    %s21 = scalar_select %p18, %s19, %s20
    %p24 = pneg %p18
    %p25 = scmp.eq.s32.totalorder %s9, 1
    %p26 = por %p24, %p25
    %p27 = scmp.ne.s32.totalorder %s19, %s22
    %p28 = scmp.eq.s32.totalorder %s9, 0
    %p29 = por %p27, %p28
    %p30 = scmp.ne.s32.totalorder %s19, %s22
    %p31 = scmp.eq.s32.totalorder %s14, 1
    %p32 = por %p30, %p31
    %p33 = scmp.ne.s32.totalorder %s22, %s23
    %p34 = scmp.eq.s32.totalorder %s14, 0
    %p35 = por %p33, %p34
    %p36 = scmp.ne.s32.totalorder %s22, %s23
    %p37 = scmp.eq.s32.totalorder %s15, 1
    %p38 = por %p36, %p37
    %p40 = scmp.ne.s32.totalorder %s23, %s39
    %p41 = scmp.eq.s32.totalorder %s15, 0
    %p42 = por %p40, %p41
    %s44 = sadd.s32 %s43, 1
    %p47 = scmp.eq.s32.totalorder %s9, 1
    %p48 = scmp.ne.s32.totalorder %s43, %s45
    %p49 = scmp.eq.s32.totalorder %s9, 0
    %p50 = por %p48, %p49
    %p51 = scmp.ne.s32.totalorder %s43, %s45
    %p52 = scmp.eq.s32.totalorder %s14, 1
    %p53 = por %p51, %p52
    %p54 = scmp.ne.s32.totalorder %s45, %s46
    %p55 = scmp.eq.s32.totalorder %s14, 0
    %p56 = por %p54, %p55
    %p57 = scmp.ne.s32.totalorder %s45, %s46
    %p58 = scmp.eq.s32.totalorder %s15, 1
    %p59 = por %p57, %p58
    %p61 = scmp.ne.s32.totalorder %s46, %s60
    %p62 = scmp.eq.s32.totalorder %s15, 0
    %p63 = por %p61, %p62
    %s65 = sadd.s32 %s64, 1
    %p68 = scmp.eq.s32.totalorder %s9, 1
    %p69 = scmp.ne.s32.totalorder %s64, %s66
    %p70 = scmp.eq.s32.totalorder %s9, 0
    %p71 = por %p69, %p70
    %p72 = scmp.ne.s32.totalorder %s64, %s66
    %p73 = scmp.eq.s32.totalorder %s14, 1
    %p74 = por %p72, %p73
    %p75 = scmp.ne.s32.totalorder %s66, %s67
    %p76 = scmp.eq.s32.totalorder %s14, 0
    %p77 = por %p75, %p76
    %p78 = scmp.ne.s32.totalorder %s66, %s67
    %p79 = scmp.eq.s32.totalorder %s15, 1
    %p80 = por %p78, %p79
    %p82 = scmp.ne.s32.totalorder %s67, %s81
    %p83 = scmp.eq.s32.totalorder %s15, 0
    %p84 = por %p82, %p83
    %s85 = ssub.s32 %s9, %s16
    %p86 = scmp.eq.s32.totalorder %s85, 0
    %s88 = sadd.s32 %s87, 1
    %s89 = scalar_select %p86, %s87, %s88
    %p92 = pneg %p86
    %p93 = scmp.eq.s32.totalorder %s9, 1
    %p94 = por %p92, %p93
    %p95 = scmp.ne.s32.totalorder %s87, %s90
    %p96 = scmp.eq.s32.totalorder %s9, 0
    %p97 = por %p95, %p96
    %p98 = scmp.ne.s32.totalorder %s87, %s90
    %p99 = scmp.eq.s32.totalorder %s14, 1
    %p100 = por %p98, %p99
    %p101 = scmp.ne.s32.totalorder %s90, %s91
    %p102 = scmp.eq.s32.totalorder %s14, 0
    %p103 = por %p101, %p102
    %p104 = scmp.ne.s32.totalorder %s90, %s91
    %p105 = scmp.eq.s32.totalorder %s15, 1
    %p106 = por %p104, %p105
    %p108 = scmp.ne.s32.totalorder %s91, %s107
    %p109 = scmp.eq.s32.totalorder %s15, 0
    %p110 = por %p108, %p109
    %p111 = scmp.le.s32.totalorder 1, %s9
    %p112 = scmp.lt.s32.totalorder %s9, 3
    %p113 = pnand %p111, %p112
    %p114 = pneg %p113
    // Predicated region
    $region9: #{unet_forward.27} parent=5 // pred_check
      _
    $region10: #{unet_forward.27} parent=5 // pred_check_branch
      %116 = sbr.rel (%p113) target = $region12
    $region11: #{unet_forward.27} parent=5 // pred_region
      %s117 = ssub.s32 %s9, 1
      // Predicated region
      $region13: #{unet_forward.27} parent=11 // pred_check
        %p118 = pneg %p56
      $region14: #{unet_forward.27} parent=11 // pred_check_branch
        %120 = sbr.rel (%p118) target = $region16
      $region15: #{unet_forward.27} parent=11 // pred_region
        _
      $region16: #{unet_forward.27} parent=11 // pred_fallthru
        _
      // Predicated region
      $region17: #{unet_forward.27} parent=11 // pred_check
        %p121 = pneg %p77
      $region18: #{unet_forward.27} parent=11 // pred_check_branch
        %123 = sbr.rel (%p121) target = $region20
      $region19: #{unet_forward.27} parent=11 // pred_region
        _
      $region20: #{unet_forward.27} parent=11 // pred_fallthru
        _
    $region12: #{unet_forward.27} parent=5 // pred_fallthru
      _
    %p124 = scmp.lt.s32.totalorder %s9, 2
    // Predicated region
    $region21: #{unet_forward.27} parent=5 // pred_check
      %p125 = pneg %p124
    $region22: #{unet_forward.27} parent=5 // pred_check_branch
      %127 = sbr.rel (%p125) target = $region24
    $region23: #{unet_forward.27} parent=5 // pred_region
      // Predicated region
      $region25: #{unet_forward.27} parent=23 // pred_check
        %p128 = pneg %p29
      $region26: #{unet_forward.27} parent=23 // pred_check_branch
        %130 = sbr.rel (%p128) target = $region28
      $region27: #{unet_forward.27} parent=23 // pred_region
        %p131 = scmp.lt.s32.totalorder %s9, 1
        %s132 = scalar_select %p131, %s9, 1
        %s133 = smul.addr %s132, 8
        %s134 = smul.addr %s133, 4
        %s135 = scalar_lea.vmem %s0, %s134
      $region28: #{unet_forward.27} parent=23 // pred_fallthru
        _
    $region24: #{unet_forward.27} parent=5 // pred_fallthru
      _
    %p136 = scmp.le.s32.totalorder 1, %s9
    %p137 = scmp.lt.s32.totalorder %s9, 3
    %p138 = pnand %p136, %p137
    %p139 = pneg %p138
    // Predicated region
    $region29: #{unet_forward.27} parent=5 // pred_check
      _
    $region30: #{unet_forward.27} parent=5 // pred_check_branch
      %141 = sbr.rel (%p138) target = $region32
    $region31: #{unet_forward.27} parent=5 // pred_region
      %s142 = ssub.s32 %s9, 1
      %p143 = scmp.lt.s32.totalorder %s14, 1
      %s144 = scalar_select %p143, %s14, 1
      %s145 = smul.addr %s144, 8
      %s146 = smul.addr %s145, 4
      %s147 = scalar_lea.vmem %s0, %s146
      %p148 = pneg %p35
      %p149 = pneg %p32
      %p150 = pneg %p56
      %p151 = pneg %p53
      %p152 = pneg %p77
      %p153 = pneg %p74
      %p154 = pneg %p103
      %p155 = pneg %p100
      %p156 = scmp.lt.s32.totalorder %s14, 1
      %s157 = scalar_select %p156, %s14, 1
      %s158 = smul.addr %s157, 32
      %s159 = smul.addr %s158, 4
      %s160 = scalar_lea.vmem %s3, %s159
      %p161 = scmp.lt.s32.totalorder %s14, 1
      %s162 = scalar_select %p161, %s14, 1
      %s163 = smul.addr %s162, 8
      %s164 = smul.addr %s163, 4
      %s165 = scalar_lea.vmem %s0, %s164
      %p166 = scmp.lt.s32.totalorder %s14, 1
      %s167 = scalar_select %p166, %s14, 1
      %s168 = smul.addr %s167, 32
      %s169 = smul.addr %s168, 4
      %s170 = scalar_lea.vmem %s3, %s169
      %v172 = vld [vmem:[%s165] sm:$0xf]
      %v173 = vld [vmem:[%s165 + $0x4] sm:$0xf]
      %v174 = vld [vmem:[%s165 + $0x8] sm:$0xf]
      %v175 = vld [vmem:[%s165 + $0xc] sm:$0xf]
      %v176 = vld [vmem:[%s165 + $0x10] sm:$0xf]
      %v177 = vld [vmem:[%s165 + $0x14] sm:$0xf]
      %v178 = vld [vmem:[%s165 + $0x18] sm:$0xf]
      %v179 = vld [vmem:[%s165 + $0x1c] sm:$0xf]
      %v180 = vld [vmem:[%s2] sm:$0x1]
      %v181 = vld [vmem:[%s1] sm:$0xf]
      %v182 = vld [vmem:[%s1 + $0x4] sm:$0xf]
      %v183 = vld [vmem:[%s1 + $0x8] sm:$0xf]
      %v184 = vld [vmem:[%s1 + $0xc] sm:$0xf]
      %v185 = vld [vmem:[%s1 + $0x10] sm:$0xf]
      %v186 = vld [vmem:[%s1 + $0x14] sm:$0xf]
      %v187 = vld [vmem:[%s1 + $0x18] sm:$0xf]
      %v188 = vld [vmem:[%s1 + $0x1c] sm:$0xf]
      %v189 = vld [vmem:[%s1 + $0x20] sm:$0xf]
      %v190 = vld [vmem:[%s1 + $0x24] sm:$0xf]
      %v191 = vld [vmem:[%s1 + $0x28] sm:$0xf]
      %v192 = vld [vmem:[%s1 + $0x2c] sm:$0xf]
      %v193 = vld [vmem:[%s1 + $0x30] sm:$0xf]
      %v194 = vld [vmem:[%s1 + $0x34] sm:$0xf]
      %v195 = vld [vmem:[%s1 + $0x38] sm:$0xf]
      %v196 = vld [vmem:[%s1 + $0x3c] sm:$0xf]
      %v198 = vlaneseq
      %v199 = vshrl.u32 %v198, 7
      %v200 = vsub.s32 0, %v199
      %v201 = vrot.slane %v180, %v200
      %v211 = vunpack.c.l.b16 %v172
      %v212 = vunpack.c.l.b16 %v173
      %v213 = vunpack.c.l.b16 %v174
      %v214 = vunpack.c.l.b16 %v175
      %v215 = vunpack.c.l.b16 %v176
      %v216 = vunpack.c.l.b16 %v177
      %v217 = vunpack.c.l.b16 %v178
      %v218 = vunpack.c.l.b16 %v179
      %v219 = vpack.c.b16 %v212, %v211
      %v220 = vpack.c.b16 %v214, %v213
      %v221 = vpack.c.b16 %v216, %v215
      %v222 = vpack.c.b16 %v218, %v217
      %v243 = vunpack.c.l.b16 %v181
      %v244 = vunpack.c.l.b16 %v182
      %v245 = vunpack.c.l.b16 %v183
      %v246 = vunpack.c.l.b16 %v184
      %v247 = vunpack.c.l.b16 %v185
      %v248 = vunpack.c.l.b16 %v186
      %v249 = vunpack.c.l.b16 %v187
      %v250 = vunpack.c.l.b16 %v188
      %v251 = vunpack.c.l.b16 %v189
      %v252 = vunpack.c.l.b16 %v190
      %v253 = vunpack.c.l.b16 %v191
      %v254 = vunpack.c.l.b16 %v192
      %v255 = vunpack.c.l.b16 %v193
      %v256 = vunpack.c.l.b16 %v194
      %v257 = vunpack.c.l.b16 %v195
      %v258 = vunpack.c.l.b16 %v196
      %v259 = vpack.c.b16 %v244, %v243
      %v260 = vpack.c.b16 %v246, %v245
      %v261 = vpack.c.b16 %v248, %v247
      %v262 = vpack.c.b16 %v250, %v249
      %v263 = vpack.c.b16 %v252, %v251
      %v264 = vpack.c.b16 %v254, %v253
      %v265 = vpack.c.b16 %v256, %v255
      %v266 = vpack.c.b16 %v258, %v257
      %275 = vmatprep.subr.bf16.mxu0 0
      %276 = vmatpush1.bf16.msra.mxu0 %v266
      %277 = vmatprep.subr.bf16.mxu0 0
      %278 = vmatpush1.bf16.msra.mxu0 %v265
      %279 = vmatprep.subr.bf16.mxu0 0
      %280 = vmatpush1.bf16.msra.mxu0 %v264
      %281 = vmatprep.subr.bf16.mxu0 0
      %282 = vmatpush1.bf16.msra.mxu0 %v263
      %283 = vmatprep.subr.bf16.mxu0 0
      %284 = vmatpush1.bf16.msra.mxu0 %v262
      %285 = vmatprep.subr.bf16.mxu0 0
      %286 = vmatpush1.bf16.msra.mxu0 %v261
      %287 = vmatprep.subr.bf16.mxu0 0
      %288 = vmatpush1.bf16.msra.mxu0 %v260
      %289 = vmatprep.subr.bf16.mxu0 0
      %290 = vmatpush1.bf16.msra.mxu0 %v259
      %291 = vmatprep.subr.bf16.mxu0 0
      %292 = vmatpush2.bf16.msra.mxu0 0
      %293 = vmatprep.subr.bf16.mxu0 0
      %294 = vmatpush2.bf16.msra.mxu0 0
      %295 = vmatprep.subr.bf16.mxu0 0
      %296 = vmatpush2.bf16.msra.mxu0 0
      %297 = vmatprep.subr.bf16.mxu0 0
      %298 = vmatpush2.bf16.msra.mxu0 0
      %299 = vmatprep.subr.bf16.mxu0 0
      %300 = vmatpush2.bf16.msra.mxu0 0
      %301 = vmatprep.subr.bf16.mxu0 0
      %302 = vmatpush2.bf16.msra.mxu0 0
      %303 = vmatprep.subr.bf16.mxu0 0
      %304 = vmatpush2.bf16.msra.mxu0 0
      %305 = vmatprep.subr.bf16.mxu0 0
      %306 = vmatpush2.bf16.msra.mxu0 0
      %307 = vmatprep.mubr.bf16.mxu0 0
      %308 = vmatmul.mubr.bf16.gmra.mxu0 %v219
      %v309 = vpop.f32.mrf.mxu0
      %v310 = vadd.f32 %v201, %v309
      %v311 = vpop.f32.mrf.mxu0
      %v312 = vpop.f32.mrf.mxu0
      %v313 = vadd.f32 %v201, %v312
      %v314 = vpop.f32.mrf.mxu0
      %315 = vmatprep.mubr.bf16.mxu0 0
      %316 = vmatmul.mubr.bf16.gmra.mxu0 %v220
      %v317 = vpop.f32.mrf.mxu0
      %v318 = vadd.f32 %v201, %v317
      %v319 = vpop.f32.mrf.mxu0
      %v320 = vpop.f32.mrf.mxu0
      %v321 = vadd.f32 %v201, %v320
      %v322 = vpop.f32.mrf.mxu0
      %323 = vmatprep.mubr.bf16.mxu0 0
      %324 = vmatmul.mubr.bf16.gmra.mxu0 %v221
      %v325 = vpop.f32.mrf.mxu0
      %v326 = vadd.f32 %v201, %v325
      %v327 = vpop.f32.mrf.mxu0
      %v328 = vpop.f32.mrf.mxu0
      %v329 = vadd.f32 %v201, %v328
      %v330 = vpop.f32.mrf.mxu0
      %331 = vmatprep.mubr.bf16.mxu0 0
      %332 = vmatmul.mubr.bf16.gmra.mxu0 %v222
      %v333 = vpop.f32.mrf.mxu0
      %v334 = vadd.f32 %v201, %v333
      %v335 = vpop.f32.mrf.mxu0
      %v336 = vpop.f32.mrf.mxu0
      %v337 = vadd.f32 %v201, %v336
      %v338 = vpop.f32.mrf.mxu0
      %339 = vdwg.mxu0
      %s340 = scalar_lea.vmem %s1, 64
      %v341 = vld [vmem:[%s340] sm:$0xf]
      %v342 = vld [vmem:[%s340 + $0x4] sm:$0xf]
      %v343 = vld [vmem:[%s340 + $0x8] sm:$0xf]
      %v344 = vld [vmem:[%s340 + $0xc] sm:$0xf]
      %v345 = vld [vmem:[%s340 + $0x10] sm:$0xf]
      %v346 = vld [vmem:[%s340 + $0x14] sm:$0xf]
      %v347 = vld [vmem:[%s340 + $0x18] sm:$0xf]
      %v348 = vld [vmem:[%s340 + $0x1c] sm:$0xf]
      %v349 = vld [vmem:[%s340 + $0x20] sm:$0xf]
      %v350 = vld [vmem:[%s340 + $0x24] sm:$0xf]
      %v351 = vld [vmem:[%s340 + $0x28] sm:$0xf]
      %v352 = vld [vmem:[%s340 + $0x2c] sm:$0xf]
      %v353 = vld [vmem:[%s340 + $0x30] sm:$0xf]
      %v354 = vld [vmem:[%s340 + $0x34] sm:$0xf]
      %v355 = vld [vmem:[%s340 + $0x38] sm:$0xf]
      %v356 = vld [vmem:[%s340 + $0x3c] sm:$0xf]
      %v373 = vunpack.c.l.b16 %v341
      %v374 = vunpack.c.l.b16 %v342
      %v375 = vunpack.c.l.b16 %v343
      %v376 = vunpack.c.l.b16 %v344
      %v377 = vunpack.c.l.b16 %v345
      %v378 = vunpack.c.l.b16 %v346
      %v379 = vunpack.c.l.b16 %v347
      %v380 = vunpack.c.l.b16 %v348
      %v381 = vunpack.c.l.b16 %v349
      %v382 = vunpack.c.l.b16 %v350
      %v383 = vunpack.c.l.b16 %v351
      %v384 = vunpack.c.l.b16 %v352
      %v385 = vunpack.c.l.b16 %v353
      %v386 = vunpack.c.l.b16 %v354
      %v387 = vunpack.c.l.b16 %v355
      %v388 = vunpack.c.l.b16 %v356
      %v389 = vpack.c.b16 %v374, %v373
      %v390 = vpack.c.b16 %v376, %v375
      %v391 = vpack.c.b16 %v378, %v377
      %v392 = vpack.c.b16 %v380, %v379
      %v393 = vpack.c.b16 %v382, %v381
      %v394 = vpack.c.b16 %v384, %v383
      %v395 = vpack.c.b16 %v386, %v385
      %v396 = vpack.c.b16 %v388, %v387
      %405 = vmatprep.subr.bf16.mxu0 0
      %406 = vmatpush1.bf16.msra.mxu0 %v396
      %407 = vmatprep.subr.bf16.mxu0 0
      %408 = vmatpush1.bf16.msra.mxu0 %v395
      %409 = vmatprep.subr.bf16.mxu0 0
      %410 = vmatpush1.bf16.msra.mxu0 %v394
      %411 = vmatprep.subr.bf16.mxu0 0
      %412 = vmatpush1.bf16.msra.mxu0 %v393
      %413 = vmatprep.subr.bf16.mxu0 0
      %414 = vmatpush1.bf16.msra.mxu0 %v392
      %415 = vmatprep.subr.bf16.mxu0 0
      %416 = vmatpush1.bf16.msra.mxu0 %v391
      %417 = vmatprep.subr.bf16.mxu0 0
      %418 = vmatpush1.bf16.msra.mxu0 %v390
      %419 = vmatprep.subr.bf16.mxu0 0
      %420 = vmatpush1.bf16.msra.mxu0 %v389
      %421 = vmatprep.subr.bf16.mxu0 0
      %422 = vmatpush2.bf16.msra.mxu0 0
      %423 = vmatprep.subr.bf16.mxu0 0
      %424 = vmatpush2.bf16.msra.mxu0 0
      %425 = vmatprep.subr.bf16.mxu0 0
      %426 = vmatpush2.bf16.msra.mxu0 0
      %427 = vmatprep.subr.bf16.mxu0 0
      %428 = vmatpush2.bf16.msra.mxu0 0
      %429 = vmatprep.subr.bf16.mxu0 0
      %430 = vmatpush2.bf16.msra.mxu0 0
      %431 = vmatprep.subr.bf16.mxu0 0
      %432 = vmatpush2.bf16.msra.mxu0 0
      %433 = vmatprep.subr.bf16.mxu0 0
      %434 = vmatpush2.bf16.msra.mxu0 0
      %435 = vmatprep.subr.bf16.mxu0 0
      %436 = vmatpush2.bf16.msra.mxu0 0
      %437 = vmatprep.mubr.bf16.mxu0 0
      %438 = vmatmul.mubr.bf16.gmra.mxu0 %v219
      %v439 = vpop.f32.mrf.mxu0
      %v440 = vadd.f32 %v201, %v439
      %v441 = vpop.f32.mrf.mxu0
      %v442 = vpop.f32.mrf.mxu0
      %v443 = vadd.f32 %v201, %v442
      %v444 = vpop.f32.mrf.mxu0
      %445 = vmatprep.mubr.bf16.mxu0 0
      %446 = vmatmul.mubr.bf16.gmra.mxu0 %v220
      %v447 = vpop.f32.mrf.mxu0
      %v448 = vadd.f32 %v201, %v447
      %v449 = vpop.f32.mrf.mxu0
      %v450 = vpop.f32.mrf.mxu0
      %v451 = vadd.f32 %v201, %v450
      %v452 = vpop.f32.mrf.mxu0
      %453 = vmatprep.mubr.bf16.mxu0 0
      %454 = vmatmul.mubr.bf16.gmra.mxu0 %v221
      %v455 = vpop.f32.mrf.mxu0
      %v456 = vadd.f32 %v201, %v455
      %v457 = vpop.f32.mrf.mxu0
      %v458 = vpop.f32.mrf.mxu0
      %v459 = vadd.f32 %v201, %v458
      %v460 = vpop.f32.mrf.mxu0
      %461 = vmatprep.mubr.bf16.mxu0 0
      %462 = vmatmul.mubr.bf16.gmra.mxu0 %v222
      %v463 = vpop.f32.mrf.mxu0
      %v464 = vadd.f32 %v201, %v463
      %v465 = vpop.f32.mrf.mxu0
      %v466 = vpop.f32.mrf.mxu0
      %v467 = vadd.f32 %v201, %v466
      %v468 = vpop.f32.mrf.mxu0
      %469 = vdwg.mxu0
      %s470 = scalar_lea.vmem %s1, 128
      %v471 = vld [vmem:[%s470] sm:$0xf]
      %v472 = vld [vmem:[%s470 + $0x4] sm:$0xf]
      %v473 = vld [vmem:[%s470 + $0x8] sm:$0xf]
      %v474 = vld [vmem:[%s470 + $0xc] sm:$0xf]
      %v475 = vld [vmem:[%s470 + $0x10] sm:$0xf]
      %v476 = vld [vmem:[%s470 + $0x14] sm:$0xf]
      %v477 = vld [vmem:[%s470 + $0x18] sm:$0xf]
      %v478 = vld [vmem:[%s470 + $0x1c] sm:$0xf]
      %v479 = vld [vmem:[%s470 + $0x20] sm:$0xf]
      %v480 = vld [vmem:[%s470 + $0x24] sm:$0xf]
      %v481 = vld [vmem:[%s470 + $0x28] sm:$0xf]
      %v482 = vld [vmem:[%s470 + $0x2c] sm:$0xf]
      %v483 = vld [vmem:[%s470 + $0x30] sm:$0xf]
      %v484 = vld [vmem:[%s470 + $0x34] sm:$0xf]
      %v485 = vld [vmem:[%s470 + $0x38] sm:$0xf]
      %v486 = vld [vmem:[%s470 + $0x3c] sm:$0xf]
      %v503 = vunpack.c.l.b16 %v471
      %v504 = vunpack.c.l.b16 %v472
      %v505 = vunpack.c.l.b16 %v473
      %v506 = vunpack.c.l.b16 %v474
      %v507 = vunpack.c.l.b16 %v475
      %v508 = vunpack.c.l.b16 %v476
      %v509 = vunpack.c.l.b16 %v477
      %v510 = vunpack.c.l.b16 %v478
      %v511 = vunpack.c.l.b16 %v479
      %v512 = vunpack.c.l.b16 %v480
      %v513 = vunpack.c.l.b16 %v481
      %v514 = vunpack.c.l.b16 %v482
      %v515 = vunpack.c.l.b16 %v483
      %v516 = vunpack.c.l.b16 %v484
      %v517 = vunpack.c.l.b16 %v485
      %v518 = vunpack.c.l.b16 %v486
      %v519 = vpack.c.b16 %v504, %v503
      %v520 = vpack.c.b16 %v506, %v505
      %v521 = vpack.c.b16 %v508, %v507
      %v522 = vpack.c.b16 %v510, %v509
      %v523 = vpack.c.b16 %v512, %v511
      %v524 = vpack.c.b16 %v514, %v513
      %v525 = vpack.c.b16 %v516, %v515
      %v526 = vpack.c.b16 %v518, %v517
      %535 = vmatprep.subr.bf16.mxu0 0
      %536 = vmatpush1.bf16.msra.mxu0 %v526
      %537 = vmatprep.subr.bf16.mxu0 0
      %538 = vmatpush1.bf16.msra.mxu0 %v525
      %539 = vmatprep.subr.bf16.mxu0 0
      %540 = vmatpush1.bf16.msra.mxu0 %v524
      %541 = vmatprep.subr.bf16.mxu0 0
      %542 = vmatpush1.bf16.msra.mxu0 %v523
      %543 = vmatprep.subr.bf16.mxu0 0
      %544 = vmatpush1.bf16.msra.mxu0 %v522
      %545 = vmatprep.subr.bf16.mxu0 0
      %546 = vmatpush1.bf16.msra.mxu0 %v521
      %547 = vmatprep.subr.bf16.mxu0 0
      %548 = vmatpush1.bf16.msra.mxu0 %v520
      %549 = vmatprep.subr.bf16.mxu0 0
      %550 = vmatpush1.bf16.msra.mxu0 %v519
      %551 = vmatprep.subr.bf16.mxu0 0
      %552 = vmatpush2.bf16.msra.mxu0 0
      %553 = vmatprep.subr.bf16.mxu0 0
      %554 = vmatpush2.bf16.msra.mxu0 0
      %555 = vmatprep.subr.bf16.mxu0 0
      %556 = vmatpush2.bf16.msra.mxu0 0
      %557 = vmatprep.subr.bf16.mxu0 0
      %558 = vmatpush2.bf16.msra.mxu0 0
      %559 = vmatprep.subr.bf16.mxu0 0
      %560 = vmatpush2.bf16.msra.mxu0 0
      %561 = vmatprep.subr.bf16.mxu0 0
      %562 = vmatpush2.bf16.msra.mxu0 0
      %563 = vmatprep.subr.bf16.mxu0 0
      %564 = vmatpush2.bf16.msra.mxu0 0
      %565 = vmatprep.subr.bf16.mxu0 0
      %566 = vmatpush2.bf16.msra.mxu0 0
      %567 = vmatprep.mubr.bf16.mxu0 0
      %568 = vmatmul.mubr.bf16.gmra.mxu0 %v219
      %v569 = vpop.f32.mrf.mxu0
      %v570 = vadd.f32 %v201, %v569
      %v571 = vpop.f32.mrf.mxu0
      %v572 = vpop.f32.mrf.mxu0
      %v573 = vadd.f32 %v201, %v572
      %v574 = vpop.f32.mrf.mxu0
      %575 = vmatprep.mubr.bf16.mxu0 0
      %576 = vmatmul.mubr.bf16.gmra.mxu0 %v220
      %v577 = vpop.f32.mrf.mxu0
      %v578 = vadd.f32 %v201, %v577
      %v579 = vpop.f32.mrf.mxu0
      %v580 = vpop.f32.mrf.mxu0
      %v581 = vadd.f32 %v201, %v580
      %v582 = vpop.f32.mrf.mxu0
      %583 = vmatprep.mubr.bf16.mxu0 0
      %584 = vmatmul.mubr.bf16.gmra.mxu0 %v221
      %v585 = vpop.f32.mrf.mxu0
      %v586 = vadd.f32 %v201, %v585
      %v587 = vpop.f32.mrf.mxu0
      %v588 = vpop.f32.mrf.mxu0
      %v589 = vadd.f32 %v201, %v588
      %v590 = vpop.f32.mrf.mxu0
      %591 = vmatprep.mubr.bf16.mxu0 0
      %592 = vmatmul.mubr.bf16.gmra.mxu0 %v222
      %v593 = vpop.f32.mrf.mxu0
      %v594 = vadd.f32 %v201, %v593
      %v595 = vpop.f32.mrf.mxu0
      %v596 = vpop.f32.mrf.mxu0
      %v597 = vadd.f32 %v201, %v596
      %v598 = vpop.f32.mrf.mxu0
      %599 = vdwg.mxu0
      %s600 = scalar_lea.vmem %s1, 192
      %v601 = vld [vmem:[%s600] sm:$0xf]
      %v602 = vld [vmem:[%s600 + $0x4] sm:$0xf]
      %v603 = vld [vmem:[%s600 + $0x8] sm:$0xf]
      %v604 = vld [vmem:[%s600 + $0xc] sm:$0xf]
      %v605 = vld [vmem:[%s600 + $0x10] sm:$0xf]
      %v606 = vld [vmem:[%s600 + $0x14] sm:$0xf]
      %v607 = vld [vmem:[%s600 + $0x18] sm:$0xf]
      %v608 = vld [vmem:[%s600 + $0x1c] sm:$0xf]
      %v609 = vld [vmem:[%s600 + $0x20] sm:$0xf]
      %v610 = vld [vmem:[%s600 + $0x24] sm:$0xf]
      %v611 = vld [vmem:[%s600 + $0x28] sm:$0xf]
      %v612 = vld [vmem:[%s600 + $0x2c] sm:$0xf]
      %v613 = vld [vmem:[%s600 + $0x30] sm:$0xf]
      %v614 = vld [vmem:[%s600 + $0x34] sm:$0xf]
      %v615 = vld [vmem:[%s600 + $0x38] sm:$0xf]
      %v616 = vld [vmem:[%s600 + $0x3c] sm:$0xf]
      %v633 = vunpack.c.l.b16 %v601
      %v634 = vunpack.c.l.b16 %v602
      %v635 = vunpack.c.l.b16 %v603
      %v636 = vunpack.c.l.b16 %v604
      %v637 = vunpack.c.l.b16 %v605
      %v638 = vunpack.c.l.b16 %v606
      %v639 = vunpack.c.l.b16 %v607
      %v640 = vunpack.c.l.b16 %v608
      %v641 = vunpack.c.l.b16 %v609
      %v642 = vunpack.c.l.b16 %v610
      %v643 = vunpack.c.l.b16 %v611
      %v644 = vunpack.c.l.b16 %v612
      %v645 = vunpack.c.l.b16 %v613
      %v646 = vunpack.c.l.b16 %v614
      %v647 = vunpack.c.l.b16 %v615
      %v648 = vunpack.c.l.b16 %v616
      %v649 = vpack.c.b16 %v634, %v633
      %v650 = vpack.c.b16 %v636, %v635
      %v651 = vpack.c.b16 %v638, %v637
      %v652 = vpack.c.b16 %v640, %v639
      %v653 = vpack.c.b16 %v642, %v641
      %v654 = vpack.c.b16 %v644, %v643
      %v655 = vpack.c.b16 %v646, %v645
      %v656 = vpack.c.b16 %v648, %v647
      %665 = vmatprep.subr.bf16.mxu0 0
      %666 = vmatpush1.bf16.msra.mxu0 %v656
      %667 = vmatprep.subr.bf16.mxu0 0
      %668 = vmatpush1.bf16.msra.mxu0 %v655
      %669 = vmatprep.subr.bf16.mxu0 0
      %670 = vmatpush1.bf16.msra.mxu0 %v654
      %671 = vmatprep.subr.bf16.mxu0 0
      %672 = vmatpush1.bf16.msra.mxu0 %v653
      %673 = vmatprep.subr.bf16.mxu0 0
      %674 = vmatpush1.bf16.msra.mxu0 %v652
      %675 = vmatprep.subr.bf16.mxu0 0
      %676 = vmatpush1.bf16.msra.mxu0 %v651
      %677 = vmatprep.subr.bf16.mxu0 0
      %678 = vmatpush1.bf16.msra.mxu0 %v650
      %679 = vmatprep.subr.bf16.mxu0 0
      %680 = vmatpush1.bf16.msra.mxu0 %v649
      %681 = vmatprep.subr.bf16.mxu0 0
      %682 = vmatpush2.bf16.msra.mxu0 0
      %683 = vmatprep.subr.bf16.mxu0 0
      %684 = vmatpush2.bf16.msra.mxu0 0
      %685 = vmatprep.subr.bf16.mxu0 0
      %686 = vmatpush2.bf16.msra.mxu0 0
      %687 = vmatprep.subr.bf16.mxu0 0
      %688 = vmatpush2.bf16.msra.mxu0 0
      %689 = vmatprep.subr.bf16.mxu0 0
      %690 = vmatpush2.bf16.msra.mxu0 0
      %691 = vmatprep.subr.bf16.mxu0 0
      %692 = vmatpush2.bf16.msra.mxu0 0
      %693 = vmatprep.subr.bf16.mxu0 0
      %694 = vmatpush2.bf16.msra.mxu0 0
      %695 = vmatprep.subr.bf16.mxu0 0
      %696 = vmatpush2.bf16.msra.mxu0 0
      %697 = vmatprep.mubr.bf16.mxu0 0
      %698 = vmatmul.mubr.bf16.gmra.mxu0 %v219
      %v699 = vpop.f32.mrf.mxu0
      %v700 = vadd.f32 %v201, %v699
      %v701 = vpop.f32.mrf.mxu0
      %v702 = vpop.f32.mrf.mxu0
      %v703 = vadd.f32 %v201, %v702
      %v704 = vpop.f32.mrf.mxu0
      %705 = vmatprep.mubr.bf16.mxu0 0
      %706 = vmatmul.mubr.bf16.gmra.mxu0 %v220
      %v707 = vpop.f32.mrf.mxu0
      %v708 = vadd.f32 %v201, %v707
      %v709 = vpop.f32.mrf.mxu0
      %v710 = vpop.f32.mrf.mxu0
      %v711 = vadd.f32 %v201, %v710
      %v712 = vpop.f32.mrf.mxu0
      %713 = vmatprep.mubr.bf16.mxu0 0
      %714 = vmatmul.mubr.bf16.gmra.mxu0 %v221
      %v715 = vpop.f32.mrf.mxu0
      %v716 = vadd.f32 %v201, %v715
      %v717 = vpop.f32.mrf.mxu0
      %v718 = vpop.f32.mrf.mxu0
      %v719 = vadd.f32 %v201, %v718
      %v720 = vpop.f32.mrf.mxu0
      %721 = vmatprep.mubr.bf16.mxu0 0
      %722 = vmatmul.mubr.bf16.gmra.mxu0 %v222
      %v723 = vpop.f32.mrf.mxu0
      %v724 = vadd.f32 %v201, %v723
      %v725 = vpop.f32.mrf.mxu0
      %v726 = vpop.f32.mrf.mxu0
      %v727 = vadd.f32 %v201, %v726
      %v728 = vpop.f32.mrf.mxu0
      %729 = vdwg.mxu0
      %v746 = vcombine.low %v310, %v440
      %v747 = vcombine.high %v310, %v440
      %v748 = vcombine.low %v313, %v443
      %v749 = vcombine.high %v313, %v443
      %v750 = vcombine.low %v318, %v448
      %v751 = vcombine.high %v318, %v448
      %v752 = vcombine.low %v321, %v451
      %v753 = vcombine.high %v321, %v451
      %v754 = vcombine.low %v326, %v456
      %v755 = vcombine.high %v326, %v456
      %v756 = vcombine.low %v329, %v459
      %v757 = vcombine.high %v329, %v459
      %v758 = vcombine.low %v334, %v464
      %v759 = vcombine.high %v334, %v464
      %v760 = vcombine.low %v337, %v467
      %v761 = vcombine.high %v337, %v467
      %v779 = vunpack.c.l.s4 1935823168
      %v780 = vunpack.c.0.s8 %v779
      %v781 = vlaneseq
      %v782 = vshrl.u32 %v781, 7
      %v783 = vsub.s32 %v780, %v782
      %v784 = vrot.slane %v746, %v783
      %v786 = vunpack.c.l.s4 1935823168
      %v787 = vunpack.c.0.s8 %v786
      %v788 = vlaneseq
      %v789 = vshrl.u32 %v788, 7
      %v790 = vsub.s32 %v787, %v789
      %v791 = vrot.slane %v747, %v790
      %v793 = vunpack.c.l.s4 1935823168
      %v794 = vunpack.c.0.s8 %v793
      %v795 = vlaneseq
      %v796 = vshrl.u32 %v795, 7
      %v797 = vsub.s32 %v794, %v796
      %v798 = vrot.slane %v748, %v797
      %v800 = vunpack.c.l.s4 1935823168
      %v801 = vunpack.c.0.s8 %v800
      %v802 = vlaneseq
      %v803 = vshrl.u32 %v802, 7
      %v804 = vsub.s32 %v801, %v803
      %v805 = vrot.slane %v749, %v804
      %v807 = vunpack.c.l.s4 1935823168
      %v808 = vunpack.c.0.s8 %v807
      %v809 = vlaneseq
      %v810 = vshrl.u32 %v809, 7
      %v811 = vsub.s32 %v808, %v810
      %v812 = vrot.slane %v750, %v811
      %v814 = vunpack.c.l.s4 1935823168
      %v815 = vunpack.c.0.s8 %v814
      %v816 = vlaneseq
      %v817 = vshrl.u32 %v816, 7
      %v818 = vsub.s32 %v815, %v817
      %v819 = vrot.slane %v751, %v818
      %v821 = vunpack.c.l.s4 1935823168
      %v822 = vunpack.c.0.s8 %v821
      %v823 = vlaneseq
      %v824 = vshrl.u32 %v823, 7
      %v825 = vsub.s32 %v822, %v824
      %v826 = vrot.slane %v752, %v825
      %v828 = vunpack.c.l.s4 1935823168
      %v829 = vunpack.c.0.s8 %v828
      %v830 = vlaneseq
      %v831 = vshrl.u32 %v830, 7
      %v832 = vsub.s32 %v829, %v831
      %v833 = vrot.slane %v753, %v832
      %v835 = vunpack.c.l.s4 1935823168
      %v836 = vunpack.c.0.s8 %v835
      %v837 = vlaneseq
      %v838 = vshrl.u32 %v837, 7
      %v839 = vsub.s32 %v836, %v838
      %v840 = vrot.slane %v754, %v839
      %v842 = vunpack.c.l.s4 1935823168
      %v843 = vunpack.c.0.s8 %v842
      %v844 = vlaneseq
      %v845 = vshrl.u32 %v844, 7
      %v846 = vsub.s32 %v843, %v845
      %v847 = vrot.slane %v755, %v846
      %v849 = vunpack.c.l.s4 1935823168
      %v850 = vunpack.c.0.s8 %v849
      %v851 = vlaneseq
      %v852 = vshrl.u32 %v851, 7
      %v853 = vsub.s32 %v850, %v852
      %v854 = vrot.slane %v756, %v853
      %v856 = vunpack.c.l.s4 1935823168
      %v857 = vunpack.c.0.s8 %v856
      %v858 = vlaneseq
      %v859 = vshrl.u32 %v858, 7
      %v860 = vsub.s32 %v857, %v859
      %v861 = vrot.slane %v757, %v860
      %v863 = vunpack.c.l.s4 1935823168
      %v864 = vunpack.c.0.s8 %v863
      %v865 = vlaneseq
      %v866 = vshrl.u32 %v865, 7
      %v867 = vsub.s32 %v864, %v866
      %v868 = vrot.slane %v758, %v867
      %v870 = vunpack.c.l.s4 1935823168
      %v871 = vunpack.c.0.s8 %v870
      %v872 = vlaneseq
      %v873 = vshrl.u32 %v872, 7
      %v874 = vsub.s32 %v871, %v873
      %v875 = vrot.slane %v759, %v874
      %v877 = vunpack.c.l.s4 1935823168
      %v878 = vunpack.c.0.s8 %v877
      %v879 = vlaneseq
      %v880 = vshrl.u32 %v879, 7
      %v881 = vsub.s32 %v878, %v880
      %v882 = vrot.slane %v760, %v881
      %v884 = vunpack.c.l.s4 1935823168
      %v885 = vunpack.c.0.s8 %v884
      %v886 = vlaneseq
      %v887 = vshrl.u32 %v886, 7
      %v888 = vsub.s32 %v885, %v887
      %v889 = vrot.slane %v761, %v888
      %v906 = vcombine.low %v570, %v700
      %v907 = vcombine.high %v570, %v700
      %v908 = vcombine.low %v573, %v703
      %v909 = vcombine.high %v573, %v703
      %v910 = vcombine.low %v578, %v708
      %v911 = vcombine.high %v578, %v708
      %v912 = vcombine.low %v581, %v711
      %v913 = vcombine.high %v581, %v711
      %v914 = vcombine.low %v586, %v716
      %v915 = vcombine.high %v586, %v716
      %v916 = vcombine.low %v589, %v719
      %v917 = vcombine.high %v589, %v719
      %v918 = vcombine.low %v594, %v724
      %v919 = vcombine.high %v594, %v724
      %v920 = vcombine.low %v597, %v727
      %v921 = vcombine.high %v597, %v727
      %v939 = vunpack.c.l.s4 1935823168
      %v940 = vunpack.c.0.s8 %v939
      %v941 = vlaneseq
      %v942 = vshrl.u32 %v941, 7
      %v943 = vsub.s32 %v940, %v942
      %v944 = vrot.slane %v906, %v943
      %v946 = vunpack.c.l.s4 1935823168
      %v947 = vunpack.c.0.s8 %v946
      %v948 = vlaneseq
      %v949 = vshrl.u32 %v948, 7
      %v950 = vsub.s32 %v947, %v949
      %v951 = vrot.slane %v907, %v950
      %v953 = vunpack.c.l.s4 1935823168
      %v954 = vunpack.c.0.s8 %v953
      %v955 = vlaneseq
      %v956 = vshrl.u32 %v955, 7
      %v957 = vsub.s32 %v954, %v956
      %v958 = vrot.slane %v908, %v957
      %v960 = vunpack.c.l.s4 1935823168
      %v961 = vunpack.c.0.s8 %v960
      %v962 = vlaneseq
      %v963 = vshrl.u32 %v962, 7
      %v964 = vsub.s32 %v961, %v963
      %v965 = vrot.slane %v909, %v964
      %v967 = vunpack.c.l.s4 1935823168
      %v968 = vunpack.c.0.s8 %v967
      %v969 = vlaneseq
      %v970 = vshrl.u32 %v969, 7
      %v971 = vsub.s32 %v968, %v970
      %v972 = vrot.slane %v910, %v971
      %v974 = vunpack.c.l.s4 1935823168
      %v975 = vunpack.c.0.s8 %v974
      %v976 = vlaneseq
      %v977 = vshrl.u32 %v976, 7
      %v978 = vsub.s32 %v975, %v977
      %v979 = vrot.slane %v911, %v978
      %v981 = vunpack.c.l.s4 1935823168
      %v982 = vunpack.c.0.s8 %v981
      %v983 = vlaneseq
      %v984 = vshrl.u32 %v983, 7
      %v985 = vsub.s32 %v982, %v984
      %v986 = vrot.slane %v912, %v985
      %v988 = vunpack.c.l.s4 1935823168
      %v989 = vunpack.c.0.s8 %v988
      %v990 = vlaneseq
      %v991 = vshrl.u32 %v990, 7
      %v992 = vsub.s32 %v989, %v991
      %v993 = vrot.slane %v913, %v992
      %v995 = vunpack.c.l.s4 1935823168
      %v996 = vunpack.c.0.s8 %v995
      %v997 = vlaneseq
      %v998 = vshrl.u32 %v997, 7
      %v999 = vsub.s32 %v996, %v998
      %v1000 = vrot.slane %v914, %v999
      %v1002 = vunpack.c.l.s4 1935823168
      %v1003 = vunpack.c.0.s8 %v1002
      %v1004 = vlaneseq
      %v1005 = vshrl.u32 %v1004, 7
      %v1006 = vsub.s32 %v1003, %v1005
      %v1007 = vrot.slane %v915, %v1006
      %v1009 = vunpack.c.l.s4 1935823168
      %v1010 = vunpack.c.0.s8 %v1009
      %v1011 = vlaneseq
      %v1012 = vshrl.u32 %v1011, 7
      %v1013 = vsub.s32 %v1010, %v1012
      %v1014 = vrot.slane %v916, %v1013
      %v1016 = vunpack.c.l.s4 1935823168
      %v1017 = vunpack.c.0.s8 %v1016
      %v1018 = vlaneseq
      %v1019 = vshrl.u32 %v1018, 7
      %v1020 = vsub.s32 %v1017, %v1019
      %v1021 = vrot.slane %v917, %v1020
      %v1023 = vunpack.c.l.s4 1935823168
      %v1024 = vunpack.c.0.s8 %v1023
      %v1025 = vlaneseq
      %v1026 = vshrl.u32 %v1025, 7
      %v1027 = vsub.s32 %v1024, %v1026
      %v1028 = vrot.slane %v918, %v1027
      %v1030 = vunpack.c.l.s4 1935823168
      %v1031 = vunpack.c.0.s8 %v1030
      %v1032 = vlaneseq
      %v1033 = vshrl.u32 %v1032, 7
      %v1034 = vsub.s32 %v1031, %v1033
      %v1035 = vrot.slane %v919, %v1034
      %v1037 = vunpack.c.l.s4 1935823168
      %v1038 = vunpack.c.0.s8 %v1037
      %v1039 = vlaneseq
      %v1040 = vshrl.u32 %v1039, 7
      %v1041 = vsub.s32 %v1038, %v1040
      %v1042 = vrot.slane %v920, %v1041
      %v1044 = vunpack.c.l.s4 1935823168
      %v1045 = vunpack.c.0.s8 %v1044
      %v1046 = vlaneseq
      %v1047 = vshrl.u32 %v1046, 7
      %v1048 = vsub.s32 %v1045, %v1047
      %v1049 = vrot.slane %v921, %v1048
      %v1050 = vpack.c.bf16 %v791, %v784
      %v1051 = vpack.c.bf16 %v951, %v944
      %v1052 = vpack.c.bf16 %v805, %v798
      %v1053 = vpack.c.bf16 %v965, %v958
      %v1054 = vpack.c.bf16 %v819, %v812
      %v1055 = vpack.c.bf16 %v979, %v972
      %v1056 = vpack.c.bf16 %v833, %v826
      %v1057 = vpack.c.bf16 %v993, %v986
      %v1058 = vpack.c.bf16 %v847, %v840
      %v1059 = vpack.c.bf16 %v1007, %v1000
      %v1060 = vpack.c.bf16 %v861, %v854
      %v1061 = vpack.c.bf16 %v1021, %v1014
      %v1062 = vpack.c.bf16 %v875, %v868
      %v1063 = vpack.c.bf16 %v1035, %v1028
      %v1064 = vpack.c.bf16 %v889, %v882
      %v1065 = vpack.c.bf16 %v1049, %v1042
      %v1082 = vunpack.c.l.b16 %v1050
      %v1083 = vunpack.c.h.b16 %v1050
      %v1084 = vunpack.c.l.b16 %v1051
      %v1085 = vunpack.c.h.b16 %v1051
      %v1086 = vunpack.c.l.b16 %v1052
      %v1087 = vunpack.c.h.b16 %v1052
      %v1088 = vunpack.c.l.b16 %v1053
      %v1089 = vunpack.c.h.b16 %v1053
      %v1090 = vunpack.c.l.b16 %v1054
      %v1091 = vunpack.c.h.b16 %v1054
      %v1092 = vunpack.c.l.b16 %v1055
      %v1093 = vunpack.c.h.b16 %v1055
      %v1094 = vunpack.c.l.b16 %v1056
      %v1095 = vunpack.c.h.b16 %v1056
      %v1096 = vunpack.c.l.b16 %v1057
      %v1097 = vunpack.c.h.b16 %v1057
      %v1098 = vunpack.c.l.b16 %v1058
      %v1099 = vunpack.c.h.b16 %v1058
      %v1100 = vunpack.c.l.b16 %v1059
      %v1101 = vunpack.c.h.b16 %v1059
      %v1102 = vunpack.c.l.b16 %v1060
      %v1103 = vunpack.c.h.b16 %v1060
      %v1104 = vunpack.c.l.b16 %v1061
      %v1105 = vunpack.c.h.b16 %v1061
      %v1106 = vunpack.c.l.b16 %v1062
      %v1107 = vunpack.c.h.b16 %v1062
      %v1108 = vunpack.c.l.b16 %v1063
      %v1109 = vunpack.c.h.b16 %v1063
      %v1110 = vunpack.c.l.b16 %v1064
      %v1111 = vunpack.c.h.b16 %v1064
      %v1112 = vunpack.c.l.b16 %v1065
      %v1113 = vunpack.c.h.b16 %v1065
      %v1114 = vpack.c.b16 %v1082, %v1082
      %v1115 = vpack.c.b16 %v1083, %v1083
      %v1116 = vpack.c.b16 %v1084, %v1084
      %v1117 = vpack.c.b16 %v1085, %v1085
      %v1118 = vpack.c.b16 %v1086, %v1086
      %v1119 = vpack.c.b16 %v1087, %v1087
      %v1120 = vpack.c.b16 %v1088, %v1088
      %v1121 = vpack.c.b16 %v1089, %v1089
      %v1122 = vpack.c.b16 %v1090, %v1090
      %v1123 = vpack.c.b16 %v1091, %v1091
      %v1124 = vpack.c.b16 %v1092, %v1092
      %v1125 = vpack.c.b16 %v1093, %v1093
      %v1126 = vpack.c.b16 %v1094, %v1094
      %v1127 = vpack.c.b16 %v1095, %v1095
      %v1128 = vpack.c.b16 %v1096, %v1096
      %v1129 = vpack.c.b16 %v1097, %v1097
      %v1130 = vpack.c.b16 %v1098, %v1098
      %v1131 = vpack.c.b16 %v1099, %v1099
      %v1132 = vpack.c.b16 %v1100, %v1100
      %v1133 = vpack.c.b16 %v1101, %v1101
      %v1134 = vpack.c.b16 %v1102, %v1102
      %v1135 = vpack.c.b16 %v1103, %v1103
      %v1136 = vpack.c.b16 %v1104, %v1104
      %v1137 = vpack.c.b16 %v1105, %v1105
      %v1138 = vpack.c.b16 %v1106, %v1106
      %v1139 = vpack.c.b16 %v1107, %v1107
      %v1140 = vpack.c.b16 %v1108, %v1108
      %v1141 = vpack.c.b16 %v1109, %v1109
      %v1142 = vpack.c.b16 %v1110, %v1110
      %v1143 = vpack.c.b16 %v1111, %v1111
      %v1144 = vpack.c.b16 %v1112, %v1112
      %v1145 = vpack.c.b16 %v1113, %v1113
      %1178 = vst [vmem:[%s170] sm:$0xf] %v1114
      %1179 = vst [vmem:[%s170 + $0x4] sm:$0xf] %v1115
      %1180 = vst [vmem:[%s170 + $0x8] sm:$0xf] %v1116
      %1181 = vst [vmem:[%s170 + $0xc] sm:$0xf] %v1117
      %1182 = vst [vmem:[%s170 + $0x10] sm:$0xf] %v1118
      %1183 = vst [vmem:[%s170 + $0x14] sm:$0xf] %v1119
      %1184 = vst [vmem:[%s170 + $0x18] sm:$0xf] %v1120
      %1185 = vst [vmem:[%s170 + $0x1c] sm:$0xf] %v1121
      %1186 = vst [vmem:[%s170 + $0x20] sm:$0xf] %v1122
      %1187 = vst [vmem:[%s170 + $0x24] sm:$0xf] %v1123
      %1188 = vst [vmem:[%s170 + $0x28] sm:$0xf] %v1124
      %1189 = vst [vmem:[%s170 + $0x2c] sm:$0xf] %v1125
      %1190 = vst [vmem:[%s170 + $0x30] sm:$0xf] %v1126
      %1191 = vst [vmem:[%s170 + $0x34] sm:$0xf] %v1127
      %1192 = vst [vmem:[%s170 + $0x38] sm:$0xf] %v1128
      %1193 = vst [vmem:[%s170 + $0x3c] sm:$0xf] %v1129
      %1194 = vst [vmem:[%s170 + $0x40] sm:$0xf] %v1130
      %1195 = vst [vmem:[%s170 + $0x44] sm:$0xf] %v1131
      %1196 = vst [vmem:[%s170 + $0x48] sm:$0xf] %v1132
      %1197 = vst [vmem:[%s170 + $0x4c] sm:$0xf] %v1133
      %1198 = vst [vmem:[%s170 + $0x50] sm:$0xf] %v1134
      %1199 = vst [vmem:[%s170 + $0x54] sm:$0xf] %v1135
      %1200 = vst [vmem:[%s170 + $0x58] sm:$0xf] %v1136
      %1201 = vst [vmem:[%s170 + $0x5c] sm:$0xf] %v1137
      %1202 = vst [vmem:[%s170 + $0x60] sm:$0xf] %v1138
      %1203 = vst [vmem:[%s170 + $0x64] sm:$0xf] %v1139
      %1204 = vst [vmem:[%s170 + $0x68] sm:$0xf] %v1140
      %1205 = vst [vmem:[%s170 + $0x6c] sm:$0xf] %v1141
      %1206 = vst [vmem:[%s170 + $0x70] sm:$0xf] %v1142
      %1207 = vst [vmem:[%s170 + $0x74] sm:$0xf] %v1143
      %1208 = vst [vmem:[%s170 + $0x78] sm:$0xf] %v1144
      %1209 = vst [vmem:[%s170 + $0x7c] sm:$0xf] %v1145
      %p1210 = scmp.lt.s32.totalorder %s14, 1
      %s1211 = scalar_select %p1210, %s14, 1
      %s1212 = smul.addr %s1211, 32
      %s1213 = smul.addr %s1212, 4
      %s1214 = scalar_lea.vmem %s3, %s1213
      // Predicated region
      $region33: #{unet_forward.27} parent=31 // pred_check
        %p1215 = pneg %p100
      $region34: #{unet_forward.27} parent=31 // pred_check_branch
        %1217 = sbr.rel (%p1215) target = $region36
      $region35: #{unet_forward.27} parent=31 // pred_region
        _
      $region36: #{unet_forward.27} parent=31 // pred_fallthru
        _
    $region32: #{unet_forward.27} parent=5 // pred_fallthru
      _
    %p1218 = scmp.le.s32.totalorder 2, %s9
    // Predicated region
    $region37: #{unet_forward.27} parent=5 // pred_check
      %p1219 = pneg %p1218
    $region38: #{unet_forward.27} parent=5 // pred_check_branch
      %1221 = sbr.rel (%p1219) target = $region40
    $region39: #{unet_forward.27} parent=5 // pred_region
      %s1222 = ssub.s32 %s9, 2
      // Predicated region
      $region41: #{unet_forward.27} parent=39 // pred_check
        %p1223 = pneg %p106
      $region42: #{unet_forward.27} parent=39 // pred_check_branch
        %1225 = sbr.rel (%p1223) target = $region44
      $region43: #{unet_forward.27} parent=39 // pred_region
        %p1226 = scmp.lt.s32.totalorder %s15, 1
        %s1227 = scalar_select %p1226, %s15, 1
        %s1228 = smul.addr %s1227, 32
        %s1229 = smul.addr %s1228, 4
        %s1230 = scalar_lea.vmem %s3, %s1229
      $region44: #{unet_forward.27} parent=39 // pred_fallthru
        _
    $region40: #{unet_forward.27} parent=5 // pred_fallthru
      _
  $region6: #{unet_forward.27} parent=0 // loop_footer
    %s13 = sadd.s32 1, %s9
  $region7: #{unet_forward.27} parent=0 // loop_footer_branch
    %8 = sbr.rel target = $region3
  $region8: #{unet_forward.27} parent=0 // loop_exit
    _

// kernel: unet_forward.28
$region0: #{unet_forward.28}
  #allocation0 [shape = 'u32[]', space=smem, size = 0x4, offset = 0x4, fixed_abs, tag = 'smem constant byte address 0x4 - core index']
  #allocation1 [shape = 'u32[144,128]{1,0:T(1,128)}', space=vmem, size = 0x12000, scoped, tag = 'internal scratch']
  %s0 = inlined_call_operand.vmem [shape: bf16[2,16,16,128], index: 0, kind: input, shape index: {}]
  %s1 = inlined_call_operand.vmem [shape: bf16[2,16,16,128], index: 1, kind: input, shape index: {}]
  %s2 = inlined_call_operand.vmem [shape: bf16[2,16,16,128], index: 2, kind: output, shape index: {}]
  %s3 = sld [smem:[#allocation0]]
  $region41: #{unet_forward.28} parent=0
    _
  %s5 = ssub.s32 1, %s3
  %s6 = scalar_select 0, %s5, %s3
  loop: start=0, step=1, limit=4
  $region2: #{unet_forward.28} parent=0 // loop_pre_header
    _
  $region3: #{unet_forward.28} parent=0 // loop_header
    %s8 = sphi 0, %s12
    %p9 = scmp.ge.s32.totalorder %s8, 4
    %s18 = sphi 0, %s20
    %s21 = sphi 0, %s18
    %s22 = sphi 0, %s21
    %s38 = sphi 0, %s22
    %s44 = sphi 0, %s46
    %s47 = sphi 0, %s44
    %s48 = sphi 0, %s47
    %s64 = sphi 0, %s48
    %s70 = sphi 0, %s72
    %s73 = sphi 0, %s70
    %s74 = sphi 0, %s73
    %s90 = sphi 0, %s74
  $region4: #{unet_forward.28} parent=0 // loop_header_branch
    %11 = sbr.rel (%p9) target = $region8
  $region5: #{unet_forward.28} parent=0 // loop_body
    %s13 = ssub.s32 %s8, 1
    %s14 = ssub.s32 %s8, 2
    %s15 = sadd.s32 %s8, 1
    %s16 = ssub.s32 %s8, %s15
    %p17 = scmp.eq.s32.totalorder %s16, 0
    %s19 = sadd.s32 %s18, 1
    %s20 = scalar_select %p17, %s18, %s19
    %p23 = pneg %p17
    %p24 = scmp.eq.s32.totalorder %s8, 1
    %p25 = por %p23, %p24
    %p26 = scmp.ne.s32.totalorder %s18, %s21
    %p27 = scmp.eq.s32.totalorder %s8, 0
    %p28 = por %p26, %p27
    %p29 = scmp.ne.s32.totalorder %s18, %s21
    %p30 = scmp.eq.s32.totalorder %s13, 1
    %p31 = por %p29, %p30
    %p32 = scmp.ne.s32.totalorder %s21, %s22
    %p33 = scmp.eq.s32.totalorder %s13, 0
    %p34 = por %p32, %p33
    %p35 = scmp.ne.s32.totalorder %s21, %s22
    %p36 = scmp.eq.s32.totalorder %s14, 1
    %p37 = por %p35, %p36
    %p39 = scmp.ne.s32.totalorder %s22, %s38
    %p40 = scmp.eq.s32.totalorder %s14, 0
    %p41 = por %p39, %p40
    %s42 = ssub.s32 %s8, %s15
    %p43 = scmp.eq.s32.totalorder %s42, 0
    %s45 = sadd.s32 %s44, 1
    %s46 = scalar_select %p43, %s44, %s45
    %p49 = pneg %p43
    %p50 = scmp.eq.s32.totalorder %s8, 1
    %p51 = por %p49, %p50
    %p52 = scmp.ne.s32.totalorder %s44, %s47
    %p53 = scmp.eq.s32.totalorder %s8, 0
    %p54 = por %p52, %p53
    %p55 = scmp.ne.s32.totalorder %s44, %s47
    %p56 = scmp.eq.s32.totalorder %s13, 1
    %p57 = por %p55, %p56
    %p58 = scmp.ne.s32.totalorder %s47, %s48
    %p59 = scmp.eq.s32.totalorder %s13, 0
    %p60 = por %p58, %p59
    %p61 = scmp.ne.s32.totalorder %s47, %s48
    %p62 = scmp.eq.s32.totalorder %s14, 1
    %p63 = por %p61, %p62
    %p65 = scmp.ne.s32.totalorder %s48, %s64
    %p66 = scmp.eq.s32.totalorder %s14, 0
    %p67 = por %p65, %p66
    %s68 = ssub.s32 %s8, %s15
    %p69 = scmp.eq.s32.totalorder %s68, 0
    %s71 = sadd.s32 %s70, 1
    %s72 = scalar_select %p69, %s70, %s71
    %p75 = pneg %p69
    %p76 = scmp.eq.s32.totalorder %s8, 1
    %p77 = por %p75, %p76
    %p78 = scmp.ne.s32.totalorder %s70, %s73
    %p79 = scmp.eq.s32.totalorder %s8, 0
    %p80 = por %p78, %p79
    %p81 = scmp.ne.s32.totalorder %s70, %s73
    %p82 = scmp.eq.s32.totalorder %s13, 1
    %p83 = por %p81, %p82
    %p84 = scmp.ne.s32.totalorder %s73, %s74
    %p85 = scmp.eq.s32.totalorder %s13, 0
    %p86 = por %p84, %p85
    %p87 = scmp.ne.s32.totalorder %s73, %s74
    %p88 = scmp.eq.s32.totalorder %s14, 1
    %p89 = por %p87, %p88
    %p91 = scmp.ne.s32.totalorder %s74, %s90
    %p92 = scmp.eq.s32.totalorder %s14, 0
    %p93 = por %p91, %p92
    %p94 = scmp.le.s32.totalorder 1, %s8
    %p95 = scmp.lt.s32.totalorder %s8, 3
    %p96 = pnand %p94, %p95
    %p97 = pneg %p96
    // Predicated region
    $region9: #{unet_forward.28} parent=5 // pred_check
      _
    $region10: #{unet_forward.28} parent=5 // pred_check_branch
      %99 = sbr.rel (%p96) target = $region12
    $region11: #{unet_forward.28} parent=5 // pred_region
      %s100 = ssub.s32 %s8, 1
    $region12: #{unet_forward.28} parent=5 // pred_fallthru
      _
    %p101 = scmp.lt.s32.totalorder %s8, 2
    // Predicated region
    $region13: #{unet_forward.28} parent=5 // pred_check
      %p102 = pneg %p101
    $region14: #{unet_forward.28} parent=5 // pred_check_branch
      %104 = sbr.rel (%p102) target = $region16
    $region15: #{unet_forward.28} parent=5 // pred_region
      // Predicated region
      $region17: #{unet_forward.28} parent=15 // pred_check
        %p105 = pneg %p28
      $region18: #{unet_forward.28} parent=15 // pred_check_branch
        %107 = sbr.rel (%p105) target = $region20
      $region19: #{unet_forward.28} parent=15 // pred_region
        %p108 = scmp.lt.s32.totalorder %s8, 1
        %s109 = scalar_select %p108, %s8, 1
        %s110 = smul.addr %s109, 32
        %s111 = smul.addr %s110, 4
        %s112 = scalar_lea.vmem %s0, %s111
      $region20: #{unet_forward.28} parent=15 // pred_fallthru
        _
      // Predicated region
      $region21: #{unet_forward.28} parent=15 // pred_check
        %p113 = pneg %p54
      $region22: #{unet_forward.28} parent=15 // pred_check_branch
        %115 = sbr.rel (%p113) target = $region24
      $region23: #{unet_forward.28} parent=15 // pred_region
        %p116 = scmp.lt.s32.totalorder %s8, 1
        %s117 = scalar_select %p116, %s8, 1
        %s118 = smul.addr %s117, 32
        %s119 = smul.addr %s118, 4
        %s120 = scalar_lea.vmem %s1, %s119
      $region24: #{unet_forward.28} parent=15 // pred_fallthru
        _
    $region16: #{unet_forward.28} parent=5 // pred_fallthru
      _
    %p121 = scmp.le.s32.totalorder 1, %s8
    %p122 = scmp.lt.s32.totalorder %s8, 3
    %p123 = pnand %p121, %p122
    %p124 = pneg %p123
    // Predicated region
    $region25: #{unet_forward.28} parent=5 // pred_check
      _
    $region26: #{unet_forward.28} parent=5 // pred_check_branch
      %126 = sbr.rel (%p123) target = $region28
    $region27: #{unet_forward.28} parent=5 // pred_region
      %s127 = ssub.s32 %s8, 1
      %p128 = scmp.lt.s32.totalorder %s13, 1
      %s129 = scalar_select %p128, %s13, 1
      %s130 = smul.addr %s129, 32
      %s131 = smul.addr %s130, 4
      %s132 = scalar_lea.vmem %s0, %s131
      %p133 = pneg %p34
      %p134 = pneg %p31
      %p135 = scmp.lt.s32.totalorder %s13, 1
      %s136 = scalar_select %p135, %s13, 1
      %s137 = smul.addr %s136, 32
      %s138 = smul.addr %s137, 4
      %s139 = scalar_lea.vmem %s1, %s138
      %p140 = pneg %p60
      %p141 = pneg %p57
      %p142 = pneg %p86
      %p143 = pneg %p83
      %p144 = scmp.lt.s32.totalorder %s13, 1
      %s145 = scalar_select %p144, %s13, 1
      %s146 = smul.addr %s145, 32
      %s147 = smul.addr %s146, 4
      %s148 = scalar_lea.vmem %s2, %s147
      %p149 = scmp.lt.s32.totalorder %s13, 1
      %s150 = scalar_select %p149, %s13, 1
      %s151 = smul.addr %s150, 32
      %s152 = smul.addr %s151, 4
      %s153 = scalar_lea.vmem %s0, %s152
      %p154 = scmp.lt.s32.totalorder %s13, 1
      %s155 = scalar_select %p154, %s13, 1
      %s156 = smul.addr %s155, 32
      %s157 = smul.addr %s156, 4
      %s158 = scalar_lea.vmem %s1, %s157
      %p159 = scmp.lt.s32.totalorder %s13, 1
      %s160 = scalar_select %p159, %s13, 1
      %s161 = smul.addr %s160, 32
      %s162 = smul.addr %s161, 4
      %s163 = scalar_lea.vmem %s2, %s162
      %v164 = vld [vmem:[%s153] sm:$0xf]
      %v165 = vld [vmem:[%s153 + $0x4] sm:$0xf]
      %v166 = vld [vmem:[%s153 + $0x8] sm:$0xf]
      %v167 = vld [vmem:[%s153 + $0xc] sm:$0xf]
      %v168 = vld [vmem:[%s153 + $0x10] sm:$0xf]
      %v169 = vld [vmem:[%s153 + $0x14] sm:$0xf]
      %v170 = vld [vmem:[%s153 + $0x18] sm:$0xf]
      %v171 = vld [vmem:[%s153 + $0x1c] sm:$0xf]
      %v172 = vld [vmem:[%s153 + $0x20] sm:$0xf]
      %v173 = vld [vmem:[%s153 + $0x24] sm:$0xf]
      %v174 = vld [vmem:[%s153 + $0x28] sm:$0xf]
      %v175 = vld [vmem:[%s153 + $0x2c] sm:$0xf]
      %v176 = vld [vmem:[%s153 + $0x30] sm:$0xf]
      %v177 = vld [vmem:[%s153 + $0x34] sm:$0xf]
      %v178 = vld [vmem:[%s153 + $0x38] sm:$0xf]
      %v179 = vld [vmem:[%s153 + $0x3c] sm:$0xf]
      %v180 = vld [vmem:[%s153 + $0x40] sm:$0xf]
      %v181 = vld [vmem:[%s153 + $0x44] sm:$0xf]
      %v182 = vld [vmem:[%s153 + $0x48] sm:$0xf]
      %v183 = vld [vmem:[%s153 + $0x4c] sm:$0xf]
      %v184 = vld [vmem:[%s153 + $0x50] sm:$0xf]
      %v185 = vld [vmem:[%s153 + $0x54] sm:$0xf]
      %v186 = vld [vmem:[%s153 + $0x58] sm:$0xf]
      %v187 = vld [vmem:[%s153 + $0x5c] sm:$0xf]
      %v188 = vld [vmem:[%s153 + $0x60] sm:$0xf]
      %v189 = vld [vmem:[%s153 + $0x64] sm:$0xf]
      %v190 = vld [vmem:[%s153 + $0x68] sm:$0xf]
      %v191 = vld [vmem:[%s153 + $0x6c] sm:$0xf]
      %v192 = vld [vmem:[%s153 + $0x70] sm:$0xf]
      %v193 = vld [vmem:[%s153 + $0x74] sm:$0xf]
      %v194 = vld [vmem:[%s153 + $0x78] sm:$0xf]
      %v195 = vld [vmem:[%s153 + $0x7c] sm:$0xf]
      %v196 = vunpack.c.l.bf16 %v164
      %v197 = vunpack.c.l.bf16 %v165
      %v198 = vunpack.c.l.bf16 %v166
      %v199 = vunpack.c.l.bf16 %v167
      %v200 = vunpack.c.l.bf16 %v168
      %v201 = vunpack.c.l.bf16 %v169
      %v202 = vunpack.c.l.bf16 %v170
      %v203 = vunpack.c.l.bf16 %v171
      %v204 = vunpack.c.l.bf16 %v172
      %v205 = vunpack.c.l.bf16 %v173
      %v206 = vunpack.c.l.bf16 %v174
      %v207 = vunpack.c.l.bf16 %v175
      %v208 = vunpack.c.l.bf16 %v176
      %v209 = vunpack.c.l.bf16 %v177
      %v210 = vunpack.c.l.bf16 %v178
      %v211 = vunpack.c.l.bf16 %v179
      %v212 = vunpack.c.l.bf16 %v180
      %v213 = vunpack.c.l.bf16 %v181
      %v214 = vunpack.c.l.bf16 %v182
      %v215 = vunpack.c.l.bf16 %v183
      %v216 = vunpack.c.l.bf16 %v184
      %v217 = vunpack.c.l.bf16 %v185
      %v218 = vunpack.c.l.bf16 %v186
      %v219 = vunpack.c.l.bf16 %v187
      %v220 = vunpack.c.l.bf16 %v188
      %v221 = vunpack.c.l.bf16 %v189
      %v222 = vunpack.c.l.bf16 %v190
      %v223 = vunpack.c.l.bf16 %v191
      %v224 = vunpack.c.l.bf16 %v192
      %v225 = vunpack.c.l.bf16 %v193
      %v226 = vunpack.c.l.bf16 %v194
      %v227 = vunpack.c.l.bf16 %v195
      %v228 = vld [vmem:[%s158] sm:$0xf]
      %v229 = vld [vmem:[%s158 + $0x4] sm:$0xf]
      %v230 = vld [vmem:[%s158 + $0x8] sm:$0xf]
      %v231 = vld [vmem:[%s158 + $0xc] sm:$0xf]
      %v232 = vld [vmem:[%s158 + $0x10] sm:$0xf]
      %v233 = vld [vmem:[%s158 + $0x14] sm:$0xf]
      %v234 = vld [vmem:[%s158 + $0x18] sm:$0xf]
      %v235 = vld [vmem:[%s158 + $0x1c] sm:$0xf]
      %v236 = vld [vmem:[%s158 + $0x20] sm:$0xf]
      %v237 = vld [vmem:[%s158 + $0x24] sm:$0xf]
      %v238 = vld [vmem:[%s158 + $0x28] sm:$0xf]
      %v239 = vld [vmem:[%s158 + $0x2c] sm:$0xf]
      %v240 = vld [vmem:[%s158 + $0x30] sm:$0xf]
      %v241 = vld [vmem:[%s158 + $0x34] sm:$0xf]
      %v242 = vld [vmem:[%s158 + $0x38] sm:$0xf]
      %v243 = vld [vmem:[%s158 + $0x3c] sm:$0xf]
      %v244 = vld [vmem:[%s158 + $0x40] sm:$0xf]
      %v245 = vld [vmem:[%s158 + $0x44] sm:$0xf]
      %v246 = vld [vmem:[%s158 + $0x48] sm:$0xf]
      %v247 = vld [vmem:[%s158 + $0x4c] sm:$0xf]
      %v248 = vld [vmem:[%s158 + $0x50] sm:$0xf]
      %v249 = vld [vmem:[%s158 + $0x54] sm:$0xf]
      %v250 = vld [vmem:[%s158 + $0x58] sm:$0xf]
      %v251 = vld [vmem:[%s158 + $0x5c] sm:$0xf]
      %v252 = vld [vmem:[%s158 + $0x60] sm:$0xf]
      %v253 = vld [vmem:[%s158 + $0x64] sm:$0xf]
      %v254 = vld [vmem:[%s158 + $0x68] sm:$0xf]
      %v255 = vld [vmem:[%s158 + $0x6c] sm:$0xf]
      %v256 = vld [vmem:[%s158 + $0x70] sm:$0xf]
      %v257 = vld [vmem:[%s158 + $0x74] sm:$0xf]
      %v258 = vld [vmem:[%s158 + $0x78] sm:$0xf]
      %v259 = vld [vmem:[%s158 + $0x7c] sm:$0xf]
      %v260 = vunpack.c.l.bf16 %v228
      %v261 = vunpack.c.l.bf16 %v229
      %v262 = vunpack.c.l.bf16 %v230
      %v263 = vunpack.c.l.bf16 %v231
      %v264 = vunpack.c.l.bf16 %v232
      %v265 = vunpack.c.l.bf16 %v233
      %v266 = vunpack.c.l.bf16 %v234
      %v267 = vunpack.c.l.bf16 %v235
      %v268 = vunpack.c.l.bf16 %v236
      %v269 = vunpack.c.l.bf16 %v237
      %v270 = vunpack.c.l.bf16 %v238
      %v271 = vunpack.c.l.bf16 %v239
      %v272 = vunpack.c.l.bf16 %v240
      %v273 = vunpack.c.l.bf16 %v241
      %v274 = vunpack.c.l.bf16 %v242
      %v275 = vunpack.c.l.bf16 %v243
      %v276 = vunpack.c.l.bf16 %v244
      %v277 = vunpack.c.l.bf16 %v245
      %v278 = vunpack.c.l.bf16 %v246
      %v279 = vunpack.c.l.bf16 %v247
      %v280 = vunpack.c.l.bf16 %v248
      %v281 = vunpack.c.l.bf16 %v249
      %v282 = vunpack.c.l.bf16 %v250
      %v283 = vunpack.c.l.bf16 %v251
      %v284 = vunpack.c.l.bf16 %v252
      %v285 = vunpack.c.l.bf16 %v253
      %v286 = vunpack.c.l.bf16 %v254
      %v287 = vunpack.c.l.bf16 %v255
      %v288 = vunpack.c.l.bf16 %v256
      %v289 = vunpack.c.l.bf16 %v257
      %v290 = vunpack.c.l.bf16 %v258
      %v291 = vunpack.c.l.bf16 %v259
      %324 = vrot.lane.b32.xlu0 %v260, 2
      %v325 = vpop.permute.xlu0 %324
      %326 = vrot.lane.b32.xlu0 %v261, 2
      %v327 = vpop.permute.xlu0 %326
      %328 = vrot.lane.b32.xlu0 %v262, 2
      %v329 = vpop.permute.xlu0 %328
      %330 = vrot.lane.b32.xlu0 %v263, 2
      %v331 = vpop.permute.xlu0 %330
      %332 = vrot.lane.b32.xlu0 %v264, 2
      %v333 = vpop.permute.xlu0 %332
      %334 = vrot.lane.b32.xlu0 %v265, 2
      %v335 = vpop.permute.xlu0 %334
      %336 = vrot.lane.b32.xlu0 %v266, 2
      %v337 = vpop.permute.xlu0 %336
      %338 = vrot.lane.b32.xlu0 %v267, 2
      %v339 = vpop.permute.xlu0 %338
      %340 = vrot.lane.b32.xlu0 %v268, 2
      %v341 = vpop.permute.xlu0 %340
      %342 = vrot.lane.b32.xlu0 %v269, 2
      %v343 = vpop.permute.xlu0 %342
      %344 = vrot.lane.b32.xlu0 %v270, 2
      %v345 = vpop.permute.xlu0 %344
      %346 = vrot.lane.b32.xlu0 %v271, 2
      %v347 = vpop.permute.xlu0 %346
      %348 = vrot.lane.b32.xlu0 %v272, 2
      %v349 = vpop.permute.xlu0 %348
      %350 = vrot.lane.b32.xlu0 %v273, 2
      %v351 = vpop.permute.xlu0 %350
      %352 = vrot.lane.b32.xlu0 %v274, 2
      %v353 = vpop.permute.xlu0 %352
      %354 = vrot.lane.b32.xlu0 %v275, 2
      %v355 = vpop.permute.xlu0 %354
      %356 = vrot.lane.b32.xlu0 %v276, 2
      %v357 = vpop.permute.xlu0 %356
      %358 = vrot.lane.b32.xlu0 %v277, 2
      %v359 = vpop.permute.xlu0 %358
      %360 = vrot.lane.b32.xlu0 %v278, 2
      %v361 = vpop.permute.xlu0 %360
      %362 = vrot.lane.b32.xlu0 %v279, 2
      %v363 = vpop.permute.xlu0 %362
      %364 = vrot.lane.b32.xlu0 %v280, 2
      %v365 = vpop.permute.xlu0 %364
      %366 = vrot.lane.b32.xlu0 %v281, 2
      %v367 = vpop.permute.xlu0 %366
      %368 = vrot.lane.b32.xlu0 %v282, 2
      %v369 = vpop.permute.xlu0 %368
      %370 = vrot.lane.b32.xlu0 %v283, 2
      %v371 = vpop.permute.xlu0 %370
      %372 = vrot.lane.b32.xlu0 %v284, 2
      %v373 = vpop.permute.xlu0 %372
      %374 = vrot.lane.b32.xlu0 %v285, 2
      %v375 = vpop.permute.xlu0 %374
      %376 = vrot.lane.b32.xlu0 %v286, 2
      %v377 = vpop.permute.xlu0 %376
      %378 = vrot.lane.b32.xlu0 %v287, 2
      %v379 = vpop.permute.xlu0 %378
      %380 = vrot.lane.b32.xlu0 %v288, 2
      %v381 = vpop.permute.xlu0 %380
      %382 = vrot.lane.b32.xlu0 %v289, 2
      %v383 = vpop.permute.xlu0 %382
      %384 = vrot.lane.b32.xlu0 %v290, 2
      %v385 = vpop.permute.xlu0 %384
      %386 = vrot.lane.b32.xlu0 %v291, 2
      %v387 = vpop.permute.xlu0 %386
      %vm420 = vcmask 15360
      %v421 = vsel %vm420, %v196, %v325
      %v422 = vsel %vm420, %v197, %v327
      %v423 = vsel %vm420, %v198, %v329
      %v424 = vsel %vm420, %v199, %v331
      %v425 = vsel %vm420, %v200, %v333
      %v426 = vsel %vm420, %v201, %v335
      %v427 = vsel %vm420, %v202, %v337
      %v428 = vsel %vm420, %v203, %v339
      %v429 = vsel %vm420, %v204, %v341
      %v430 = vsel %vm420, %v205, %v343
      %v431 = vsel %vm420, %v206, %v345
      %v432 = vsel %vm420, %v207, %v347
      %v433 = vsel %vm420, %v208, %v349
      %v434 = vsel %vm420, %v209, %v351
      %v435 = vsel %vm420, %v210, %v353
      %v436 = vsel %vm420, %v211, %v355
      %v437 = vsel %vm420, %v212, %v357
      %v438 = vsel %vm420, %v213, %v359
      %v439 = vsel %vm420, %v214, %v361
      %v440 = vsel %vm420, %v215, %v363
      %v441 = vsel %vm420, %v216, %v365
      %v442 = vsel %vm420, %v217, %v367
      %v443 = vsel %vm420, %v218, %v369
      %v444 = vsel %vm420, %v219, %v371
      %v445 = vsel %vm420, %v220, %v373
      %v446 = vsel %vm420, %v221, %v375
      %v447 = vsel %vm420, %v222, %v377
      %v448 = vsel %vm420, %v223, %v379
      %v449 = vsel %vm420, %v224, %v381
      %v450 = vsel %vm420, %v225, %v383
      %v451 = vsel %vm420, %v226, %v385
      %v452 = vsel %vm420, %v227, %v387
      %vm453 = vcmask 31744
      %v454 = vsel %vm453, %v421, 0.0
      %v455 = vsel %vm453, %v422, 0.0
      %v456 = vsel %vm453, %v423, 0.0
      %v457 = vsel %vm453, %v424, 0.0
      %v458 = vsel %vm453, %v425, 0.0
      %v459 = vsel %vm453, %v426, 0.0
      %v460 = vsel %vm453, %v427, 0.0
      %v461 = vsel %vm453, %v428, 0.0
      %v462 = vsel %vm453, %v429, 0.0
      %v463 = vsel %vm453, %v430, 0.0
      %v464 = vsel %vm453, %v431, 0.0
      %v465 = vsel %vm453, %v432, 0.0
      %v466 = vsel %vm453, %v433, 0.0
      %v467 = vsel %vm453, %v434, 0.0
      %v468 = vsel %vm453, %v435, 0.0
      %v469 = vsel %vm453, %v436, 0.0
      %v470 = vsel %vm453, %v437, 0.0
      %v471 = vsel %vm453, %v438, 0.0
      %v472 = vsel %vm453, %v439, 0.0
      %v473 = vsel %vm453, %v440, 0.0
      %v474 = vsel %vm453, %v441, 0.0
      %v475 = vsel %vm453, %v442, 0.0
      %v476 = vsel %vm453, %v443, 0.0
      %v477 = vsel %vm453, %v444, 0.0
      %v478 = vsel %vm453, %v445, 0.0
      %v479 = vsel %vm453, %v446, 0.0
      %v480 = vsel %vm453, %v447, 0.0
      %v481 = vsel %vm453, %v448, 0.0
      %v482 = vsel %vm453, %v449, 0.0
      %v483 = vsel %vm453, %v450, 0.0
      %v484 = vsel %vm453, %v451, 0.0
      %v485 = vsel %vm453, %v452, 0.0
      %v486 = vpack.c.bf16 %v455, %v454
      %v487 = vpack.c.bf16 %v457, %v456
      %v488 = vpack.c.bf16 %v459, %v458
      %v489 = vpack.c.bf16 %v461, %v460
      %v490 = vpack.c.bf16 %v463, %v462
      %v491 = vpack.c.bf16 %v465, %v464
      %v492 = vpack.c.bf16 %v467, %v466
      %v493 = vpack.c.bf16 %v469, %v468
      %v494 = vpack.c.bf16 %v471, %v470
      %v495 = vpack.c.bf16 %v473, %v472
      %v496 = vpack.c.bf16 %v475, %v474
      %v497 = vpack.c.bf16 %v477, %v476
      %v498 = vpack.c.bf16 %v479, %v478
      %v499 = vpack.c.bf16 %v481, %v480
      %v500 = vpack.c.bf16 %v483, %v482
      %v501 = vpack.c.bf16 %v485, %v484
      %v518 = vunpack.c.l.b16 %v486
      %v519 = vunpack.c.h.b16 %v486
      %v520 = vunpack.c.l.b16 %v487
      %v521 = vunpack.c.h.b16 %v487
      %v522 = vunpack.c.l.b16 %v488
      %v523 = vunpack.c.h.b16 %v488
      %v524 = vunpack.c.l.b16 %v489
      %v525 = vunpack.c.h.b16 %v489
      %v526 = vunpack.c.l.b16 %v490
      %v527 = vunpack.c.h.b16 %v490
      %v528 = vunpack.c.l.b16 %v491
      %v529 = vunpack.c.h.b16 %v491
      %v530 = vunpack.c.l.b16 %v492
      %v531 = vunpack.c.h.b16 %v492
      %v532 = vunpack.c.l.b16 %v493
      %v533 = vunpack.c.h.b16 %v493
      %v534 = vunpack.c.l.b16 %v494
      %v535 = vunpack.c.h.b16 %v494
      %v536 = vunpack.c.l.b16 %v495
      %v537 = vunpack.c.h.b16 %v495
      %v538 = vunpack.c.l.b16 %v496
      %v539 = vunpack.c.h.b16 %v496
      %v540 = vunpack.c.l.b16 %v497
      %v541 = vunpack.c.h.b16 %v497
      %v542 = vunpack.c.l.b16 %v498
      %v543 = vunpack.c.h.b16 %v498
      %v544 = vunpack.c.l.b16 %v499
      %v545 = vunpack.c.h.b16 %v499
      %v546 = vunpack.c.l.b16 %v500
      %v547 = vunpack.c.h.b16 %v500
      %v548 = vunpack.c.l.b16 %v501
      %v549 = vunpack.c.h.b16 %v501
      %v550 = vpack.c.b16 %v518, %v518
      %v551 = vpack.c.b16 %v519, %v519
      %v552 = vpack.c.b16 %v520, %v520
      %v553 = vpack.c.b16 %v521, %v521
      %v554 = vpack.c.b16 %v522, %v522
      %v555 = vpack.c.b16 %v523, %v523
      %v556 = vpack.c.b16 %v524, %v524
      %v557 = vpack.c.b16 %v525, %v525
      %v558 = vpack.c.b16 %v526, %v526
      %v559 = vpack.c.b16 %v527, %v527
      %v560 = vpack.c.b16 %v528, %v528
      %v561 = vpack.c.b16 %v529, %v529
      %v562 = vpack.c.b16 %v530, %v530
      %v563 = vpack.c.b16 %v531, %v531
      %v564 = vpack.c.b16 %v532, %v532
      %v565 = vpack.c.b16 %v533, %v533
      %v566 = vpack.c.b16 %v534, %v534
      %v567 = vpack.c.b16 %v535, %v535
      %v568 = vpack.c.b16 %v536, %v536
      %v569 = vpack.c.b16 %v537, %v537
      %v570 = vpack.c.b16 %v538, %v538
      %v571 = vpack.c.b16 %v539, %v539
      %v572 = vpack.c.b16 %v540, %v540
      %v573 = vpack.c.b16 %v541, %v541
      %v574 = vpack.c.b16 %v542, %v542
      %v575 = vpack.c.b16 %v543, %v543
      %v576 = vpack.c.b16 %v544, %v544
      %v577 = vpack.c.b16 %v545, %v545
      %v578 = vpack.c.b16 %v546, %v546
      %v579 = vpack.c.b16 %v547, %v547
      %v580 = vpack.c.b16 %v548, %v548
      %v581 = vpack.c.b16 %v549, %v549
      %614 = vst [vmem:[%s163] sm:$0xf] %v550
      %615 = vst [vmem:[%s163 + $0x4] sm:$0xf] %v551
      %616 = vst [vmem:[%s163 + $0x8] sm:$0xf] %v552
      %617 = vst [vmem:[%s163 + $0xc] sm:$0xf] %v553
      %618 = vst [vmem:[%s163 + $0x10] sm:$0xf] %v554
      %619 = vst [vmem:[%s163 + $0x14] sm:$0xf] %v555
      %620 = vst [vmem:[%s163 + $0x18] sm:$0xf] %v556
      %621 = vst [vmem:[%s163 + $0x1c] sm:$0xf] %v557
      %622 = vst [vmem:[%s163 + $0x20] sm:$0xf] %v558
      %623 = vst [vmem:[%s163 + $0x24] sm:$0xf] %v559
      %624 = vst [vmem:[%s163 + $0x28] sm:$0xf] %v560
      %625 = vst [vmem:[%s163 + $0x2c] sm:$0xf] %v561
      %626 = vst [vmem:[%s163 + $0x30] sm:$0xf] %v562
      %627 = vst [vmem:[%s163 + $0x34] sm:$0xf] %v563
      %628 = vst [vmem:[%s163 + $0x38] sm:$0xf] %v564
      %629 = vst [vmem:[%s163 + $0x3c] sm:$0xf] %v565
      %630 = vst [vmem:[%s163 + $0x40] sm:$0xf] %v566
      %631 = vst [vmem:[%s163 + $0x44] sm:$0xf] %v567
      %632 = vst [vmem:[%s163 + $0x48] sm:$0xf] %v568
      %633 = vst [vmem:[%s163 + $0x4c] sm:$0xf] %v569
      %634 = vst [vmem:[%s163 + $0x50] sm:$0xf] %v570
      %635 = vst [vmem:[%s163 + $0x54] sm:$0xf] %v571
      %636 = vst [vmem:[%s163 + $0x58] sm:$0xf] %v572
      %637 = vst [vmem:[%s163 + $0x5c] sm:$0xf] %v573
      %638 = vst [vmem:[%s163 + $0x60] sm:$0xf] %v574
      %639 = vst [vmem:[%s163 + $0x64] sm:$0xf] %v575
      %640 = vst [vmem:[%s163 + $0x68] sm:$0xf] %v576
      %641 = vst [vmem:[%s163 + $0x6c] sm:$0xf] %v577
      %642 = vst [vmem:[%s163 + $0x70] sm:$0xf] %v578
      %643 = vst [vmem:[%s163 + $0x74] sm:$0xf] %v579
      %644 = vst [vmem:[%s163 + $0x78] sm:$0xf] %v580
      %645 = vst [vmem:[%s163 + $0x7c] sm:$0xf] %v581
      %p646 = scmp.lt.s32.totalorder %s13, 1
      %s647 = scalar_select %p646, %s13, 1
      %s648 = smul.addr %s647, 32
      %s649 = smul.addr %s648, 4
      %s650 = scalar_lea.vmem %s2, %s649
      // Predicated region
      $region29: #{unet_forward.28} parent=27 // pred_check
        %p651 = pneg %p83
      $region30: #{unet_forward.28} parent=27 // pred_check_branch
        %653 = sbr.rel (%p651) target = $region32
      $region31: #{unet_forward.28} parent=27 // pred_region
        _
      $region32: #{unet_forward.28} parent=27 // pred_fallthru
        _
    $region28: #{unet_forward.28} parent=5 // pred_fallthru
      _
    %p654 = scmp.le.s32.totalorder 2, %s8
    // Predicated region
    $region33: #{unet_forward.28} parent=5 // pred_check
      %p655 = pneg %p654
    $region34: #{unet_forward.28} parent=5 // pred_check_branch
      %657 = sbr.rel (%p655) target = $region36
    $region35: #{unet_forward.28} parent=5 // pred_region
      %s658 = ssub.s32 %s8, 2
      // Predicated region
      $region37: #{unet_forward.28} parent=35 // pred_check
        %p659 = pneg %p89
      $region38: #{unet_forward.28} parent=35 // pred_check_branch
        %661 = sbr.rel (%p659) target = $region40
      $region39: #{unet_forward.28} parent=35 // pred_region
        %p662 = scmp.lt.s32.totalorder %s14, 1
        %s663 = scalar_select %p662, %s14, 1
        %s664 = smul.addr %s663, 32
        %s665 = smul.addr %s664, 4
        %s666 = scalar_lea.vmem %s2, %s665
      $region40: #{unet_forward.28} parent=35 // pred_fallthru
        _
    $region36: #{unet_forward.28} parent=5 // pred_fallthru
      _
  $region6: #{unet_forward.28} parent=0 // loop_footer
    %s12 = sadd.s32 1, %s8
  $region7: #{unet_forward.28} parent=0 // loop_footer_branch
    %7 = sbr.rel target = $region3
  $region8: #{unet_forward.28} parent=0 // loop_exit
    _

// kernel: unet_forward.18
$region0: #{unet_forward.18}
  #allocation0 [shape = 'u32[]', space=smem, size = 0x4, offset = 0x4, fixed_abs, tag = 'smem constant byte address 0x4 - core index']
  #allocation1 [shape = 'u32[144,128]{1,0:T(1,128)}', space=vmem, size = 0x12000, scoped, tag = 'internal scratch']
  %s0 = inlined_call_operand.vmem [shape: bf16[2,18,18,128], index: 0, kind: input, shape index: {}]
  %s1 = inlined_call_operand.vmem [shape: bf16[9,128,128], index: 1, kind: input, shape index: {}]
  %s2 = inlined_call_operand.vmem [shape: f32[1,128], index: 2, kind: input, shape index: {}]
  %s3 = inlined_call_operand.vmem [shape: f32[2,16,16,128], index: 3, kind: output, shape index: {0}]
  %s4 = inlined_call_operand.vmem [shape: f32[2,2,8,128], index: 4, kind: output, shape index: {1}]
  %5 = xla_tuple %s3, %s4
  %s6 = sld [smem:[#allocation0]]
  $region53: #{unet_forward.18} parent=0
    _
  %s8 = ssub.s32 1, %s6
  %s9 = scalar_select 0, %s8, %s6
  loop: start=0, step=1, limit=6
  $region2: #{unet_forward.18} parent=0 // loop_pre_header
    _
  $region3: #{unet_forward.18} parent=0 // loop_header
    %s11 = sphi 0, %s15
    %p12 = scmp.ge.s32.totalorder %s11, 6
    %s18 = sphi 0, %s30
    %s19 = sphi 0, %s26
    %s20 = sphi 0, %s18
    %s21 = sphi 0, %s19
    %s22 = sphi 0, %s20
    %s23 = sphi 0, %s21
    %s33 = sphi 0, %s35
    %s36 = sphi 0, %s33
    %s37 = sphi 0, %s36
    %s53 = sphi 0, %s37
    %s57 = sphi 0, %s57
    %s59 = sphi 0, %s57
    %s60 = sphi 0, %s59
    %s74 = sphi 0, %s60
    %s78 = sphi 0, %s78
    %s80 = sphi 0, %s78
    %s81 = sphi 0, %s80
    %s95 = sphi 0, %s81
    %s103 = sphi 0, %s105
    %s106 = sphi 0, %s103
    %s107 = sphi 0, %s106
    %s123 = sphi 0, %s107
    %s131 = sphi 0, %s133
    %s134 = sphi 0, %s131
    %s135 = sphi 0, %s134
    %s151 = sphi 0, %s135
  $region4: #{unet_forward.18} parent=0 // loop_header_branch
    %14 = sbr.rel (%p12) target = $region8
  $region5: #{unet_forward.18} parent=0 // loop_body
    %s16 = ssub.s32 %s11, 1
    %s17 = ssub.s32 %s11, 2
    %s24 = sadd.s32 1, %s19
    %p25 = scmp.ge.s32.totalorder %s24, 2
    %s26 = scalar_select %p25, 0, %s24
    %s27 = sadd.s32 1, %s18
    %s28 = scalar_select %p25, %s27, %s18
    %p29 = scmp.ge.s32.totalorder %s28, 2
    %s30 = scalar_select %p29, 0, %s28
    %s31 = ssub.s32 %s18, %s30
    %p32 = scmp.eq.s32.totalorder %s31, 0
    %s34 = sadd.s32 %s33, 1
    %s35 = scalar_select %p32, %s33, %s34
    %p38 = pneg %p32
    %p39 = scmp.eq.s32.totalorder %s11, 3
    %p40 = por %p38, %p39
    %p41 = scmp.ne.s32.totalorder %s33, %s36
    %p42 = scmp.eq.s32.totalorder %s11, 0
    %p43 = por %p41, %p42
    %p44 = scmp.ne.s32.totalorder %s33, %s36
    %p45 = scmp.eq.s32.totalorder %s16, 3
    %p46 = por %p44, %p45
    %p47 = scmp.ne.s32.totalorder %s36, %s37
    %p48 = scmp.eq.s32.totalorder %s16, 0
    %p49 = por %p47, %p48
    %p50 = scmp.ne.s32.totalorder %s36, %s37
    %p51 = scmp.eq.s32.totalorder %s17, 3
    %p52 = por %p50, %p51
    %p54 = scmp.ne.s32.totalorder %s37, %s53
    %p55 = scmp.eq.s32.totalorder %s17, 0
    %p56 = por %p54, %p55
    %s58 = sadd.s32 %s57, 1
    %p61 = scmp.eq.s32.totalorder %s11, 3
    %p62 = scmp.ne.s32.totalorder %s57, %s59
    %p63 = scmp.eq.s32.totalorder %s11, 0
    %p64 = por %p62, %p63
    %p65 = scmp.ne.s32.totalorder %s57, %s59
    %p66 = scmp.eq.s32.totalorder %s16, 3
    %p67 = por %p65, %p66
    %p68 = scmp.ne.s32.totalorder %s59, %s60
    %p69 = scmp.eq.s32.totalorder %s16, 0
    %p70 = por %p68, %p69
    %p71 = scmp.ne.s32.totalorder %s59, %s60
    %p72 = scmp.eq.s32.totalorder %s17, 3
    %p73 = por %p71, %p72
    %p75 = scmp.ne.s32.totalorder %s60, %s74
    %p76 = scmp.eq.s32.totalorder %s17, 0
    %p77 = por %p75, %p76
    %s79 = sadd.s32 %s78, 1
    %p82 = scmp.eq.s32.totalorder %s11, 3
    %p83 = scmp.ne.s32.totalorder %s78, %s80
    %p84 = scmp.eq.s32.totalorder %s11, 0
    %p85 = por %p83, %p84
    %p86 = scmp.ne.s32.totalorder %s78, %s80
    %p87 = scmp.eq.s32.totalorder %s16, 3
    %p88 = por %p86, %p87
    %p89 = scmp.ne.s32.totalorder %s80, %s81
    %p90 = scmp.eq.s32.totalorder %s16, 0
    %p91 = por %p89, %p90
    %p92 = scmp.ne.s32.totalorder %s80, %s81
    %p93 = scmp.eq.s32.totalorder %s17, 3
    %p94 = por %p92, %p93
    %p96 = scmp.ne.s32.totalorder %s81, %s95
    %p97 = scmp.eq.s32.totalorder %s17, 0
    %p98 = por %p96, %p97
    %s99 = ssub.s32 %s18, %s30
    %s100 = ssub.s32 %s19, %s26
    %s101 = sor.u32 %s99, %s100
    %p102 = scmp.eq.s32.totalorder %s101, 0
    %s104 = sadd.s32 %s103, 1
    %s105 = scalar_select %p102, %s103, %s104
    %p108 = pneg %p102
    %p109 = scmp.eq.s32.totalorder %s11, 3
    %p110 = por %p108, %p109
    %p111 = scmp.ne.s32.totalorder %s103, %s106
    %p112 = scmp.eq.s32.totalorder %s11, 0
    %p113 = por %p111, %p112
    %p114 = scmp.ne.s32.totalorder %s103, %s106
    %p115 = scmp.eq.s32.totalorder %s16, 3
    %p116 = por %p114, %p115
    %p117 = scmp.ne.s32.totalorder %s106, %s107
    %p118 = scmp.eq.s32.totalorder %s16, 0
    %p119 = por %p117, %p118
    %p120 = scmp.ne.s32.totalorder %s106, %s107
    %p121 = scmp.eq.s32.totalorder %s17, 3
    %p122 = por %p120, %p121
    %p124 = scmp.ne.s32.totalorder %s107, %s123
    %p125 = scmp.eq.s32.totalorder %s17, 0
    %p126 = por %p124, %p125
    %s127 = ssub.s32 %s18, %s30
    %s128 = ssub.s32 %s19, %s26
    %s129 = sor.u32 %s127, %s128
    %p130 = scmp.eq.s32.totalorder %s129, 0
    %s132 = sadd.s32 %s131, 1
    %s133 = scalar_select %p130, %s131, %s132
    %p136 = pneg %p130
    %p137 = scmp.eq.s32.totalorder %s11, 3
    %p138 = por %p136, %p137
    %p139 = scmp.ne.s32.totalorder %s131, %s134
    %p140 = scmp.eq.s32.totalorder %s11, 0
    %p141 = por %p139, %p140
    %p142 = scmp.ne.s32.totalorder %s131, %s134
    %p143 = scmp.eq.s32.totalorder %s16, 3
    %p144 = por %p142, %p143
    %p145 = scmp.ne.s32.totalorder %s134, %s135
    %p146 = scmp.eq.s32.totalorder %s16, 0
    %p147 = por %p145, %p146
    %p148 = scmp.ne.s32.totalorder %s134, %s135
    %p149 = scmp.eq.s32.totalorder %s17, 3
    %p150 = por %p148, %p149
    %p152 = scmp.ne.s32.totalorder %s135, %s151
    %p153 = scmp.eq.s32.totalorder %s17, 0
    %p154 = por %p152, %p153
    %p155 = scmp.le.s32.totalorder 1, %s11
    %p156 = scmp.lt.s32.totalorder %s11, 5
    %p157 = pnand %p155, %p156
    %p158 = pneg %p157
    // Predicated region
    $region9: #{unet_forward.18} parent=5 // pred_check
      _
    $region10: #{unet_forward.18} parent=5 // pred_check_branch
      %160 = sbr.rel (%p157) target = $region12
    $region11: #{unet_forward.18} parent=5 // pred_region
      %s161 = ssub.s32 %s11, 1
      // Predicated region
      $region13: #{unet_forward.18} parent=11 // pred_check
        %p162 = pneg %p70
      $region14: #{unet_forward.18} parent=11 // pred_check_branch
        %164 = sbr.rel (%p162) target = $region16
      $region15: #{unet_forward.18} parent=11 // pred_region
        _
      $region16: #{unet_forward.18} parent=11 // pred_fallthru
        _
      // Predicated region
      $region17: #{unet_forward.18} parent=11 // pred_check
        %p165 = pneg %p91
      $region18: #{unet_forward.18} parent=11 // pred_check_branch
        %167 = sbr.rel (%p165) target = $region20
      $region19: #{unet_forward.18} parent=11 // pred_region
        _
      $region20: #{unet_forward.18} parent=11 // pred_fallthru
        _
    $region12: #{unet_forward.18} parent=5 // pred_fallthru
      _
    %p168 = scmp.lt.s32.totalorder %s11, 4
    // Predicated region
    $region21: #{unet_forward.18} parent=5 // pred_check
      %p169 = pneg %p168
    $region22: #{unet_forward.18} parent=5 // pred_check_branch
      %171 = sbr.rel (%p169) target = $region24
    $region23: #{unet_forward.18} parent=5 // pred_region
      // Predicated region
      $region25: #{unet_forward.18} parent=23 // pred_check
        %p172 = pneg %p43
      $region26: #{unet_forward.18} parent=23 // pred_check_branch
        %174 = sbr.rel (%p172) target = $region28
      $region27: #{unet_forward.18} parent=23 // pred_region
        %p175 = scmp.lt.s32.totalorder %s18, 1
        %s176 = scalar_select %p175, %s18, 1
        %s177 = smul.addr %s176, 54
        %s178 = smul.addr %s177, 4
        %s179 = scalar_lea.vmem %s0, %s178
      $region28: #{unet_forward.18} parent=23 // pred_fallthru
        _
    $region24: #{unet_forward.18} parent=5 // pred_fallthru
      _
    %p180 = scmp.le.s32.totalorder 1, %s11
    %p181 = scmp.lt.s32.totalorder %s11, 5
    %p182 = pnand %p180, %p181
    %p183 = pneg %p182
    // Predicated region
    $region29: #{unet_forward.18} parent=5 // pred_check
      _
    $region30: #{unet_forward.18} parent=5 // pred_check_branch
      %185 = sbr.rel (%p182) target = $region32
    $region31: #{unet_forward.18} parent=5 // pred_region
      %s186 = ssub.s32 %s11, 1
      %p187 = scmp.lt.s32.totalorder %s20, 1
      %s188 = scalar_select %p187, %s20, 1
      %s189 = smul.addr %s188, 54
      %s190 = smul.addr %s189, 4
      %s191 = scalar_lea.vmem %s0, %s190
      %p192 = pneg %p49
      %p193 = pneg %p46
      %p194 = pneg %p70
      %p195 = pneg %p67
      %p196 = pneg %p91
      %p197 = pneg %p88
      %p198 = pneg %p119
      %p199 = pneg %p116
      %s200 = smul.u32 8, %s21
      %p201 = scmp.lt.s32.totalorder %s20, 1
      %s202 = scalar_select %p201, %s20, 1
      %p203 = scmp.lt.s32.totalorder %s200, 15
      %s204 = scalar_select %p203, %s200, 15
      %s205 = smul.addr %s204, 2
      %s206 = smul.addr %s202, 32
      %s207 = sadd.s32 %s205, %s206
      %s208 = smul.addr %s207, 8
      %s209 = scalar_lea.vmem %s3, %s208
      %p210 = pneg %p147
      %p211 = pneg %p144
      %p212 = scmp.lt.s32.totalorder %s20, 1
      %s213 = scalar_select %p212, %s20, 1
      %p214 = scmp.lt.s32.totalorder %s21, 1
      %s215 = scalar_select %p214, %s21, 1
      %s216 = smul.addr %s213, 2
      %s217 = sadd.s32 %s215, %s216
      %s218 = smul.addr %s217, 8
      %s219 = scalar_lea.vmem %s4, %s218
      %p220 = scmp.lt.s32.totalorder %s20, 1
      %s221 = scalar_select %p220, %s20, 1
      %s222 = smul.addr %s221, 54
      %s223 = smul.addr %s222, 4
      %s224 = scalar_lea.vmem %s0, %s223
      %s225 = smul.u32 8, %s21
      %p226 = scmp.lt.s32.totalorder %s20, 1
      %s227 = scalar_select %p226, %s20, 1
      %p228 = scmp.lt.s32.totalorder %s225, 15
      %s229 = scalar_select %p228, %s225, 15
      %s230 = smul.addr %s229, 2
      %s231 = smul.addr %s227, 32
      %s232 = sadd.s32 %s230, %s231
      %s233 = smul.addr %s232, 8
      %s234 = scalar_lea.vmem %s3, %s233
      %s235 = smul.u32 8, %s21
      %p236 = scmp.lt.s32.totalorder %s20, 1
      %s237 = scalar_select %p236, %s20, 1
      %p238 = scmp.lt.s32.totalorder %s21, 1
      %s239 = scalar_select %p238, %s21, 1
      %s240 = smul.addr %s237, 2
      %s241 = sadd.s32 %s239, %s240
      %s242 = smul.addr %s241, 8
      %s243 = scalar_lea.vmem %s4, %s242
      %s245 = smul.u32 %s21, 8
      %s246 = smul.u32 %s245, 3
      %s247 = smul.addr %s246, 4
      %s248 = scalar_lea.vmem %s224, %s247
      %v249 = vld [vmem:[%s248] sm:$0xf]
      %v250 = vld [vmem:[%s248 + $0x4] sm:$0xf]
      %v251 = vld [vmem:[%s248 + $0x8] sm:$0x1]
      %v252 = vld [vmem:[%s248 + $0xc] sm:$0xf]
      %v253 = vld [vmem:[%s248 + $0x10] sm:$0xf]
      %v254 = vld [vmem:[%s248 + $0x14] sm:$0x1]
      %v255 = vld [vmem:[%s248 + $0x18] sm:$0xf]
      %v256 = vld [vmem:[%s248 + $0x1c] sm:$0xf]
      %v257 = vld [vmem:[%s248 + $0x20] sm:$0x1]
      %v258 = vld [vmem:[%s248 + $0x24] sm:$0xf]
      %v259 = vld [vmem:[%s248 + $0x28] sm:$0xf]
      %v260 = vld [vmem:[%s248 + $0x2c] sm:$0x1]
      %v261 = vld [vmem:[%s248 + $0x30] sm:$0xf]
      %v262 = vld [vmem:[%s248 + $0x34] sm:$0xf]
      %v263 = vld [vmem:[%s248 + $0x38] sm:$0x1]
      %v264 = vld [vmem:[%s248 + $0x3c] sm:$0xf]
      %v265 = vld [vmem:[%s248 + $0x40] sm:$0xf]
      %v266 = vld [vmem:[%s248 + $0x44] sm:$0x1]
      %v267 = vld [vmem:[%s248 + $0x48] sm:$0xf]
      %v268 = vld [vmem:[%s248 + $0x4c] sm:$0xf]
      %v269 = vld [vmem:[%s248 + $0x50] sm:$0x1]
      %v270 = vld [vmem:[%s248 + $0x54] sm:$0xf]
      %v271 = vld [vmem:[%s248 + $0x58] sm:$0xf]
      %v272 = vld [vmem:[%s248 + $0x5c] sm:$0x1]
      %v273 = vld [vmem:[%s1] sm:$0xf]
      %v274 = vld [vmem:[%s1 + $0x4] sm:$0xf]
      %v275 = vld [vmem:[%s1 + $0x8] sm:$0xf]
      %v276 = vld [vmem:[%s1 + $0xc] sm:$0xf]
      %v277 = vld [vmem:[%s1 + $0x10] sm:$0xf]
      %v278 = vld [vmem:[%s1 + $0x14] sm:$0xf]
      %v279 = vld [vmem:[%s1 + $0x18] sm:$0xf]
      %v280 = vld [vmem:[%s1 + $0x1c] sm:$0xf]
      %v281 = vld [vmem:[%s1 + $0x20] sm:$0xf]
      %v282 = vld [vmem:[%s1 + $0x24] sm:$0xf]
      %v283 = vld [vmem:[%s1 + $0x28] sm:$0xf]
      %v284 = vld [vmem:[%s1 + $0x2c] sm:$0xf]
      %v285 = vld [vmem:[%s1 + $0x30] sm:$0xf]
      %v286 = vld [vmem:[%s1 + $0x34] sm:$0xf]
      %v287 = vld [vmem:[%s1 + $0x38] sm:$0xf]
      %v288 = vld [vmem:[%s1 + $0x3c] sm:$0xf]
      %vm289 = vsmask.f32 3328
      %vm290 = vsmask.f32 7440
      %vm291 = vmor %vm289, %vm290
      %v293 = vshrl.u32 %v249, 16
      %v295 = vrot.slane %v293, 4
      %v296 = vshll.u32 %v249, 16
      %v298 = vrot.slane %v296, 5
      %v299 = vor.u32 %v295, %v298
      %v300 = vrot.slane %v299, 4
      %v302 = vshll.u32 %v250, 16
      %v304 = vrot.slane %v302, 5
      %v305 = vsel %vm291, %v300, %v304
      %v306 = vshrl.u32 %v250, 16
      %v308 = vrot.slane %v306, 4
      %v309 = vor.u32 %v308, %v304
      %v310 = vrot.slane %v309, 4
      %v312 = vshll.u32 %v251, 16
      %v314 = vrot.slane %v312, 5
      %v315 = vsel %vm291, %v310, %v314
      %v317 = vshrl.u32 %v252, 16
      %v319 = vrot.slane %v317, 4
      %v320 = vshll.u32 %v252, 16
      %v322 = vrot.slane %v320, 5
      %v323 = vor.u32 %v319, %v322
      %v324 = vrot.slane %v323, 4
      %v326 = vshll.u32 %v253, 16
      %v328 = vrot.slane %v326, 5
      %v329 = vsel %vm291, %v324, %v328
      %v330 = vshrl.u32 %v253, 16
      %v332 = vrot.slane %v330, 4
      %v333 = vor.u32 %v332, %v328
      %v334 = vrot.slane %v333, 4
      %v336 = vshll.u32 %v254, 16
      %v338 = vrot.slane %v336, 5
      %v339 = vsel %vm291, %v334, %v338
      %v341 = vshrl.u32 %v255, 16
      %v343 = vrot.slane %v341, 4
      %v344 = vshll.u32 %v255, 16
      %v346 = vrot.slane %v344, 5
      %v347 = vor.u32 %v343, %v346
      %v348 = vrot.slane %v347, 4
      %v350 = vshll.u32 %v256, 16
      %v352 = vrot.slane %v350, 5
      %v353 = vsel %vm291, %v348, %v352
      %v354 = vshrl.u32 %v256, 16
      %v356 = vrot.slane %v354, 4
      %v357 = vor.u32 %v356, %v352
      %v358 = vrot.slane %v357, 4
      %v360 = vshll.u32 %v257, 16
      %v362 = vrot.slane %v360, 5
      %v363 = vsel %vm291, %v358, %v362
      %v365 = vshrl.u32 %v258, 16
      %v367 = vrot.slane %v365, 4
      %v368 = vshll.u32 %v258, 16
      %v370 = vrot.slane %v368, 5
      %v371 = vor.u32 %v367, %v370
      %v372 = vrot.slane %v371, 4
      %v374 = vshll.u32 %v259, 16
      %v376 = vrot.slane %v374, 5
      %v377 = vsel %vm291, %v372, %v376
      %v378 = vshrl.u32 %v259, 16
      %v380 = vrot.slane %v378, 4
      %v381 = vor.u32 %v380, %v376
      %v382 = vrot.slane %v381, 4
      %v384 = vshll.u32 %v260, 16
      %v386 = vrot.slane %v384, 5
      %v387 = vsel %vm291, %v382, %v386
      %v389 = vshrl.u32 %v261, 16
      %v391 = vrot.slane %v389, 4
      %v392 = vshll.u32 %v261, 16
      %v394 = vrot.slane %v392, 5
      %v395 = vor.u32 %v391, %v394
      %v396 = vrot.slane %v395, 4
      %v398 = vshll.u32 %v262, 16
      %v400 = vrot.slane %v398, 5
      %v401 = vsel %vm291, %v396, %v400
      %v402 = vshrl.u32 %v262, 16
      %v404 = vrot.slane %v402, 4
      %v405 = vor.u32 %v404, %v400
      %v406 = vrot.slane %v405, 4
      %v408 = vshll.u32 %v263, 16
      %v410 = vrot.slane %v408, 5
      %v411 = vsel %vm291, %v406, %v410
      %v413 = vshrl.u32 %v264, 16
      %v415 = vrot.slane %v413, 4
      %v416 = vshll.u32 %v264, 16
      %v418 = vrot.slane %v416, 5
      %v419 = vor.u32 %v415, %v418
      %v420 = vrot.slane %v419, 4
      %v422 = vshll.u32 %v265, 16
      %v424 = vrot.slane %v422, 5
      %v425 = vsel %vm291, %v420, %v424
      %v426 = vshrl.u32 %v265, 16
      %v428 = vrot.slane %v426, 4
      %v429 = vor.u32 %v428, %v424
      %v430 = vrot.slane %v429, 4
      %v432 = vshll.u32 %v266, 16
      %v434 = vrot.slane %v432, 5
      %v435 = vsel %vm291, %v430, %v434
      %v437 = vshrl.u32 %v267, 16
      %v439 = vrot.slane %v437, 4
      %v440 = vshll.u32 %v267, 16
      %v442 = vrot.slane %v440, 5
      %v443 = vor.u32 %v439, %v442
      %v444 = vrot.slane %v443, 4
      %v446 = vshll.u32 %v268, 16
      %v448 = vrot.slane %v446, 5
      %v449 = vsel %vm291, %v444, %v448
      %v450 = vshrl.u32 %v268, 16
      %v452 = vrot.slane %v450, 4
      %v453 = vor.u32 %v452, %v448
      %v454 = vrot.slane %v453, 4
      %v456 = vshll.u32 %v269, 16
      %v458 = vrot.slane %v456, 5
      %v459 = vsel %vm291, %v454, %v458
      %v461 = vshrl.u32 %v270, 16
      %v463 = vrot.slane %v461, 4
      %v464 = vshll.u32 %v270, 16
      %v466 = vrot.slane %v464, 5
      %v467 = vor.u32 %v463, %v466
      %v468 = vrot.slane %v467, 4
      %v470 = vshll.u32 %v271, 16
      %v472 = vrot.slane %v470, 5
      %v473 = vsel %vm291, %v468, %v472
      %v474 = vshrl.u32 %v271, 16
      %v476 = vrot.slane %v474, 4
      %v477 = vor.u32 %v476, %v472
      %v478 = vrot.slane %v477, 4
      %v480 = vshll.u32 %v272, 16
      %v482 = vrot.slane %v480, 5
      %v483 = vsel %vm291, %v478, %v482
      %s484 = scalar_lea.vmem %s1, 64
      %v485 = vld [vmem:[%s484] sm:$0xf]
      %v486 = vld [vmem:[%s484 + $0x4] sm:$0xf]
      %v487 = vld [vmem:[%s484 + $0x8] sm:$0xf]
      %v488 = vld [vmem:[%s484 + $0xc] sm:$0xf]
      %v489 = vld [vmem:[%s484 + $0x10] sm:$0xf]
      %v490 = vld [vmem:[%s484 + $0x14] sm:$0xf]
      %v491 = vld [vmem:[%s484 + $0x18] sm:$0xf]
      %v492 = vld [vmem:[%s484 + $0x1c] sm:$0xf]
      %v493 = vld [vmem:[%s484 + $0x20] sm:$0xf]
      %v494 = vld [vmem:[%s484 + $0x24] sm:$0xf]
      %v495 = vld [vmem:[%s484 + $0x28] sm:$0xf]
      %v496 = vld [vmem:[%s484 + $0x2c] sm:$0xf]
      %v497 = vld [vmem:[%s484 + $0x30] sm:$0xf]
      %v498 = vld [vmem:[%s484 + $0x34] sm:$0xf]
      %v499 = vld [vmem:[%s484 + $0x38] sm:$0xf]
      %v500 = vld [vmem:[%s484 + $0x3c] sm:$0xf]
      %v501 = vunpack.c.l.b16 %v305
      %v502 = vunpack.c.l.b16 %v315
      %v503 = vunpack.c.l.b16 %v329
      %v504 = vunpack.c.l.b16 %v339
      %v505 = vunpack.c.l.b16 %v353
      %v506 = vunpack.c.l.b16 %v363
      %v507 = vunpack.c.l.b16 %v377
      %v508 = vunpack.c.l.b16 %v387
      %v509 = vunpack.c.l.b16 %v401
      %v510 = vunpack.c.l.b16 %v411
      %v511 = vunpack.c.l.b16 %v425
      %v512 = vunpack.c.l.b16 %v435
      %v513 = vunpack.c.l.b16 %v449
      %v514 = vunpack.c.l.b16 %v459
      %v515 = vunpack.c.l.b16 %v473
      %v516 = vunpack.c.l.b16 %v483
      %v517 = vpack.c.b16 %v502, %v501
      %v518 = vpack.c.b16 %v504, %v503
      %v519 = vpack.c.b16 %v506, %v505
      %v520 = vpack.c.b16 %v508, %v507
      %v521 = vpack.c.b16 %v510, %v509
      %v522 = vpack.c.b16 %v512, %v511
      %v523 = vpack.c.b16 %v514, %v513
      %v524 = vpack.c.b16 %v516, %v515
      %v549 = vunpack.c.l.b16 %v485
      %v550 = vunpack.c.l.b16 %v486
      %v551 = vunpack.c.l.b16 %v487
      %v552 = vunpack.c.l.b16 %v488
      %v553 = vunpack.c.l.b16 %v489
      %v554 = vunpack.c.l.b16 %v490
      %v555 = vunpack.c.l.b16 %v491
      %v556 = vunpack.c.l.b16 %v492
      %v557 = vunpack.c.l.b16 %v493
      %v558 = vunpack.c.l.b16 %v494
      %v559 = vunpack.c.l.b16 %v495
      %v560 = vunpack.c.l.b16 %v496
      %v561 = vunpack.c.l.b16 %v497
      %v562 = vunpack.c.l.b16 %v498
      %v563 = vunpack.c.l.b16 %v499
      %v564 = vunpack.c.l.b16 %v500
      %v565 = vpack.c.b16 %v550, %v549
      %v566 = vpack.c.b16 %v552, %v551
      %v567 = vpack.c.b16 %v554, %v553
      %v568 = vpack.c.b16 %v556, %v555
      %v569 = vpack.c.b16 %v558, %v557
      %v570 = vpack.c.b16 %v560, %v559
      %v571 = vpack.c.b16 %v562, %v561
      %v572 = vpack.c.b16 %v564, %v563
      %581 = vmatprep.subr.bf16.mxu0 0
      %582 = vmatpush1.bf16.msra.mxu0 %v572
      %583 = vmatprep.subr.bf16.mxu0 0
      %584 = vmatpush1.bf16.msra.mxu0 %v571
      %585 = vmatprep.subr.bf16.mxu0 0
      %586 = vmatpush1.bf16.msra.mxu0 %v570
      %587 = vmatprep.subr.bf16.mxu0 0
      %588 = vmatpush1.bf16.msra.mxu0 %v569
      %589 = vmatprep.subr.bf16.mxu0 0
      %590 = vmatpush1.bf16.msra.mxu0 %v568
      %591 = vmatprep.subr.bf16.mxu0 0
      %592 = vmatpush1.bf16.msra.mxu0 %v567
      %593 = vmatprep.subr.bf16.mxu0 0
      %594 = vmatpush1.bf16.msra.mxu0 %v566
      %595 = vmatprep.subr.bf16.mxu0 0
      %596 = vmatpush1.bf16.msra.mxu0 %v565
      %597 = vmatprep.subr.bf16.mxu0 0
      %598 = vmatpush2.bf16.msra.mxu0 0
      %599 = vmatprep.subr.bf16.mxu0 0
      %600 = vmatpush2.bf16.msra.mxu0 0
      %601 = vmatprep.subr.bf16.mxu0 0
      %602 = vmatpush2.bf16.msra.mxu0 0
      %603 = vmatprep.subr.bf16.mxu0 0
      %604 = vmatpush2.bf16.msra.mxu0 0
      %605 = vmatprep.subr.bf16.mxu0 0
      %606 = vmatpush2.bf16.msra.mxu0 0
      %607 = vmatprep.subr.bf16.mxu0 0
      %608 = vmatpush2.bf16.msra.mxu0 0
      %609 = vmatprep.subr.bf16.mxu0 0
      %610 = vmatpush2.bf16.msra.mxu0 0
      %611 = vmatprep.subr.bf16.mxu0 0
      %612 = vmatpush2.bf16.msra.mxu0 0
      %613 = vmatprep.mubr.bf16.mxu0 0
      %614 = vmatmul.mubr.bf16.gmra.mxu0 %v517
      %v615 = vpop.f32.mrf.mxu0
      %v616 = vadd.f32 0.0, %v615
      %v617 = vpop.f32.mrf.mxu0
      %v618 = vpop.f32.mrf.mxu0
      %v619 = vadd.f32 0.0, %v618
      %v620 = vpop.f32.mrf.mxu0
      %621 = vmatprep.mubr.bf16.mxu0 0
      %622 = vmatmul.mubr.bf16.gmra.mxu0 %v518
      %v623 = vpop.f32.mrf.mxu0
      %v624 = vadd.f32 0.0, %v623
      %v625 = vpop.f32.mrf.mxu0
      %v626 = vpop.f32.mrf.mxu0
      %v627 = vadd.f32 0.0, %v626
      %v628 = vpop.f32.mrf.mxu0
      %629 = vmatprep.mubr.bf16.mxu0 0
      %630 = vmatmul.mubr.bf16.gmra.mxu0 %v519
      %v631 = vpop.f32.mrf.mxu0
      %v632 = vadd.f32 0.0, %v631
      %v633 = vpop.f32.mrf.mxu0
      %v634 = vpop.f32.mrf.mxu0
      %v635 = vadd.f32 0.0, %v634
      %v636 = vpop.f32.mrf.mxu0
      %637 = vmatprep.mubr.bf16.mxu0 0
      %638 = vmatmul.mubr.bf16.gmra.mxu0 %v520
      %v639 = vpop.f32.mrf.mxu0
      %v640 = vadd.f32 0.0, %v639
      %v641 = vpop.f32.mrf.mxu0
      %v642 = vpop.f32.mrf.mxu0
      %v643 = vadd.f32 0.0, %v642
      %v644 = vpop.f32.mrf.mxu0
      %645 = vmatprep.mubr.bf16.mxu0 0
      %646 = vmatmul.mubr.bf16.gmra.mxu0 %v521
      %v647 = vpop.f32.mrf.mxu0
      %v648 = vadd.f32 0.0, %v647
      %v649 = vpop.f32.mrf.mxu0
      %v650 = vpop.f32.mrf.mxu0
      %v651 = vadd.f32 0.0, %v650
      %v652 = vpop.f32.mrf.mxu0
      %653 = vmatprep.mubr.bf16.mxu0 0
      %654 = vmatmul.mubr.bf16.gmra.mxu0 %v522
      %v655 = vpop.f32.mrf.mxu0
      %v656 = vadd.f32 0.0, %v655
      %v657 = vpop.f32.mrf.mxu0
      %v658 = vpop.f32.mrf.mxu0
      %v659 = vadd.f32 0.0, %v658
      %v660 = vpop.f32.mrf.mxu0
      %661 = vmatprep.mubr.bf16.mxu0 0
      %662 = vmatmul.mubr.bf16.gmra.mxu0 %v523
      %v663 = vpop.f32.mrf.mxu0
      %v664 = vadd.f32 0.0, %v663
      %v665 = vpop.f32.mrf.mxu0
      %v666 = vpop.f32.mrf.mxu0
      %v667 = vadd.f32 0.0, %v666
      %v668 = vpop.f32.mrf.mxu0
      %669 = vmatprep.mubr.bf16.mxu0 0
      %670 = vmatmul.mubr.bf16.gmra.mxu0 %v524
      %v671 = vpop.f32.mrf.mxu0
      %v672 = vadd.f32 0.0, %v671
      %v673 = vpop.f32.mrf.mxu0
      %v674 = vpop.f32.mrf.mxu0
      %v675 = vadd.f32 0.0, %v674
      %v676 = vpop.f32.mrf.mxu0
      %677 = vdwg.mxu0
      %v694 = vunpack.c.l.b16 %v249
      %v695 = vunpack.c.l.b16 %v250
      %v696 = vunpack.c.l.b16 %v252
      %v697 = vunpack.c.l.b16 %v253
      %v698 = vunpack.c.l.b16 %v255
      %v699 = vunpack.c.l.b16 %v256
      %v700 = vunpack.c.l.b16 %v258
      %v701 = vunpack.c.l.b16 %v259
      %v702 = vunpack.c.l.b16 %v261
      %v703 = vunpack.c.l.b16 %v262
      %v704 = vunpack.c.l.b16 %v264
      %v705 = vunpack.c.l.b16 %v265
      %v706 = vunpack.c.l.b16 %v267
      %v707 = vunpack.c.l.b16 %v268
      %v708 = vunpack.c.l.b16 %v270
      %v709 = vunpack.c.l.b16 %v271
      %v710 = vpack.c.b16 %v695, %v694
      %v711 = vpack.c.b16 %v697, %v696
      %v712 = vpack.c.b16 %v699, %v698
      %v713 = vpack.c.b16 %v701, %v700
      %v714 = vpack.c.b16 %v703, %v702
      %v715 = vpack.c.b16 %v705, %v704
      %v716 = vpack.c.b16 %v707, %v706
      %v717 = vpack.c.b16 %v709, %v708
      %v742 = vunpack.c.l.b16 %v273
      %v743 = vunpack.c.l.b16 %v274
      %v744 = vunpack.c.l.b16 %v275
      %v745 = vunpack.c.l.b16 %v276
      %v746 = vunpack.c.l.b16 %v277
      %v747 = vunpack.c.l.b16 %v278
      %v748 = vunpack.c.l.b16 %v279
      %v749 = vunpack.c.l.b16 %v280
      %v750 = vunpack.c.l.b16 %v281
      %v751 = vunpack.c.l.b16 %v282
      %v752 = vunpack.c.l.b16 %v283
      %v753 = vunpack.c.l.b16 %v284
      %v754 = vunpack.c.l.b16 %v285
      %v755 = vunpack.c.l.b16 %v286
      %v756 = vunpack.c.l.b16 %v287
      %v757 = vunpack.c.l.b16 %v288
      %v758 = vpack.c.b16 %v743, %v742
      %v759 = vpack.c.b16 %v745, %v744
      %v760 = vpack.c.b16 %v747, %v746
      %v761 = vpack.c.b16 %v749, %v748
      %v762 = vpack.c.b16 %v751, %v750
      %v763 = vpack.c.b16 %v753, %v752
      %v764 = vpack.c.b16 %v755, %v754
      %v765 = vpack.c.b16 %v757, %v756
      %774 = vmatprep.subr.bf16.mxu0 0
      %775 = vmatpush1.bf16.msra.mxu0 %v765
      %776 = vmatprep.subr.bf16.mxu0 0
      %777 = vmatpush1.bf16.msra.mxu0 %v764
      %778 = vmatprep.subr.bf16.mxu0 0
      %779 = vmatpush1.bf16.msra.mxu0 %v763
      %780 = vmatprep.subr.bf16.mxu0 0
      %781 = vmatpush1.bf16.msra.mxu0 %v762
      %782 = vmatprep.subr.bf16.mxu0 0
      %783 = vmatpush1.bf16.msra.mxu0 %v761
      %784 = vmatprep.subr.bf16.mxu0 0
      %785 = vmatpush1.bf16.msra.mxu0 %v760
      %786 = vmatprep.subr.bf16.mxu0 0
      %787 = vmatpush1.bf16.msra.mxu0 %v759
      %788 = vmatprep.subr.bf16.mxu0 0
      %789 = vmatpush1.bf16.msra.mxu0 %v758
      %790 = vmatprep.subr.bf16.mxu0 0
      %791 = vmatpush2.bf16.msra.mxu0 0
      %792 = vmatprep.subr.bf16.mxu0 0
      %793 = vmatpush2.bf16.msra.mxu0 0
      %794 = vmatprep.subr.bf16.mxu0 0
      %795 = vmatpush2.bf16.msra.mxu0 0
      %796 = vmatprep.subr.bf16.mxu0 0
      %797 = vmatpush2.bf16.msra.mxu0 0
      %798 = vmatprep.subr.bf16.mxu0 0
      %799 = vmatpush2.bf16.msra.mxu0 0
      %800 = vmatprep.subr.bf16.mxu0 0
      %801 = vmatpush2.bf16.msra.mxu0 0
      %802 = vmatprep.subr.bf16.mxu0 0
      %803 = vmatpush2.bf16.msra.mxu0 0
      %804 = vmatprep.subr.bf16.mxu0 0
      %805 = vmatpush2.bf16.msra.mxu0 0
      %806 = vmatprep.mubr.bf16.mxu0 0
      %807 = vmatmul.mubr.bf16.gmra.mxu0 %v710
      %v808 = vpop.f32.mrf.mxu0
      %v809 = vadd.f32 %v616, %v808
      %v810 = vpop.f32.mrf.mxu0
      %v811 = vpop.f32.mrf.mxu0
      %v812 = vadd.f32 %v619, %v811
      %v813 = vpop.f32.mrf.mxu0
      %814 = vmatprep.mubr.bf16.mxu0 0
      %815 = vmatmul.mubr.bf16.gmra.mxu0 %v711
      %v816 = vpop.f32.mrf.mxu0
      %v817 = vadd.f32 %v624, %v816
      %v818 = vpop.f32.mrf.mxu0
      %v819 = vpop.f32.mrf.mxu0
      %v820 = vadd.f32 %v627, %v819
      %v821 = vpop.f32.mrf.mxu0
      %822 = vmatprep.mubr.bf16.mxu0 0
      %823 = vmatmul.mubr.bf16.gmra.mxu0 %v712
      %v824 = vpop.f32.mrf.mxu0
      %v825 = vadd.f32 %v632, %v824
      %v826 = vpop.f32.mrf.mxu0
      %v827 = vpop.f32.mrf.mxu0
      %v828 = vadd.f32 %v635, %v827
      %v829 = vpop.f32.mrf.mxu0
      %830 = vmatprep.mubr.bf16.mxu0 0
      %831 = vmatmul.mubr.bf16.gmra.mxu0 %v713
      %v832 = vpop.f32.mrf.mxu0
      %v833 = vadd.f32 %v640, %v832
      %v834 = vpop.f32.mrf.mxu0
      %v835 = vpop.f32.mrf.mxu0
      %v836 = vadd.f32 %v643, %v835
      %v837 = vpop.f32.mrf.mxu0
      %838 = vmatprep.mubr.bf16.mxu0 0
      %839 = vmatmul.mubr.bf16.gmra.mxu0 %v714
      %v840 = vpop.f32.mrf.mxu0
      %v841 = vadd.f32 %v648, %v840
      %v842 = vpop.f32.mrf.mxu0
      %v843 = vpop.f32.mrf.mxu0
      %v844 = vadd.f32 %v651, %v843
      %v845 = vpop.f32.mrf.mxu0
      %846 = vmatprep.mubr.bf16.mxu0 0
      %847 = vmatmul.mubr.bf16.gmra.mxu0 %v715
      %v848 = vpop.f32.mrf.mxu0
      %v849 = vadd.f32 %v656, %v848
      %v850 = vpop.f32.mrf.mxu0
      %v851 = vpop.f32.mrf.mxu0
      %v852 = vadd.f32 %v659, %v851
      %v853 = vpop.f32.mrf.mxu0
      %854 = vmatprep.mubr.bf16.mxu0 0
      %855 = vmatmul.mubr.bf16.gmra.mxu0 %v716
      %v856 = vpop.f32.mrf.mxu0
      %v857 = vadd.f32 %v664, %v856
      %v858 = vpop.f32.mrf.mxu0
      %v859 = vpop.f32.mrf.mxu0
      %v860 = vadd.f32 %v667, %v859
      %v861 = vpop.f32.mrf.mxu0
      %862 = vmatprep.mubr.bf16.mxu0 0
      %863 = vmatmul.mubr.bf16.gmra.mxu0 %v717
      %v864 = vpop.f32.mrf.mxu0
      %v865 = vadd.f32 %v672, %v864
      %v866 = vpop.f32.mrf.mxu0
      %v867 = vpop.f32.mrf.mxu0
      %v868 = vadd.f32 %v675, %v867
      %v869 = vpop.f32.mrf.mxu0
      %870 = vdwg.mxu0
      %vm879 = vcmask 1042432
      %vm880 = vcmask 1046532
      %vm881 = vmor %vm879, %vm880
      %v882 = vrot.slane %v249, 5
      %v883 = vrot.slane %v882, 4
      %v884 = vrot.slane %v250, 5
      %v885 = vsel %vm881, %v883, %v884
      %v886 = vrot.slane %v884, 4
      %v887 = vrot.slane %v251, 5
      %v888 = vsel %vm881, %v886, %v887
      %v889 = vrot.slane %v252, 5
      %v890 = vrot.slane %v889, 4
      %v891 = vrot.slane %v253, 5
      %v892 = vsel %vm881, %v890, %v891
      %v893 = vrot.slane %v891, 4
      %v894 = vrot.slane %v254, 5
      %v895 = vsel %vm881, %v893, %v894
      %v896 = vrot.slane %v255, 5
      %v897 = vrot.slane %v896, 4
      %v898 = vrot.slane %v256, 5
      %v899 = vsel %vm881, %v897, %v898
      %v900 = vrot.slane %v898, 4
      %v901 = vrot.slane %v257, 5
      %v902 = vsel %vm881, %v900, %v901
      %v903 = vrot.slane %v258, 5
      %v904 = vrot.slane %v903, 4
      %v905 = vrot.slane %v259, 5
      %v906 = vsel %vm881, %v904, %v905
      %v907 = vrot.slane %v905, 4
      %v908 = vrot.slane %v260, 5
      %v909 = vsel %vm881, %v907, %v908
      %v910 = vrot.slane %v261, 5
      %v911 = vrot.slane %v910, 4
      %v912 = vrot.slane %v262, 5
      %v913 = vsel %vm881, %v911, %v912
      %v914 = vrot.slane %v912, 4
      %v915 = vrot.slane %v263, 5
      %v916 = vsel %vm881, %v914, %v915
      %v917 = vrot.slane %v264, 5
      %v918 = vrot.slane %v917, 4
      %v919 = vrot.slane %v265, 5
      %v920 = vsel %vm881, %v918, %v919
      %v921 = vrot.slane %v919, 4
      %v922 = vrot.slane %v266, 5
      %v923 = vsel %vm881, %v921, %v922
      %v924 = vrot.slane %v267, 5
      %v925 = vrot.slane %v924, 4
      %v926 = vrot.slane %v268, 5
      %v927 = vsel %vm881, %v925, %v926
      %v928 = vrot.slane %v926, 4
      %v929 = vrot.slane %v269, 5
      %v930 = vsel %vm881, %v928, %v929
      %v931 = vrot.slane %v270, 5
      %v932 = vrot.slane %v931, 4
      %v933 = vrot.slane %v271, 5
      %v934 = vsel %vm881, %v932, %v933
      %v935 = vrot.slane %v933, 4
      %v936 = vrot.slane %v272, 5
      %v937 = vsel %vm881, %v935, %v936
      %s938 = scalar_lea.vmem %s1, 128
      %v939 = vld [vmem:[%s938] sm:$0xf]
      %v940 = vld [vmem:[%s938 + $0x4] sm:$0xf]
      %v941 = vld [vmem:[%s938 + $0x8] sm:$0xf]
      %v942 = vld [vmem:[%s938 + $0xc] sm:$0xf]
      %v943 = vld [vmem:[%s938 + $0x10] sm:$0xf]
      %v944 = vld [vmem:[%s938 + $0x14] sm:$0xf]
      %v945 = vld [vmem:[%s938 + $0x18] sm:$0xf]
      %v946 = vld [vmem:[%s938 + $0x1c] sm:$0xf]
      %v947 = vld [vmem:[%s938 + $0x20] sm:$0xf]
      %v948 = vld [vmem:[%s938 + $0x24] sm:$0xf]
      %v949 = vld [vmem:[%s938 + $0x28] sm:$0xf]
      %v950 = vld [vmem:[%s938 + $0x2c] sm:$0xf]
      %v951 = vld [vmem:[%s938 + $0x30] sm:$0xf]
      %v952 = vld [vmem:[%s938 + $0x34] sm:$0xf]
      %v953 = vld [vmem:[%s938 + $0x38] sm:$0xf]
      %v954 = vld [vmem:[%s938 + $0x3c] sm:$0xf]
      %v955 = vunpack.c.l.b16 %v885
      %v956 = vunpack.c.l.b16 %v888
      %v957 = vunpack.c.l.b16 %v892
      %v958 = vunpack.c.l.b16 %v895
      %v959 = vunpack.c.l.b16 %v899
      %v960 = vunpack.c.l.b16 %v902
      %v961 = vunpack.c.l.b16 %v906
      %v962 = vunpack.c.l.b16 %v909
      %v963 = vunpack.c.l.b16 %v913
      %v964 = vunpack.c.l.b16 %v916
      %v965 = vunpack.c.l.b16 %v920
      %v966 = vunpack.c.l.b16 %v923
      %v967 = vunpack.c.l.b16 %v927
      %v968 = vunpack.c.l.b16 %v930
      %v969 = vunpack.c.l.b16 %v934
      %v970 = vunpack.c.l.b16 %v937
      %v971 = vpack.c.b16 %v956, %v955
      %v972 = vpack.c.b16 %v958, %v957
      %v973 = vpack.c.b16 %v960, %v959
      %v974 = vpack.c.b16 %v962, %v961
      %v975 = vpack.c.b16 %v964, %v963
      %v976 = vpack.c.b16 %v966, %v965
      %v977 = vpack.c.b16 %v968, %v967
      %v978 = vpack.c.b16 %v970, %v969
      %v1003 = vunpack.c.l.b16 %v939
      %v1004 = vunpack.c.l.b16 %v940
      %v1005 = vunpack.c.l.b16 %v941
      %v1006 = vunpack.c.l.b16 %v942
      %v1007 = vunpack.c.l.b16 %v943
      %v1008 = vunpack.c.l.b16 %v944
      %v1009 = vunpack.c.l.b16 %v945
      %v1010 = vunpack.c.l.b16 %v946
      %v1011 = vunpack.c.l.b16 %v947
      %v1012 = vunpack.c.l.b16 %v948
      %v1013 = vunpack.c.l.b16 %v949
      %v1014 = vunpack.c.l.b16 %v950
      %v1015 = vunpack.c.l.b16 %v951
      %v1016 = vunpack.c.l.b16 %v952
      %v1017 = vunpack.c.l.b16 %v953
      %v1018 = vunpack.c.l.b16 %v954
      %v1019 = vpack.c.b16 %v1004, %v1003
      %v1020 = vpack.c.b16 %v1006, %v1005
      %v1021 = vpack.c.b16 %v1008, %v1007
      %v1022 = vpack.c.b16 %v1010, %v1009
      %v1023 = vpack.c.b16 %v1012, %v1011
      %v1024 = vpack.c.b16 %v1014, %v1013
      %v1025 = vpack.c.b16 %v1016, %v1015
      %v1026 = vpack.c.b16 %v1018, %v1017
      %1035 = vmatprep.subr.bf16.mxu0 0
      %1036 = vmatpush1.bf16.msra.mxu0 %v1026
      %1037 = vmatprep.subr.bf16.mxu0 0
      %1038 = vmatpush1.bf16.msra.mxu0 %v1025
      %1039 = vmatprep.subr.bf16.mxu0 0
      %1040 = vmatpush1.bf16.msra.mxu0 %v1024
      %1041 = vmatprep.subr.bf16.mxu0 0
      %1042 = vmatpush1.bf16.msra.mxu0 %v1023
      %1043 = vmatprep.subr.bf16.mxu0 0
      %1044 = vmatpush1.bf16.msra.mxu0 %v1022
      %1045 = vmatprep.subr.bf16.mxu0 0
      %1046 = vmatpush1.bf16.msra.mxu0 %v1021
      %1047 = vmatprep.subr.bf16.mxu0 0
      %1048 = vmatpush1.bf16.msra.mxu0 %v1020
      %1049 = vmatprep.subr.bf16.mxu0 0
      %1050 = vmatpush1.bf16.msra.mxu0 %v1019
      %1051 = vmatprep.subr.bf16.mxu0 0
      %1052 = vmatpush2.bf16.msra.mxu0 0
      %1053 = vmatprep.subr.bf16.mxu0 0
      %1054 = vmatpush2.bf16.msra.mxu0 0
      %1055 = vmatprep.subr.bf16.mxu0 0
      %1056 = vmatpush2.bf16.msra.mxu0 0
      %1057 = vmatprep.subr.bf16.mxu0 0
      %1058 = vmatpush2.bf16.msra.mxu0 0
      %1059 = vmatprep.subr.bf16.mxu0 0
      %1060 = vmatpush2.bf16.msra.mxu0 0
      %1061 = vmatprep.subr.bf16.mxu0 0
      %1062 = vmatpush2.bf16.msra.mxu0 0
      %1063 = vmatprep.subr.bf16.mxu0 0
      %1064 = vmatpush2.bf16.msra.mxu0 0
      %1065 = vmatprep.subr.bf16.mxu0 0
      %1066 = vmatpush2.bf16.msra.mxu0 0
      %1067 = vmatprep.mubr.bf16.mxu0 0
      %1068 = vmatmul.mubr.bf16.gmra.mxu0 %v971
      %v1069 = vpop.f32.mrf.mxu0
      %v1070 = vadd.f32 0.0, %v1069
      %v1071 = vpop.f32.mrf.mxu0
      %v1072 = vpop.f32.mrf.mxu0
      %v1073 = vadd.f32 0.0, %v1072
      %v1074 = vpop.f32.mrf.mxu0
      %1075 = vmatprep.mubr.bf16.mxu0 0
      %1076 = vmatmul.mubr.bf16.gmra.mxu0 %v972
      %v1077 = vpop.f32.mrf.mxu0
      %v1078 = vadd.f32 0.0, %v1077
      %v1079 = vpop.f32.mrf.mxu0
      %v1080 = vpop.f32.mrf.mxu0
      %v1081 = vadd.f32 0.0, %v1080
      %v1082 = vpop.f32.mrf.mxu0
      %1083 = vmatprep.mubr.bf16.mxu0 0
      %1084 = vmatmul.mubr.bf16.gmra.mxu0 %v973
      %v1085 = vpop.f32.mrf.mxu0
      %v1086 = vadd.f32 0.0, %v1085
      %v1087 = vpop.f32.mrf.mxu0
      %v1088 = vpop.f32.mrf.mxu0
      %v1089 = vadd.f32 0.0, %v1088
      %v1090 = vpop.f32.mrf.mxu0
      %1091 = vmatprep.mubr.bf16.mxu0 0
      %1092 = vmatmul.mubr.bf16.gmra.mxu0 %v974
      %v1093 = vpop.f32.mrf.mxu0
      %v1094 = vadd.f32 0.0, %v1093
      %v1095 = vpop.f32.mrf.mxu0
      %v1096 = vpop.f32.mrf.mxu0
      %v1097 = vadd.f32 0.0, %v1096
      %v1098 = vpop.f32.mrf.mxu0
      %1099 = vmatprep.mubr.bf16.mxu0 0
      %1100 = vmatmul.mubr.bf16.gmra.mxu0 %v975
      %v1101 = vpop.f32.mrf.mxu0
      %v1102 = vadd.f32 0.0, %v1101
      %v1103 = vpop.f32.mrf.mxu0
      %v1104 = vpop.f32.mrf.mxu0
      %v1105 = vadd.f32 0.0, %v1104
      %v1106 = vpop.f32.mrf.mxu0
      %1107 = vmatprep.mubr.bf16.mxu0 0
      %1108 = vmatmul.mubr.bf16.gmra.mxu0 %v976
      %v1109 = vpop.f32.mrf.mxu0
      %v1110 = vadd.f32 0.0, %v1109
      %v1111 = vpop.f32.mrf.mxu0
      %v1112 = vpop.f32.mrf.mxu0
      %v1113 = vadd.f32 0.0, %v1112
      %v1114 = vpop.f32.mrf.mxu0
      %1115 = vmatprep.mubr.bf16.mxu0 0
      %1116 = vmatmul.mubr.bf16.gmra.mxu0 %v977
      %v1117 = vpop.f32.mrf.mxu0
      %v1118 = vadd.f32 0.0, %v1117
      %v1119 = vpop.f32.mrf.mxu0
      %v1120 = vpop.f32.mrf.mxu0
      %v1121 = vadd.f32 0.0, %v1120
      %v1122 = vpop.f32.mrf.mxu0
      %1123 = vmatprep.mubr.bf16.mxu0 0
      %1124 = vmatmul.mubr.bf16.gmra.mxu0 %v978
      %v1125 = vpop.f32.mrf.mxu0
      %v1126 = vadd.f32 0.0, %v1125
      %v1127 = vpop.f32.mrf.mxu0
      %v1128 = vpop.f32.mrf.mxu0
      %v1129 = vadd.f32 0.0, %v1128
      %v1130 = vpop.f32.mrf.mxu0
      %1131 = vdwg.mxu0
      %v1132 = vadd.f32 %v809, %v1070
      %v1133 = vadd.f32 %v812, %v1073
      %v1134 = vadd.f32 %v817, %v1078
      %v1135 = vadd.f32 %v820, %v1081
      %v1136 = vadd.f32 %v825, %v1086
      %v1137 = vadd.f32 %v828, %v1089
      %v1138 = vadd.f32 %v833, %v1094
      %v1139 = vadd.f32 %v836, %v1097
      %v1140 = vadd.f32 %v841, %v1102
      %v1141 = vadd.f32 %v844, %v1105
      %v1142 = vadd.f32 %v849, %v1110
      %v1143 = vadd.f32 %v852, %v1113
      %v1144 = vadd.f32 %v857, %v1118
      %v1145 = vadd.f32 %v860, %v1121
      %v1146 = vadd.f32 %v865, %v1126
      %v1147 = vadd.f32 %v868, %v1129
      %s1148 = sadd.s32 %s245, 1
      %s1149 = smul.u32 %s1148, 3
      %s1150 = smul.addr %s1149, 4
      %s1151 = scalar_lea.vmem %s224, %s1150
      %v1152 = vld [vmem:[%s1151] sm:$0xf]
      %v1153 = vld [vmem:[%s1151 + $0x4] sm:$0xf]
      %v1154 = vld [vmem:[%s1151 + $0x8] sm:$0x1]
      %v1155 = vld [vmem:[%s1151 + $0xc] sm:$0xf]
      %v1156 = vld [vmem:[%s1151 + $0x10] sm:$0xf]
      %v1157 = vld [vmem:[%s1151 + $0x14] sm:$0x1]
      %v1158 = vld [vmem:[%s1151 + $0x18] sm:$0xf]
      %v1159 = vld [vmem:[%s1151 + $0x1c] sm:$0xf]
      %v1160 = vld [vmem:[%s1151 + $0x20] sm:$0x1]
      %v1161 = vld [vmem:[%s1151 + $0x24] sm:$0xf]
      %v1162 = vld [vmem:[%s1151 + $0x28] sm:$0xf]
      %v1163 = vld [vmem:[%s1151 + $0x2c] sm:$0x1]
      %v1164 = vld [vmem:[%s1151 + $0x30] sm:$0xf]
      %v1165 = vld [vmem:[%s1151 + $0x34] sm:$0xf]
      %v1166 = vld [vmem:[%s1151 + $0x38] sm:$0x1]
      %v1167 = vld [vmem:[%s1151 + $0x3c] sm:$0xf]
      %v1168 = vld [vmem:[%s1151 + $0x40] sm:$0xf]
      %v1169 = vld [vmem:[%s1151 + $0x44] sm:$0x1]
      %v1170 = vld [vmem:[%s1151 + $0x48] sm:$0xf]
      %v1171 = vld [vmem:[%s1151 + $0x4c] sm:$0xf]
      %v1172 = vld [vmem:[%s1151 + $0x50] sm:$0x1]
      %v1173 = vld [vmem:[%s1151 + $0x54] sm:$0xf]
      %v1174 = vld [vmem:[%s1151 + $0x58] sm:$0xf]
      %v1175 = vld [vmem:[%s1151 + $0x5c] sm:$0x1]
      %s1176 = scalar_lea.vmem %s1, 192
      %v1177 = vld [vmem:[%s1176] sm:$0xf]
      %v1178 = vld [vmem:[%s1176 + $0x4] sm:$0xf]
      %v1179 = vld [vmem:[%s1176 + $0x8] sm:$0xf]
      %v1180 = vld [vmem:[%s1176 + $0xc] sm:$0xf]
      %v1181 = vld [vmem:[%s1176 + $0x10] sm:$0xf]
      %v1182 = vld [vmem:[%s1176 + $0x14] sm:$0xf]
      %v1183 = vld [vmem:[%s1176 + $0x18] sm:$0xf]
      %v1184 = vld [vmem:[%s1176 + $0x1c] sm:$0xf]
      %v1185 = vld [vmem:[%s1176 + $0x20] sm:$0xf]
      %v1186 = vld [vmem:[%s1176 + $0x24] sm:$0xf]
      %v1187 = vld [vmem:[%s1176 + $0x28] sm:$0xf]
      %v1188 = vld [vmem:[%s1176 + $0x2c] sm:$0xf]
      %v1189 = vld [vmem:[%s1176 + $0x30] sm:$0xf]
      %v1190 = vld [vmem:[%s1176 + $0x34] sm:$0xf]
      %v1191 = vld [vmem:[%s1176 + $0x38] sm:$0xf]
      %v1192 = vld [vmem:[%s1176 + $0x3c] sm:$0xf]
      %v1209 = vunpack.c.l.b16 %v1152
      %v1210 = vunpack.c.l.b16 %v1153
      %v1211 = vunpack.c.l.b16 %v1155
      %v1212 = vunpack.c.l.b16 %v1156
      %v1213 = vunpack.c.l.b16 %v1158
      %v1214 = vunpack.c.l.b16 %v1159
      %v1215 = vunpack.c.l.b16 %v1161
      %v1216 = vunpack.c.l.b16 %v1162
      %v1217 = vunpack.c.l.b16 %v1164
      %v1218 = vunpack.c.l.b16 %v1165
      %v1219 = vunpack.c.l.b16 %v1167
      %v1220 = vunpack.c.l.b16 %v1168
      %v1221 = vunpack.c.l.b16 %v1170
      %v1222 = vunpack.c.l.b16 %v1171
      %v1223 = vunpack.c.l.b16 %v1173
      %v1224 = vunpack.c.l.b16 %v1174
      %v1225 = vpack.c.b16 %v1210, %v1209
      %v1226 = vpack.c.b16 %v1212, %v1211
      %v1227 = vpack.c.b16 %v1214, %v1213
      %v1228 = vpack.c.b16 %v1216, %v1215
      %v1229 = vpack.c.b16 %v1218, %v1217
      %v1230 = vpack.c.b16 %v1220, %v1219
      %v1231 = vpack.c.b16 %v1222, %v1221
      %v1232 = vpack.c.b16 %v1224, %v1223
      %v1257 = vunpack.c.l.b16 %v1177
      %v1258 = vunpack.c.l.b16 %v1178
      %v1259 = vunpack.c.l.b16 %v1179
      %v1260 = vunpack.c.l.b16 %v1180
      %v1261 = vunpack.c.l.b16 %v1181
      %v1262 = vunpack.c.l.b16 %v1182
      %v1263 = vunpack.c.l.b16 %v1183
      %v1264 = vunpack.c.l.b16 %v1184
      %v1265 = vunpack.c.l.b16 %v1185
      %v1266 = vunpack.c.l.b16 %v1186
      %v1267 = vunpack.c.l.b16 %v1187
      %v1268 = vunpack.c.l.b16 %v1188
      %v1269 = vunpack.c.l.b16 %v1189
      %v1270 = vunpack.c.l.b16 %v1190
      %v1271 = vunpack.c.l.b16 %v1191
      %v1272 = vunpack.c.l.b16 %v1192
      %v1273 = vpack.c.b16 %v1258, %v1257
      %v1274 = vpack.c.b16 %v1260, %v1259
      %v1275 = vpack.c.b16 %v1262, %v1261
      %v1276 = vpack.c.b16 %v1264, %v1263
      %v1277 = vpack.c.b16 %v1266, %v1265
      %v1278 = vpack.c.b16 %v1268, %v1267
      %v1279 = vpack.c.b16 %v1270, %v1269
      %v1280 = vpack.c.b16 %v1272, %v1271
      %1289 = vmatprep.subr.bf16.mxu0 0
      %1290 = vmatpush1.bf16.msra.mxu0 %v1280
      %1291 = vmatprep.subr.bf16.mxu0 0
      %1292 = vmatpush1.bf16.msra.mxu0 %v1279
      %1293 = vmatprep.subr.bf16.mxu0 0
      %1294 = vmatpush1.bf16.msra.mxu0 %v1278
      %1295 = vmatprep.subr.bf16.mxu0 0
      %1296 = vmatpush1.bf16.msra.mxu0 %v1277
      %1297 = vmatprep.subr.bf16.mxu0 0
      %1298 = vmatpush1.bf16.msra.mxu0 %v1276
      %1299 = vmatprep.subr.bf16.mxu0 0
      %1300 = vmatpush1.bf16.msra.mxu0 %v1275
      %1301 = vmatprep.subr.bf16.mxu0 0
      %1302 = vmatpush1.bf16.msra.mxu0 %v1274
      %1303 = vmatprep.subr.bf16.mxu0 0
      %1304 = vmatpush1.bf16.msra.mxu0 %v1273
      %1305 = vmatprep.subr.bf16.mxu0 0
      %1306 = vmatpush2.bf16.msra.mxu0 0
      %1307 = vmatprep.subr.bf16.mxu0 0
      %1308 = vmatpush2.bf16.msra.mxu0 0
      %1309 = vmatprep.subr.bf16.mxu0 0
      %1310 = vmatpush2.bf16.msra.mxu0 0
      %1311 = vmatprep.subr.bf16.mxu0 0
      %1312 = vmatpush2.bf16.msra.mxu0 0
      %1313 = vmatprep.subr.bf16.mxu0 0
      %1314 = vmatpush2.bf16.msra.mxu0 0
      %1315 = vmatprep.subr.bf16.mxu0 0
      %1316 = vmatpush2.bf16.msra.mxu0 0
      %1317 = vmatprep.subr.bf16.mxu0 0
      %1318 = vmatpush2.bf16.msra.mxu0 0
      %1319 = vmatprep.subr.bf16.mxu0 0
      %1320 = vmatpush2.bf16.msra.mxu0 0
      %1321 = vmatprep.mubr.bf16.mxu0 0
      %1322 = vmatmul.mubr.bf16.gmra.mxu0 %v1225
      %v1323 = vpop.f32.mrf.mxu0
      %v1324 = vadd.f32 0.0, %v1323
      %v1325 = vpop.f32.mrf.mxu0
      %v1326 = vpop.f32.mrf.mxu0
      %v1327 = vadd.f32 0.0, %v1326
      %v1328 = vpop.f32.mrf.mxu0
      %1329 = vmatprep.mubr.bf16.mxu0 0
      %1330 = vmatmul.mubr.bf16.gmra.mxu0 %v1226
      %v1331 = vpop.f32.mrf.mxu0
      %v1332 = vadd.f32 0.0, %v1331
      %v1333 = vpop.f32.mrf.mxu0
      %v1334 = vpop.f32.mrf.mxu0
      %v1335 = vadd.f32 0.0, %v1334
      %v1336 = vpop.f32.mrf.mxu0
      %1337 = vmatprep.mubr.bf16.mxu0 0
      %1338 = vmatmul.mubr.bf16.gmra.mxu0 %v1227
      %v1339 = vpop.f32.mrf.mxu0
      %v1340 = vadd.f32 0.0, %v1339
      %v1341 = vpop.f32.mrf.mxu0
      %v1342 = vpop.f32.mrf.mxu0
      %v1343 = vadd.f32 0.0, %v1342
      %v1344 = vpop.f32.mrf.mxu0
      %1345 = vmatprep.mubr.bf16.mxu0 0
      %1346 = vmatmul.mubr.bf16.gmra.mxu0 %v1228
      %v1347 = vpop.f32.mrf.mxu0
      %v1348 = vadd.f32 0.0, %v1347
      %v1349 = vpop.f32.mrf.mxu0
      %v1350 = vpop.f32.mrf.mxu0
      %v1351 = vadd.f32 0.0, %v1350
      %v1352 = vpop.f32.mrf.mxu0
      %1353 = vmatprep.mubr.bf16.mxu0 0
      %1354 = vmatmul.mubr.bf16.gmra.mxu0 %v1229
      %v1355 = vpop.f32.mrf.mxu0
      %v1356 = vadd.f32 0.0, %v1355
      %v1357 = vpop.f32.mrf.mxu0
      %v1358 = vpop.f32.mrf.mxu0
      %v1359 = vadd.f32 0.0, %v1358
      %v1360 = vpop.f32.mrf.mxu0
      %1361 = vmatprep.mubr.bf16.mxu0 0
      %1362 = vmatmul.mubr.bf16.gmra.mxu0 %v1230
      %v1363 = vpop.f32.mrf.mxu0
      %v1364 = vadd.f32 0.0, %v1363
      %v1365 = vpop.f32.mrf.mxu0
      %v1366 = vpop.f32.mrf.mxu0
      %v1367 = vadd.f32 0.0, %v1366
      %v1368 = vpop.f32.mrf.mxu0
      %1369 = vmatprep.mubr.bf16.mxu0 0
      %1370 = vmatmul.mubr.bf16.gmra.mxu0 %v1231
      %v1371 = vpop.f32.mrf.mxu0
      %v1372 = vadd.f32 0.0, %v1371
      %v1373 = vpop.f32.mrf.mxu0
      %v1374 = vpop.f32.mrf.mxu0
      %v1375 = vadd.f32 0.0, %v1374
      %v1376 = vpop.f32.mrf.mxu0
      %1377 = vmatprep.mubr.bf16.mxu0 0
      %1378 = vmatmul.mubr.bf16.gmra.mxu0 %v1232
      %v1379 = vpop.f32.mrf.mxu0
      %v1380 = vadd.f32 0.0, %v1379
      %v1381 = vpop.f32.mrf.mxu0
      %v1382 = vpop.f32.mrf.mxu0
      %v1383 = vadd.f32 0.0, %v1382
      %v1384 = vpop.f32.mrf.mxu0
      %1385 = vdwg.mxu0
      %v1386 = vadd.f32 %v1132, %v1324
      %v1387 = vadd.f32 %v1133, %v1327
      %v1388 = vadd.f32 %v1134, %v1332
      %v1389 = vadd.f32 %v1135, %v1335
      %v1390 = vadd.f32 %v1136, %v1340
      %v1391 = vadd.f32 %v1137, %v1343
      %v1392 = vadd.f32 %v1138, %v1348
      %v1393 = vadd.f32 %v1139, %v1351
      %v1394 = vadd.f32 %v1140, %v1356
      %v1395 = vadd.f32 %v1141, %v1359
      %v1396 = vadd.f32 %v1142, %v1364
      %v1397 = vadd.f32 %v1143, %v1367
      %v1398 = vadd.f32 %v1144, %v1372
      %v1399 = vadd.f32 %v1145, %v1375
      %v1400 = vadd.f32 %v1146, %v1380
      %v1401 = vadd.f32 %v1147, %v1383
      %v1403 = vshrl.u32 %v1152, 16
      %v1405 = vrot.slane %v1403, 4
      %v1406 = vshll.u32 %v1152, 16
      %v1408 = vrot.slane %v1406, 5
      %v1409 = vor.u32 %v1405, %v1408
      %v1410 = vrot.slane %v1409, 4
      %v1412 = vshll.u32 %v1153, 16
      %v1414 = vrot.slane %v1412, 5
      %v1415 = vsel %vm291, %v1410, %v1414
      %v1416 = vshrl.u32 %v1153, 16
      %v1418 = vrot.slane %v1416, 4
      %v1419 = vor.u32 %v1418, %v1414
      %v1420 = vrot.slane %v1419, 4
      %v1422 = vshll.u32 %v1154, 16
      %v1424 = vrot.slane %v1422, 5
      %v1425 = vsel %vm291, %v1420, %v1424
      %v1427 = vshrl.u32 %v1155, 16
      %v1429 = vrot.slane %v1427, 4
      %v1430 = vshll.u32 %v1155, 16
      %v1432 = vrot.slane %v1430, 5
      %v1433 = vor.u32 %v1429, %v1432
      %v1434 = vrot.slane %v1433, 4
      %v1436 = vshll.u32 %v1156, 16
      %v1438 = vrot.slane %v1436, 5
      %v1439 = vsel %vm291, %v1434, %v1438
      %v1440 = vshrl.u32 %v1156, 16
      %v1442 = vrot.slane %v1440, 4
      %v1443 = vor.u32 %v1442, %v1438
      %v1444 = vrot.slane %v1443, 4
      %v1446 = vshll.u32 %v1157, 16
      %v1448 = vrot.slane %v1446, 5
      %v1449 = vsel %vm291, %v1444, %v1448
      %v1451 = vshrl.u32 %v1158, 16
      %v1453 = vrot.slane %v1451, 4
      %v1454 = vshll.u32 %v1158, 16
      %v1456 = vrot.slane %v1454, 5
      %v1457 = vor.u32 %v1453, %v1456
      %v1458 = vrot.slane %v1457, 4
      %v1460 = vshll.u32 %v1159, 16
      %v1462 = vrot.slane %v1460, 5
      %v1463 = vsel %vm291, %v1458, %v1462
      %v1464 = vshrl.u32 %v1159, 16
      %v1466 = vrot.slane %v1464, 4
      %v1467 = vor.u32 %v1466, %v1462
      %v1468 = vrot.slane %v1467, 4
      %v1470 = vshll.u32 %v1160, 16
      %v1472 = vrot.slane %v1470, 5
      %v1473 = vsel %vm291, %v1468, %v1472
      %v1475 = vshrl.u32 %v1161, 16
      %v1477 = vrot.slane %v1475, 4
      %v1478 = vshll.u32 %v1161, 16
      %v1480 = vrot.slane %v1478, 5
      %v1481 = vor.u32 %v1477, %v1480
      %v1482 = vrot.slane %v1481, 4
      %v1484 = vshll.u32 %v1162, 16
      %v1486 = vrot.slane %v1484, 5
      %v1487 = vsel %vm291, %v1482, %v1486
      %v1488 = vshrl.u32 %v1162, 16
      %v1490 = vrot.slane %v1488, 4
      %v1491 = vor.u32 %v1490, %v1486
      %v1492 = vrot.slane %v1491, 4
      %v1494 = vshll.u32 %v1163, 16
      %v1496 = vrot.slane %v1494, 5
      %v1497 = vsel %vm291, %v1492, %v1496
      %v1499 = vshrl.u32 %v1164, 16
      %v1501 = vrot.slane %v1499, 4
      %v1502 = vshll.u32 %v1164, 16
      %v1504 = vrot.slane %v1502, 5
      %v1505 = vor.u32 %v1501, %v1504
      %v1506 = vrot.slane %v1505, 4
      %v1508 = vshll.u32 %v1165, 16
      %v1510 = vrot.slane %v1508, 5
      %v1511 = vsel %vm291, %v1506, %v1510
      %v1512 = vshrl.u32 %v1165, 16
      %v1514 = vrot.slane %v1512, 4
      %v1515 = vor.u32 %v1514, %v1510
      %v1516 = vrot.slane %v1515, 4
      %v1518 = vshll.u32 %v1166, 16
      %v1520 = vrot.slane %v1518, 5
      %v1521 = vsel %vm291, %v1516, %v1520
      %v1523 = vshrl.u32 %v1167, 16
      %v1525 = vrot.slane %v1523, 4
      %v1526 = vshll.u32 %v1167, 16
      %v1528 = vrot.slane %v1526, 5
      %v1529 = vor.u32 %v1525, %v1528
      %v1530 = vrot.slane %v1529, 4
      %v1532 = vshll.u32 %v1168, 16
      %v1534 = vrot.slane %v1532, 5
      %v1535 = vsel %vm291, %v1530, %v1534
      %v1536 = vshrl.u32 %v1168, 16
      %v1538 = vrot.slane %v1536, 4
      %v1539 = vor.u32 %v1538, %v1534
      %v1540 = vrot.slane %v1539, 4
      %v1542 = vshll.u32 %v1169, 16
      %v1544 = vrot.slane %v1542, 5
      %v1545 = vsel %vm291, %v1540, %v1544
      %v1547 = vshrl.u32 %v1170, 16
      %v1549 = vrot.slane %v1547, 4
      %v1550 = vshll.u32 %v1170, 16
      %v1552 = vrot.slane %v1550, 5
      %v1553 = vor.u32 %v1549, %v1552
      %v1554 = vrot.slane %v1553, 4
      %v1556 = vshll.u32 %v1171, 16
      %v1558 = vrot.slane %v1556, 5
      %v1559 = vsel %vm291, %v1554, %v1558
      %v1560 = vshrl.u32 %v1171, 16
      %v1562 = vrot.slane %v1560, 4
      %v1563 = vor.u32 %v1562, %v1558
      %v1564 = vrot.slane %v1563, 4
      %v1566 = vshll.u32 %v1172, 16
      %v1568 = vrot.slane %v1566, 5
      %v1569 = vsel %vm291, %v1564, %v1568
      %v1571 = vshrl.u32 %v1173, 16
      %v1573 = vrot.slane %v1571, 4
      %v1574 = vshll.u32 %v1173, 16
      %v1576 = vrot.slane %v1574, 5
      %v1577 = vor.u32 %v1573, %v1576
      %v1578 = vrot.slane %v1577, 4
      %v1580 = vshll.u32 %v1174, 16
      %v1582 = vrot.slane %v1580, 5
      %v1583 = vsel %vm291, %v1578, %v1582
      %v1584 = vshrl.u32 %v1174, 16
      %v1586 = vrot.slane %v1584, 4
      %v1587 = vor.u32 %v1586, %v1582
      %v1588 = vrot.slane %v1587, 4
      %v1590 = vshll.u32 %v1175, 16
      %v1592 = vrot.slane %v1590, 5
      %v1593 = vsel %vm291, %v1588, %v1592
      %s1594 = scalar_lea.vmem %s1, 256
      %v1595 = vld [vmem:[%s1594] sm:$0xf]
      %v1596 = vld [vmem:[%s1594 + $0x4] sm:$0xf]
      %v1597 = vld [vmem:[%s1594 + $0x8] sm:$0xf]
      %v1598 = vld [vmem:[%s1594 + $0xc] sm:$0xf]
      %v1599 = vld [vmem:[%s1594 + $0x10] sm:$0xf]
      %v1600 = vld [vmem:[%s1594 + $0x14] sm:$0xf]
      %v1601 = vld [vmem:[%s1594 + $0x18] sm:$0xf]
      %v1602 = vld [vmem:[%s1594 + $0x1c] sm:$0xf]
      %v1603 = vld [vmem:[%s1594 + $0x20] sm:$0xf]
      %v1604 = vld [vmem:[%s1594 + $0x24] sm:$0xf]
      %v1605 = vld [vmem:[%s1594 + $0x28] sm:$0xf]
      %v1606 = vld [vmem:[%s1594 + $0x2c] sm:$0xf]
      %v1607 = vld [vmem:[%s1594 + $0x30] sm:$0xf]
      %v1608 = vld [vmem:[%s1594 + $0x34] sm:$0xf]
      %v1609 = vld [vmem:[%s1594 + $0x38] sm:$0xf]
      %v1610 = vld [vmem:[%s1594 + $0x3c] sm:$0xf]
      %v1611 = vunpack.c.l.b16 %v1415
      %v1612 = vunpack.c.l.b16 %v1425
      %v1613 = vunpack.c.l.b16 %v1439
      %v1614 = vunpack.c.l.b16 %v1449
      %v1615 = vunpack.c.l.b16 %v1463
      %v1616 = vunpack.c.l.b16 %v1473
      %v1617 = vunpack.c.l.b16 %v1487
      %v1618 = vunpack.c.l.b16 %v1497
      %v1619 = vunpack.c.l.b16 %v1511
      %v1620 = vunpack.c.l.b16 %v1521
      %v1621 = vunpack.c.l.b16 %v1535
      %v1622 = vunpack.c.l.b16 %v1545
      %v1623 = vunpack.c.l.b16 %v1559
      %v1624 = vunpack.c.l.b16 %v1569
      %v1625 = vunpack.c.l.b16 %v1583
      %v1626 = vunpack.c.l.b16 %v1593
      %v1627 = vpack.c.b16 %v1612, %v1611
      %v1628 = vpack.c.b16 %v1614, %v1613
      %v1629 = vpack.c.b16 %v1616, %v1615
      %v1630 = vpack.c.b16 %v1618, %v1617
      %v1631 = vpack.c.b16 %v1620, %v1619
      %v1632 = vpack.c.b16 %v1622, %v1621
      %v1633 = vpack.c.b16 %v1624, %v1623
      %v1634 = vpack.c.b16 %v1626, %v1625
      %v1659 = vunpack.c.l.b16 %v1595
      %v1660 = vunpack.c.l.b16 %v1596
      %v1661 = vunpack.c.l.b16 %v1597
      %v1662 = vunpack.c.l.b16 %v1598
      %v1663 = vunpack.c.l.b16 %v1599
      %v1664 = vunpack.c.l.b16 %v1600
      %v1665 = vunpack.c.l.b16 %v1601
      %v1666 = vunpack.c.l.b16 %v1602
      %v1667 = vunpack.c.l.b16 %v1603
      %v1668 = vunpack.c.l.b16 %v1604
      %v1669 = vunpack.c.l.b16 %v1605
      %v1670 = vunpack.c.l.b16 %v1606
      %v1671 = vunpack.c.l.b16 %v1607
      %v1672 = vunpack.c.l.b16 %v1608
      %v1673 = vunpack.c.l.b16 %v1609
      %v1674 = vunpack.c.l.b16 %v1610
      %v1675 = vpack.c.b16 %v1660, %v1659
      %v1676 = vpack.c.b16 %v1662, %v1661
      %v1677 = vpack.c.b16 %v1664, %v1663
      %v1678 = vpack.c.b16 %v1666, %v1665
      %v1679 = vpack.c.b16 %v1668, %v1667
      %v1680 = vpack.c.b16 %v1670, %v1669
      %v1681 = vpack.c.b16 %v1672, %v1671
      %v1682 = vpack.c.b16 %v1674, %v1673
      %1691 = vmatprep.subr.bf16.mxu0 0
      %1692 = vmatpush1.bf16.msra.mxu0 %v1682
      %1693 = vmatprep.subr.bf16.mxu0 0
      %1694 = vmatpush1.bf16.msra.mxu0 %v1681
      %1695 = vmatprep.subr.bf16.mxu0 0
      %1696 = vmatpush1.bf16.msra.mxu0 %v1680
      %1697 = vmatprep.subr.bf16.mxu0 0
      %1698 = vmatpush1.bf16.msra.mxu0 %v1679
      %1699 = vmatprep.subr.bf16.mxu0 0
      %1700 = vmatpush1.bf16.msra.mxu0 %v1678
      %1701 = vmatprep.subr.bf16.mxu0 0
      %1702 = vmatpush1.bf16.msra.mxu0 %v1677
      %1703 = vmatprep.subr.bf16.mxu0 0
      %1704 = vmatpush1.bf16.msra.mxu0 %v1676
      %1705 = vmatprep.subr.bf16.mxu0 0
      %1706 = vmatpush1.bf16.msra.mxu0 %v1675
      %1707 = vmatprep.subr.bf16.mxu0 0
      %1708 = vmatpush2.bf16.msra.mxu0 0
      %1709 = vmatprep.subr.bf16.mxu0 0
      %1710 = vmatpush2.bf16.msra.mxu0 0
      %1711 = vmatprep.subr.bf16.mxu0 0
      %1712 = vmatpush2.bf16.msra.mxu0 0
      %1713 = vmatprep.subr.bf16.mxu0 0
      %1714 = vmatpush2.bf16.msra.mxu0 0
      %1715 = vmatprep.subr.bf16.mxu0 0
      %1716 = vmatpush2.bf16.msra.mxu0 0
      %1717 = vmatprep.subr.bf16.mxu0 0
      %1718 = vmatpush2.bf16.msra.mxu0 0
      %1719 = vmatprep.subr.bf16.mxu0 0
      %1720 = vmatpush2.bf16.msra.mxu0 0
      %1721 = vmatprep.subr.bf16.mxu0 0
      %1722 = vmatpush2.bf16.msra.mxu0 0
      %1723 = vmatprep.mubr.bf16.mxu0 0
      %1724 = vmatmul.mubr.bf16.gmra.mxu0 %v1627
      %v1725 = vpop.f32.mrf.mxu0
      %v1726 = vadd.f32 0.0, %v1725
      %v1727 = vpop.f32.mrf.mxu0
      %v1728 = vpop.f32.mrf.mxu0
      %v1729 = vadd.f32 0.0, %v1728
      %v1730 = vpop.f32.mrf.mxu0
      %1731 = vmatprep.mubr.bf16.mxu0 0
      %1732 = vmatmul.mubr.bf16.gmra.mxu0 %v1628
      %v1733 = vpop.f32.mrf.mxu0
      %v1734 = vadd.f32 0.0, %v1733
      %v1735 = vpop.f32.mrf.mxu0
      %v1736 = vpop.f32.mrf.mxu0
      %v1737 = vadd.f32 0.0, %v1736
      %v1738 = vpop.f32.mrf.mxu0
      %1739 = vmatprep.mubr.bf16.mxu0 0
      %1740 = vmatmul.mubr.bf16.gmra.mxu0 %v1629
      %v1741 = vpop.f32.mrf.mxu0
      %v1742 = vadd.f32 0.0, %v1741
      %v1743 = vpop.f32.mrf.mxu0
      %v1744 = vpop.f32.mrf.mxu0
      %v1745 = vadd.f32 0.0, %v1744
      %v1746 = vpop.f32.mrf.mxu0
      %1747 = vmatprep.mubr.bf16.mxu0 0
      %1748 = vmatmul.mubr.bf16.gmra.mxu0 %v1630
      %v1749 = vpop.f32.mrf.mxu0
      %v1750 = vadd.f32 0.0, %v1749
      %v1751 = vpop.f32.mrf.mxu0
      %v1752 = vpop.f32.mrf.mxu0
      %v1753 = vadd.f32 0.0, %v1752
      %v1754 = vpop.f32.mrf.mxu0
      %1755 = vmatprep.mubr.bf16.mxu0 0
      %1756 = vmatmul.mubr.bf16.gmra.mxu0 %v1631
      %v1757 = vpop.f32.mrf.mxu0
      %v1758 = vadd.f32 0.0, %v1757
      %v1759 = vpop.f32.mrf.mxu0
      %v1760 = vpop.f32.mrf.mxu0
      %v1761 = vadd.f32 0.0, %v1760
      %v1762 = vpop.f32.mrf.mxu0
      %1763 = vmatprep.mubr.bf16.mxu0 0
      %1764 = vmatmul.mubr.bf16.gmra.mxu0 %v1632
      %v1765 = vpop.f32.mrf.mxu0
      %v1766 = vadd.f32 0.0, %v1765
      %v1767 = vpop.f32.mrf.mxu0
      %v1768 = vpop.f32.mrf.mxu0
      %v1769 = vadd.f32 0.0, %v1768
      %v1770 = vpop.f32.mrf.mxu0
      %1771 = vmatprep.mubr.bf16.mxu0 0
      %1772 = vmatmul.mubr.bf16.gmra.mxu0 %v1633
      %v1773 = vpop.f32.mrf.mxu0
      %v1774 = vadd.f32 0.0, %v1773
      %v1775 = vpop.f32.mrf.mxu0
      %v1776 = vpop.f32.mrf.mxu0
      %v1777 = vadd.f32 0.0, %v1776
      %v1778 = vpop.f32.mrf.mxu0
      %1779 = vmatprep.mubr.bf16.mxu0 0
      %1780 = vmatmul.mubr.bf16.gmra.mxu0 %v1634
      %v1781 = vpop.f32.mrf.mxu0
      %v1782 = vadd.f32 0.0, %v1781
      %v1783 = vpop.f32.mrf.mxu0
      %v1784 = vpop.f32.mrf.mxu0
      %v1785 = vadd.f32 0.0, %v1784
      %v1786 = vpop.f32.mrf.mxu0
      %1787 = vdwg.mxu0
      %v1788 = vadd.f32 %v1386, %v1726
      %v1789 = vadd.f32 %v1387, %v1729
      %v1790 = vadd.f32 %v1388, %v1734
      %v1791 = vadd.f32 %v1389, %v1737
      %v1792 = vadd.f32 %v1390, %v1742
      %v1793 = vadd.f32 %v1391, %v1745
      %v1794 = vadd.f32 %v1392, %v1750
      %v1795 = vadd.f32 %v1393, %v1753
      %v1796 = vadd.f32 %v1394, %v1758
      %v1797 = vadd.f32 %v1395, %v1761
      %v1798 = vadd.f32 %v1396, %v1766
      %v1799 = vadd.f32 %v1397, %v1769
      %v1800 = vadd.f32 %v1398, %v1774
      %v1801 = vadd.f32 %v1399, %v1777
      %v1802 = vadd.f32 %v1400, %v1782
      %v1803 = vadd.f32 %v1401, %v1785
      %v1812 = vrot.slane %v1152, 5
      %v1813 = vrot.slane %v1812, 4
      %v1814 = vrot.slane %v1153, 5
      %v1815 = vsel %vm881, %v1813, %v1814
      %v1816 = vrot.slane %v1814, 4
      %v1817 = vrot.slane %v1154, 5
      %v1818 = vsel %vm881, %v1816, %v1817
      %v1819 = vrot.slane %v1155, 5
      %v1820 = vrot.slane %v1819, 4
      %v1821 = vrot.slane %v1156, 5
      %v1822 = vsel %vm881, %v1820, %v1821
      %v1823 = vrot.slane %v1821, 4
      %v1824 = vrot.slane %v1157, 5
      %v1825 = vsel %vm881, %v1823, %v1824
      %v1826 = vrot.slane %v1158, 5
      %v1827 = vrot.slane %v1826, 4
      %v1828 = vrot.slane %v1159, 5
      %v1829 = vsel %vm881, %v1827, %v1828
      %v1830 = vrot.slane %v1828, 4
      %v1831 = vrot.slane %v1160, 5
      %v1832 = vsel %vm881, %v1830, %v1831
      %v1833 = vrot.slane %v1161, 5
      %v1834 = vrot.slane %v1833, 4
      %v1835 = vrot.slane %v1162, 5
      %v1836 = vsel %vm881, %v1834, %v1835
      %v1837 = vrot.slane %v1835, 4
      %v1838 = vrot.slane %v1163, 5
      %v1839 = vsel %vm881, %v1837, %v1838
      %v1840 = vrot.slane %v1164, 5
      %v1841 = vrot.slane %v1840, 4
      %v1842 = vrot.slane %v1165, 5
      %v1843 = vsel %vm881, %v1841, %v1842
      %v1844 = vrot.slane %v1842, 4
      %v1845 = vrot.slane %v1166, 5
      %v1846 = vsel %vm881, %v1844, %v1845
      %v1847 = vrot.slane %v1167, 5
      %v1848 = vrot.slane %v1847, 4
      %v1849 = vrot.slane %v1168, 5
      %v1850 = vsel %vm881, %v1848, %v1849
      %v1851 = vrot.slane %v1849, 4
      %v1852 = vrot.slane %v1169, 5
      %v1853 = vsel %vm881, %v1851, %v1852
      %v1854 = vrot.slane %v1170, 5
      %v1855 = vrot.slane %v1854, 4
      %v1856 = vrot.slane %v1171, 5
      %v1857 = vsel %vm881, %v1855, %v1856
      %v1858 = vrot.slane %v1856, 4
      %v1859 = vrot.slane %v1172, 5
      %v1860 = vsel %vm881, %v1858, %v1859
      %v1861 = vrot.slane %v1173, 5
      %v1862 = vrot.slane %v1861, 4
      %v1863 = vrot.slane %v1174, 5
      %v1864 = vsel %vm881, %v1862, %v1863
      %v1865 = vrot.slane %v1863, 4
      %v1866 = vrot.slane %v1175, 5
      %v1867 = vsel %vm881, %v1865, %v1866
      %s1868 = scalar_lea.vmem %s1, 320
      %v1869 = vld [vmem:[%s1868] sm:$0xf]
      %v1870 = vld [vmem:[%s1868 + $0x4] sm:$0xf]
      %v1871 = vld [vmem:[%s1868 + $0x8] sm:$0xf]
      %v1872 = vld [vmem:[%s1868 + $0xc] sm:$0xf]
      %v1873 = vld [vmem:[%s1868 + $0x10] sm:$0xf]
      %v1874 = vld [vmem:[%s1868 + $0x14] sm:$0xf]
      %v1875 = vld [vmem:[%s1868 + $0x18] sm:$0xf]
      %v1876 = vld [vmem:[%s1868 + $0x1c] sm:$0xf]
      %v1877 = vld [vmem:[%s1868 + $0x20] sm:$0xf]
      %v1878 = vld [vmem:[%s1868 + $0x24] sm:$0xf]
      %v1879 = vld [vmem:[%s1868 + $0x28] sm:$0xf]
      %v1880 = vld [vmem:[%s1868 + $0x2c] sm:$0xf]
      %v1881 = vld [vmem:[%s1868 + $0x30] sm:$0xf]
      %v1882 = vld [vmem:[%s1868 + $0x34] sm:$0xf]
      %v1883 = vld [vmem:[%s1868 + $0x38] sm:$0xf]
      %v1884 = vld [vmem:[%s1868 + $0x3c] sm:$0xf]
      %v1885 = vunpack.c.l.b16 %v1815
      %v1886 = vunpack.c.l.b16 %v1818
      %v1887 = vunpack.c.l.b16 %v1822
      %v1888 = vunpack.c.l.b16 %v1825
      %v1889 = vunpack.c.l.b16 %v1829
      %v1890 = vunpack.c.l.b16 %v1832
      %v1891 = vunpack.c.l.b16 %v1836
      %v1892 = vunpack.c.l.b16 %v1839
      %v1893 = vunpack.c.l.b16 %v1843
      %v1894 = vunpack.c.l.b16 %v1846
      %v1895 = vunpack.c.l.b16 %v1850
      %v1896 = vunpack.c.l.b16 %v1853
      %v1897 = vunpack.c.l.b16 %v1857
      %v1898 = vunpack.c.l.b16 %v1860
      %v1899 = vunpack.c.l.b16 %v1864
      %v1900 = vunpack.c.l.b16 %v1867
      %v1901 = vpack.c.b16 %v1886, %v1885
      %v1902 = vpack.c.b16 %v1888, %v1887
      %v1903 = vpack.c.b16 %v1890, %v1889
      %v1904 = vpack.c.b16 %v1892, %v1891
      %v1905 = vpack.c.b16 %v1894, %v1893
      %v1906 = vpack.c.b16 %v1896, %v1895
      %v1907 = vpack.c.b16 %v1898, %v1897
      %v1908 = vpack.c.b16 %v1900, %v1899
      %v1933 = vunpack.c.l.b16 %v1869
      %v1934 = vunpack.c.l.b16 %v1870
      %v1935 = vunpack.c.l.b16 %v1871
      %v1936 = vunpack.c.l.b16 %v1872
      %v1937 = vunpack.c.l.b16 %v1873
      %v1938 = vunpack.c.l.b16 %v1874
      %v1939 = vunpack.c.l.b16 %v1875
      %v1940 = vunpack.c.l.b16 %v1876
      %v1941 = vunpack.c.l.b16 %v1877
      %v1942 = vunpack.c.l.b16 %v1878
      %v1943 = vunpack.c.l.b16 %v1879
      %v1944 = vunpack.c.l.b16 %v1880
      %v1945 = vunpack.c.l.b16 %v1881
      %v1946 = vunpack.c.l.b16 %v1882
      %v1947 = vunpack.c.l.b16 %v1883
      %v1948 = vunpack.c.l.b16 %v1884
      %v1949 = vpack.c.b16 %v1934, %v1933
      %v1950 = vpack.c.b16 %v1936, %v1935
      %v1951 = vpack.c.b16 %v1938, %v1937
      %v1952 = vpack.c.b16 %v1940, %v1939
      %v1953 = vpack.c.b16 %v1942, %v1941
      %v1954 = vpack.c.b16 %v1944, %v1943
      %v1955 = vpack.c.b16 %v1946, %v1945
      %v1956 = vpack.c.b16 %v1948, %v1947
      %1965 = vmatprep.subr.bf16.mxu0 0
      %1966 = vmatpush1.bf16.msra.mxu0 %v1956
      %1967 = vmatprep.subr.bf16.mxu0 0
      %1968 = vmatpush1.bf16.msra.mxu0 %v1955
      %1969 = vmatprep.subr.bf16.mxu0 0
      %1970 = vmatpush1.bf16.msra.mxu0 %v1954
      %1971 = vmatprep.subr.bf16.mxu0 0
      %1972 = vmatpush1.bf16.msra.mxu0 %v1953
      %1973 = vmatprep.subr.bf16.mxu0 0
      %1974 = vmatpush1.bf16.msra.mxu0 %v1952
      %1975 = vmatprep.subr.bf16.mxu0 0
      %1976 = vmatpush1.bf16.msra.mxu0 %v1951
      %1977 = vmatprep.subr.bf16.mxu0 0
      %1978 = vmatpush1.bf16.msra.mxu0 %v1950
      %1979 = vmatprep.subr.bf16.mxu0 0
      %1980 = vmatpush1.bf16.msra.mxu0 %v1949
      %1981 = vmatprep.subr.bf16.mxu0 0
      %1982 = vmatpush2.bf16.msra.mxu0 0
      %1983 = vmatprep.subr.bf16.mxu0 0
      %1984 = vmatpush2.bf16.msra.mxu0 0
      %1985 = vmatprep.subr.bf16.mxu0 0
      %1986 = vmatpush2.bf16.msra.mxu0 0
      %1987 = vmatprep.subr.bf16.mxu0 0
      %1988 = vmatpush2.bf16.msra.mxu0 0
      %1989 = vmatprep.subr.bf16.mxu0 0
      %1990 = vmatpush2.bf16.msra.mxu0 0
      %1991 = vmatprep.subr.bf16.mxu0 0
      %1992 = vmatpush2.bf16.msra.mxu0 0
      %1993 = vmatprep.subr.bf16.mxu0 0
      %1994 = vmatpush2.bf16.msra.mxu0 0
      %1995 = vmatprep.subr.bf16.mxu0 0
      %1996 = vmatpush2.bf16.msra.mxu0 0
      %1997 = vmatprep.mubr.bf16.mxu0 0
      %1998 = vmatmul.mubr.bf16.gmra.mxu0 %v1901
      %v1999 = vpop.f32.mrf.mxu0
      %v2000 = vadd.f32 0.0, %v1999
      %v2001 = vpop.f32.mrf.mxu0
      %v2002 = vpop.f32.mrf.mxu0
      %v2003 = vadd.f32 0.0, %v2002
      %v2004 = vpop.f32.mrf.mxu0
      %2005 = vmatprep.mubr.bf16.mxu0 0
      %2006 = vmatmul.mubr.bf16.gmra.mxu0 %v1902
      %v2007 = vpop.f32.mrf.mxu0
      %v2008 = vadd.f32 0.0, %v2007
      %v2009 = vpop.f32.mrf.mxu0
      %v2010 = vpop.f32.mrf.mxu0
      %v2011 = vadd.f32 0.0, %v2010
      %v2012 = vpop.f32.mrf.mxu0
      %2013 = vmatprep.mubr.bf16.mxu0 0
      %2014 = vmatmul.mubr.bf16.gmra.mxu0 %v1903
      %v2015 = vpop.f32.mrf.mxu0
      %v2016 = vadd.f32 0.0, %v2015
      %v2017 = vpop.f32.mrf.mxu0
      %v2018 = vpop.f32.mrf.mxu0
      %v2019 = vadd.f32 0.0, %v2018
      %v2020 = vpop.f32.mrf.mxu0
      %2021 = vmatprep.mubr.bf16.mxu0 0
      %2022 = vmatmul.mubr.bf16.gmra.mxu0 %v1904
      %v2023 = vpop.f32.mrf.mxu0
      %v2024 = vadd.f32 0.0, %v2023
      %v2025 = vpop.f32.mrf.mxu0
      %v2026 = vpop.f32.mrf.mxu0
      %v2027 = vadd.f32 0.0, %v2026
      %v2028 = vpop.f32.mrf.mxu0
      %2029 = vmatprep.mubr.bf16.mxu0 0
      %2030 = vmatmul.mubr.bf16.gmra.mxu0 %v1905
      %v2031 = vpop.f32.mrf.mxu0
      %v2032 = vadd.f32 0.0, %v2031
      %v2033 = vpop.f32.mrf.mxu0
      %v2034 = vpop.f32.mrf.mxu0
      %v2035 = vadd.f32 0.0, %v2034
      %v2036 = vpop.f32.mrf.mxu0
      %2037 = vmatprep.mubr.bf16.mxu0 0
      %2038 = vmatmul.mubr.bf16.gmra.mxu0 %v1906
      %v2039 = vpop.f32.mrf.mxu0
      %v2040 = vadd.f32 0.0, %v2039
      %v2041 = vpop.f32.mrf.mxu0
      %v2042 = vpop.f32.mrf.mxu0
      %v2043 = vadd.f32 0.0, %v2042
      %v2044 = vpop.f32.mrf.mxu0
      %2045 = vmatprep.mubr.bf16.mxu0 0
      %2046 = vmatmul.mubr.bf16.gmra.mxu0 %v1907
      %v2047 = vpop.f32.mrf.mxu0
      %v2048 = vadd.f32 0.0, %v2047
      %v2049 = vpop.f32.mrf.mxu0
      %v2050 = vpop.f32.mrf.mxu0
      %v2051 = vadd.f32 0.0, %v2050
      %v2052 = vpop.f32.mrf.mxu0
      %2053 = vmatprep.mubr.bf16.mxu0 0
      %2054 = vmatmul.mubr.bf16.gmra.mxu0 %v1908
      %v2055 = vpop.f32.mrf.mxu0
      %v2056 = vadd.f32 0.0, %v2055
      %v2057 = vpop.f32.mrf.mxu0
      %v2058 = vpop.f32.mrf.mxu0
      %v2059 = vadd.f32 0.0, %v2058
      %v2060 = vpop.f32.mrf.mxu0
      %2061 = vdwg.mxu0
      %v2062 = vadd.f32 %v1788, %v2000
      %v2063 = vadd.f32 %v1789, %v2003
      %v2064 = vadd.f32 %v1790, %v2008
      %v2065 = vadd.f32 %v1791, %v2011
      %v2066 = vadd.f32 %v1792, %v2016
      %v2067 = vadd.f32 %v1793, %v2019
      %v2068 = vadd.f32 %v1794, %v2024
      %v2069 = vadd.f32 %v1795, %v2027
      %v2070 = vadd.f32 %v1796, %v2032
      %v2071 = vadd.f32 %v1797, %v2035
      %v2072 = vadd.f32 %v1798, %v2040
      %v2073 = vadd.f32 %v1799, %v2043
      %v2074 = vadd.f32 %v1800, %v2048
      %v2075 = vadd.f32 %v1801, %v2051
      %v2076 = vadd.f32 %v1802, %v2056
      %v2077 = vadd.f32 %v1803, %v2059
      %s2078 = sadd.s32 %s245, 2
      %s2079 = smul.u32 %s2078, 3
      %s2080 = smul.addr %s2079, 4
      %s2081 = scalar_lea.vmem %s224, %s2080
      %v2082 = vld [vmem:[%s2081] sm:$0xf]
      %v2083 = vld [vmem:[%s2081 + $0x4] sm:$0xf]
      %v2084 = vld [vmem:[%s2081 + $0x8] sm:$0x1]
      %v2085 = vld [vmem:[%s2081 + $0xc] sm:$0xf]
      %v2086 = vld [vmem:[%s2081 + $0x10] sm:$0xf]
      %v2087 = vld [vmem:[%s2081 + $0x14] sm:$0x1]
      %v2088 = vld [vmem:[%s2081 + $0x18] sm:$0xf]
      %v2089 = vld [vmem:[%s2081 + $0x1c] sm:$0xf]
      %v2090 = vld [vmem:[%s2081 + $0x20] sm:$0x1]
      %v2091 = vld [vmem:[%s2081 + $0x24] sm:$0xf]
      %v2092 = vld [vmem:[%s2081 + $0x28] sm:$0xf]
      %v2093 = vld [vmem:[%s2081 + $0x2c] sm:$0x1]
      %v2094 = vld [vmem:[%s2081 + $0x30] sm:$0xf]
      %v2095 = vld [vmem:[%s2081 + $0x34] sm:$0xf]
      %v2096 = vld [vmem:[%s2081 + $0x38] sm:$0x1]
      %v2097 = vld [vmem:[%s2081 + $0x3c] sm:$0xf]
      %v2098 = vld [vmem:[%s2081 + $0x40] sm:$0xf]
      %v2099 = vld [vmem:[%s2081 + $0x44] sm:$0x1]
      %v2100 = vld [vmem:[%s2081 + $0x48] sm:$0xf]
      %v2101 = vld [vmem:[%s2081 + $0x4c] sm:$0xf]
      %v2102 = vld [vmem:[%s2081 + $0x50] sm:$0x1]
      %v2103 = vld [vmem:[%s2081 + $0x54] sm:$0xf]
      %v2104 = vld [vmem:[%s2081 + $0x58] sm:$0xf]
      %v2105 = vld [vmem:[%s2081 + $0x5c] sm:$0x1]
      %s2106 = scalar_lea.vmem %s1, 384
      %v2107 = vld [vmem:[%s2106] sm:$0xf]
      %v2108 = vld [vmem:[%s2106 + $0x4] sm:$0xf]
      %v2109 = vld [vmem:[%s2106 + $0x8] sm:$0xf]
      %v2110 = vld [vmem:[%s2106 + $0xc] sm:$0xf]
      %v2111 = vld [vmem:[%s2106 + $0x10] sm:$0xf]
      %v2112 = vld [vmem:[%s2106 + $0x14] sm:$0xf]
      %v2113 = vld [vmem:[%s2106 + $0x18] sm:$0xf]
      %v2114 = vld [vmem:[%s2106 + $0x1c] sm:$0xf]
      %v2115 = vld [vmem:[%s2106 + $0x20] sm:$0xf]
      %v2116 = vld [vmem:[%s2106 + $0x24] sm:$0xf]
      %v2117 = vld [vmem:[%s2106 + $0x28] sm:$0xf]
      %v2118 = vld [vmem:[%s2106 + $0x2c] sm:$0xf]
      %v2119 = vld [vmem:[%s2106 + $0x30] sm:$0xf]
      %v2120 = vld [vmem:[%s2106 + $0x34] sm:$0xf]
      %v2121 = vld [vmem:[%s2106 + $0x38] sm:$0xf]
      %v2122 = vld [vmem:[%s2106 + $0x3c] sm:$0xf]
      %v2139 = vunpack.c.l.b16 %v2082
      %v2140 = vunpack.c.l.b16 %v2083
      %v2141 = vunpack.c.l.b16 %v2085
      %v2142 = vunpack.c.l.b16 %v2086
      %v2143 = vunpack.c.l.b16 %v2088
      %v2144 = vunpack.c.l.b16 %v2089
      %v2145 = vunpack.c.l.b16 %v2091
      %v2146 = vunpack.c.l.b16 %v2092
      %v2147 = vunpack.c.l.b16 %v2094
      %v2148 = vunpack.c.l.b16 %v2095
      %v2149 = vunpack.c.l.b16 %v2097
      %v2150 = vunpack.c.l.b16 %v2098
      %v2151 = vunpack.c.l.b16 %v2100
      %v2152 = vunpack.c.l.b16 %v2101
      %v2153 = vunpack.c.l.b16 %v2103
      %v2154 = vunpack.c.l.b16 %v2104
      %v2155 = vpack.c.b16 %v2140, %v2139
      %v2156 = vpack.c.b16 %v2142, %v2141
      %v2157 = vpack.c.b16 %v2144, %v2143
      %v2158 = vpack.c.b16 %v2146, %v2145
      %v2159 = vpack.c.b16 %v2148, %v2147
      %v2160 = vpack.c.b16 %v2150, %v2149
      %v2161 = vpack.c.b16 %v2152, %v2151
      %v2162 = vpack.c.b16 %v2154, %v2153
      %v2187 = vunpack.c.l.b16 %v2107
      %v2188 = vunpack.c.l.b16 %v2108
      %v2189 = vunpack.c.l.b16 %v2109
      %v2190 = vunpack.c.l.b16 %v2110
      %v2191 = vunpack.c.l.b16 %v2111
      %v2192 = vunpack.c.l.b16 %v2112
      %v2193 = vunpack.c.l.b16 %v2113
      %v2194 = vunpack.c.l.b16 %v2114
      %v2195 = vunpack.c.l.b16 %v2115
      %v2196 = vunpack.c.l.b16 %v2116
      %v2197 = vunpack.c.l.b16 %v2117
      %v2198 = vunpack.c.l.b16 %v2118
      %v2199 = vunpack.c.l.b16 %v2119
      %v2200 = vunpack.c.l.b16 %v2120
      %v2201 = vunpack.c.l.b16 %v2121
      %v2202 = vunpack.c.l.b16 %v2122
      %v2203 = vpack.c.b16 %v2188, %v2187
      %v2204 = vpack.c.b16 %v2190, %v2189
      %v2205 = vpack.c.b16 %v2192, %v2191
      %v2206 = vpack.c.b16 %v2194, %v2193
      %v2207 = vpack.c.b16 %v2196, %v2195
      %v2208 = vpack.c.b16 %v2198, %v2197
      %v2209 = vpack.c.b16 %v2200, %v2199
      %v2210 = vpack.c.b16 %v2202, %v2201
      %2219 = vmatprep.subr.bf16.mxu0 0
      %2220 = vmatpush1.bf16.msra.mxu0 %v2210
      %2221 = vmatprep.subr.bf16.mxu0 0
      %2222 = vmatpush1.bf16.msra.mxu0 %v2209
      %2223 = vmatprep.subr.bf16.mxu0 0
      %2224 = vmatpush1.bf16.msra.mxu0 %v2208
      %2225 = vmatprep.subr.bf16.mxu0 0
      %2226 = vmatpush1.bf16.msra.mxu0 %v2207
      %2227 = vmatprep.subr.bf16.mxu0 0
      %2228 = vmatpush1.bf16.msra.mxu0 %v2206
      %2229 = vmatprep.subr.bf16.mxu0 0
      %2230 = vmatpush1.bf16.msra.mxu0 %v2205
      %2231 = vmatprep.subr.bf16.mxu0 0
      %2232 = vmatpush1.bf16.msra.mxu0 %v2204
      %2233 = vmatprep.subr.bf16.mxu0 0
      %2234 = vmatpush1.bf16.msra.mxu0 %v2203
      %2235 = vmatprep.subr.bf16.mxu0 0
      %2236 = vmatpush2.bf16.msra.mxu0 0
      %2237 = vmatprep.subr.bf16.mxu0 0
      %2238 = vmatpush2.bf16.msra.mxu0 0
      %2239 = vmatprep.subr.bf16.mxu0 0
      %2240 = vmatpush2.bf16.msra.mxu0 0
      %2241 = vmatprep.subr.bf16.mxu0 0
      %2242 = vmatpush2.bf16.msra.mxu0 0
      %2243 = vmatprep.subr.bf16.mxu0 0
      %2244 = vmatpush2.bf16.msra.mxu0 0
      %2245 = vmatprep.subr.bf16.mxu0 0
      %2246 = vmatpush2.bf16.msra.mxu0 0
      %2247 = vmatprep.subr.bf16.mxu0 0
      %2248 = vmatpush2.bf16.msra.mxu0 0
      %2249 = vmatprep.subr.bf16.mxu0 0
      %2250 = vmatpush2.bf16.msra.mxu0 0
      %2251 = vmatprep.mubr.bf16.mxu0 0
      %2252 = vmatmul.mubr.bf16.gmra.mxu0 %v2155
      %v2253 = vpop.f32.mrf.mxu0
      %v2254 = vadd.f32 0.0, %v2253
      %v2255 = vpop.f32.mrf.mxu0
      %v2256 = vpop.f32.mrf.mxu0
      %v2257 = vadd.f32 0.0, %v2256
      %v2258 = vpop.f32.mrf.mxu0
      %2259 = vmatprep.mubr.bf16.mxu0 0
      %2260 = vmatmul.mubr.bf16.gmra.mxu0 %v2156
      %v2261 = vpop.f32.mrf.mxu0
      %v2262 = vadd.f32 0.0, %v2261
      %v2263 = vpop.f32.mrf.mxu0
      %v2264 = vpop.f32.mrf.mxu0
      %v2265 = vadd.f32 0.0, %v2264
      %v2266 = vpop.f32.mrf.mxu0
      %2267 = vmatprep.mubr.bf16.mxu0 0
      %2268 = vmatmul.mubr.bf16.gmra.mxu0 %v2157
      %v2269 = vpop.f32.mrf.mxu0
      %v2270 = vadd.f32 0.0, %v2269
      %v2271 = vpop.f32.mrf.mxu0
      %v2272 = vpop.f32.mrf.mxu0
      %v2273 = vadd.f32 0.0, %v2272
      %v2274 = vpop.f32.mrf.mxu0
      %2275 = vmatprep.mubr.bf16.mxu0 0
      %2276 = vmatmul.mubr.bf16.gmra.mxu0 %v2158
      %v2277 = vpop.f32.mrf.mxu0
      %v2278 = vadd.f32 0.0, %v2277
      %v2279 = vpop.f32.mrf.mxu0
      %v2280 = vpop.f32.mrf.mxu0
      %v2281 = vadd.f32 0.0, %v2280
      %v2282 = vpop.f32.mrf.mxu0
      %2283 = vmatprep.mubr.bf16.mxu0 0
      %2284 = vmatmul.mubr.bf16.gmra.mxu0 %v2159
      %v2285 = vpop.f32.mrf.mxu0
      %v2286 = vadd.f32 0.0, %v2285
      %v2287 = vpop.f32.mrf.mxu0
      %v2288 = vpop.f32.mrf.mxu0
      %v2289 = vadd.f32 0.0, %v2288
      %v2290 = vpop.f32.mrf.mxu0
      %2291 = vmatprep.mubr.bf16.mxu0 0
      %2292 = vmatmul.mubr.bf16.gmra.mxu0 %v2160
      %v2293 = vpop.f32.mrf.mxu0
      %v2294 = vadd.f32 0.0, %v2293
      %v2295 = vpop.f32.mrf.mxu0
      %v2296 = vpop.f32.mrf.mxu0
      %v2297 = vadd.f32 0.0, %v2296
      %v2298 = vpop.f32.mrf.mxu0
      %2299 = vmatprep.mubr.bf16.mxu0 0
      %2300 = vmatmul.mubr.bf16.gmra.mxu0 %v2161
      %v2301 = vpop.f32.mrf.mxu0
      %v2302 = vadd.f32 0.0, %v2301
      %v2303 = vpop.f32.mrf.mxu0
      %v2304 = vpop.f32.mrf.mxu0
      %v2305 = vadd.f32 0.0, %v2304
      %v2306 = vpop.f32.mrf.mxu0
      %2307 = vmatprep.mubr.bf16.mxu0 0
      %2308 = vmatmul.mubr.bf16.gmra.mxu0 %v2162
      %v2309 = vpop.f32.mrf.mxu0
      %v2310 = vadd.f32 0.0, %v2309
      %v2311 = vpop.f32.mrf.mxu0
      %v2312 = vpop.f32.mrf.mxu0
      %v2313 = vadd.f32 0.0, %v2312
      %v2314 = vpop.f32.mrf.mxu0
      %2315 = vdwg.mxu0
      %v2316 = vadd.f32 %v2062, %v2254
      %v2317 = vadd.f32 %v2063, %v2257
      %v2318 = vadd.f32 %v2064, %v2262
      %v2319 = vadd.f32 %v2065, %v2265
      %v2320 = vadd.f32 %v2066, %v2270
      %v2321 = vadd.f32 %v2067, %v2273
      %v2322 = vadd.f32 %v2068, %v2278
      %v2323 = vadd.f32 %v2069, %v2281
      %v2324 = vadd.f32 %v2070, %v2286
      %v2325 = vadd.f32 %v2071, %v2289
      %v2326 = vadd.f32 %v2072, %v2294
      %v2327 = vadd.f32 %v2073, %v2297
      %v2328 = vadd.f32 %v2074, %v2302
      %v2329 = vadd.f32 %v2075, %v2305
      %v2330 = vadd.f32 %v2076, %v2310
      %v2331 = vadd.f32 %v2077, %v2313
      %v2333 = vshrl.u32 %v2082, 16
      %v2335 = vrot.slane %v2333, 4
      %v2336 = vshll.u32 %v2082, 16
      %v2338 = vrot.slane %v2336, 5
      %v2339 = vor.u32 %v2335, %v2338
      %v2340 = vrot.slane %v2339, 4
      %v2342 = vshll.u32 %v2083, 16
      %v2344 = vrot.slane %v2342, 5
      %v2345 = vsel %vm291, %v2340, %v2344
      %v2346 = vshrl.u32 %v2083, 16
      %v2348 = vrot.slane %v2346, 4
      %v2349 = vor.u32 %v2348, %v2344
      %v2350 = vrot.slane %v2349, 4
      %v2352 = vshll.u32 %v2084, 16
      %v2354 = vrot.slane %v2352, 5
      %v2355 = vsel %vm291, %v2350, %v2354
      %v2357 = vshrl.u32 %v2085, 16
      %v2359 = vrot.slane %v2357, 4
      %v2360 = vshll.u32 %v2085, 16
      %v2362 = vrot.slane %v2360, 5
      %v2363 = vor.u32 %v2359, %v2362
      %v2364 = vrot.slane %v2363, 4
      %v2366 = vshll.u32 %v2086, 16
      %v2368 = vrot.slane %v2366, 5
      %v2369 = vsel %vm291, %v2364, %v2368
      %v2370 = vshrl.u32 %v2086, 16
      %v2372 = vrot.slane %v2370, 4
      %v2373 = vor.u32 %v2372, %v2368
      %v2374 = vrot.slane %v2373, 4
      %v2376 = vshll.u32 %v2087, 16
      %v2378 = vrot.slane %v2376, 5
      %v2379 = vsel %vm291, %v2374, %v2378
      %v2381 = vshrl.u32 %v2088, 16
      %v2383 = vrot.slane %v2381, 4
      %v2384 = vshll.u32 %v2088, 16
      %v2386 = vrot.slane %v2384, 5
      %v2387 = vor.u32 %v2383, %v2386
      %v2388 = vrot.slane %v2387, 4
      %v2390 = vshll.u32 %v2089, 16
      %v2392 = vrot.slane %v2390, 5
      %v2393 = vsel %vm291, %v2388, %v2392
      %v2394 = vshrl.u32 %v2089, 16
      %v2396 = vrot.slane %v2394, 4
      %v2397 = vor.u32 %v2396, %v2392
      %v2398 = vrot.slane %v2397, 4
      %v2400 = vshll.u32 %v2090, 16
      %v2402 = vrot.slane %v2400, 5
      %v2403 = vsel %vm291, %v2398, %v2402
      %v2405 = vshrl.u32 %v2091, 16
      %v2407 = vrot.slane %v2405, 4
      %v2408 = vshll.u32 %v2091, 16
      %v2410 = vrot.slane %v2408, 5
      %v2411 = vor.u32 %v2407, %v2410
      %v2412 = vrot.slane %v2411, 4
      %v2414 = vshll.u32 %v2092, 16
      %v2416 = vrot.slane %v2414, 5
      %v2417 = vsel %vm291, %v2412, %v2416
      %v2418 = vshrl.u32 %v2092, 16
      %v2420 = vrot.slane %v2418, 4
      %v2421 = vor.u32 %v2420, %v2416
      %v2422 = vrot.slane %v2421, 4
      %v2424 = vshll.u32 %v2093, 16
      %v2426 = vrot.slane %v2424, 5
      %v2427 = vsel %vm291, %v2422, %v2426
      %v2429 = vshrl.u32 %v2094, 16
      %v2431 = vrot.slane %v2429, 4
      %v2432 = vshll.u32 %v2094, 16
      %v2434 = vrot.slane %v2432, 5
      %v2435 = vor.u32 %v2431, %v2434
      %v2436 = vrot.slane %v2435, 4
      %v2438 = vshll.u32 %v2095, 16
      %v2440 = vrot.slane %v2438, 5
      %v2441 = vsel %vm291, %v2436, %v2440
      %v2442 = vshrl.u32 %v2095, 16
      %v2444 = vrot.slane %v2442, 4
      %v2445 = vor.u32 %v2444, %v2440
      %v2446 = vrot.slane %v2445, 4
      %v2448 = vshll.u32 %v2096, 16
      %v2450 = vrot.slane %v2448, 5
      %v2451 = vsel %vm291, %v2446, %v2450
      %v2453 = vshrl.u32 %v2097, 16
      %v2455 = vrot.slane %v2453, 4
      %v2456 = vshll.u32 %v2097, 16
      %v2458 = vrot.slane %v2456, 5
      %v2459 = vor.u32 %v2455, %v2458
      %v2460 = vrot.slane %v2459, 4
      %v2462 = vshll.u32 %v2098, 16
      %v2464 = vrot.slane %v2462, 5
      %v2465 = vsel %vm291, %v2460, %v2464
      %v2466 = vshrl.u32 %v2098, 16
      %v2468 = vrot.slane %v2466, 4
      %v2469 = vor.u32 %v2468, %v2464
      %v2470 = vrot.slane %v2469, 4
      %v2472 = vshll.u32 %v2099, 16
      %v2474 = vrot.slane %v2472, 5
      %v2475 = vsel %vm291, %v2470, %v2474
      %v2477 = vshrl.u32 %v2100, 16
      %v2479 = vrot.slane %v2477, 4
      %v2480 = vshll.u32 %v2100, 16
      %v2482 = vrot.slane %v2480, 5
      %v2483 = vor.u32 %v2479, %v2482
      %v2484 = vrot.slane %v2483, 4
      %v2486 = vshll.u32 %v2101, 16
      %v2488 = vrot.slane %v2486, 5
      %v2489 = vsel %vm291, %v2484, %v2488
      %v2490 = vshrl.u32 %v2101, 16
      %v2492 = vrot.slane %v2490, 4
      %v2493 = vor.u32 %v2492, %v2488
      %v2494 = vrot.slane %v2493, 4
      %v2496 = vshll.u32 %v2102, 16
      %v2498 = vrot.slane %v2496, 5
      %v2499 = vsel %vm291, %v2494, %v2498
      %v2501 = vshrl.u32 %v2103, 16
      %v2503 = vrot.slane %v2501, 4
      %v2504 = vshll.u32 %v2103, 16
      %v2506 = vrot.slane %v2504, 5
      %v2507 = vor.u32 %v2503, %v2506
      %v2508 = vrot.slane %v2507, 4
      %v2510 = vshll.u32 %v2104, 16
      %v2512 = vrot.slane %v2510, 5
      %v2513 = vsel %vm291, %v2508, %v2512
      %v2514 = vshrl.u32 %v2104, 16
      %v2516 = vrot.slane %v2514, 4
      %v2517 = vor.u32 %v2516, %v2512
      %v2518 = vrot.slane %v2517, 4
      %v2520 = vshll.u32 %v2105, 16
      %v2522 = vrot.slane %v2520, 5
      %v2523 = vsel %vm291, %v2518, %v2522
      %s2524 = scalar_lea.vmem %s1, 448
      %v2525 = vld [vmem:[%s2524] sm:$0xf]
      %v2526 = vld [vmem:[%s2524 + $0x4] sm:$0xf]
      %v2527 = vld [vmem:[%s2524 + $0x8] sm:$0xf]
      %v2528 = vld [vmem:[%s2524 + $0xc] sm:$0xf]
      %v2529 = vld [vmem:[%s2524 + $0x10] sm:$0xf]
      %v2530 = vld [vmem:[%s2524 + $0x14] sm:$0xf]
      %v2531 = vld [vmem:[%s2524 + $0x18] sm:$0xf]
      %v2532 = vld [vmem:[%s2524 + $0x1c] sm:$0xf]
      %v2533 = vld [vmem:[%s2524 + $0x20] sm:$0xf]
      %v2534 = vld [vmem:[%s2524 + $0x24] sm:$0xf]
      %v2535 = vld [vmem:[%s2524 + $0x28] sm:$0xf]
      %v2536 = vld [vmem:[%s2524 + $0x2c] sm:$0xf]
      %v2537 = vld [vmem:[%s2524 + $0x30] sm:$0xf]
      %v2538 = vld [vmem:[%s2524 + $0x34] sm:$0xf]
      %v2539 = vld [vmem:[%s2524 + $0x38] sm:$0xf]
      %v2540 = vld [vmem:[%s2524 + $0x3c] sm:$0xf]
      %v2541 = vunpack.c.l.b16 %v2345
      %v2542 = vunpack.c.l.b16 %v2355
      %v2543 = vunpack.c.l.b16 %v2369
      %v2544 = vunpack.c.l.b16 %v2379
      %v2545 = vunpack.c.l.b16 %v2393
      %v2546 = vunpack.c.l.b16 %v2403
      %v2547 = vunpack.c.l.b16 %v2417
      %v2548 = vunpack.c.l.b16 %v2427
      %v2549 = vunpack.c.l.b16 %v2441
      %v2550 = vunpack.c.l.b16 %v2451
      %v2551 = vunpack.c.l.b16 %v2465
      %v2552 = vunpack.c.l.b16 %v2475
      %v2553 = vunpack.c.l.b16 %v2489
      %v2554 = vunpack.c.l.b16 %v2499
      %v2555 = vunpack.c.l.b16 %v2513
      %v2556 = vunpack.c.l.b16 %v2523
      %v2557 = vpack.c.b16 %v2542, %v2541
      %v2558 = vpack.c.b16 %v2544, %v2543
      %v2559 = vpack.c.b16 %v2546, %v2545
      %v2560 = vpack.c.b16 %v2548, %v2547
      %v2561 = vpack.c.b16 %v2550, %v2549
      %v2562 = vpack.c.b16 %v2552, %v2551
      %v2563 = vpack.c.b16 %v2554, %v2553
      %v2564 = vpack.c.b16 %v2556, %v2555
      %v2589 = vunpack.c.l.b16 %v2525
      %v2590 = vunpack.c.l.b16 %v2526
      %v2591 = vunpack.c.l.b16 %v2527
      %v2592 = vunpack.c.l.b16 %v2528
      %v2593 = vunpack.c.l.b16 %v2529
      %v2594 = vunpack.c.l.b16 %v2530
      %v2595 = vunpack.c.l.b16 %v2531
      %v2596 = vunpack.c.l.b16 %v2532
      %v2597 = vunpack.c.l.b16 %v2533
      %v2598 = vunpack.c.l.b16 %v2534
      %v2599 = vunpack.c.l.b16 %v2535
      %v2600 = vunpack.c.l.b16 %v2536
      %v2601 = vunpack.c.l.b16 %v2537
      %v2602 = vunpack.c.l.b16 %v2538
      %v2603 = vunpack.c.l.b16 %v2539
      %v2604 = vunpack.c.l.b16 %v2540
      %v2605 = vpack.c.b16 %v2590, %v2589
      %v2606 = vpack.c.b16 %v2592, %v2591
      %v2607 = vpack.c.b16 %v2594, %v2593
      %v2608 = vpack.c.b16 %v2596, %v2595
      %v2609 = vpack.c.b16 %v2598, %v2597
      %v2610 = vpack.c.b16 %v2600, %v2599
      %v2611 = vpack.c.b16 %v2602, %v2601
      %v2612 = vpack.c.b16 %v2604, %v2603
      %2621 = vmatprep.subr.bf16.mxu0 0
      %2622 = vmatpush1.bf16.msra.mxu0 %v2612
      %2623 = vmatprep.subr.bf16.mxu0 0
      %2624 = vmatpush1.bf16.msra.mxu0 %v2611
      %2625 = vmatprep.subr.bf16.mxu0 0
      %2626 = vmatpush1.bf16.msra.mxu0 %v2610
      %2627 = vmatprep.subr.bf16.mxu0 0
      %2628 = vmatpush1.bf16.msra.mxu0 %v2609
      %2629 = vmatprep.subr.bf16.mxu0 0
      %2630 = vmatpush1.bf16.msra.mxu0 %v2608
      %2631 = vmatprep.subr.bf16.mxu0 0
      %2632 = vmatpush1.bf16.msra.mxu0 %v2607
      %2633 = vmatprep.subr.bf16.mxu0 0
      %2634 = vmatpush1.bf16.msra.mxu0 %v2606
      %2635 = vmatprep.subr.bf16.mxu0 0
      %2636 = vmatpush1.bf16.msra.mxu0 %v2605
      %2637 = vmatprep.subr.bf16.mxu0 0
      %2638 = vmatpush2.bf16.msra.mxu0 0
      %2639 = vmatprep.subr.bf16.mxu0 0
      %2640 = vmatpush2.bf16.msra.mxu0 0
      %2641 = vmatprep.subr.bf16.mxu0 0
      %2642 = vmatpush2.bf16.msra.mxu0 0
      %2643 = vmatprep.subr.bf16.mxu0 0
      %2644 = vmatpush2.bf16.msra.mxu0 0
      %2645 = vmatprep.subr.bf16.mxu0 0
      %2646 = vmatpush2.bf16.msra.mxu0 0
      %2647 = vmatprep.subr.bf16.mxu0 0
      %2648 = vmatpush2.bf16.msra.mxu0 0
      %2649 = vmatprep.subr.bf16.mxu0 0
      %2650 = vmatpush2.bf16.msra.mxu0 0
      %2651 = vmatprep.subr.bf16.mxu0 0
      %2652 = vmatpush2.bf16.msra.mxu0 0
      %2653 = vmatprep.mubr.bf16.mxu0 0
      %2654 = vmatmul.mubr.bf16.gmra.mxu0 %v2557
      %v2655 = vpop.f32.mrf.mxu0
      %v2656 = vadd.f32 0.0, %v2655
      %v2657 = vpop.f32.mrf.mxu0
      %v2658 = vpop.f32.mrf.mxu0
      %v2659 = vadd.f32 0.0, %v2658
      %v2660 = vpop.f32.mrf.mxu0
      %2661 = vmatprep.mubr.bf16.mxu0 0
      %2662 = vmatmul.mubr.bf16.gmra.mxu0 %v2558
      %v2663 = vpop.f32.mrf.mxu0
      %v2664 = vadd.f32 0.0, %v2663
      %v2665 = vpop.f32.mrf.mxu0
      %v2666 = vpop.f32.mrf.mxu0
      %v2667 = vadd.f32 0.0, %v2666
      %v2668 = vpop.f32.mrf.mxu0
      %2669 = vmatprep.mubr.bf16.mxu0 0
      %2670 = vmatmul.mubr.bf16.gmra.mxu0 %v2559
      %v2671 = vpop.f32.mrf.mxu0
      %v2672 = vadd.f32 0.0, %v2671
      %v2673 = vpop.f32.mrf.mxu0
      %v2674 = vpop.f32.mrf.mxu0
      %v2675 = vadd.f32 0.0, %v2674
      %v2676 = vpop.f32.mrf.mxu0
      %2677 = vmatprep.mubr.bf16.mxu0 0
      %2678 = vmatmul.mubr.bf16.gmra.mxu0 %v2560
      %v2679 = vpop.f32.mrf.mxu0
      %v2680 = vadd.f32 0.0, %v2679
      %v2681 = vpop.f32.mrf.mxu0
      %v2682 = vpop.f32.mrf.mxu0
      %v2683 = vadd.f32 0.0, %v2682
      %v2684 = vpop.f32.mrf.mxu0
      %2685 = vmatprep.mubr.bf16.mxu0 0
      %2686 = vmatmul.mubr.bf16.gmra.mxu0 %v2561
      %v2687 = vpop.f32.mrf.mxu0
      %v2688 = vadd.f32 0.0, %v2687
      %v2689 = vpop.f32.mrf.mxu0
      %v2690 = vpop.f32.mrf.mxu0
      %v2691 = vadd.f32 0.0, %v2690
      %v2692 = vpop.f32.mrf.mxu0
      %2693 = vmatprep.mubr.bf16.mxu0 0
      %2694 = vmatmul.mubr.bf16.gmra.mxu0 %v2562
      %v2695 = vpop.f32.mrf.mxu0
      %v2696 = vadd.f32 0.0, %v2695
      %v2697 = vpop.f32.mrf.mxu0
      %v2698 = vpop.f32.mrf.mxu0
      %v2699 = vadd.f32 0.0, %v2698
      %v2700 = vpop.f32.mrf.mxu0
      %2701 = vmatprep.mubr.bf16.mxu0 0
      %2702 = vmatmul.mubr.bf16.gmra.mxu0 %v2563
      %v2703 = vpop.f32.mrf.mxu0
      %v2704 = vadd.f32 0.0, %v2703
      %v2705 = vpop.f32.mrf.mxu0
      %v2706 = vpop.f32.mrf.mxu0
      %v2707 = vadd.f32 0.0, %v2706
      %v2708 = vpop.f32.mrf.mxu0
      %2709 = vmatprep.mubr.bf16.mxu0 0
      %2710 = vmatmul.mubr.bf16.gmra.mxu0 %v2564
      %v2711 = vpop.f32.mrf.mxu0
      %v2712 = vadd.f32 0.0, %v2711
      %v2713 = vpop.f32.mrf.mxu0
      %v2714 = vpop.f32.mrf.mxu0
      %v2715 = vadd.f32 0.0, %v2714
      %v2716 = vpop.f32.mrf.mxu0
      %2717 = vdwg.mxu0
      %v2718 = vadd.f32 %v2316, %v2656
      %v2719 = vadd.f32 %v2317, %v2659
      %v2720 = vadd.f32 %v2318, %v2664
      %v2721 = vadd.f32 %v2319, %v2667
      %v2722 = vadd.f32 %v2320, %v2672
      %v2723 = vadd.f32 %v2321, %v2675
      %v2724 = vadd.f32 %v2322, %v2680
      %v2725 = vadd.f32 %v2323, %v2683
      %v2726 = vadd.f32 %v2324, %v2688
      %v2727 = vadd.f32 %v2325, %v2691
      %v2728 = vadd.f32 %v2326, %v2696
      %v2729 = vadd.f32 %v2327, %v2699
      %v2730 = vadd.f32 %v2328, %v2704
      %v2731 = vadd.f32 %v2329, %v2707
      %v2732 = vadd.f32 %v2330, %v2712
      %v2733 = vadd.f32 %v2331, %v2715
      %v2742 = vrot.slane %v2082, 5
      %v2743 = vrot.slane %v2742, 4
      %v2744 = vrot.slane %v2083, 5
      %v2745 = vsel %vm881, %v2743, %v2744
      %v2746 = vrot.slane %v2744, 4
      %v2747 = vrot.slane %v2084, 5
      %v2748 = vsel %vm881, %v2746, %v2747
      %v2749 = vrot.slane %v2085, 5
      %v2750 = vrot.slane %v2749, 4
      %v2751 = vrot.slane %v2086, 5
      %v2752 = vsel %vm881, %v2750, %v2751
      %v2753 = vrot.slane %v2751, 4
      %v2754 = vrot.slane %v2087, 5
      %v2755 = vsel %vm881, %v2753, %v2754
      %v2756 = vrot.slane %v2088, 5
      %v2757 = vrot.slane %v2756, 4
      %v2758 = vrot.slane %v2089, 5
      %v2759 = vsel %vm881, %v2757, %v2758
      %v2760 = vrot.slane %v2758, 4
      %v2761 = vrot.slane %v2090, 5
      %v2762 = vsel %vm881, %v2760, %v2761
      %v2763 = vrot.slane %v2091, 5
      %v2764 = vrot.slane %v2763, 4
      %v2765 = vrot.slane %v2092, 5
      %v2766 = vsel %vm881, %v2764, %v2765
      %v2767 = vrot.slane %v2765, 4
      %v2768 = vrot.slane %v2093, 5
      %v2769 = vsel %vm881, %v2767, %v2768
      %v2770 = vrot.slane %v2094, 5
      %v2771 = vrot.slane %v2770, 4
      %v2772 = vrot.slane %v2095, 5
      %v2773 = vsel %vm881, %v2771, %v2772
      %v2774 = vrot.slane %v2772, 4
      %v2775 = vrot.slane %v2096, 5
      %v2776 = vsel %vm881, %v2774, %v2775
      %v2777 = vrot.slane %v2097, 5
      %v2778 = vrot.slane %v2777, 4
      %v2779 = vrot.slane %v2098, 5
      %v2780 = vsel %vm881, %v2778, %v2779
      %v2781 = vrot.slane %v2779, 4
      %v2782 = vrot.slane %v2099, 5
      %v2783 = vsel %vm881, %v2781, %v2782
      %v2784 = vrot.slane %v2100, 5
      %v2785 = vrot.slane %v2784, 4
      %v2786 = vrot.slane %v2101, 5
      %v2787 = vsel %vm881, %v2785, %v2786
      %v2788 = vrot.slane %v2786, 4
      %v2789 = vrot.slane %v2102, 5
      %v2790 = vsel %vm881, %v2788, %v2789
      %v2791 = vrot.slane %v2103, 5
      %v2792 = vrot.slane %v2791, 4
      %v2793 = vrot.slane %v2104, 5
      %v2794 = vsel %vm881, %v2792, %v2793
      %v2795 = vrot.slane %v2793, 4
      %v2796 = vrot.slane %v2105, 5
      %v2797 = vsel %vm881, %v2795, %v2796
      %s2798 = scalar_lea.vmem %s1, 512
      %v2799 = vld [vmem:[%s2798] sm:$0xf]
      %v2800 = vld [vmem:[%s2798 + $0x4] sm:$0xf]
      %v2801 = vld [vmem:[%s2798 + $0x8] sm:$0xf]
      %v2802 = vld [vmem:[%s2798 + $0xc] sm:$0xf]
      %v2803 = vld [vmem:[%s2798 + $0x10] sm:$0xf]
      %v2804 = vld [vmem:[%s2798 + $0x14] sm:$0xf]
      %v2805 = vld [vmem:[%s2798 + $0x18] sm:$0xf]
      %v2806 = vld [vmem:[%s2798 + $0x1c] sm:$0xf]
      %v2807 = vld [vmem:[%s2798 + $0x20] sm:$0xf]
      %v2808 = vld [vmem:[%s2798 + $0x24] sm:$0xf]
      %v2809 = vld [vmem:[%s2798 + $0x28] sm:$0xf]
      %v2810 = vld [vmem:[%s2798 + $0x2c] sm:$0xf]
      %v2811 = vld [vmem:[%s2798 + $0x30] sm:$0xf]
      %v2812 = vld [vmem:[%s2798 + $0x34] sm:$0xf]
      %v2813 = vld [vmem:[%s2798 + $0x38] sm:$0xf]
      %v2814 = vld [vmem:[%s2798 + $0x3c] sm:$0xf]
      %v2815 = vunpack.c.l.b16 %v2745
      %v2816 = vunpack.c.l.b16 %v2748
      %v2817 = vunpack.c.l.b16 %v2752
      %v2818 = vunpack.c.l.b16 %v2755
      %v2819 = vunpack.c.l.b16 %v2759
      %v2820 = vunpack.c.l.b16 %v2762
      %v2821 = vunpack.c.l.b16 %v2766
      %v2822 = vunpack.c.l.b16 %v2769
      %v2823 = vunpack.c.l.b16 %v2773
      %v2824 = vunpack.c.l.b16 %v2776
      %v2825 = vunpack.c.l.b16 %v2780
      %v2826 = vunpack.c.l.b16 %v2783
      %v2827 = vunpack.c.l.b16 %v2787
      %v2828 = vunpack.c.l.b16 %v2790
      %v2829 = vunpack.c.l.b16 %v2794
      %v2830 = vunpack.c.l.b16 %v2797
      %v2831 = vpack.c.b16 %v2816, %v2815
      %v2832 = vpack.c.b16 %v2818, %v2817
      %v2833 = vpack.c.b16 %v2820, %v2819
      %v2834 = vpack.c.b16 %v2822, %v2821
      %v2835 = vpack.c.b16 %v2824, %v2823
      %v2836 = vpack.c.b16 %v2826, %v2825
      %v2837 = vpack.c.b16 %v2828, %v2827
      %v2838 = vpack.c.b16 %v2830, %v2829
      %v2863 = vunpack.c.l.b16 %v2799
      %v2864 = vunpack.c.l.b16 %v2800
      %v2865 = vunpack.c.l.b16 %v2801
      %v2866 = vunpack.c.l.b16 %v2802
      %v2867 = vunpack.c.l.b16 %v2803
      %v2868 = vunpack.c.l.b16 %v2804
      %v2869 = vunpack.c.l.b16 %v2805
      %v2870 = vunpack.c.l.b16 %v2806
      %v2871 = vunpack.c.l.b16 %v2807
      %v2872 = vunpack.c.l.b16 %v2808
      %v2873 = vunpack.c.l.b16 %v2809
      %v2874 = vunpack.c.l.b16 %v2810
      %v2875 = vunpack.c.l.b16 %v2811
      %v2876 = vunpack.c.l.b16 %v2812
      %v2877 = vunpack.c.l.b16 %v2813
      %v2878 = vunpack.c.l.b16 %v2814
      %v2879 = vpack.c.b16 %v2864, %v2863
      %v2880 = vpack.c.b16 %v2866, %v2865
      %v2881 = vpack.c.b16 %v2868, %v2867
      %v2882 = vpack.c.b16 %v2870, %v2869
      %v2883 = vpack.c.b16 %v2872, %v2871
      %v2884 = vpack.c.b16 %v2874, %v2873
      %v2885 = vpack.c.b16 %v2876, %v2875
      %v2886 = vpack.c.b16 %v2878, %v2877
      %2895 = vmatprep.subr.bf16.mxu0 0
      %2896 = vmatpush1.bf16.msra.mxu0 %v2886
      %2897 = vmatprep.subr.bf16.mxu0 0
      %2898 = vmatpush1.bf16.msra.mxu0 %v2885
      %2899 = vmatprep.subr.bf16.mxu0 0
      %2900 = vmatpush1.bf16.msra.mxu0 %v2884
      %2901 = vmatprep.subr.bf16.mxu0 0
      %2902 = vmatpush1.bf16.msra.mxu0 %v2883
      %2903 = vmatprep.subr.bf16.mxu0 0
      %2904 = vmatpush1.bf16.msra.mxu0 %v2882
      %2905 = vmatprep.subr.bf16.mxu0 0
      %2906 = vmatpush1.bf16.msra.mxu0 %v2881
      %2907 = vmatprep.subr.bf16.mxu0 0
      %2908 = vmatpush1.bf16.msra.mxu0 %v2880
      %2909 = vmatprep.subr.bf16.mxu0 0
      %2910 = vmatpush1.bf16.msra.mxu0 %v2879
      %2911 = vmatprep.subr.bf16.mxu0 0
      %2912 = vmatpush2.bf16.msra.mxu0 0
      %2913 = vmatprep.subr.bf16.mxu0 0
      %2914 = vmatpush2.bf16.msra.mxu0 0
      %2915 = vmatprep.subr.bf16.mxu0 0
      %2916 = vmatpush2.bf16.msra.mxu0 0
      %2917 = vmatprep.subr.bf16.mxu0 0
      %2918 = vmatpush2.bf16.msra.mxu0 0
      %2919 = vmatprep.subr.bf16.mxu0 0
      %2920 = vmatpush2.bf16.msra.mxu0 0
      %2921 = vmatprep.subr.bf16.mxu0 0
      %2922 = vmatpush2.bf16.msra.mxu0 0
      %2923 = vmatprep.subr.bf16.mxu0 0
      %2924 = vmatpush2.bf16.msra.mxu0 0
      %2925 = vmatprep.subr.bf16.mxu0 0
      %2926 = vmatpush2.bf16.msra.mxu0 0
      %2927 = vmatprep.mubr.bf16.mxu0 0
      %2928 = vmatmul.mubr.bf16.gmra.mxu0 %v2831
      %v2929 = vpop.f32.mrf.mxu0
      %v2930 = vadd.f32 0.0, %v2929
      %v2931 = vpop.f32.mrf.mxu0
      %v2932 = vpop.f32.mrf.mxu0
      %v2933 = vadd.f32 0.0, %v2932
      %v2934 = vpop.f32.mrf.mxu0
      %2935 = vmatprep.mubr.bf16.mxu0 0
      %2936 = vmatmul.mubr.bf16.gmra.mxu0 %v2832
      %v2937 = vpop.f32.mrf.mxu0
      %v2938 = vadd.f32 0.0, %v2937
      %v2939 = vpop.f32.mrf.mxu0
      %v2940 = vpop.f32.mrf.mxu0
      %v2941 = vadd.f32 0.0, %v2940
      %v2942 = vpop.f32.mrf.mxu0
      %2943 = vmatprep.mubr.bf16.mxu0 0
      %2944 = vmatmul.mubr.bf16.gmra.mxu0 %v2833
      %v2945 = vpop.f32.mrf.mxu0
      %v2946 = vadd.f32 0.0, %v2945
      %v2947 = vpop.f32.mrf.mxu0
      %v2948 = vpop.f32.mrf.mxu0
      %v2949 = vadd.f32 0.0, %v2948
      %v2950 = vpop.f32.mrf.mxu0
      %2951 = vmatprep.mubr.bf16.mxu0 0
      %2952 = vmatmul.mubr.bf16.gmra.mxu0 %v2834
      %v2953 = vpop.f32.mrf.mxu0
      %v2954 = vadd.f32 0.0, %v2953
      %v2955 = vpop.f32.mrf.mxu0
      %v2956 = vpop.f32.mrf.mxu0
      %v2957 = vadd.f32 0.0, %v2956
      %v2958 = vpop.f32.mrf.mxu0
      %2959 = vmatprep.mubr.bf16.mxu0 0
      %2960 = vmatmul.mubr.bf16.gmra.mxu0 %v2835
      %v2961 = vpop.f32.mrf.mxu0
      %v2962 = vadd.f32 0.0, %v2961
      %v2963 = vpop.f32.mrf.mxu0
      %v2964 = vpop.f32.mrf.mxu0
      %v2965 = vadd.f32 0.0, %v2964
      %v2966 = vpop.f32.mrf.mxu0
      %2967 = vmatprep.mubr.bf16.mxu0 0
      %2968 = vmatmul.mubr.bf16.gmra.mxu0 %v2836
      %v2969 = vpop.f32.mrf.mxu0
      %v2970 = vadd.f32 0.0, %v2969
      %v2971 = vpop.f32.mrf.mxu0
      %v2972 = vpop.f32.mrf.mxu0
      %v2973 = vadd.f32 0.0, %v2972
      %v2974 = vpop.f32.mrf.mxu0
      %2975 = vmatprep.mubr.bf16.mxu0 0
      %2976 = vmatmul.mubr.bf16.gmra.mxu0 %v2837
      %v2977 = vpop.f32.mrf.mxu0
      %v2978 = vadd.f32 0.0, %v2977
      %v2979 = vpop.f32.mrf.mxu0
      %v2980 = vpop.f32.mrf.mxu0
      %v2981 = vadd.f32 0.0, %v2980
      %v2982 = vpop.f32.mrf.mxu0
      %2983 = vmatprep.mubr.bf16.mxu0 0
      %2984 = vmatmul.mubr.bf16.gmra.mxu0 %v2838
      %v2985 = vpop.f32.mrf.mxu0
      %v2986 = vadd.f32 0.0, %v2985
      %v2987 = vpop.f32.mrf.mxu0
      %v2988 = vpop.f32.mrf.mxu0
      %v2989 = vadd.f32 0.0, %v2988
      %v2990 = vpop.f32.mrf.mxu0
      %2991 = vdwg.mxu0
      %v2992 = vadd.f32 %v2718, %v2930
      %v2993 = vadd.f32 %v2719, %v2933
      %v2994 = vadd.f32 %v2720, %v2938
      %v2995 = vadd.f32 %v2721, %v2941
      %v2996 = vadd.f32 %v2722, %v2946
      %v2997 = vadd.f32 %v2723, %v2949
      %v2998 = vadd.f32 %v2724, %v2954
      %v2999 = vadd.f32 %v2725, %v2957
      %v3000 = vadd.f32 %v2726, %v2962
      %v3001 = vadd.f32 %v2727, %v2965
      %v3002 = vadd.f32 %v2728, %v2970
      %v3003 = vadd.f32 %v2729, %v2973
      %v3004 = vadd.f32 %v2730, %v2978
      %v3005 = vadd.f32 %v2731, %v2981
      %v3006 = vadd.f32 %v2732, %v2986
      %v3007 = vadd.f32 %v2733, %v2989
      %v3008 = vld [vmem:[%s2] sm:$0x1]
      %v3010 = vlaneseq
      %v3011 = vshrl.u32 %v3010, 7
      %v3012 = vsub.s32 0, %v3011
      %v3013 = vrot.slane %v3008, %v3012
      %v3015 = vadd.f32 %v2992, %v3013
      %v3016 = vadd.f32 %v2993, %v3013
      %v3017 = vadd.f32 %v2994, %v3013
      %v3018 = vadd.f32 %v2995, %v3013
      %v3019 = vadd.f32 %v2996, %v3013
      %v3020 = vadd.f32 %v2997, %v3013
      %v3021 = vadd.f32 %v2998, %v3013
      %v3022 = vadd.f32 %v2999, %v3013
      %v3023 = vadd.f32 %v3000, %v3013
      %v3024 = vadd.f32 %v3001, %v3013
      %v3025 = vadd.f32 %v3002, %v3013
      %v3026 = vadd.f32 %v3003, %v3013
      %v3027 = vadd.f32 %v3004, %v3013
      %v3028 = vadd.f32 %v3005, %v3013
      %v3029 = vadd.f32 %v3006, %v3013
      %v3030 = vadd.f32 %v3007, %v3013
      %3031 = vst [vmem:[%s234] sm:$0xff] %v3015
      %3032 = vst [vmem:[%s234 + $0x8] sm:$0xff] %v3016
      %3033 = vst [vmem:[%s234 + $0x10] sm:$0xff] %v3017
      %3034 = vst [vmem:[%s234 + $0x18] sm:$0xff] %v3018
      %3035 = vst [vmem:[%s234 + $0x20] sm:$0xff] %v3019
      %3036 = vst [vmem:[%s234 + $0x28] sm:$0xff] %v3020
      %3037 = vst [vmem:[%s234 + $0x30] sm:$0xff] %v3021
      %3038 = vst [vmem:[%s234 + $0x38] sm:$0xff] %v3022
      %3039 = vst [vmem:[%s234 + $0x40] sm:$0xff] %v3023
      %3040 = vst [vmem:[%s234 + $0x48] sm:$0xff] %v3024
      %3041 = vst [vmem:[%s234 + $0x50] sm:$0xff] %v3025
      %3042 = vst [vmem:[%s234 + $0x58] sm:$0xff] %v3026
      %3043 = vst [vmem:[%s234 + $0x60] sm:$0xff] %v3027
      %3044 = vst [vmem:[%s234 + $0x68] sm:$0xff] %v3028
      %3045 = vst [vmem:[%s234 + $0x70] sm:$0xff] %v3029
      %3046 = vst [vmem:[%s234 + $0x78] sm:$0xff] %v3030
      %v3047 = vadd.f32 %v3015, %v3016
      %v3048 = vadd.f32 %v3047, %v3017
      %v3049 = vadd.f32 %v3048, %v3018
      %v3050 = vadd.f32 %v3049, %v3019
      %v3051 = vadd.f32 %v3050, %v3020
      %v3052 = vadd.f32 %v3051, %v3021
      %v3053 = vadd.f32 %v3052, %v3022
      %v3054 = vadd.f32 %v3053, %v3023
      %v3055 = vadd.f32 %v3054, %v3024
      %v3056 = vadd.f32 %v3055, %v3025
      %v3057 = vadd.f32 %v3056, %v3026
      %v3058 = vadd.f32 %v3057, %v3027
      %v3059 = vadd.f32 %v3058, %v3028
      %v3060 = vadd.f32 %v3059, %v3029
      %v3061 = vadd.f32 %v3060, %v3030
      %v3062 = vrot.slane %v3061, 4
      %v3063 = vadd.f32 %v3061, %v3062
      %v3064 = vrot.slane %v3063, 2
      %v3065 = vadd.f32 %v3063, %v3064
      %v3066 = vrot.slane %v3065, 1
      %v3067 = vadd.f32 %v3065, %v3066
      %v3068 = vmul.f32 %v3015, %v3015
      %v3069 = vmul.f32 %v3016, %v3016
      %v3070 = vmul.f32 %v3017, %v3017
      %v3071 = vmul.f32 %v3018, %v3018
      %v3072 = vmul.f32 %v3019, %v3019
      %v3073 = vmul.f32 %v3020, %v3020
      %v3074 = vmul.f32 %v3021, %v3021
      %v3075 = vmul.f32 %v3022, %v3022
      %v3076 = vmul.f32 %v3023, %v3023
      %v3077 = vmul.f32 %v3024, %v3024
      %v3078 = vmul.f32 %v3025, %v3025
      %v3079 = vmul.f32 %v3026, %v3026
      %v3080 = vmul.f32 %v3027, %v3027
      %v3081 = vmul.f32 %v3028, %v3028
      %v3082 = vmul.f32 %v3029, %v3029
      %v3083 = vmul.f32 %v3030, %v3030
      %v3084 = vadd.f32 %v3068, %v3069
      %v3085 = vadd.f32 %v3084, %v3070
      %v3086 = vadd.f32 %v3085, %v3071
      %v3087 = vadd.f32 %v3086, %v3072
      %v3088 = vadd.f32 %v3087, %v3073
      %v3089 = vadd.f32 %v3088, %v3074
      %v3090 = vadd.f32 %v3089, %v3075
      %v3091 = vadd.f32 %v3090, %v3076
      %v3092 = vadd.f32 %v3091, %v3077
      %v3093 = vadd.f32 %v3092, %v3078
      %v3094 = vadd.f32 %v3093, %v3079
      %v3095 = vadd.f32 %v3094, %v3080
      %v3096 = vadd.f32 %v3095, %v3081
      %v3097 = vadd.f32 %v3096, %v3082
      %v3098 = vadd.f32 %v3097, %v3083
      %v3099 = vrot.slane %v3098, 4
      %v3100 = vadd.f32 %v3098, %v3099
      %v3101 = vrot.slane %v3100, 2
      %v3102 = vadd.f32 %v3100, %v3101
      %v3103 = vrot.slane %v3102, 1
      %v3104 = vadd.f32 %v3102, %v3103
      %vm3105 = vcmask 1040384
      %v3106 = vsel %vm3105, %v3067, %v3104
      %vm3107 = vcmask 1041408
      %v3108 = vsel %vm3107, %v3106, 0.0
      %3109 = vst [vmem:[%s243] sm:$0xff] %v3108
      %s3110 = smul.u32 8, %s21
      %p3111 = scmp.lt.s32.totalorder %s20, 1
      %s3112 = scalar_select %p3111, %s20, 1
      %p3113 = scmp.lt.s32.totalorder %s3110, 15
      %s3114 = scalar_select %p3113, %s3110, 15
      %s3115 = smul.addr %s3114, 2
      %s3116 = smul.addr %s3112, 32
      %s3117 = sadd.s32 %s3115, %s3116
      %s3118 = smul.addr %s3117, 8
      %s3119 = scalar_lea.vmem %s3, %s3118
      %p3120 = scmp.lt.s32.totalorder %s20, 1
      %s3121 = scalar_select %p3120, %s20, 1
      %p3122 = scmp.lt.s32.totalorder %s21, 1
      %s3123 = scalar_select %p3122, %s21, 1
      %s3124 = smul.addr %s3121, 2
      %s3125 = sadd.s32 %s3123, %s3124
      %s3126 = smul.addr %s3125, 8
      %s3127 = scalar_lea.vmem %s4, %s3126
      // Predicated region
      $region33: #{unet_forward.18} parent=31 // pred_check
        %p3128 = pneg %p116
      $region34: #{unet_forward.18} parent=31 // pred_check_branch
        %3130 = sbr.rel (%p3128) target = $region36
      $region35: #{unet_forward.18} parent=31 // pred_region
        %s3131 = smul.u32 8, %s21
      $region36: #{unet_forward.18} parent=31 // pred_fallthru
        _
      // Predicated region
      $region37: #{unet_forward.18} parent=31 // pred_check
        %p3132 = pneg %p144
      $region38: #{unet_forward.18} parent=31 // pred_check_branch
        %3134 = sbr.rel (%p3132) target = $region40
      $region39: #{unet_forward.18} parent=31 // pred_region
        _
      $region40: #{unet_forward.18} parent=31 // pred_fallthru
        _
    $region32: #{unet_forward.18} parent=5 // pred_fallthru
      _
    %p3135 = scmp.le.s32.totalorder 2, %s11
    // Predicated region
    $region41: #{unet_forward.18} parent=5 // pred_check
      %p3136 = pneg %p3135
    $region42: #{unet_forward.18} parent=5 // pred_check_branch
      %3138 = sbr.rel (%p3136) target = $region44
    $region43: #{unet_forward.18} parent=5 // pred_region
      %s3139 = ssub.s32 %s11, 2
      // Predicated region
      $region45: #{unet_forward.18} parent=43 // pred_check
        %p3140 = pneg %p122
      $region46: #{unet_forward.18} parent=43 // pred_check_branch
        %3142 = sbr.rel (%p3140) target = $region48
      $region47: #{unet_forward.18} parent=43 // pred_region
        %s3143 = smul.u32 8, %s23
        %p3144 = scmp.lt.s32.totalorder %s22, 1
        %s3145 = scalar_select %p3144, %s22, 1
        %p3146 = scmp.lt.s32.totalorder %s3143, 15
        %s3147 = scalar_select %p3146, %s3143, 15
        %s3148 = smul.addr %s3147, 2
        %s3149 = smul.addr %s3145, 32
        %s3150 = sadd.s32 %s3148, %s3149
        %s3151 = smul.addr %s3150, 8
        %s3152 = scalar_lea.vmem %s3, %s3151
      $region48: #{unet_forward.18} parent=43 // pred_fallthru
        _
      // Predicated region
      $region49: #{unet_forward.18} parent=43 // pred_check
        %p3153 = pneg %p150
      $region50: #{unet_forward.18} parent=43 // pred_check_branch
        %3155 = sbr.rel (%p3153) target = $region52
      $region51: #{unet_forward.18} parent=43 // pred_region
        %p3156 = scmp.lt.s32.totalorder %s22, 1
        %s3157 = scalar_select %p3156, %s22, 1
        %p3158 = scmp.lt.s32.totalorder %s23, 1
        %s3159 = scalar_select %p3158, %s23, 1
        %s3160 = smul.addr %s3157, 2
        %s3161 = sadd.s32 %s3159, %s3160
        %s3162 = smul.addr %s3161, 8
        %s3163 = scalar_lea.vmem %s4, %s3162
      $region52: #{unet_forward.18} parent=43 // pred_fallthru
        _
    $region44: #{unet_forward.18} parent=5 // pred_fallthru
      _
  $region6: #{unet_forward.18} parent=0 // loop_footer
    %s15 = sadd.s32 1, %s11
  $region7: #{unet_forward.18} parent=0 // loop_footer_branch
    %10 = sbr.rel target = $region3
  $region8: #{unet_forward.18} parent=0 // loop_exit
    _

// kernel: unet_forward.33
$region0: #{unet_forward.33}
  #allocation0 [shape = 'u32[]', space=smem, size = 0x4, offset = 0x4, fixed_abs, tag = 'smem constant byte address 0x4 - core index']
  #allocation1 [shape = 'u32[144,128]{1,0:T(1,128)}', space=vmem, size = 0x12000, scoped, tag = 'internal scratch']
  %s0 = inlined_call_operand.vmem [shape: bf16[2,16,16,128], index: 0, kind: input, shape index: {}]
  %s1 = inlined_call_operand.vmem [shape: bf16[128,128], index: 1, kind: input, shape index: {}]
  %s2 = inlined_call_operand.vmem [shape: f32[1,128], index: 2, kind: input, shape index: {}]
  %s3 = inlined_call_operand.vmem [shape: f32[2,1,1], index: 3, kind: input, shape index: {}]
  %s4 = inlined_call_operand.vmem [shape: f32[2,1,1], index: 4, kind: input, shape index: {}]
  %s5 = inlined_call_operand.vmem [shape: f32[2,16,16,128], index: 5, kind: output, shape index: {}]
  %s6 = sld [smem:[#allocation0]]
  $region53: #{unet_forward.33} parent=0
    _
  %s8 = ssub.s32 1, %s6
  %s9 = scalar_select 0, %s8, %s6
  loop: start=0, step=1, limit=4
  $region2: #{unet_forward.33} parent=0 // loop_pre_header
    _
  $region3: #{unet_forward.33} parent=0 // loop_header
    %s11 = sphi 0, %s15
    %p12 = scmp.ge.s32.totalorder %s11, 4
    %s21 = sphi 0, %s23
    %s24 = sphi 0, %s21
    %s25 = sphi 0, %s24
    %s41 = sphi 0, %s25
    %s45 = sphi 0, %s45
    %s47 = sphi 0, %s45
    %s48 = sphi 0, %s47
    %s62 = sphi 0, %s48
    %s66 = sphi 0, %s66
    %s68 = sphi 0, %s66
    %s69 = sphi 0, %s68
    %s83 = sphi 0, %s69
    %s89 = sphi 0, %s91
    %s92 = sphi 0, %s89
    %s93 = sphi 0, %s92
    %s109 = sphi 0, %s93
    %s115 = sphi 0, %s117
    %s118 = sphi 0, %s115
    %s119 = sphi 0, %s118
    %s135 = sphi 0, %s119
    %s141 = sphi 0, %s143
    %s144 = sphi 0, %s141
    %s145 = sphi 0, %s144
    %s161 = sphi 0, %s145
  $region4: #{unet_forward.33} parent=0 // loop_header_branch
    %14 = sbr.rel (%p12) target = $region8
  $region5: #{unet_forward.33} parent=0 // loop_body
    %s16 = ssub.s32 %s11, 1
    %s17 = ssub.s32 %s11, 2
    %s18 = sadd.s32 %s11, 1
    %s19 = ssub.s32 %s11, %s18
    %p20 = scmp.eq.s32.totalorder %s19, 0
    %s22 = sadd.s32 %s21, 1
    %s23 = scalar_select %p20, %s21, %s22
    %p26 = pneg %p20
    %p27 = scmp.eq.s32.totalorder %s11, 1
    %p28 = por %p26, %p27
    %p29 = scmp.ne.s32.totalorder %s21, %s24
    %p30 = scmp.eq.s32.totalorder %s11, 0
    %p31 = por %p29, %p30
    %p32 = scmp.ne.s32.totalorder %s21, %s24
    %p33 = scmp.eq.s32.totalorder %s16, 1
    %p34 = por %p32, %p33
    %p35 = scmp.ne.s32.totalorder %s24, %s25
    %p36 = scmp.eq.s32.totalorder %s16, 0
    %p37 = por %p35, %p36
    %p38 = scmp.ne.s32.totalorder %s24, %s25
    %p39 = scmp.eq.s32.totalorder %s17, 1
    %p40 = por %p38, %p39
    %p42 = scmp.ne.s32.totalorder %s25, %s41
    %p43 = scmp.eq.s32.totalorder %s17, 0
    %p44 = por %p42, %p43
    %s46 = sadd.s32 %s45, 1
    %p49 = scmp.eq.s32.totalorder %s11, 1
    %p50 = scmp.ne.s32.totalorder %s45, %s47
    %p51 = scmp.eq.s32.totalorder %s11, 0
    %p52 = por %p50, %p51
    %p53 = scmp.ne.s32.totalorder %s45, %s47
    %p54 = scmp.eq.s32.totalorder %s16, 1
    %p55 = por %p53, %p54
    %p56 = scmp.ne.s32.totalorder %s47, %s48
    %p57 = scmp.eq.s32.totalorder %s16, 0
    %p58 = por %p56, %p57
    %p59 = scmp.ne.s32.totalorder %s47, %s48
    %p60 = scmp.eq.s32.totalorder %s17, 1
    %p61 = por %p59, %p60
    %p63 = scmp.ne.s32.totalorder %s48, %s62
    %p64 = scmp.eq.s32.totalorder %s17, 0
    %p65 = por %p63, %p64
    %s67 = sadd.s32 %s66, 1
    %p70 = scmp.eq.s32.totalorder %s11, 1
    %p71 = scmp.ne.s32.totalorder %s66, %s68
    %p72 = scmp.eq.s32.totalorder %s11, 0
    %p73 = por %p71, %p72
    %p74 = scmp.ne.s32.totalorder %s66, %s68
    %p75 = scmp.eq.s32.totalorder %s16, 1
    %p76 = por %p74, %p75
    %p77 = scmp.ne.s32.totalorder %s68, %s69
    %p78 = scmp.eq.s32.totalorder %s16, 0
    %p79 = por %p77, %p78
    %p80 = scmp.ne.s32.totalorder %s68, %s69
    %p81 = scmp.eq.s32.totalorder %s17, 1
    %p82 = por %p80, %p81
    %p84 = scmp.ne.s32.totalorder %s69, %s83
    %p85 = scmp.eq.s32.totalorder %s17, 0
    %p86 = por %p84, %p85
    %s87 = ssub.s32 %s11, %s18
    %p88 = scmp.eq.s32.totalorder %s87, 0
    %s90 = sadd.s32 %s89, 1
    %s91 = scalar_select %p88, %s89, %s90
    %p94 = pneg %p88
    %p95 = scmp.eq.s32.totalorder %s11, 1
    %p96 = por %p94, %p95
    %p97 = scmp.ne.s32.totalorder %s89, %s92
    %p98 = scmp.eq.s32.totalorder %s11, 0
    %p99 = por %p97, %p98
    %p100 = scmp.ne.s32.totalorder %s89, %s92
    %p101 = scmp.eq.s32.totalorder %s16, 1
    %p102 = por %p100, %p101
    %p103 = scmp.ne.s32.totalorder %s92, %s93
    %p104 = scmp.eq.s32.totalorder %s16, 0
    %p105 = por %p103, %p104
    %p106 = scmp.ne.s32.totalorder %s92, %s93
    %p107 = scmp.eq.s32.totalorder %s17, 1
    %p108 = por %p106, %p107
    %p110 = scmp.ne.s32.totalorder %s93, %s109
    %p111 = scmp.eq.s32.totalorder %s17, 0
    %p112 = por %p110, %p111
    %s113 = ssub.s32 %s11, %s18
    %p114 = scmp.eq.s32.totalorder %s113, 0
    %s116 = sadd.s32 %s115, 1
    %s117 = scalar_select %p114, %s115, %s116
    %p120 = pneg %p114
    %p121 = scmp.eq.s32.totalorder %s11, 1
    %p122 = por %p120, %p121
    %p123 = scmp.ne.s32.totalorder %s115, %s118
    %p124 = scmp.eq.s32.totalorder %s11, 0
    %p125 = por %p123, %p124
    %p126 = scmp.ne.s32.totalorder %s115, %s118
    %p127 = scmp.eq.s32.totalorder %s16, 1
    %p128 = por %p126, %p127
    %p129 = scmp.ne.s32.totalorder %s118, %s119
    %p130 = scmp.eq.s32.totalorder %s16, 0
    %p131 = por %p129, %p130
    %p132 = scmp.ne.s32.totalorder %s118, %s119
    %p133 = scmp.eq.s32.totalorder %s17, 1
    %p134 = por %p132, %p133
    %p136 = scmp.ne.s32.totalorder %s119, %s135
    %p137 = scmp.eq.s32.totalorder %s17, 0
    %p138 = por %p136, %p137
    %s139 = ssub.s32 %s11, %s18
    %p140 = scmp.eq.s32.totalorder %s139, 0
    %s142 = sadd.s32 %s141, 1
    %s143 = scalar_select %p140, %s141, %s142
    %p146 = pneg %p140
    %p147 = scmp.eq.s32.totalorder %s11, 1
    %p148 = por %p146, %p147
    %p149 = scmp.ne.s32.totalorder %s141, %s144
    %p150 = scmp.eq.s32.totalorder %s11, 0
    %p151 = por %p149, %p150
    %p152 = scmp.ne.s32.totalorder %s141, %s144
    %p153 = scmp.eq.s32.totalorder %s16, 1
    %p154 = por %p152, %p153
    %p155 = scmp.ne.s32.totalorder %s144, %s145
    %p156 = scmp.eq.s32.totalorder %s16, 0
    %p157 = por %p155, %p156
    %p158 = scmp.ne.s32.totalorder %s144, %s145
    %p159 = scmp.eq.s32.totalorder %s17, 1
    %p160 = por %p158, %p159
    %p162 = scmp.ne.s32.totalorder %s145, %s161
    %p163 = scmp.eq.s32.totalorder %s17, 0
    %p164 = por %p162, %p163
    %p165 = scmp.le.s32.totalorder 1, %s11
    %p166 = scmp.lt.s32.totalorder %s11, 3
    %p167 = pnand %p165, %p166
    %p168 = pneg %p167
    // Predicated region
    $region9: #{unet_forward.33} parent=5 // pred_check
      _
    $region10: #{unet_forward.33} parent=5 // pred_check_branch
      %170 = sbr.rel (%p167) target = $region12
    $region11: #{unet_forward.33} parent=5 // pred_region
      %s171 = ssub.s32 %s11, 1
      // Predicated region
      $region13: #{unet_forward.33} parent=11 // pred_check
        %p172 = pneg %p58
      $region14: #{unet_forward.33} parent=11 // pred_check_branch
        %174 = sbr.rel (%p172) target = $region16
      $region15: #{unet_forward.33} parent=11 // pred_region
        _
      $region16: #{unet_forward.33} parent=11 // pred_fallthru
        _
      // Predicated region
      $region17: #{unet_forward.33} parent=11 // pred_check
        %p175 = pneg %p79
      $region18: #{unet_forward.33} parent=11 // pred_check_branch
        %177 = sbr.rel (%p175) target = $region20
      $region19: #{unet_forward.33} parent=11 // pred_region
        _
      $region20: #{unet_forward.33} parent=11 // pred_fallthru
        _
    $region12: #{unet_forward.33} parent=5 // pred_fallthru
      _
    %p178 = scmp.lt.s32.totalorder %s11, 2
    // Predicated region
    $region21: #{unet_forward.33} parent=5 // pred_check
      %p179 = pneg %p178
    $region22: #{unet_forward.33} parent=5 // pred_check_branch
      %181 = sbr.rel (%p179) target = $region24
    $region23: #{unet_forward.33} parent=5 // pred_region
      // Predicated region
      $region25: #{unet_forward.33} parent=23 // pred_check
        %p182 = pneg %p31
      $region26: #{unet_forward.33} parent=23 // pred_check_branch
        %184 = sbr.rel (%p182) target = $region28
      $region27: #{unet_forward.33} parent=23 // pred_region
        %p185 = scmp.lt.s32.totalorder %s11, 1
        %s186 = scalar_select %p185, %s11, 1
        %s187 = smul.addr %s186, 32
        %s188 = smul.addr %s187, 4
        %s189 = scalar_lea.vmem %s0, %s188
      $region28: #{unet_forward.33} parent=23 // pred_fallthru
        _
      // Predicated region
      $region29: #{unet_forward.33} parent=23 // pred_check
        %p190 = pneg %p99
      $region30: #{unet_forward.33} parent=23 // pred_check_branch
        %192 = sbr.rel (%p190) target = $region32
      $region31: #{unet_forward.33} parent=23 // pred_region
        %p193 = scmp.lt.s32.totalorder %s11, 1
        %s194 = scalar_select %p193, %s11, 1
        %s195 = scalar_lea.vmem %s3, %s194
      $region32: #{unet_forward.33} parent=23 // pred_fallthru
        _
      // Predicated region
      $region33: #{unet_forward.33} parent=23 // pred_check
        %p196 = pneg %p125
      $region34: #{unet_forward.33} parent=23 // pred_check_branch
        %198 = sbr.rel (%p196) target = $region36
      $region35: #{unet_forward.33} parent=23 // pred_region
        %p199 = scmp.lt.s32.totalorder %s11, 1
        %s200 = scalar_select %p199, %s11, 1
        %s201 = scalar_lea.vmem %s4, %s200
      $region36: #{unet_forward.33} parent=23 // pred_fallthru
        _
    $region24: #{unet_forward.33} parent=5 // pred_fallthru
      _
    %p202 = scmp.le.s32.totalorder 1, %s11
    %p203 = scmp.lt.s32.totalorder %s11, 3
    %p204 = pnand %p202, %p203
    %p205 = pneg %p204
    // Predicated region
    $region37: #{unet_forward.33} parent=5 // pred_check
      _
    $region38: #{unet_forward.33} parent=5 // pred_check_branch
      %207 = sbr.rel (%p204) target = $region40
    $region39: #{unet_forward.33} parent=5 // pred_region
      %s208 = ssub.s32 %s11, 1
      %p209 = scmp.lt.s32.totalorder %s16, 1
      %s210 = scalar_select %p209, %s16, 1
      %s211 = smul.addr %s210, 32
      %s212 = smul.addr %s211, 4
      %s213 = scalar_lea.vmem %s0, %s212
      %p214 = pneg %p37
      %p215 = pneg %p34
      %p216 = pneg %p58
      %p217 = pneg %p55
      %p218 = pneg %p79
      %p219 = pneg %p76
      %p220 = scmp.lt.s32.totalorder %s16, 1
      %s221 = scalar_select %p220, %s16, 1
      %s222 = scalar_lea.vmem %s3, %s221
      %p223 = pneg %p105
      %p224 = pneg %p102
      %p225 = scmp.lt.s32.totalorder %s16, 1
      %s226 = scalar_select %p225, %s16, 1
      %s227 = scalar_lea.vmem %s4, %s226
      %p228 = pneg %p131
      %p229 = pneg %p128
      %p230 = pneg %p157
      %p231 = pneg %p154
      %p232 = scmp.lt.s32.totalorder %s16, 1
      %s233 = scalar_select %p232, %s16, 1
      %s234 = smul.addr %s233, 32
      %s235 = smul.addr %s234, 8
      %s236 = scalar_lea.vmem %s5, %s235
      %p237 = scmp.lt.s32.totalorder %s16, 1
      %s238 = scalar_select %p237, %s16, 1
      %s239 = smul.addr %s238, 32
      %s240 = smul.addr %s239, 4
      %s241 = scalar_lea.vmem %s0, %s240
      %p242 = scmp.lt.s32.totalorder %s16, 1
      %s243 = scalar_select %p242, %s16, 1
      %s244 = scalar_lea.vmem %s3, %s243
      %p245 = scmp.lt.s32.totalorder %s16, 1
      %s246 = scalar_select %p245, %s16, 1
      %s247 = scalar_lea.vmem %s4, %s246
      %p248 = scmp.lt.s32.totalorder %s16, 1
      %s249 = scalar_select %p248, %s16, 1
      %s250 = smul.addr %s249, 32
      %s251 = smul.addr %s250, 8
      %s252 = scalar_lea.vmem %s5, %s251
      %v254 = vld [vmem:[%s241] sm:$0xf]
      %v255 = vld [vmem:[%s241 + $0x4] sm:$0xf]
      %v256 = vld [vmem:[%s241 + $0x8] sm:$0xf]
      %v257 = vld [vmem:[%s241 + $0xc] sm:$0xf]
      %v258 = vld [vmem:[%s241 + $0x10] sm:$0xf]
      %v259 = vld [vmem:[%s241 + $0x14] sm:$0xf]
      %v260 = vld [vmem:[%s241 + $0x18] sm:$0xf]
      %v261 = vld [vmem:[%s241 + $0x1c] sm:$0xf]
      %v262 = vld [vmem:[%s241 + $0x20] sm:$0xf]
      %v263 = vld [vmem:[%s241 + $0x24] sm:$0xf]
      %v264 = vld [vmem:[%s241 + $0x28] sm:$0xf]
      %v265 = vld [vmem:[%s241 + $0x2c] sm:$0xf]
      %v266 = vld [vmem:[%s241 + $0x30] sm:$0xf]
      %v267 = vld [vmem:[%s241 + $0x34] sm:$0xf]
      %v268 = vld [vmem:[%s241 + $0x38] sm:$0xf]
      %v269 = vld [vmem:[%s241 + $0x3c] sm:$0xf]
      %v270 = vld [vmem:[%s241 + $0x40] sm:$0xf]
      %v271 = vld [vmem:[%s241 + $0x44] sm:$0xf]
      %v272 = vld [vmem:[%s241 + $0x48] sm:$0xf]
      %v273 = vld [vmem:[%s241 + $0x4c] sm:$0xf]
      %v274 = vld [vmem:[%s241 + $0x50] sm:$0xf]
      %v275 = vld [vmem:[%s241 + $0x54] sm:$0xf]
      %v276 = vld [vmem:[%s241 + $0x58] sm:$0xf]
      %v277 = vld [vmem:[%s241 + $0x5c] sm:$0xf]
      %v278 = vld [vmem:[%s241 + $0x60] sm:$0xf]
      %v279 = vld [vmem:[%s241 + $0x64] sm:$0xf]
      %v280 = vld [vmem:[%s241 + $0x68] sm:$0xf]
      %v281 = vld [vmem:[%s241 + $0x6c] sm:$0xf]
      %v282 = vld [vmem:[%s241 + $0x70] sm:$0xf]
      %v283 = vld [vmem:[%s241 + $0x74] sm:$0xf]
      %v284 = vld [vmem:[%s241 + $0x78] sm:$0xf]
      %v285 = vld [vmem:[%s241 + $0x7c] sm:$0xf]
      %v286 = vld [vmem:[%s1] sm:$0xf]
      %v287 = vld [vmem:[%s1 + $0x4] sm:$0xf]
      %v288 = vld [vmem:[%s1 + $0x8] sm:$0xf]
      %v289 = vld [vmem:[%s1 + $0xc] sm:$0xf]
      %v290 = vld [vmem:[%s1 + $0x10] sm:$0xf]
      %v291 = vld [vmem:[%s1 + $0x14] sm:$0xf]
      %v292 = vld [vmem:[%s1 + $0x18] sm:$0xf]
      %v293 = vld [vmem:[%s1 + $0x1c] sm:$0xf]
      %v294 = vld [vmem:[%s1 + $0x20] sm:$0xf]
      %v295 = vld [vmem:[%s1 + $0x24] sm:$0xf]
      %v296 = vld [vmem:[%s1 + $0x28] sm:$0xf]
      %v297 = vld [vmem:[%s1 + $0x2c] sm:$0xf]
      %v298 = vld [vmem:[%s1 + $0x30] sm:$0xf]
      %v299 = vld [vmem:[%s1 + $0x34] sm:$0xf]
      %v300 = vld [vmem:[%s1 + $0x38] sm:$0xf]
      %v301 = vld [vmem:[%s1 + $0x3c] sm:$0xf]
      %v302 = vld [vmem:[%s2] sm:$0x1]
      %v304 = vlaneseq
      %v305 = vshrl.u32 %v304, 7
      %v306 = vsub.s32 0, %v305
      %v307 = vrot.slane %v302, %v306
      %v341 = vunpack.c.l.b16 %v254
      %v342 = vunpack.c.l.b16 %v255
      %v343 = vunpack.c.l.b16 %v256
      %v344 = vunpack.c.l.b16 %v257
      %v345 = vunpack.c.l.b16 %v258
      %v346 = vunpack.c.l.b16 %v259
      %v347 = vunpack.c.l.b16 %v260
      %v348 = vunpack.c.l.b16 %v261
      %v349 = vunpack.c.l.b16 %v262
      %v350 = vunpack.c.l.b16 %v263
      %v351 = vunpack.c.l.b16 %v264
      %v352 = vunpack.c.l.b16 %v265
      %v353 = vunpack.c.l.b16 %v266
      %v354 = vunpack.c.l.b16 %v267
      %v355 = vunpack.c.l.b16 %v268
      %v356 = vunpack.c.l.b16 %v269
      %v357 = vunpack.c.l.b16 %v270
      %v358 = vunpack.c.l.b16 %v271
      %v359 = vunpack.c.l.b16 %v272
      %v360 = vunpack.c.l.b16 %v273
      %v361 = vunpack.c.l.b16 %v274
      %v362 = vunpack.c.l.b16 %v275
      %v363 = vunpack.c.l.b16 %v276
      %v364 = vunpack.c.l.b16 %v277
      %v365 = vunpack.c.l.b16 %v278
      %v366 = vunpack.c.l.b16 %v279
      %v367 = vunpack.c.l.b16 %v280
      %v368 = vunpack.c.l.b16 %v281
      %v369 = vunpack.c.l.b16 %v282
      %v370 = vunpack.c.l.b16 %v283
      %v371 = vunpack.c.l.b16 %v284
      %v372 = vunpack.c.l.b16 %v285
      %v373 = vpack.c.b16 %v342, %v341
      %v374 = vpack.c.b16 %v344, %v343
      %v375 = vpack.c.b16 %v346, %v345
      %v376 = vpack.c.b16 %v348, %v347
      %v377 = vpack.c.b16 %v350, %v349
      %v378 = vpack.c.b16 %v352, %v351
      %v379 = vpack.c.b16 %v354, %v353
      %v380 = vpack.c.b16 %v356, %v355
      %v381 = vpack.c.b16 %v358, %v357
      %v382 = vpack.c.b16 %v360, %v359
      %v383 = vpack.c.b16 %v362, %v361
      %v384 = vpack.c.b16 %v364, %v363
      %v385 = vpack.c.b16 %v366, %v365
      %v386 = vpack.c.b16 %v368, %v367
      %v387 = vpack.c.b16 %v370, %v369
      %v388 = vpack.c.b16 %v372, %v371
      %v421 = vunpack.c.l.b16 %v286
      %v422 = vunpack.c.l.b16 %v287
      %v423 = vunpack.c.l.b16 %v288
      %v424 = vunpack.c.l.b16 %v289
      %v425 = vunpack.c.l.b16 %v290
      %v426 = vunpack.c.l.b16 %v291
      %v427 = vunpack.c.l.b16 %v292
      %v428 = vunpack.c.l.b16 %v293
      %v429 = vunpack.c.l.b16 %v294
      %v430 = vunpack.c.l.b16 %v295
      %v431 = vunpack.c.l.b16 %v296
      %v432 = vunpack.c.l.b16 %v297
      %v433 = vunpack.c.l.b16 %v298
      %v434 = vunpack.c.l.b16 %v299
      %v435 = vunpack.c.l.b16 %v300
      %v436 = vunpack.c.l.b16 %v301
      %v437 = vpack.c.b16 %v422, %v421
      %v438 = vpack.c.b16 %v424, %v423
      %v439 = vpack.c.b16 %v426, %v425
      %v440 = vpack.c.b16 %v428, %v427
      %v441 = vpack.c.b16 %v430, %v429
      %v442 = vpack.c.b16 %v432, %v431
      %v443 = vpack.c.b16 %v434, %v433
      %v444 = vpack.c.b16 %v436, %v435
      %453 = vmatprep.subr.bf16.mxu0 0
      %454 = vmatpush1.bf16.msra.mxu0 %v444
      %455 = vmatprep.subr.bf16.mxu0 0
      %456 = vmatpush1.bf16.msra.mxu0 %v443
      %457 = vmatprep.subr.bf16.mxu0 0
      %458 = vmatpush1.bf16.msra.mxu0 %v442
      %459 = vmatprep.subr.bf16.mxu0 0
      %460 = vmatpush1.bf16.msra.mxu0 %v441
      %461 = vmatprep.subr.bf16.mxu0 0
      %462 = vmatpush1.bf16.msra.mxu0 %v440
      %463 = vmatprep.subr.bf16.mxu0 0
      %464 = vmatpush1.bf16.msra.mxu0 %v439
      %465 = vmatprep.subr.bf16.mxu0 0
      %466 = vmatpush1.bf16.msra.mxu0 %v438
      %467 = vmatprep.subr.bf16.mxu0 0
      %468 = vmatpush1.bf16.msra.mxu0 %v437
      %469 = vmatprep.subr.bf16.mxu0 0
      %470 = vmatpush2.bf16.msra.mxu0 0
      %471 = vmatprep.subr.bf16.mxu0 0
      %472 = vmatpush2.bf16.msra.mxu0 0
      %473 = vmatprep.subr.bf16.mxu0 0
      %474 = vmatpush2.bf16.msra.mxu0 0
      %475 = vmatprep.subr.bf16.mxu0 0
      %476 = vmatpush2.bf16.msra.mxu0 0
      %477 = vmatprep.subr.bf16.mxu0 0
      %478 = vmatpush2.bf16.msra.mxu0 0
      %479 = vmatprep.subr.bf16.mxu0 0
      %480 = vmatpush2.bf16.msra.mxu0 0
      %481 = vmatprep.subr.bf16.mxu0 0
      %482 = vmatpush2.bf16.msra.mxu0 0
      %483 = vmatprep.subr.bf16.mxu0 0
      %484 = vmatpush2.bf16.msra.mxu0 0
      %485 = vmatprep.mubr.bf16.mxu0 0
      %486 = vmatmul.mubr.bf16.gmra.mxu0 %v373
      %v487 = vpop.f32.mrf.mxu0
      %v488 = vadd.f32 %v307, %v487
      %v489 = vpop.f32.mrf.mxu0
      %v490 = vpop.f32.mrf.mxu0
      %v491 = vadd.f32 %v307, %v490
      %v492 = vpop.f32.mrf.mxu0
      %493 = vmatprep.mubr.bf16.mxu0 0
      %494 = vmatmul.mubr.bf16.gmra.mxu0 %v374
      %v495 = vpop.f32.mrf.mxu0
      %v496 = vadd.f32 %v307, %v495
      %v497 = vpop.f32.mrf.mxu0
      %v498 = vpop.f32.mrf.mxu0
      %v499 = vadd.f32 %v307, %v498
      %v500 = vpop.f32.mrf.mxu0
      %501 = vmatprep.mubr.bf16.mxu0 0
      %502 = vmatmul.mubr.bf16.gmra.mxu0 %v375
      %v503 = vpop.f32.mrf.mxu0
      %v504 = vadd.f32 %v307, %v503
      %v505 = vpop.f32.mrf.mxu0
      %v506 = vpop.f32.mrf.mxu0
      %v507 = vadd.f32 %v307, %v506
      %v508 = vpop.f32.mrf.mxu0
      %509 = vmatprep.mubr.bf16.mxu0 0
      %510 = vmatmul.mubr.bf16.gmra.mxu0 %v376
      %v511 = vpop.f32.mrf.mxu0
      %v512 = vadd.f32 %v307, %v511
      %v513 = vpop.f32.mrf.mxu0
      %v514 = vpop.f32.mrf.mxu0
      %v515 = vadd.f32 %v307, %v514
      %v516 = vpop.f32.mrf.mxu0
      %517 = vmatprep.mubr.bf16.mxu0 0
      %518 = vmatmul.mubr.bf16.gmra.mxu0 %v377
      %v519 = vpop.f32.mrf.mxu0
      %v520 = vadd.f32 %v307, %v519
      %v521 = vpop.f32.mrf.mxu0
      %v522 = vpop.f32.mrf.mxu0
      %v523 = vadd.f32 %v307, %v522
      %v524 = vpop.f32.mrf.mxu0
      %525 = vmatprep.mubr.bf16.mxu0 0
      %526 = vmatmul.mubr.bf16.gmra.mxu0 %v378
      %v527 = vpop.f32.mrf.mxu0
      %v528 = vadd.f32 %v307, %v527
      %v529 = vpop.f32.mrf.mxu0
      %v530 = vpop.f32.mrf.mxu0
      %v531 = vadd.f32 %v307, %v530
      %v532 = vpop.f32.mrf.mxu0
      %533 = vmatprep.mubr.bf16.mxu0 0
      %534 = vmatmul.mubr.bf16.gmra.mxu0 %v379
      %v535 = vpop.f32.mrf.mxu0
      %v536 = vadd.f32 %v307, %v535
      %v537 = vpop.f32.mrf.mxu0
      %v538 = vpop.f32.mrf.mxu0
      %v539 = vadd.f32 %v307, %v538
      %v540 = vpop.f32.mrf.mxu0
      %541 = vmatprep.mubr.bf16.mxu0 0
      %542 = vmatmul.mubr.bf16.gmra.mxu0 %v380
      %v543 = vpop.f32.mrf.mxu0
      %v544 = vadd.f32 %v307, %v543
      %v545 = vpop.f32.mrf.mxu0
      %v546 = vpop.f32.mrf.mxu0
      %v547 = vadd.f32 %v307, %v546
      %v548 = vpop.f32.mrf.mxu0
      %549 = vmatprep.mubr.bf16.mxu0 0
      %550 = vmatmul.mubr.bf16.gmra.mxu0 %v381
      %v551 = vpop.f32.mrf.mxu0
      %v552 = vadd.f32 %v307, %v551
      %v553 = vpop.f32.mrf.mxu0
      %v554 = vpop.f32.mrf.mxu0
      %v555 = vadd.f32 %v307, %v554
      %v556 = vpop.f32.mrf.mxu0
      %557 = vmatprep.mubr.bf16.mxu0 0
      %558 = vmatmul.mubr.bf16.gmra.mxu0 %v382
      %v559 = vpop.f32.mrf.mxu0
      %v560 = vadd.f32 %v307, %v559
      %v561 = vpop.f32.mrf.mxu0
      %v562 = vpop.f32.mrf.mxu0
      %v563 = vadd.f32 %v307, %v562
      %v564 = vpop.f32.mrf.mxu0
      %565 = vmatprep.mubr.bf16.mxu0 0
      %566 = vmatmul.mubr.bf16.gmra.mxu0 %v383
      %v567 = vpop.f32.mrf.mxu0
      %v568 = vadd.f32 %v307, %v567
      %v569 = vpop.f32.mrf.mxu0
      %v570 = vpop.f32.mrf.mxu0
      %v571 = vadd.f32 %v307, %v570
      %v572 = vpop.f32.mrf.mxu0
      %573 = vmatprep.mubr.bf16.mxu0 0
      %574 = vmatmul.mubr.bf16.gmra.mxu0 %v384
      %v575 = vpop.f32.mrf.mxu0
      %v576 = vadd.f32 %v307, %v575
      %v577 = vpop.f32.mrf.mxu0
      %v578 = vpop.f32.mrf.mxu0
      %v579 = vadd.f32 %v307, %v578
      %v580 = vpop.f32.mrf.mxu0
      %581 = vmatprep.mubr.bf16.mxu0 0
      %582 = vmatmul.mubr.bf16.gmra.mxu0 %v385
      %v583 = vpop.f32.mrf.mxu0
      %v584 = vadd.f32 %v307, %v583
      %v585 = vpop.f32.mrf.mxu0
      %v586 = vpop.f32.mrf.mxu0
      %v587 = vadd.f32 %v307, %v586
      %v588 = vpop.f32.mrf.mxu0
      %589 = vmatprep.mubr.bf16.mxu0 0
      %590 = vmatmul.mubr.bf16.gmra.mxu0 %v386
      %v591 = vpop.f32.mrf.mxu0
      %v592 = vadd.f32 %v307, %v591
      %v593 = vpop.f32.mrf.mxu0
      %v594 = vpop.f32.mrf.mxu0
      %v595 = vadd.f32 %v307, %v594
      %v596 = vpop.f32.mrf.mxu0
      %597 = vmatprep.mubr.bf16.mxu0 0
      %598 = vmatmul.mubr.bf16.gmra.mxu0 %v387
      %v599 = vpop.f32.mrf.mxu0
      %v600 = vadd.f32 %v307, %v599
      %v601 = vpop.f32.mrf.mxu0
      %v602 = vpop.f32.mrf.mxu0
      %v603 = vadd.f32 %v307, %v602
      %v604 = vpop.f32.mrf.mxu0
      %605 = vmatprep.mubr.bf16.mxu0 0
      %606 = vmatmul.mubr.bf16.gmra.mxu0 %v388
      %v607 = vpop.f32.mrf.mxu0
      %v608 = vadd.f32 %v307, %v607
      %v609 = vpop.f32.mrf.mxu0
      %v610 = vpop.f32.mrf.mxu0
      %v611 = vadd.f32 %v307, %v610
      %v612 = vpop.f32.mrf.mxu0
      %613 = vdwg.mxu0
      %v614 = vld [vmem:[%s247] sm:$0x1]
      %s615 = vtos %v614
      %v616 = vstv %s615
      %v617 = vmul.f32 %v488, %v616
      %v618 = vmul.f32 %v491, %v616
      %v619 = vmul.f32 %v496, %v616
      %v620 = vmul.f32 %v499, %v616
      %v621 = vmul.f32 %v504, %v616
      %v622 = vmul.f32 %v507, %v616
      %v623 = vmul.f32 %v512, %v616
      %v624 = vmul.f32 %v515, %v616
      %v625 = vmul.f32 %v520, %v616
      %v626 = vmul.f32 %v523, %v616
      %v627 = vmul.f32 %v528, %v616
      %v628 = vmul.f32 %v531, %v616
      %v629 = vmul.f32 %v536, %v616
      %v630 = vmul.f32 %v539, %v616
      %v631 = vmul.f32 %v544, %v616
      %v632 = vmul.f32 %v547, %v616
      %v633 = vmul.f32 %v552, %v616
      %v634 = vmul.f32 %v555, %v616
      %v635 = vmul.f32 %v560, %v616
      %v636 = vmul.f32 %v563, %v616
      %v637 = vmul.f32 %v568, %v616
      %v638 = vmul.f32 %v571, %v616
      %v639 = vmul.f32 %v576, %v616
      %v640 = vmul.f32 %v579, %v616
      %v641 = vmul.f32 %v584, %v616
      %v642 = vmul.f32 %v587, %v616
      %v643 = vmul.f32 %v592, %v616
      %v644 = vmul.f32 %v595, %v616
      %v645 = vmul.f32 %v600, %v616
      %v646 = vmul.f32 %v603, %v616
      %v647 = vmul.f32 %v608, %v616
      %v648 = vmul.f32 %v611, %v616
      %v649 = vld [vmem:[%s244] sm:$0x1]
      %s650 = vtos %v649
      %v651 = vstv %s650
      %v652 = vadd.f32 %v617, %v651
      %v653 = vadd.f32 %v618, %v651
      %v654 = vadd.f32 %v619, %v651
      %v655 = vadd.f32 %v620, %v651
      %v656 = vadd.f32 %v621, %v651
      %v657 = vadd.f32 %v622, %v651
      %v658 = vadd.f32 %v623, %v651
      %v659 = vadd.f32 %v624, %v651
      %v660 = vadd.f32 %v625, %v651
      %v661 = vadd.f32 %v626, %v651
      %v662 = vadd.f32 %v627, %v651
      %v663 = vadd.f32 %v628, %v651
      %v664 = vadd.f32 %v629, %v651
      %v665 = vadd.f32 %v630, %v651
      %v666 = vadd.f32 %v631, %v651
      %v667 = vadd.f32 %v632, %v651
      %v668 = vadd.f32 %v633, %v651
      %v669 = vadd.f32 %v634, %v651
      %v670 = vadd.f32 %v635, %v651
      %v671 = vadd.f32 %v636, %v651
      %v672 = vadd.f32 %v637, %v651
      %v673 = vadd.f32 %v638, %v651
      %v674 = vadd.f32 %v639, %v651
      %v675 = vadd.f32 %v640, %v651
      %v676 = vadd.f32 %v641, %v651
      %v677 = vadd.f32 %v642, %v651
      %v678 = vadd.f32 %v643, %v651
      %v679 = vadd.f32 %v644, %v651
      %v680 = vadd.f32 %v645, %v651
      %v681 = vadd.f32 %v646, %v651
      %v682 = vadd.f32 %v647, %v651
      %v683 = vadd.f32 %v648, %v651
      %684 = vst [vmem:[%s252] sm:$0xff] %v652
      %685 = vst [vmem:[%s252 + $0x8] sm:$0xff] %v653
      %686 = vst [vmem:[%s252 + $0x10] sm:$0xff] %v654
      %687 = vst [vmem:[%s252 + $0x18] sm:$0xff] %v655
      %688 = vst [vmem:[%s252 + $0x20] sm:$0xff] %v656
      %689 = vst [vmem:[%s252 + $0x28] sm:$0xff] %v657
      %690 = vst [vmem:[%s252 + $0x30] sm:$0xff] %v658
      %691 = vst [vmem:[%s252 + $0x38] sm:$0xff] %v659
      %692 = vst [vmem:[%s252 + $0x40] sm:$0xff] %v660
      %693 = vst [vmem:[%s252 + $0x48] sm:$0xff] %v661
      %694 = vst [vmem:[%s252 + $0x50] sm:$0xff] %v662
      %695 = vst [vmem:[%s252 + $0x58] sm:$0xff] %v663
      %696 = vst [vmem:[%s252 + $0x60] sm:$0xff] %v664
      %697 = vst [vmem:[%s252 + $0x68] sm:$0xff] %v665
      %698 = vst [vmem:[%s252 + $0x70] sm:$0xff] %v666
      %699 = vst [vmem:[%s252 + $0x78] sm:$0xff] %v667
      %700 = vst [vmem:[%s252 + $0x80] sm:$0xff] %v668
      %701 = vst [vmem:[%s252 + $0x88] sm:$0xff] %v669
      %702 = vst [vmem:[%s252 + $0x90] sm:$0xff] %v670
      %703 = vst [vmem:[%s252 + $0x98] sm:$0xff] %v671
      %704 = vst [vmem:[%s252 + $0xa0] sm:$0xff] %v672
      %705 = vst [vmem:[%s252 + $0xa8] sm:$0xff] %v673
      %706 = vst [vmem:[%s252 + $0xb0] sm:$0xff] %v674
      %707 = vst [vmem:[%s252 + $0xb8] sm:$0xff] %v675
      %708 = vst [vmem:[%s252 + $0xc0] sm:$0xff] %v676
      %709 = vst [vmem:[%s252 + $0xc8] sm:$0xff] %v677
      %710 = vst [vmem:[%s252 + $0xd0] sm:$0xff] %v678
      %711 = vst [vmem:[%s252 + $0xd8] sm:$0xff] %v679
      %712 = vst [vmem:[%s252 + $0xe0] sm:$0xff] %v680
      %713 = vst [vmem:[%s252 + $0xe8] sm:$0xff] %v681
      %714 = vst [vmem:[%s252 + $0xf0] sm:$0xff] %v682
      %715 = vst [vmem:[%s252 + $0xf8] sm:$0xff] %v683
      %p716 = scmp.lt.s32.totalorder %s16, 1
      %s717 = scalar_select %p716, %s16, 1
      %s718 = smul.addr %s717, 32
      %s719 = smul.addr %s718, 8
      %s720 = scalar_lea.vmem %s5, %s719
      // Predicated region
      $region41: #{unet_forward.33} parent=39 // pred_check
        %p721 = pneg %p154
      $region42: #{unet_forward.33} parent=39 // pred_check_branch
        %723 = sbr.rel (%p721) target = $region44
      $region43: #{unet_forward.33} parent=39 // pred_region
        _
      $region44: #{unet_forward.33} parent=39 // pred_fallthru
        _
    $region40: #{unet_forward.33} parent=5 // pred_fallthru
      _
    %p724 = scmp.le.s32.totalorder 2, %s11
    // Predicated region
    $region45: #{unet_forward.33} parent=5 // pred_check
      %p725 = pneg %p724
    $region46: #{unet_forward.33} parent=5 // pred_check_branch
      %727 = sbr.rel (%p725) target = $region48
    $region47: #{unet_forward.33} parent=5 // pred_region
      %s728 = ssub.s32 %s11, 2
      // Predicated region
      $region49: #{unet_forward.33} parent=47 // pred_check
        %p729 = pneg %p160
      $region50: #{unet_forward.33} parent=47 // pred_check_branch
        %731 = sbr.rel (%p729) target = $region52
      $region51: #{unet_forward.33} parent=47 // pred_region
        %p732 = scmp.lt.s32.totalorder %s17, 1
        %s733 = scalar_select %p732, %s17, 1
        %s734 = smul.addr %s733, 32
        %s735 = smul.addr %s734, 8
        %s736 = scalar_lea.vmem %s5, %s735
      $region52: #{unet_forward.33} parent=47 // pred_fallthru
        _
    $region48: #{unet_forward.33} parent=5 // pred_fallthru
      _
  $region6: #{unet_forward.33} parent=0 // loop_footer
    %s15 = sadd.s32 1, %s11
  $region7: #{unet_forward.33} parent=0 // loop_footer_branch
    %10 = sbr.rel target = $region3
  $region8: #{unet_forward.33} parent=0 // loop_exit
    _

</llo_original>
